<compile_context>
chip_gen: v7x
topology: tpu7x:2x2x1
jax: 0.10.0
libtpu: 0.0.40
codegen_flags: <defaults>
</compile_context>

<pallas_src>
import functools
import math

import jax
import jax.numpy as jnp
import numpy as np
from jax.experimental import pallas as pl
from jax.experimental.pallas import tpu as pltpu

VMEM = pl.BlockSpec(memory_space=pltpu.MemorySpace.VMEM)


# ---------------------------------------------------------------------------
# The fused kernel: biGRU(2 layers) -> MHA -> TextCNN -> fc1/ReLU/BN/fc2.
# refs = [x,
#         (wih, whh, bih, bhhn) * num_layers,          # direction-stacked, packed
#         wqkv, bqkv, wo, bo,                          # stream-block-packed
#         (conv_w, conv_b) * len(ksizes),              # stream-duplicated blocks
#         w1p, b1, w2, b2,                             # head (BN folded in w2/b2)
#         out,                                         # (B, output_size)
#         seq_scratch]                                 # (S*B, 4H) VMEM
# ---------------------------------------------------------------------------
def _mjnet_kernel(*refs, S, B, H, num_heads, num_layers, ksizes, C):
    f32 = jnp.float32
    H2 = 2 * H            # two streams packed, per direction
    E = 2 * H             # per-stream embedding width
    E2 = 2 * E            # both streams packed
    SB = S * B
    hd = E // num_heads
    G = 2 * num_heads     # (stream, head) attention groups

    idx = 0
    x_ref = refs[idx]; idx += 1
    gru_refs = refs[idx:idx + 4 * num_layers]; idx += 4 * num_layers
    wqkv_ref, bqkv_ref, wo_ref, bo_ref = refs[idx:idx + 4]; idx += 4
    conv_refs = refs[idx:idx + 2 * len(ksizes)]; idx += 2 * len(ksizes)
    w1p_ref, b1_ref, w2_ref, b2_ref = refs[idx:idx + 4]; idx += 4
    out_ref = refs[idx]
    seq_ref = refs[idx + 1]            # (S*B, E2): packed biGRU layer output

    # ------------- bidirectional GRU, both streams fused per direction -----
    def gru_layer(x_pack, wih_ref, whh_ref, bih_ref, bhhn_ref):
        # Input-side gates for every timestep: one matmul per direction
        # (streams live in the K/N dims via block-diagonal packing).
        xg_f = jnp.dot(x_pack, wih_ref[0], preferred_element_type=f32) + bih_ref[0]
        xg_b = jnp.dot(x_pack, wih_ref[1], preferred_element_type=f32) + bih_ref[1]
        whh_f, whh_b = whh_ref[0], whh_ref[1]
        bn_f, bn_b = bhhn_ref[0], bhhn_ref[1]

        def gate(gx, gh, h, bn):            # PyTorch gate order [r, z, n]
            r = jax.nn.sigmoid(gx[:, 0:H2] + gh[:, 0:H2])
            z = jax.nn.sigmoid(gx[:, H2:2 * H2] + gh[:, H2:2 * H2])
            n = jnp.tanh(gx[:, 2 * H2:3 * H2] + r * (gh[:, 2 * H2:3 * H2] + bn))
            return (1.0 - z) * n + z * h

        h_f = jnp.zeros((B, H2), f32)
        h_b = jnp.zeros((B, H2), f32)
        # Fully unrolled recurrence (S is a tiny static constant); every slice
        # offset is static, equivalent to lax.fori_loop(..., unroll=True).
        for s in range(S):
            t_r = S - 1 - s
            gh_f = jnp.dot(h_f, whh_f, preferred_element_type=f32)
            gh_b = jnp.dot(h_b, whh_b, preferred_element_type=f32)
            h_f = gate(xg_f[s * B:(s + 1) * B], gh_f, h_f, bn_f)
            h_b = gate(xg_b[t_r * B:(t_r + 1) * B], gh_b, h_b, bn_b)
            seq_ref[s * B:(s + 1) * B, 0:H2] = h_f
            seq_ref[t_r * B:(t_r + 1) * B, H2:2 * H2] = h_b

    layer_in = x_ref[...]                                # (S*B, 2*input_size)
    for l in range(num_layers):
        wih_r, whh_r, bih_r, bhhn_r = gru_refs[4 * l:4 * l + 4]
        gru_layer(layer_in, wih_r, whh_r, bih_r, bhhn_r)
        # eval mode: inter-layer GRU dropout = identity.  The read below is
        # traced before the next layer's stores, so the in-place reuse of
        # seq_ref is well ordered.
        layer_in = seq_ref[...]                          # (S*B, E2)
    emb = layer_in

    # -------- multi-head self-attention: batch rows + heads batched --------
    qkv = jnp.dot(emb, wqkv_ref[...], preferred_element_type=f32) + bqkv_ref[...]
    q = qkv[:, 0:E2] * (1.0 / math.sqrt(hd))
    k = qkv[:, E2:2 * E2]
    v = qkv[:, 2 * E2:3 * E2]
    # Rows are (time-major, batch-minor): row = s*B + b.  One (SB, SB) score
    # matmul per (stream, head) group with cross-batch entries masked replaces
    # B * num_heads tiny per-row matmuls + per-row heads concatenation.
    rb = jax.lax.broadcasted_iota(jnp.int32, (SB, SB), 0) % B
    cbi = jax.lax.broadcasted_iota(jnp.int32, (SB, SB), 1) % B
    mask = jnp.where(rb == cbi, 0.0, -1e30).astype(f32)

    wo = wo_ref[...]
    attn = jnp.zeros((SB, E2), f32)
    for g in range(G):
        sl = slice(g * hd, (g + 1) * hd)
        sc = jax.lax.dot_general(q[:, sl], k[:, sl], (((1,), (1,)), ((), ())),
                                 preferred_element_type=f32) + mask
        sc = sc - jnp.max(sc, axis=-1, keepdims=True)
        p = jnp.exp(sc)
        p = p / jnp.sum(p, axis=-1, keepdims=True)       # attn dropout = id (eval)
        og = jnp.dot(p, v[:, sl], preferred_element_type=f32)       # (SB, hd)
        # accumulate straight into the block-diagonal output projection
        attn = attn + jnp.dot(og, wo[g * hd:(g + 1) * hd, :],
                              preferred_element_type=f32)
    attn = attn + bo_ref[...]                            # (SB, E2) = [m | mi]

    # -------- TextCNN (shared weights; streams + batch + taps batched) -----
    # Tap-wise matmul-accumulate == im2col along the contraction dim without
    # materializing the im2col buffer; output channels (2C) are lane-dense.
    h1 = jnp.zeros((B, b1_ref.shape[-1]), f32) + b1_ref[...]
    for ki, ksz in enumerate(ksizes):
        L = S - ksz + 1
        cw_ref = conv_refs[2 * ki]
        cb_ref = conv_refs[2 * ki + 1]
        acc = jnp.zeros((L * B, 2 * C), f32)
        for j in range(ksz):
            acc = acc + jnp.dot(attn[j * B:(j + L) * B, :], cw_ref[j],
                                preferred_element_type=f32)
        acc = jnp.maximum(acc + cb_ref[...], 0.0)
        pooled = acc[0:B]
        for t in range(1, L):                            # max over time
            pooled = jnp.maximum(pooled, acc[t * B:(t + 1) * B])
        # fc1 accumulated per feature block (pooled-feature dropout = id, eval),
        # so the (B, 768) feature concat is never materialized.
        h1 = h1 + jnp.dot(pooled, w1p_ref[ki], preferred_element_type=f32)

    # -------- head: fc1 -> dropout(id) -> ReLU -> BN(eval) -> fc2 ----------
    h1 = jnp.maximum(h1, 0.0)
    # BatchNorm1d (eval, running stats) is folded into w2/b2 on the host.
    out_ref[...] = jnp.dot(h1, w2_ref[...], preferred_element_type=f32) + b2_ref[...]


# ---------------------------------------------------------------------------
# Wrapper: exactly one pallas_call for the whole forward pass.
# ---------------------------------------------------------------------------
def mjnet_forward(packed, C2_m, C2_mi, *, hidden_size, num_heads,
                  cnn_channels=128, kernel_sizes=(3, 5, 7)):
    B, S, Din = C2_m.shape
    # Stream packing + time-major relayout happens here in XLA (free at these
    # sizes); the kernel performs no transposes / reshapes / concatenates.
    x = jnp.concatenate([C2_m, C2_mi], axis=-1)          # (B, S, 2*Din)
    x = jnp.transpose(x, (1, 0, 2)).reshape(S * B, 2 * Din)

    gp, ap, cp, hp = packed["gru"], packed["attn"], packed["cnn"], packed["head"]
    args = [x]
    for lp in gp:
        args += [lp["wih"], lp["whh"], lp["bih"], lp["bhhn"]]
    args += [ap["wqkv"], ap["bqkv"], ap["wo"], ap["bo"]]
    for conv in cp:
        args += [conv["w"], conv["b"]]
    args += [hp["w1p"], hp["b1"], hp["w2"], hp["b2"]]

    out_size = hp["b2"].shape[-1]
    kernel = functools.partial(
        _mjnet_kernel, S=S, B=B, H=hidden_size, num_heads=num_heads,
        num_layers=len(gp), ksizes=tuple(kernel_sizes), C=cnn_channels)
    return pl.pallas_call(
        kernel,
        out_shape=jax.ShapeDtypeStruct((B, out_size), jnp.float32),
        in_specs=[VMEM] * len(args),
        out_specs=VMEM,
        scratch_shapes=[pltpu.VMEM((S * B, 4 * hidden_size), jnp.float32)],
    )(*args)


# ---------------------------------------------------------------------------
# Deterministic PyTorch-layout parameter construction (shapes as in
# MJnet.__init__) and host-side packing into the fused-kernel layouts.
# ---------------------------------------------------------------------------
def init_params(key, input_size, hidden_size, num_layers, num_heads, output_size,
                cnn_channels=128, kernel_sizes=(3, 5, 7)):
    H = hidden_size
    E = 2 * H
    keys = iter(jax.random.split(key, 512))

    def u(shape, scale):
        return np.asarray(jax.random.uniform(next(keys), shape, jnp.float32,
                                             -scale, scale))

    s_gru = 1.0 / math.sqrt(H)
    gru = []                                   # gru[stream][layer][dir]
    for st in range(2):
        layers = []
        for l in range(num_layers):
            din = input_size if l == 0 else E
            dirs = []
            for d in range(2):
                dirs.append(dict(w_ih=u((3 * H, din), s_gru),
                                 w_hh=u((3 * H, H), s_gru),
                                 b_ih=u((3 * H,), s_gru),
                                 b_hh=u((3 * H,), s_gru)))
            layers.append(dirs)
        gru.append(layers)

    s_attn = 1.0 / math.sqrt(E)
    attn = []
    for st in range(2):
        attn.append(dict(in_w=u((3 * E, E), s_attn),
                         in_b=np.zeros((3 * E,), np.float32),
                         out_w=u((E, E), s_attn),
                         out_b=np.zeros((E,), np.float32)))

    cnn = []
    for k in kernel_sizes:
        s_c = 1.0 / math.sqrt(E * k)
        cnn.append(dict(w=u((cnn_channels, E, k), s_c),
                        b=u((cnn_channels,), s_c)))

    in_head = 2 * len(kernel_sizes) * cnn_channels        # 768
    s1 = 1.0 / math.sqrt(in_head)
    s2 = 1.0 / math.sqrt(cnn_channels)
    head = dict(fc1_w=u((cnn_channels, in_head), s1), fc1_b=u((cnn_channels,), s1),
                bn_gamma=np.ones((cnn_channels,), np.float32),
                bn_beta=np.zeros((cnn_channels,), np.float32),
                bn_mean=np.zeros((cnn_channels,), np.float32),
                bn_var=np.ones((cnn_channels,), np.float32),
                fc2_w=u((output_size, cnn_channels), s2),
                fc2_b=u((output_size,), s2))
    return dict(gru=gru, attn=attn, cnn=cnn, head=head)


def prepare_params(p, input_size, hidden_size, num_heads,
                   cnn_channels=128, kernel_sizes=(3, 5, 7)):
    """Pack per-stream / per-direction PyTorch-layout params into the
    block-diagonal, pre-transposed layouts the fused kernel consumes."""
    H = hidden_size
    H2 = 2 * H
    E = 2 * H
    E2 = 2 * E
    C = cnn_channels
    num_layers = len(p["gru"][0])

    def emb_rows(st):
        # packed biGRU-output columns of stream `st`: [fwd(H), bwd(H)]
        return np.concatenate([np.arange(st * H, (st + 1) * H),
                               np.arange(2 * H + st * H, 2 * H + (st + 1) * H)])

    # ---- GRU: stack directions, block-pack streams, fold r/z parts of b_hh -
    gru_packed = []
    for l in range(num_layers):
        in_pack = 2 * input_size if l == 0 else E2
        wih = np.zeros((2, in_pack, 3 * H2), np.float32)
        whh = np.zeros((2, H2, 3 * H2), np.float32)
        bih = np.zeros((2, 1, 3 * H2), np.float32)
        bhhn = np.zeros((2, 1, H2), np.float32)
        for d in range(2):                      # 0 = forward, 1 = backward
            for st in range(2):                 # 0 = m, 1 = mi
                lp = p["gru"][st][l][d]
                rows = (np.arange(st * input_size, (st + 1) * input_size)
                        if l == 0 else emb_rows(st))
                for q in range(3):              # gate order [r, z, n]
                    c0 = q * H2 + st * H
                    cols = np.arange(c0, c0 + H)
                    wih[d][rows[:, None], cols[None, :]] = \
                        lp["w_ih"][q * H:(q + 1) * H, :].T
                    whh[d, st * H:(st + 1) * H, c0:c0 + H] = \
                        lp["w_hh"][q * H:(q + 1) * H, :].T
                    b = lp["b_ih"][q * H:(q + 1) * H]
                    if q < 2:                   # b_hh of r/z always adds
                        b = b + lp["b_hh"][q * H:(q + 1) * H]
                    bih[d, 0, c0:c0 + H] = b
                bhhn[d, 0, st * H:(st + 1) * H] = lp["b_hh"][2 * H:3 * H]
        gru_packed.append(dict(wih=jnp.asarray(wih), whh=jnp.asarray(whh),
                               bih=jnp.asarray(bih), bhhn=jnp.asarray(bhhn)))

    # ---- attention: per-stream in_proj / out_proj block-stacked ------------
    wqkv = np.zeros((E2, 3 * E2), np.float32)
    bqkv = np.zeros((1, 3 * E2), np.float32)
    wo = np.zeros((E2, E2), np.float32)
    bo = np.zeros((1, E2), np.float32)
    for st in range(2):
        ap = p["attn"][st]
        rows = emb_rows(st)
        for r in range(3):                      # Q, K, V regions
            c0 = r * E2 + st * E
            cols = np.arange(c0, c0 + E)
            wqkv[rows[:, None], cols[None, :]] = ap["in_w"][r * E:(r + 1) * E, :].T
            bqkv[0, c0:c0 + E] = ap["in_b"][r * E:(r + 1) * E]
        wo[st * E:(st + 1) * E, st * E:(st + 1) * E] = ap["out_w"].T
        bo[0, st * E:(st + 1) * E] = ap["out_b"]

    # ---- TextCNN: shared weights duplicated on the two stream blocks -------
    convs = []
    for ci, k in enumerate(kernel_sizes):
        cw_t = p["cnn"][ci]
        cw = np.zeros((k, E2, 2 * C), np.float32)
        for j in range(k):
            wj = cw_t["w"][:, :, j].T           # (E, C)
            cw[j, 0:E, 0:C] = wj
            cw[j, E:2 * E, C:2 * C] = wj
        cb = np.concatenate([cw_t["b"], cw_t["b"]])[None, :]
        convs.append(dict(w=jnp.asarray(cw), b=jnp.asarray(cb)))

    # ---- head: fc1 rows regrouped per kernel-size block; BN folded into fc2
    hp = p["head"]
    nks = len(kernel_sizes)
    w1t = hp["fc1_w"].T                         # (2*nks*C, 128)
    fc1_out = hp["fc1_b"].shape[0]
    w1p = np.zeros((nks, 2 * C, fc1_out), np.float32)
    for ki in range(nks):
        w1p[ki, 0:C] = w1t[ki * C:(ki + 1) * C]                          # m
        w1p[ki, C:2 * C] = w1t[nks * C + ki * C:nks * C + (ki + 1) * C]  # mi
    scale = hp["bn_gamma"] / np.sqrt(hp["bn_var"] + 1e-5)
    shift = hp["bn_beta"] - hp["bn_mean"] * scale
    w2_eff = scale[:, None] * hp["fc2_w"].T     # (128, out)
    b2_eff = (shift @ hp["fc2_w"].T + hp["fc2_b"])[None, :]
    head = dict(w1p=jnp.asarray(w1p), b1=jnp.asarray(hp["fc1_b"][None, :]),
                w2=jnp.asarray(w2_eff), b2=jnp.asarray(b2_eff))

    return dict(gru=gru_packed,
                attn=dict(wqkv=jnp.asarray(wqkv), bqkv=jnp.asarray(bqkv),
                          wo=jnp.asarray(wo), bo=jnp.asarray(bo)),
                cnn=convs, head=head)


if __name__ == "__main__":
    INPUT_SIZE, HIDDEN_SIZE, NUM_LAYERS, NUM_HEADS, OUTPUT_SIZE = 16, 16, 2, 4, 8
    B, S = 2, 8            # S >= 7 so the k=7 conv has a valid output length

    key = jax.random.PRNGKey(0)
    kp, kx, ky = jax.random.split(key, 3)
    torch_like = init_params(kp, INPUT_SIZE, HIDDEN_SIZE, NUM_LAYERS, NUM_HEADS,
                             OUTPUT_SIZE)
    packed = prepare_params(torch_like, INPUT_SIZE, HIDDEN_SIZE, NUM_HEADS)

    C2_m = jax.random.normal(kx, (B, S, INPUT_SIZE), jnp.float32)
    C2_mi = jax.random.normal(ky, (B, S, INPUT_SIZE), jnp.float32)

    fwd = jax.jit(functools.partial(mjnet_forward, hidden_size=HIDDEN_SIZE,
                                    num_heads=NUM_HEADS))
    out = fwd(packed, C2_m, C2_mi)
    jax.block_until_ready(out)
    assert out.shape == (B, OUTPUT_SIZE) and out.dtype == jnp.float32
    assert bool(jnp.all(jnp.isfinite(out)))
    print("KERNEL_OK")
</pallas_src>

<mosaic_0001>
module attributes {stable_mosaic.version = 11 : i64} {
  func.func @_mjnet_kernel(%arg0: memref<16x32xf32, #tpu.memory_space<vmem>>, %arg1: memref<2x32x96xf32, #tpu.memory_space<vmem>>, %arg2: memref<2x32x96xf32, #tpu.memory_space<vmem>>, %arg3: memref<2x1x96xf32, #tpu.memory_space<vmem>>, %arg4: memref<2x1x32xf32, #tpu.memory_space<vmem>>, %arg5: memref<2x64x96xf32, #tpu.memory_space<vmem>>, %arg6: memref<2x32x96xf32, #tpu.memory_space<vmem>>, %arg7: memref<2x1x96xf32, #tpu.memory_space<vmem>>, %arg8: memref<2x1x32xf32, #tpu.memory_space<vmem>>, %arg9: memref<64x192xf32, #tpu.memory_space<vmem>>, %arg10: memref<1x192xf32, #tpu.memory_space<vmem>>, %arg11: memref<64x64xf32, #tpu.memory_space<vmem>>, %arg12: memref<1x64xf32, #tpu.memory_space<vmem>>, %arg13: memref<3x64x256xf32, #tpu.memory_space<vmem>>, %arg14: memref<1x256xf32, #tpu.memory_space<vmem>>, %arg15: memref<5x64x256xf32, #tpu.memory_space<vmem>>, %arg16: memref<1x256xf32, #tpu.memory_space<vmem>>, %arg17: memref<7x64x256xf32, #tpu.memory_space<vmem>>, %arg18: memref<1x256xf32, #tpu.memory_space<vmem>>, %arg19: memref<3x256x128xf32, #tpu.memory_space<vmem>>, %arg20: memref<1x128xf32, #tpu.memory_space<vmem>>, %arg21: memref<128x8xf32, #tpu.memory_space<vmem>>, %arg22: memref<1x8xf32, #tpu.memory_space<vmem>>, %arg23: memref<2x8xf32, #tpu.memory_space<vmem>>, %arg24: memref<16x64xf32, #tpu.memory_space<vmem>>) attributes {dimension_semantics = [], scalar_prefetch = 0 : i64, scratch_operands = 1 : i64, tpu.core_type = #tpu.core_type<tc>} {
    %c0 = arith.constant 0 : index
    %c0_0 = arith.constant 0 : index
    %0 = vector.load %arg0[%c0, %c0_0] : memref<16x32xf32, #tpu.memory_space<vmem>>, vector<16x32xf32>
    %c0_1 = arith.constant 0 : index
    %c0_2 = arith.constant 0 : index
    %c0_3 = arith.constant 0 : index
    %1 = vector.load %arg1[%c0_1, %c0_2, %c0_3] : memref<2x32x96xf32, #tpu.memory_space<vmem>>, vector<1x32x96xf32>
    %2 = vector.shape_cast %1 : vector<1x32x96xf32> to vector<32x96xf32>
    %cst = arith.constant dense<0.000000e+00> : vector<16x96xf32>
    %3 = tpu.matmul %0, %2, %cst {dimension_numbers = #tpu.dot_dimension_numbers<[1], [0], [0], [1], [0, 0, 1, 1], [], []>} : vector<16x32xf32>, vector<32x96xf32>, vector<16x96xf32> -> vector<16x96xf32>
    %c0_4 = arith.constant 0 : index
    %c0_5 = arith.constant 0 : index
    %c0_6 = arith.constant 0 : index
    %4 = vector.load %arg3[%c0_4, %c0_5, %c0_6] : memref<2x1x96xf32, #tpu.memory_space<vmem>>, vector<1x1x96xf32>
    %5 = vector.shape_cast %4 : vector<1x1x96xf32> to vector<1x96xf32>
    %6 = vector.broadcast %5 : vector<1x96xf32> to vector<16x96xf32>
    %7 = arith.addf %3, %6 : vector<16x96xf32>
    %c1 = arith.constant 1 : index
    %c0_7 = arith.constant 0 : index
    %c0_8 = arith.constant 0 : index
    %8 = vector.load %arg1[%c1, %c0_7, %c0_8] : memref<2x32x96xf32, #tpu.memory_space<vmem>>, vector<1x32x96xf32>
    %9 = vector.shape_cast %8 : vector<1x32x96xf32> to vector<32x96xf32>
    %cst_9 = arith.constant dense<0.000000e+00> : vector<16x96xf32>
    %10 = tpu.matmul %0, %9, %cst_9 {dimension_numbers = #tpu.dot_dimension_numbers<[1], [0], [0], [1], [0, 0, 1, 1], [], []>} : vector<16x32xf32>, vector<32x96xf32>, vector<16x96xf32> -> vector<16x96xf32>
    %c1_10 = arith.constant 1 : index
    %c0_11 = arith.constant 0 : index
    %c0_12 = arith.constant 0 : index
    %11 = vector.load %arg3[%c1_10, %c0_11, %c0_12] : memref<2x1x96xf32, #tpu.memory_space<vmem>>, vector<1x1x96xf32>
    %12 = vector.shape_cast %11 : vector<1x1x96xf32> to vector<1x96xf32>
    %13 = vector.broadcast %12 : vector<1x96xf32> to vector<16x96xf32>
    %14 = arith.addf %10, %13 : vector<16x96xf32>
    %c0_13 = arith.constant 0 : index
    %c0_14 = arith.constant 0 : index
    %c0_15 = arith.constant 0 : index
    %15 = vector.load %arg2[%c0_13, %c0_14, %c0_15] : memref<2x32x96xf32, #tpu.memory_space<vmem>>, vector<1x32x96xf32>
    %16 = vector.shape_cast %15 : vector<1x32x96xf32> to vector<32x96xf32>
    %c1_16 = arith.constant 1 : index
    %c0_17 = arith.constant 0 : index
    %c0_18 = arith.constant 0 : index
    %17 = vector.load %arg2[%c1_16, %c0_17, %c0_18] : memref<2x32x96xf32, #tpu.memory_space<vmem>>, vector<1x32x96xf32>
    %18 = vector.shape_cast %17 : vector<1x32x96xf32> to vector<32x96xf32>
    %c0_19 = arith.constant 0 : index
    %c0_20 = arith.constant 0 : index
    %c0_21 = arith.constant 0 : index
    %19 = vector.load %arg4[%c0_19, %c0_20, %c0_21] : memref<2x1x32xf32, #tpu.memory_space<vmem>>, vector<1x1x32xf32>
    %20 = vector.shape_cast %19 : vector<1x1x32xf32> to vector<1x32xf32>
    %c1_22 = arith.constant 1 : index
    %c0_23 = arith.constant 0 : index
    %c0_24 = arith.constant 0 : index
    %21 = vector.load %arg4[%c1_22, %c0_23, %c0_24] : memref<2x1x32xf32, #tpu.memory_space<vmem>>, vector<1x1x32xf32>
    %22 = vector.shape_cast %21 : vector<1x1x32xf32> to vector<1x32xf32>
    %cst_25 = arith.constant 0.000000e+00 : f32
    %23 = vector.broadcast %cst_25 : f32 to vector<2x32xf32>
    %cst_26 = arith.constant 0.000000e+00 : f32
    %24 = vector.broadcast %cst_26 : f32 to vector<2x32xf32>
    %cst_27 = arith.constant dense<0.000000e+00> : vector<2x96xf32>
    %25 = tpu.matmul %23, %16, %cst_27 {dimension_numbers = #tpu.dot_dimension_numbers<[1], [0], [0], [1], [0, 0, 1, 1], [], []>} : vector<2x32xf32>, vector<32x96xf32>, vector<2x96xf32> -> vector<2x96xf32>
    %cst_28 = arith.constant dense<0.000000e+00> : vector<2x96xf32>
    %26 = tpu.matmul %24, %18, %cst_28 {dimension_numbers = #tpu.dot_dimension_numbers<[1], [0], [0], [1], [0, 0, 1, 1], [], []>} : vector<2x32xf32>, vector<32x96xf32>, vector<2x96xf32> -> vector<2x96xf32>
    %27 = vector.extract_strided_slice %7 {offsets = [0, 0], sizes = [2, 96], strides = [1, 1]} : vector<16x96xf32> to vector<2x96xf32>
    %28 = vector.extract_strided_slice %27 {offsets = [0, 0], sizes = [2, 32], strides = [1, 1]} : vector<2x96xf32> to vector<2x32xf32>
    %29 = vector.extract_strided_slice %25 {offsets = [0, 0], sizes = [2, 32], strides = [1, 1]} : vector<2x96xf32> to vector<2x32xf32>
    %30 = arith.addf %28, %29 : vector<2x32xf32>
    %31 = arith.negf %30 : vector<2x32xf32>
    %32 = math.exp %31 : vector<2x32xf32>
    %cst_29 = arith.constant 1.000000e+00 : f32
    %33 = vector.broadcast %cst_29 : f32 to vector<2x32xf32>
    %34 = arith.addf %33, %32 : vector<2x32xf32>
    %35 = arith.divf %33, %34 : vector<2x32xf32>
    %36 = vector.extract_strided_slice %27 {offsets = [0, 32], sizes = [2, 32], strides = [1, 1]} : vector<2x96xf32> to vector<2x32xf32>
    %37 = vector.extract_strided_slice %25 {offsets = [0, 32], sizes = [2, 32], strides = [1, 1]} : vector<2x96xf32> to vector<2x32xf32>
    %38 = arith.addf %36, %37 : vector<2x32xf32>
    %39 = arith.negf %38 : vector<2x32xf32>
    %40 = math.exp %39 : vector<2x32xf32>
    %cst_30 = arith.constant 1.000000e+00 : f32
    %41 = vector.broadcast %cst_30 : f32 to vector<2x32xf32>
    %42 = arith.addf %41, %40 : vector<2x32xf32>
    %43 = arith.divf %41, %42 : vector<2x32xf32>
    %44 = vector.extract_strided_slice %27 {offsets = [0, 64], sizes = [2, 32], strides = [1, 1]} : vector<2x96xf32> to vector<2x32xf32>
    %45 = vector.extract_strided_slice %25 {offsets = [0, 64], sizes = [2, 32], strides = [1, 1]} : vector<2x96xf32> to vector<2x32xf32>
    %46 = vector.broadcast %20 : vector<1x32xf32> to vector<2x32xf32>
    %47 = arith.addf %45, %46 : vector<2x32xf32>
    %48 = arith.mulf %35, %47 : vector<2x32xf32>
    %49 = arith.addf %44, %48 : vector<2x32xf32>
    %50 = math.tanh %49 : vector<2x32xf32>
    %cst_31 = arith.constant 1.000000e+00 : f32
    %51 = vector.broadcast %cst_31 : f32 to vector<2x32xf32>
    %52 = arith.subf %51, %43 : vector<2x32xf32>
    %53 = arith.mulf %52, %50 : vector<2x32xf32>
    %54 = arith.mulf %43, %23 : vector<2x32xf32>
    %55 = arith.addf %53, %54 : vector<2x32xf32>
    %56 = vector.extract_strided_slice %14 {offsets = [14, 0], sizes = [2, 96], strides = [1, 1]} : vector<16x96xf32> to vector<2x96xf32>
    %57 = vector.extract_strided_slice %56 {offsets = [0, 0], sizes = [2, 32], strides = [1, 1]} : vector<2x96xf32> to vector<2x32xf32>
    %58 = vector.extract_strided_slice %26 {offsets = [0, 0], sizes = [2, 32], strides = [1, 1]} : vector<2x96xf32> to vector<2x32xf32>
    %59 = arith.addf %57, %58 : vector<2x32xf32>
    %60 = arith.negf %59 : vector<2x32xf32>
    %61 = math.exp %60 : vector<2x32xf32>
    %cst_32 = arith.constant 1.000000e+00 : f32
    %62 = vector.broadcast %cst_32 : f32 to vector<2x32xf32>
    %63 = arith.addf %62, %61 : vector<2x32xf32>
    %64 = arith.divf %62, %63 : vector<2x32xf32>
    %65 = vector.extract_strided_slice %56 {offsets = [0, 32], sizes = [2, 32], strides = [1, 1]} : vector<2x96xf32> to vector<2x32xf32>
    %66 = vector.extract_strided_slice %26 {offsets = [0, 32], sizes = [2, 32], strides = [1, 1]} : vector<2x96xf32> to vector<2x32xf32>
    %67 = arith.addf %65, %66 : vector<2x32xf32>
    %68 = arith.negf %67 : vector<2x32xf32>
    %69 = math.exp %68 : vector<2x32xf32>
    %cst_33 = arith.constant 1.000000e+00 : f32
    %70 = vector.broadcast %cst_33 : f32 to vector<2x32xf32>
    %71 = arith.addf %70, %69 : vector<2x32xf32>
    %72 = arith.divf %70, %71 : vector<2x32xf32>
    %73 = vector.extract_strided_slice %56 {offsets = [0, 64], sizes = [2, 32], strides = [1, 1]} : vector<2x96xf32> to vector<2x32xf32>
    %74 = vector.extract_strided_slice %26 {offsets = [0, 64], sizes = [2, 32], strides = [1, 1]} : vector<2x96xf32> to vector<2x32xf32>
    %75 = vector.broadcast %22 : vector<1x32xf32> to vector<2x32xf32>
    %76 = arith.addf %74, %75 : vector<2x32xf32>
    %77 = arith.mulf %64, %76 : vector<2x32xf32>
    %78 = arith.addf %73, %77 : vector<2x32xf32>
    %79 = math.tanh %78 : vector<2x32xf32>
    %cst_34 = arith.constant 1.000000e+00 : f32
    %80 = vector.broadcast %cst_34 : f32 to vector<2x32xf32>
    %81 = arith.subf %80, %72 : vector<2x32xf32>
    %82 = arith.mulf %81, %79 : vector<2x32xf32>
    %83 = arith.mulf %72, %24 : vector<2x32xf32>
    %84 = arith.addf %82, %83 : vector<2x32xf32>
    %c0_35 = arith.constant 0 : index
    %c0_36 = arith.constant 0 : index
    %85 = vector.load %arg24[%c0_35, %c0_36] : memref<16x64xf32, #tpu.memory_space<vmem>>, vector<2x32xf32>
    tpu.vector_store %arg24[%c0_35, %c0_36], %55 {strides = array<i32>} : memref<16x64xf32, #tpu.memory_space<vmem>>, vector<2x32xf32>,
    %c14 = arith.constant 14 : index
    %c32 = arith.constant 32 : index
    %86 = vector.load %arg24[%c14, %c32] : memref<16x64xf32, #tpu.memory_space<vmem>>, vector<2x32xf32>
    tpu.vector_store %arg24[%c14, %c32], %84 {strides = array<i32>} : memref<16x64xf32, #tpu.memory_space<vmem>>, vector<2x32xf32>,
    %cst_37 = arith.constant dense<0.000000e+00> : vector<2x96xf32>
    %87 = tpu.matmul %55, %16, %cst_37 {dimension_numbers = #tpu.dot_dimension_numbers<[1], [0], [0], [1], [0, 0, 1, 1], [], []>} : vector<2x32xf32>, vector<32x96xf32>, vector<2x96xf32> -> vector<2x96xf32>
    %cst_38 = arith.constant dense<0.000000e+00> : vector<2x96xf32>
    %88 = tpu.matmul %84, %18, %cst_38 {dimension_numbers = #tpu.dot_dimension_numbers<[1], [0], [0], [1], [0, 0, 1, 1], [], []>} : vector<2x32xf32>, vector<32x96xf32>, vector<2x96xf32> -> vector<2x96xf32>
    %89 = vector.extract_strided_slice %7 {offsets = [2, 0], sizes = [2, 96], strides = [1, 1]} : vector<16x96xf32> to vector<2x96xf32>
    %90 = vector.extract_strided_slice %89 {offsets = [0, 0], sizes = [2, 32], strides = [1, 1]} : vector<2x96xf32> to vector<2x32xf32>
    %91 = vector.extract_strided_slice %87 {offsets = [0, 0], sizes = [2, 32], strides = [1, 1]} : vector<2x96xf32> to vector<2x32xf32>
    %92 = arith.addf %90, %91 : vector<2x32xf32>
    %93 = arith.negf %92 : vector<2x32xf32>
    %94 = math.exp %93 : vector<2x32xf32>
    %cst_39 = arith.constant 1.000000e+00 : f32
    %95 = vector.broadcast %cst_39 : f32 to vector<2x32xf32>
    %96 = arith.addf %95, %94 : vector<2x32xf32>
    %97 = arith.divf %95, %96 : vector<2x32xf32>
    %98 = vector.extract_strided_slice %89 {offsets = [0, 32], sizes = [2, 32], strides = [1, 1]} : vector<2x96xf32> to vector<2x32xf32>
    %99 = vector.extract_strided_slice %87 {offsets = [0, 32], sizes = [2, 32], strides = [1, 1]} : vector<2x96xf32> to vector<2x32xf32>
    %100 = arith.addf %98, %99 : vector<2x32xf32>
    %101 = arith.negf %100 : vector<2x32xf32>
    %102 = math.exp %101 : vector<2x32xf32>
    %cst_40 = arith.constant 1.000000e+00 : f32
    %103 = vector.broadcast %cst_40 : f32 to vector<2x32xf32>
    %104 = arith.addf %103, %102 : vector<2x32xf32>
    %105 = arith.divf %103, %104 : vector<2x32xf32>
    %106 = vector.extract_strided_slice %89 {offsets = [0, 64], sizes = [2, 32], strides = [1, 1]} : vector<2x96xf32> to vector<2x32xf32>
    %107 = vector.extract_strided_slice %87 {offsets = [0, 64], sizes = [2, 32], strides = [1, 1]} : vector<2x96xf32> to vector<2x32xf32>
    %108 = vector.broadcast %20 : vector<1x32xf32> to vector<2x32xf32>
    %109 = arith.addf %107, %108 : vector<2x32xf32>
    %110 = arith.mulf %97, %109 : vector<2x32xf32>
    %111 = arith.addf %106, %110 : vector<2x32xf32>
    %112 = math.tanh %111 : vector<2x32xf32>
    %cst_41 = arith.constant 1.000000e+00 : f32
    %113 = vector.broadcast %cst_41 : f32 to vector<2x32xf32>
    %114 = arith.subf %113, %105 : vector<2x32xf32>
    %115 = arith.mulf %114, %112 : vector<2x32xf32>
    %116 = arith.mulf %105, %55 : vector<2x32xf32>
    %117 = arith.addf %115, %116 : vector<2x32xf32>
    %118 = vector.extract_strided_slice %14 {offsets = [12, 0], sizes = [2, 96], strides = [1, 1]} : vector<16x96xf32> to vector<2x96xf32>
    %119 = vector.extract_strided_slice %118 {offsets = [0, 0], sizes = [2, 32], strides = [1, 1]} : vector<2x96xf32> to vector<2x32xf32>
    %120 = vector.extract_strided_slice %88 {offsets = [0, 0], sizes = [2, 32], strides = [1, 1]} : vector<2x96xf32> to vector<2x32xf32>
    %121 = arith.addf %119, %120 : vector<2x32xf32>
    %122 = arith.negf %121 : vector<2x32xf32>
    %123 = math.exp %122 : vector<2x32xf32>
    %cst_42 = arith.constant 1.000000e+00 : f32
    %124 = vector.broadcast %cst_42 : f32 to vector<2x32xf32>
    %125 = arith.addf %124, %123 : vector<2x32xf32>
    %126 = arith.divf %124, %125 : vector<2x32xf32>
    %127 = vector.extract_strided_slice %118 {offsets = [0, 32], sizes = [2, 32], strides = [1, 1]} : vector<2x96xf32> to vector<2x32xf32>
    %128 = vector.extract_strided_slice %88 {offsets = [0, 32], sizes = [2, 32], strides = [1, 1]} : vector<2x96xf32> to vector<2x32xf32>
    %129 = arith.addf %127, %128 : vector<2x32xf32>
    %130 = arith.negf %129 : vector<2x32xf32>
    %131 = math.exp %130 : vector<2x32xf32>
    %cst_43 = arith.constant 1.000000e+00 : f32
    %132 = vector.broadcast %cst_43 : f32 to vector<2x32xf32>
    %133 = arith.addf %132, %131 : vector<2x32xf32>
    %134 = arith.divf %132, %133 : vector<2x32xf32>
    %135 = vector.extract_strided_slice %118 {offsets = [0, 64], sizes = [2, 32], strides = [1, 1]} : vector<2x96xf32> to vector<2x32xf32>
    %136 = vector.extract_strided_slice %88 {offsets = [0, 64], sizes = [2, 32], strides = [1, 1]} : vector<2x96xf32> to vector<2x32xf32>
    %137 = vector.broadcast %22 : vector<1x32xf32> to vector<2x32xf32>
    %138 = arith.addf %136, %137 : vector<2x32xf32>
    %139 = arith.mulf %126, %138 : vector<2x32xf32>
    %140 = arith.addf %135, %139 : vector<2x32xf32>
    %141 = math.tanh %140 : vector<2x32xf32>
    %cst_44 = arith.constant 1.000000e+00 : f32
    %142 = vector.broadcast %cst_44 : f32 to vector<2x32xf32>
    %143 = arith.subf %142, %134 : vector<2x32xf32>
    %144 = arith.mulf %143, %141 : vector<2x32xf32>
    %145 = arith.mulf %134, %84 : vector<2x32xf32>
    %146 = arith.addf %144, %145 : vector<2x32xf32>
    %c2 = arith.constant 2 : index
    %c0_45 = arith.constant 0 : index
    %147 = vector.load %arg24[%c2, %c0_45] : memref<16x64xf32, #tpu.memory_space<vmem>>, vector<2x32xf32>
    tpu.vector_store %arg24[%c2, %c0_45], %117 {strides = array<i32>} : memref<16x64xf32, #tpu.memory_space<vmem>>, vector<2x32xf32>,
    %c12 = arith.constant 12 : index
    %c32_46 = arith.constant 32 : index
    %148 = vector.load %arg24[%c12, %c32_46] : memref<16x64xf32, #tpu.memory_space<vmem>>, vector<2x32xf32>
    tpu.vector_store %arg24[%c12, %c32_46], %146 {strides = array<i32>} : memref<16x64xf32, #tpu.memory_space<vmem>>, vector<2x32xf32>,
    %cst_47 = arith.constant dense<0.000000e+00> : vector<2x96xf32>
    %149 = tpu.matmul %117, %16, %cst_47 {dimension_numbers = #tpu.dot_dimension_numbers<[1], [0], [0], [1], [0, 0, 1, 1], [], []>} : vector<2x32xf32>, vector<32x96xf32>, vector<2x96xf32> -> vector<2x96xf32>
    %cst_48 = arith.constant dense<0.000000e+00> : vector<2x96xf32>
    %150 = tpu.matmul %146, %18, %cst_48 {dimension_numbers = #tpu.dot_dimension_numbers<[1], [0], [0], [1], [0, 0, 1, 1], [], []>} : vector<2x32xf32>, vector<32x96xf32>, vector<2x96xf32> -> vector<2x96xf32>
    %151 = vector.extract_strided_slice %7 {offsets = [4, 0], sizes = [2, 96], strides = [1, 1]} : vector<16x96xf32> to vector<2x96xf32>
    %152 = vector.extract_strided_slice %151 {offsets = [0, 0], sizes = [2, 32], strides = [1, 1]} : vector<2x96xf32> to vector<2x32xf32>
    %153 = vector.extract_strided_slice %149 {offsets = [0, 0], sizes = [2, 32], strides = [1, 1]} : vector<2x96xf32> to vector<2x32xf32>
    %154 = arith.addf %152, %153 : vector<2x32xf32>
    %155 = arith.negf %154 : vector<2x32xf32>
    %156 = math.exp %155 : vector<2x32xf32>
    %cst_49 = arith.constant 1.000000e+00 : f32
    %157 = vector.broadcast %cst_49 : f32 to vector<2x32xf32>
    %158 = arith.addf %157, %156 : vector<2x32xf32>
    %159 = arith.divf %157, %158 : vector<2x32xf32>
    %160 = vector.extract_strided_slice %151 {offsets = [0, 32], sizes = [2, 32], strides = [1, 1]} : vector<2x96xf32> to vector<2x32xf32>
    %161 = vector.extract_strided_slice %149 {offsets = [0, 32], sizes = [2, 32], strides = [1, 1]} : vector<2x96xf32> to vector<2x32xf32>
    %162 = arith.addf %160, %161 : vector<2x32xf32>
    %163 = arith.negf %162 : vector<2x32xf32>
    %164 = math.exp %163 : vector<2x32xf32>
    %cst_50 = arith.constant 1.000000e+00 : f32
    %165 = vector.broadcast %cst_50 : f32 to vector<2x32xf32>
    %166 = arith.addf %165, %164 : vector<2x32xf32>
    %167 = arith.divf %165, %166 : vector<2x32xf32>
    %168 = vector.extract_strided_slice %151 {offsets = [0, 64], sizes = [2, 32], strides = [1, 1]} : vector<2x96xf32> to vector<2x32xf32>
    %169 = vector.extract_strided_slice %149 {offsets = [0, 64], sizes = [2, 32], strides = [1, 1]} : vector<2x96xf32> to vector<2x32xf32>
    %170 = vector.broadcast %20 : vector<1x32xf32> to vector<2x32xf32>
    %171 = arith.addf %169, %170 : vector<2x32xf32>
    %172 = arith.mulf %159, %171 : vector<2x32xf32>
    %173 = arith.addf %168, %172 : vector<2x32xf32>
    %174 = math.tanh %173 : vector<2x32xf32>
    %cst_51 = arith.constant 1.000000e+00 : f32
    %175 = vector.broadcast %cst_51 : f32 to vector<2x32xf32>
    %176 = arith.subf %175, %167 : vector<2x32xf32>
    %177 = arith.mulf %176, %174 : vector<2x32xf32>
    %178 = arith.mulf %167, %117 : vector<2x32xf32>
    %179 = arith.addf %177, %178 : vector<2x32xf32>
    %180 = vector.extract_strided_slice %14 {offsets = [10, 0], sizes = [2, 96], strides = [1, 1]} : vector<16x96xf32> to vector<2x96xf32>
    %181 = vector.extract_strided_slice %180 {offsets = [0, 0], sizes = [2, 32], strides = [1, 1]} : vector<2x96xf32> to vector<2x32xf32>
    %182 = vector.extract_strided_slice %150 {offsets = [0, 0], sizes = [2, 32], strides = [1, 1]} : vector<2x96xf32> to vector<2x32xf32>
    %183 = arith.addf %181, %182 : vector<2x32xf32>
    %184 = arith.negf %183 : vector<2x32xf32>
    %185 = math.exp %184 : vector<2x32xf32>
    %cst_52 = arith.constant 1.000000e+00 : f32
    %186 = vector.broadcast %cst_52 : f32 to vector<2x32xf32>
    %187 = arith.addf %186, %185 : vector<2x32xf32>
    %188 = arith.divf %186, %187 : vector<2x32xf32>
    %189 = vector.extract_strided_slice %180 {offsets = [0, 32], sizes = [2, 32], strides = [1, 1]} : vector<2x96xf32> to vector<2x32xf32>
    %190 = vector.extract_strided_slice %150 {offsets = [0, 32], sizes = [2, 32], strides = [1, 1]} : vector<2x96xf32> to vector<2x32xf32>
    %191 = arith.addf %189, %190 : vector<2x32xf32>
    %192 = arith.negf %191 : vector<2x32xf32>
    %193 = math.exp %192 : vector<2x32xf32>
    %cst_53 = arith.constant 1.000000e+00 : f32
    %194 = vector.broadcast %cst_53 : f32 to vector<2x32xf32>
    %195 = arith.addf %194, %193 : vector<2x32xf32>
    %196 = arith.divf %194, %195 : vector<2x32xf32>
    %197 = vector.extract_strided_slice %180 {offsets = [0, 64], sizes = [2, 32], strides = [1, 1]} : vector<2x96xf32> to vector<2x32xf32>
    %198 = vector.extract_strided_slice %150 {offsets = [0, 64], sizes = [2, 32], strides = [1, 1]} : vector<2x96xf32> to vector<2x32xf32>
    %199 = vector.broadcast %22 : vector<1x32xf32> to vector<2x32xf32>
    %200 = arith.addf %198, %199 : vector<2x32xf32>
    %201 = arith.mulf %188, %200 : vector<2x32xf32>
    %202 = arith.addf %197, %201 : vector<2x32xf32>
    %203 = math.tanh %202 : vector<2x32xf32>
    %cst_54 = arith.constant 1.000000e+00 : f32
    %204 = vector.broadcast %cst_54 : f32 to vector<2x32xf32>
    %205 = arith.subf %204, %196 : vector<2x32xf32>
    %206 = arith.mulf %205, %203 : vector<2x32xf32>
    %207 = arith.mulf %196, %146 : vector<2x32xf32>
    %208 = arith.addf %206, %207 : vector<2x32xf32>
    %c4 = arith.constant 4 : index
    %c0_55 = arith.constant 0 : index
    %209 = vector.load %arg24[%c4, %c0_55] : memref<16x64xf32, #tpu.memory_space<vmem>>, vector<2x32xf32>
    tpu.vector_store %arg24[%c4, %c0_55], %179 {strides = array<i32>} : memref<16x64xf32, #tpu.memory_space<vmem>>, vector<2x32xf32>,
    %c10 = arith.constant 10 : index
    %c32_56 = arith.constant 32 : index
    %210 = vector.load %arg24[%c10, %c32_56] : memref<16x64xf32, #tpu.memory_space<vmem>>, vector<2x32xf32>
    tpu.vector_store %arg24[%c10, %c32_56], %208 {strides = array<i32>} : memref<16x64xf32, #tpu.memory_space<vmem>>, vector<2x32xf32>,
    %cst_57 = arith.constant dense<0.000000e+00> : vector<2x96xf32>
    %211 = tpu.matmul %179, %16, %cst_57 {dimension_numbers = #tpu.dot_dimension_numbers<[1], [0], [0], [1], [0, 0, 1, 1], [], []>} : vector<2x32xf32>, vector<32x96xf32>, vector<2x96xf32> -> vector<2x96xf32>
    %cst_58 = arith.constant dense<0.000000e+00> : vector<2x96xf32>
    %212 = tpu.matmul %208, %18, %cst_58 {dimension_numbers = #tpu.dot_dimension_numbers<[1], [0], [0], [1], [0, 0, 1, 1], [], []>} : vector<2x32xf32>, vector<32x96xf32>, vector<2x96xf32> -> vector<2x96xf32>
    %213 = vector.extract_strided_slice %7 {offsets = [6, 0], sizes = [2, 96], strides = [1, 1]} : vector<16x96xf32> to vector<2x96xf32>
    %214 = vector.extract_strided_slice %213 {offsets = [0, 0], sizes = [2, 32], strides = [1, 1]} : vector<2x96xf32> to vector<2x32xf32>
    %215 = vector.extract_strided_slice %211 {offsets = [0, 0], sizes = [2, 32], strides = [1, 1]} : vector<2x96xf32> to vector<2x32xf32>
    %216 = arith.addf %214, %215 : vector<2x32xf32>
    %217 = arith.negf %216 : vector<2x32xf32>
    %218 = math.exp %217 : vector<2x32xf32>
    %cst_59 = arith.constant 1.000000e+00 : f32
    %219 = vector.broadcast %cst_59 : f32 to vector<2x32xf32>
    %220 = arith.addf %219, %218 : vector<2x32xf32>
    %221 = arith.divf %219, %220 : vector<2x32xf32>
    %222 = vector.extract_strided_slice %213 {offsets = [0, 32], sizes = [2, 32], strides = [1, 1]} : vector<2x96xf32> to vector<2x32xf32>
    %223 = vector.extract_strided_slice %211 {offsets = [0, 32], sizes = [2, 32], strides = [1, 1]} : vector<2x96xf32> to vector<2x32xf32>
    %224 = arith.addf %222, %223 : vector<2x32xf32>
    %225 = arith.negf %224 : vector<2x32xf32>
    %226 = math.exp %225 : vector<2x32xf32>
    %cst_60 = arith.constant 1.000000e+00 : f32
    %227 = vector.broadcast %cst_60 : f32 to vector<2x32xf32>
    %228 = arith.addf %227, %226 : vector<2x32xf32>
    %229 = arith.divf %227, %228 : vector<2x32xf32>
    %230 = vector.extract_strided_slice %213 {offsets = [0, 64], sizes = [2, 32], strides = [1, 1]} : vector<2x96xf32> to vector<2x32xf32>
    %231 = vector.extract_strided_slice %211 {offsets = [0, 64], sizes = [2, 32], strides = [1, 1]} : vector<2x96xf32> to vector<2x32xf32>
    %232 = vector.broadcast %20 : vector<1x32xf32> to vector<2x32xf32>
    %233 = arith.addf %231, %232 : vector<2x32xf32>
    %234 = arith.mulf %221, %233 : vector<2x32xf32>
    %235 = arith.addf %230, %234 : vector<2x32xf32>
    %236 = math.tanh %235 : vector<2x32xf32>
    %cst_61 = arith.constant 1.000000e+00 : f32
    %237 = vector.broadcast %cst_61 : f32 to vector<2x32xf32>
    %238 = arith.subf %237, %229 : vector<2x32xf32>
    %239 = arith.mulf %238, %236 : vector<2x32xf32>
    %240 = arith.mulf %229, %179 : vector<2x32xf32>
    %241 = arith.addf %239, %240 : vector<2x32xf32>
    %242 = vector.extract_strided_slice %14 {offsets = [8, 0], sizes = [2, 96], strides = [1, 1]} : vector<16x96xf32> to vector<2x96xf32>
    %243 = vector.extract_strided_slice %242 {offsets = [0, 0], sizes = [2, 32], strides = [1, 1]} : vector<2x96xf32> to vector<2x32xf32>
    %244 = vector.extract_strided_slice %212 {offsets = [0, 0], sizes = [2, 32], strides = [1, 1]} : vector<2x96xf32> to vector<2x32xf32>
    %245 = arith.addf %243, %244 : vector<2x32xf32>
    %246 = arith.negf %245 : vector<2x32xf32>
    %247 = math.exp %246 : vector<2x32xf32>
    %cst_62 = arith.constant 1.000000e+00 : f32
    %248 = vector.broadcast %cst_62 : f32 to vector<2x32xf32>
    %249 = arith.addf %248, %247 : vector<2x32xf32>
    %250 = arith.divf %248, %249 : vector<2x32xf32>
    %251 = vector.extract_strided_slice %242 {offsets = [0, 32], sizes = [2, 32], strides = [1, 1]} : vector<2x96xf32> to vector<2x32xf32>
    %252 = vector.extract_strided_slice %212 {offsets = [0, 32], sizes = [2, 32], strides = [1, 1]} : vector<2x96xf32> to vector<2x32xf32>
    %253 = arith.addf %251, %252 : vector<2x32xf32>
    %254 = arith.negf %253 : vector<2x32xf32>
    %255 = math.exp %254 : vector<2x32xf32>
    %cst_63 = arith.constant 1.000000e+00 : f32
    %256 = vector.broadcast %cst_63 : f32 to vector<2x32xf32>
    %257 = arith.addf %256, %255 : vector<2x32xf32>
    %258 = arith.divf %256, %257 : vector<2x32xf32>
    %259 = vector.extract_strided_slice %242 {offsets = [0, 64], sizes = [2, 32], strides = [1, 1]} : vector<2x96xf32> to vector<2x32xf32>
    %260 = vector.extract_strided_slice %212 {offsets = [0, 64], sizes = [2, 32], strides = [1, 1]} : vector<2x96xf32> to vector<2x32xf32>
    %261 = vector.broadcast %22 : vector<1x32xf32> to vector<2x32xf32>
    %262 = arith.addf %260, %261 : vector<2x32xf32>
    %263 = arith.mulf %250, %262 : vector<2x32xf32>
    %264 = arith.addf %259, %263 : vector<2x32xf32>
    %265 = math.tanh %264 : vector<2x32xf32>
    %cst_64 = arith.constant 1.000000e+00 : f32
    %266 = vector.broadcast %cst_64 : f32 to vector<2x32xf32>
    %267 = arith.subf %266, %258 : vector<2x32xf32>
    %268 = arith.mulf %267, %265 : vector<2x32xf32>
    %269 = arith.mulf %258, %208 : vector<2x32xf32>
    %270 = arith.addf %268, %269 : vector<2x32xf32>
    %c6 = arith.constant 6 : index
    %c0_65 = arith.constant 0 : index
    %271 = vector.load %arg24[%c6, %c0_65] : memref<16x64xf32, #tpu.memory_space<vmem>>, vector<2x32xf32>
    tpu.vector_store %arg24[%c6, %c0_65], %241 {strides = array<i32>} : memref<16x64xf32, #tpu.memory_space<vmem>>, vector<2x32xf32>,
    %c8 = arith.constant 8 : index
    %c32_66 = arith.constant 32 : index
    %272 = vector.load %arg24[%c8, %c32_66] : memref<16x64xf32, #tpu.memory_space<vmem>>, vector<2x32xf32>
    tpu.vector_store %arg24[%c8, %c32_66], %270 {strides = array<i32>} : memref<16x64xf32, #tpu.memory_space<vmem>>, vector<2x32xf32>,
    %cst_67 = arith.constant dense<0.000000e+00> : vector<2x96xf32>
    %273 = tpu.matmul %241, %16, %cst_67 {dimension_numbers = #tpu.dot_dimension_numbers<[1], [0], [0], [1], [0, 0, 1, 1], [], []>} : vector<2x32xf32>, vector<32x96xf32>, vector<2x96xf32> -> vector<2x96xf32>
    %cst_68 = arith.constant dense<0.000000e+00> : vector<2x96xf32>
    %274 = tpu.matmul %270, %18, %cst_68 {dimension_numbers = #tpu.dot_dimension_numbers<[1], [0], [0], [1], [0, 0, 1, 1], [], []>} : vector<2x32xf32>, vector<32x96xf32>, vector<2x96xf32> -> vector<2x96xf32>
    %275 = vector.extract_strided_slice %7 {offsets = [8, 0], sizes = [2, 96], strides = [1, 1]} : vector<16x96xf32> to vector<2x96xf32>
    %276 = vector.extract_strided_slice %275 {offsets = [0, 0], sizes = [2, 32], strides = [1, 1]} : vector<2x96xf32> to vector<2x32xf32>
    %277 = vector.extract_strided_slice %273 {offsets = [0, 0], sizes = [2, 32], strides = [1, 1]} : vector<2x96xf32> to vector<2x32xf32>
    %278 = arith.addf %276, %277 : vector<2x32xf32>
    %279 = arith.negf %278 : vector<2x32xf32>
    %280 = math.exp %279 : vector<2x32xf32>
    %cst_69 = arith.constant 1.000000e+00 : f32
    %281 = vector.broadcast %cst_69 : f32 to vector<2x32xf32>
    %282 = arith.addf %281, %280 : vector<2x32xf32>
    %283 = arith.divf %281, %282 : vector<2x32xf32>
    %284 = vector.extract_strided_slice %275 {offsets = [0, 32], sizes = [2, 32], strides = [1, 1]} : vector<2x96xf32> to vector<2x32xf32>
    %285 = vector.extract_strided_slice %273 {offsets = [0, 32], sizes = [2, 32], strides = [1, 1]} : vector<2x96xf32> to vector<2x32xf32>
    %286 = arith.addf %284, %285 : vector<2x32xf32>
    %287 = arith.negf %286 : vector<2x32xf32>
    %288 = math.exp %287 : vector<2x32xf32>
    %cst_70 = arith.constant 1.000000e+00 : f32
    %289 = vector.broadcast %cst_70 : f32 to vector<2x32xf32>
    %290 = arith.addf %289, %288 : vector<2x32xf32>
    %291 = arith.divf %289, %290 : vector<2x32xf32>
    %292 = vector.extract_strided_slice %275 {offsets = [0, 64], sizes = [2, 32], strides = [1, 1]} : vector<2x96xf32> to vector<2x32xf32>
    %293 = vector.extract_strided_slice %273 {offsets = [0, 64], sizes = [2, 32], strides = [1, 1]} : vector<2x96xf32> to vector<2x32xf32>
    %294 = vector.broadcast %20 : vector<1x32xf32> to vector<2x32xf32>
    %295 = arith.addf %293, %294 : vector<2x32xf32>
    %296 = arith.mulf %283, %295 : vector<2x32xf32>
    %297 = arith.addf %292, %296 : vector<2x32xf32>
    %298 = math.tanh %297 : vector<2x32xf32>
    %cst_71 = arith.constant 1.000000e+00 : f32
    %299 = vector.broadcast %cst_71 : f32 to vector<2x32xf32>
    %300 = arith.subf %299, %291 : vector<2x32xf32>
    %301 = arith.mulf %300, %298 : vector<2x32xf32>
    %302 = arith.mulf %291, %241 : vector<2x32xf32>
    %303 = arith.addf %301, %302 : vector<2x32xf32>
    %304 = vector.extract_strided_slice %14 {offsets = [6, 0], sizes = [2, 96], strides = [1, 1]} : vector<16x96xf32> to vector<2x96xf32>
    %305 = vector.extract_strided_slice %304 {offsets = [0, 0], sizes = [2, 32], strides = [1, 1]} : vector<2x96xf32> to vector<2x32xf32>
    %306 = vector.extract_strided_slice %274 {offsets = [0, 0], sizes = [2, 32], strides = [1, 1]} : vector<2x96xf32> to vector<2x32xf32>
    %307 = arith.addf %305, %306 : vector<2x32xf32>
    %308 = arith.negf %307 : vector<2x32xf32>
    %309 = math.exp %308 : vector<2x32xf32>
    %cst_72 = arith.constant 1.000000e+00 : f32
    %310 = vector.broadcast %cst_72 : f32 to vector<2x32xf32>
    %311 = arith.addf %310, %309 : vector<2x32xf32>
    %312 = arith.divf %310, %311 : vector<2x32xf32>
    %313 = vector.extract_strided_slice %304 {offsets = [0, 32], sizes = [2, 32], strides = [1, 1]} : vector<2x96xf32> to vector<2x32xf32>
    %314 = vector.extract_strided_slice %274 {offsets = [0, 32], sizes = [2, 32], strides = [1, 1]} : vector<2x96xf32> to vector<2x32xf32>
    %315 = arith.addf %313, %314 : vector<2x32xf32>
    %316 = arith.negf %315 : vector<2x32xf32>
    %317 = math.exp %316 : vector<2x32xf32>
    %cst_73 = arith.constant 1.000000e+00 : f32
    %318 = vector.broadcast %cst_73 : f32 to vector<2x32xf32>
    %319 = arith.addf %318, %317 : vector<2x32xf32>
    %320 = arith.divf %318, %319 : vector<2x32xf32>
    %321 = vector.extract_strided_slice %304 {offsets = [0, 64], sizes = [2, 32], strides = [1, 1]} : vector<2x96xf32> to vector<2x32xf32>
    %322 = vector.extract_strided_slice %274 {offsets = [0, 64], sizes = [2, 32], strides = [1, 1]} : vector<2x96xf32> to vector<2x32xf32>
    %323 = vector.broadcast %22 : vector<1x32xf32> to vector<2x32xf32>
    %324 = arith.addf %322, %323 : vector<2x32xf32>
    %325 = arith.mulf %312, %324 : vector<2x32xf32>
    %326 = arith.addf %321, %325 : vector<2x32xf32>
    %327 = math.tanh %326 : vector<2x32xf32>
    %cst_74 = arith.constant 1.000000e+00 : f32
    %328 = vector.broadcast %cst_74 : f32 to vector<2x32xf32>
    %329 = arith.subf %328, %320 : vector<2x32xf32>
    %330 = arith.mulf %329, %327 : vector<2x32xf32>
    %331 = arith.mulf %320, %270 : vector<2x32xf32>
    %332 = arith.addf %330, %331 : vector<2x32xf32>
    %c8_75 = arith.constant 8 : index
    %c0_76 = arith.constant 0 : index
    %333 = vector.load %arg24[%c8_75, %c0_76] : memref<16x64xf32, #tpu.memory_space<vmem>>, vector<2x32xf32>
    tpu.vector_store %arg24[%c8_75, %c0_76], %303 {strides = array<i32>} : memref<16x64xf32, #tpu.memory_space<vmem>>, vector<2x32xf32>,
    %c6_77 = arith.constant 6 : index
    %c32_78 = arith.constant 32 : index
    %334 = vector.load %arg24[%c6_77, %c32_78] : memref<16x64xf32, #tpu.memory_space<vmem>>, vector<2x32xf32>
    tpu.vector_store %arg24[%c6_77, %c32_78], %332 {strides = array<i32>} : memref<16x64xf32, #tpu.memory_space<vmem>>, vector<2x32xf32>,
    %cst_79 = arith.constant dense<0.000000e+00> : vector<2x96xf32>
    %335 = tpu.matmul %303, %16, %cst_79 {dimension_numbers = #tpu.dot_dimension_numbers<[1], [0], [0], [1], [0, 0, 1, 1], [], []>} : vector<2x32xf32>, vector<32x96xf32>, vector<2x96xf32> -> vector<2x96xf32>
    %cst_80 = arith.constant dense<0.000000e+00> : vector<2x96xf32>
    %336 = tpu.matmul %332, %18, %cst_80 {dimension_numbers = #tpu.dot_dimension_numbers<[1], [0], [0], [1], [0, 0, 1, 1], [], []>} : vector<2x32xf32>, vector<32x96xf32>, vector<2x96xf32> -> vector<2x96xf32>
    %337 = vector.extract_strided_slice %7 {offsets = [10, 0], sizes = [2, 96], strides = [1, 1]} : vector<16x96xf32> to vector<2x96xf32>
    %338 = vector.extract_strided_slice %337 {offsets = [0, 0], sizes = [2, 32], strides = [1, 1]} : vector<2x96xf32> to vector<2x32xf32>
    %339 = vector.extract_strided_slice %335 {offsets = [0, 0], sizes = [2, 32], strides = [1, 1]} : vector<2x96xf32> to vector<2x32xf32>
    %340 = arith.addf %338, %339 : vector<2x32xf32>
    %341 = arith.negf %340 : vector<2x32xf32>
    %342 = math.exp %341 : vector<2x32xf32>
    %cst_81 = arith.constant 1.000000e+00 : f32
    %343 = vector.broadcast %cst_81 : f32 to vector<2x32xf32>
    %344 = arith.addf %343, %342 : vector<2x32xf32>
    %345 = arith.divf %343, %344 : vector<2x32xf32>
    %346 = vector.extract_strided_slice %337 {offsets = [0, 32], sizes = [2, 32], strides = [1, 1]} : vector<2x96xf32> to vector<2x32xf32>
    %347 = vector.extract_strided_slice %335 {offsets = [0, 32], sizes = [2, 32], strides = [1, 1]} : vector<2x96xf32> to vector<2x32xf32>
    %348 = arith.addf %346, %347 : vector<2x32xf32>
    %349 = arith.negf %348 : vector<2x32xf32>
    %350 = math.exp %349 : vector<2x32xf32>
    %cst_82 = arith.constant 1.000000e+00 : f32
    %351 = vector.broadcast %cst_82 : f32 to vector<2x32xf32>
    %352 = arith.addf %351, %350 : vector<2x32xf32>
    %353 = arith.divf %351, %352 : vector<2x32xf32>
    %354 = vector.extract_strided_slice %337 {offsets = [0, 64], sizes = [2, 32], strides = [1, 1]} : vector<2x96xf32> to vector<2x32xf32>
    %355 = vector.extract_strided_slice %335 {offsets = [0, 64], sizes = [2, 32], strides = [1, 1]} : vector<2x96xf32> to vector<2x32xf32>
    %356 = vector.broadcast %20 : vector<1x32xf32> to vector<2x32xf32>
    %357 = arith.addf %355, %356 : vector<2x32xf32>
    %358 = arith.mulf %345, %357 : vector<2x32xf32>
    %359 = arith.addf %354, %358 : vector<2x32xf32>
    %360 = math.tanh %359 : vector<2x32xf32>
    %cst_83 = arith.constant 1.000000e+00 : f32
    %361 = vector.broadcast %cst_83 : f32 to vector<2x32xf32>
    %362 = arith.subf %361, %353 : vector<2x32xf32>
    %363 = arith.mulf %362, %360 : vector<2x32xf32>
    %364 = arith.mulf %353, %303 : vector<2x32xf32>
    %365 = arith.addf %363, %364 : vector<2x32xf32>
    %366 = vector.extract_strided_slice %14 {offsets = [4, 0], sizes = [2, 96], strides = [1, 1]} : vector<16x96xf32> to vector<2x96xf32>
    %367 = vector.extract_strided_slice %366 {offsets = [0, 0], sizes = [2, 32], strides = [1, 1]} : vector<2x96xf32> to vector<2x32xf32>
    %368 = vector.extract_strided_slice %336 {offsets = [0, 0], sizes = [2, 32], strides = [1, 1]} : vector<2x96xf32> to vector<2x32xf32>
    %369 = arith.addf %367, %368 : vector<2x32xf32>
    %370 = arith.negf %369 : vector<2x32xf32>
    %371 = math.exp %370 : vector<2x32xf32>
    %cst_84 = arith.constant 1.000000e+00 : f32
    %372 = vector.broadcast %cst_84 : f32 to vector<2x32xf32>
    %373 = arith.addf %372, %371 : vector<2x32xf32>
    %374 = arith.divf %372, %373 : vector<2x32xf32>
    %375 = vector.extract_strided_slice %366 {offsets = [0, 32], sizes = [2, 32], strides = [1, 1]} : vector<2x96xf32> to vector<2x32xf32>
    %376 = vector.extract_strided_slice %336 {offsets = [0, 32], sizes = [2, 32], strides = [1, 1]} : vector<2x96xf32> to vector<2x32xf32>
    %377 = arith.addf %375, %376 : vector<2x32xf32>
    %378 = arith.negf %377 : vector<2x32xf32>
    %379 = math.exp %378 : vector<2x32xf32>
    %cst_85 = arith.constant 1.000000e+00 : f32
    %380 = vector.broadcast %cst_85 : f32 to vector<2x32xf32>
    %381 = arith.addf %380, %379 : vector<2x32xf32>
    %382 = arith.divf %380, %381 : vector<2x32xf32>
    %383 = vector.extract_strided_slice %366 {offsets = [0, 64], sizes = [2, 32], strides = [1, 1]} : vector<2x96xf32> to vector<2x32xf32>
    %384 = vector.extract_strided_slice %336 {offsets = [0, 64], sizes = [2, 32], strides = [1, 1]} : vector<2x96xf32> to vector<2x32xf32>
    %385 = vector.broadcast %22 : vector<1x32xf32> to vector<2x32xf32>
    %386 = arith.addf %384, %385 : vector<2x32xf32>
    %387 = arith.mulf %374, %386 : vector<2x32xf32>
    %388 = arith.addf %383, %387 : vector<2x32xf32>
    %389 = math.tanh %388 : vector<2x32xf32>
    %cst_86 = arith.constant 1.000000e+00 : f32
    %390 = vector.broadcast %cst_86 : f32 to vector<2x32xf32>
    %391 = arith.subf %390, %382 : vector<2x32xf32>
    %392 = arith.mulf %391, %389 : vector<2x32xf32>
    %393 = arith.mulf %382, %332 : vector<2x32xf32>
    %394 = arith.addf %392, %393 : vector<2x32xf32>
    %c10_87 = arith.constant 10 : index
    %c0_88 = arith.constant 0 : index
    %395 = vector.load %arg24[%c10_87, %c0_88] : memref<16x64xf32, #tpu.memory_space<vmem>>, vector<2x32xf32>
    tpu.vector_store %arg24[%c10_87, %c0_88], %365 {strides = array<i32>} : memref<16x64xf32, #tpu.memory_space<vmem>>, vector<2x32xf32>,
    %c4_89 = arith.constant 4 : index
    %c32_90 = arith.constant 32 : index
    %396 = vector.load %arg24[%c4_89, %c32_90] : memref<16x64xf32, #tpu.memory_space<vmem>>, vector<2x32xf32>
    tpu.vector_store %arg24[%c4_89, %c32_90], %394 {strides = array<i32>} : memref<16x64xf32, #tpu.memory_space<vmem>>, vector<2x32xf32>,
    %cst_91 = arith.constant dense<0.000000e+00> : vector<2x96xf32>
    %397 = tpu.matmul %365, %16, %cst_91 {dimension_numbers = #tpu.dot_dimension_numbers<[1], [0], [0], [1], [0, 0, 1, 1], [], []>} : vector<2x32xf32>, vector<32x96xf32>, vector<2x96xf32> -> vector<2x96xf32>
    %cst_92 = arith.constant dense<0.000000e+00> : vector<2x96xf32>
    %398 = tpu.matmul %394, %18, %cst_92 {dimension_numbers = #tpu.dot_dimension_numbers<[1], [0], [0], [1], [0, 0, 1, 1], [], []>} : vector<2x32xf32>, vector<32x96xf32>, vector<2x96xf32> -> vector<2x96xf32>
    %399 = vector.extract_strided_slice %7 {offsets = [12, 0], sizes = [2, 96], strides = [1, 1]} : vector<16x96xf32> to vector<2x96xf32>
    %400 = vector.extract_strided_slice %399 {offsets = [0, 0], sizes = [2, 32], strides = [1, 1]} : vector<2x96xf32> to vector<2x32xf32>
    %401 = vector.extract_strided_slice %397 {offsets = [0, 0], sizes = [2, 32], strides = [1, 1]} : vector<2x96xf32> to vector<2x32xf32>
    %402 = arith.addf %400, %401 : vector<2x32xf32>
    %403 = arith.negf %402 : vector<2x32xf32>
    %404 = math.exp %403 : vector<2x32xf32>
    %cst_93 = arith.constant 1.000000e+00 : f32
    %405 = vector.broadcast %cst_93 : f32 to vector<2x32xf32>
    %406 = arith.addf %405, %404 : vector<2x32xf32>
    %407 = arith.divf %405, %406 : vector<2x32xf32>
    %408 = vector.extract_strided_slice %399 {offsets = [0, 32], sizes = [2, 32], strides = [1, 1]} : vector<2x96xf32> to vector<2x32xf32>
    %409 = vector.extract_strided_slice %397 {offsets = [0, 32], sizes = [2, 32], strides = [1, 1]} : vector<2x96xf32> to vector<2x32xf32>
    %410 = arith.addf %408, %409 : vector<2x32xf32>
    %411 = arith.negf %410 : vector<2x32xf32>
    %412 = math.exp %411 : vector<2x32xf32>
    %cst_94 = arith.constant 1.000000e+00 : f32
    %413 = vector.broadcast %cst_94 : f32 to vector<2x32xf32>
    %414 = arith.addf %413, %412 : vector<2x32xf32>
    %415 = arith.divf %413, %414 : vector<2x32xf32>
    %416 = vector.extract_strided_slice %399 {offsets = [0, 64], sizes = [2, 32], strides = [1, 1]} : vector<2x96xf32> to vector<2x32xf32>
    %417 = vector.extract_strided_slice %397 {offsets = [0, 64], sizes = [2, 32], strides = [1, 1]} : vector<2x96xf32> to vector<2x32xf32>
    %418 = vector.broadcast %20 : vector<1x32xf32> to vector<2x32xf32>
    %419 = arith.addf %417, %418 : vector<2x32xf32>
    %420 = arith.mulf %407, %419 : vector<2x32xf32>
    %421 = arith.addf %416, %420 : vector<2x32xf32>
    %422 = math.tanh %421 : vector<2x32xf32>
    %cst_95 = arith.constant 1.000000e+00 : f32
    %423 = vector.broadcast %cst_95 : f32 to vector<2x32xf32>
    %424 = arith.subf %423, %415 : vector<2x32xf32>
    %425 = arith.mulf %424, %422 : vector<2x32xf32>
    %426 = arith.mulf %415, %365 : vector<2x32xf32>
    %427 = arith.addf %425, %426 : vector<2x32xf32>
    %428 = vector.extract_strided_slice %14 {offsets = [2, 0], sizes = [2, 96], strides = [1, 1]} : vector<16x96xf32> to vector<2x96xf32>
    %429 = vector.extract_strided_slice %428 {offsets = [0, 0], sizes = [2, 32], strides = [1, 1]} : vector<2x96xf32> to vector<2x32xf32>
    %430 = vector.extract_strided_slice %398 {offsets = [0, 0], sizes = [2, 32], strides = [1, 1]} : vector<2x96xf32> to vector<2x32xf32>
    %431 = arith.addf %429, %430 : vector<2x32xf32>
    %432 = arith.negf %431 : vector<2x32xf32>
    %433 = math.exp %432 : vector<2x32xf32>
    %cst_96 = arith.constant 1.000000e+00 : f32
    %434 = vector.broadcast %cst_96 : f32 to vector<2x32xf32>
    %435 = arith.addf %434, %433 : vector<2x32xf32>
    %436 = arith.divf %434, %435 : vector<2x32xf32>
    %437 = vector.extract_strided_slice %428 {offsets = [0, 32], sizes = [2, 32], strides = [1, 1]} : vector<2x96xf32> to vector<2x32xf32>
    %438 = vector.extract_strided_slice %398 {offsets = [0, 32], sizes = [2, 32], strides = [1, 1]} : vector<2x96xf32> to vector<2x32xf32>
    %439 = arith.addf %437, %438 : vector<2x32xf32>
    %440 = arith.negf %439 : vector<2x32xf32>
    %441 = math.exp %440 : vector<2x32xf32>
    %cst_97 = arith.constant 1.000000e+00 : f32
    %442 = vector.broadcast %cst_97 : f32 to vector<2x32xf32>
    %443 = arith.addf %442, %441 : vector<2x32xf32>
    %444 = arith.divf %442, %443 : vector<2x32xf32>
    %445 = vector.extract_strided_slice %428 {offsets = [0, 64], sizes = [2, 32], strides = [1, 1]} : vector<2x96xf32> to vector<2x32xf32>
    %446 = vector.extract_strided_slice %398 {offsets = [0, 64], sizes = [2, 32], strides = [1, 1]} : vector<2x96xf32> to vector<2x32xf32>
    %447 = vector.broadcast %22 : vector<1x32xf32> to vector<2x32xf32>
    %448 = arith.addf %446, %447 : vector<2x32xf32>
    %449 = arith.mulf %436, %448 : vector<2x32xf32>
    %450 = arith.addf %445, %449 : vector<2x32xf32>
    %451 = math.tanh %450 : vector<2x32xf32>
    %cst_98 = arith.constant 1.000000e+00 : f32
    %452 = vector.broadcast %cst_98 : f32 to vector<2x32xf32>
    %453 = arith.subf %452, %444 : vector<2x32xf32>
    %454 = arith.mulf %453, %451 : vector<2x32xf32>
    %455 = arith.mulf %444, %394 : vector<2x32xf32>
    %456 = arith.addf %454, %455 : vector<2x32xf32>
    %c12_99 = arith.constant 12 : index
    %c0_100 = arith.constant 0 : index
    %457 = vector.load %arg24[%c12_99, %c0_100] : memref<16x64xf32, #tpu.memory_space<vmem>>, vector<2x32xf32>
    tpu.vector_store %arg24[%c12_99, %c0_100], %427 {strides = array<i32>} : memref<16x64xf32, #tpu.memory_space<vmem>>, vector<2x32xf32>,
    %c2_101 = arith.constant 2 : index
    %c32_102 = arith.constant 32 : index
    %458 = vector.load %arg24[%c2_101, %c32_102] : memref<16x64xf32, #tpu.memory_space<vmem>>, vector<2x32xf32>
    tpu.vector_store %arg24[%c2_101, %c32_102], %456 {strides = array<i32>} : memref<16x64xf32, #tpu.memory_space<vmem>>, vector<2x32xf32>,
    %cst_103 = arith.constant dense<0.000000e+00> : vector<2x96xf32>
    %459 = tpu.matmul %427, %16, %cst_103 {dimension_numbers = #tpu.dot_dimension_numbers<[1], [0], [0], [1], [0, 0, 1, 1], [], []>} : vector<2x32xf32>, vector<32x96xf32>, vector<2x96xf32> -> vector<2x96xf32>
    %cst_104 = arith.constant dense<0.000000e+00> : vector<2x96xf32>
    %460 = tpu.matmul %456, %18, %cst_104 {dimension_numbers = #tpu.dot_dimension_numbers<[1], [0], [0], [1], [0, 0, 1, 1], [], []>} : vector<2x32xf32>, vector<32x96xf32>, vector<2x96xf32> -> vector<2x96xf32>
    %461 = vector.extract_strided_slice %7 {offsets = [14, 0], sizes = [2, 96], strides = [1, 1]} : vector<16x96xf32> to vector<2x96xf32>
    %462 = vector.extract_strided_slice %461 {offsets = [0, 0], sizes = [2, 32], strides = [1, 1]} : vector<2x96xf32> to vector<2x32xf32>
    %463 = vector.extract_strided_slice %459 {offsets = [0, 0], sizes = [2, 32], strides = [1, 1]} : vector<2x96xf32> to vector<2x32xf32>
    %464 = arith.addf %462, %463 : vector<2x32xf32>
    %465 = arith.negf %464 : vector<2x32xf32>
    %466 = math.exp %465 : vector<2x32xf32>
    %cst_105 = arith.constant 1.000000e+00 : f32
    %467 = vector.broadcast %cst_105 : f32 to vector<2x32xf32>
    %468 = arith.addf %467, %466 : vector<2x32xf32>
    %469 = arith.divf %467, %468 : vector<2x32xf32>
    %470 = vector.extract_strided_slice %461 {offsets = [0, 32], sizes = [2, 32], strides = [1, 1]} : vector<2x96xf32> to vector<2x32xf32>
    %471 = vector.extract_strided_slice %459 {offsets = [0, 32], sizes = [2, 32], strides = [1, 1]} : vector<2x96xf32> to vector<2x32xf32>
    %472 = arith.addf %470, %471 : vector<2x32xf32>
    %473 = arith.negf %472 : vector<2x32xf32>
    %474 = math.exp %473 : vector<2x32xf32>
    %cst_106 = arith.constant 1.000000e+00 : f32
    %475 = vector.broadcast %cst_106 : f32 to vector<2x32xf32>
    %476 = arith.addf %475, %474 : vector<2x32xf32>
    %477 = arith.divf %475, %476 : vector<2x32xf32>
    %478 = vector.extract_strided_slice %461 {offsets = [0, 64], sizes = [2, 32], strides = [1, 1]} : vector<2x96xf32> to vector<2x32xf32>
    %479 = vector.extract_strided_slice %459 {offsets = [0, 64], sizes = [2, 32], strides = [1, 1]} : vector<2x96xf32> to vector<2x32xf32>
    %480 = vector.broadcast %20 : vector<1x32xf32> to vector<2x32xf32>
    %481 = arith.addf %479, %480 : vector<2x32xf32>
    %482 = arith.mulf %469, %481 : vector<2x32xf32>
    %483 = arith.addf %478, %482 : vector<2x32xf32>
    %484 = math.tanh %483 : vector<2x32xf32>
    %cst_107 = arith.constant 1.000000e+00 : f32
    %485 = vector.broadcast %cst_107 : f32 to vector<2x32xf32>
    %486 = arith.subf %485, %477 : vector<2x32xf32>
    %487 = arith.mulf %486, %484 : vector<2x32xf32>
    %488 = arith.mulf %477, %427 : vector<2x32xf32>
    %489 = arith.addf %487, %488 : vector<2x32xf32>
    %490 = vector.extract_strided_slice %14 {offsets = [0, 0], sizes = [2, 96], strides = [1, 1]} : vector<16x96xf32> to vector<2x96xf32>
    %491 = vector.extract_strided_slice %490 {offsets = [0, 0], sizes = [2, 32], strides = [1, 1]} : vector<2x96xf32> to vector<2x32xf32>
    %492 = vector.extract_strided_slice %460 {offsets = [0, 0], sizes = [2, 32], strides = [1, 1]} : vector<2x96xf32> to vector<2x32xf32>
    %493 = arith.addf %491, %492 : vector<2x32xf32>
    %494 = arith.negf %493 : vector<2x32xf32>
    %495 = math.exp %494 : vector<2x32xf32>
    %cst_108 = arith.constant 1.000000e+00 : f32
    %496 = vector.broadcast %cst_108 : f32 to vector<2x32xf32>
    %497 = arith.addf %496, %495 : vector<2x32xf32>
    %498 = arith.divf %496, %497 : vector<2x32xf32>
    %499 = vector.extract_strided_slice %490 {offsets = [0, 32], sizes = [2, 32], strides = [1, 1]} : vector<2x96xf32> to vector<2x32xf32>
    %500 = vector.extract_strided_slice %460 {offsets = [0, 32], sizes = [2, 32], strides = [1, 1]} : vector<2x96xf32> to vector<2x32xf32>
    %501 = arith.addf %499, %500 : vector<2x32xf32>
    %502 = arith.negf %501 : vector<2x32xf32>
    %503 = math.exp %502 : vector<2x32xf32>
    %cst_109 = arith.constant 1.000000e+00 : f32
    %504 = vector.broadcast %cst_109 : f32 to vector<2x32xf32>
    %505 = arith.addf %504, %503 : vector<2x32xf32>
    %506 = arith.divf %504, %505 : vector<2x32xf32>
    %507 = vector.extract_strided_slice %490 {offsets = [0, 64], sizes = [2, 32], strides = [1, 1]} : vector<2x96xf32> to vector<2x32xf32>
    %508 = vector.extract_strided_slice %460 {offsets = [0, 64], sizes = [2, 32], strides = [1, 1]} : vector<2x96xf32> to vector<2x32xf32>
    %509 = vector.broadcast %22 : vector<1x32xf32> to vector<2x32xf32>
    %510 = arith.addf %508, %509 : vector<2x32xf32>
    %511 = arith.mulf %498, %510 : vector<2x32xf32>
    %512 = arith.addf %507, %511 : vector<2x32xf32>
    %513 = math.tanh %512 : vector<2x32xf32>
    %cst_110 = arith.constant 1.000000e+00 : f32
    %514 = vector.broadcast %cst_110 : f32 to vector<2x32xf32>
    %515 = arith.subf %514, %506 : vector<2x32xf32>
    %516 = arith.mulf %515, %513 : vector<2x32xf32>
    %517 = arith.mulf %506, %456 : vector<2x32xf32>
    %518 = arith.addf %516, %517 : vector<2x32xf32>
    %c14_111 = arith.constant 14 : index
    %c0_112 = arith.constant 0 : index
    %519 = vector.load %arg24[%c14_111, %c0_112] : memref<16x64xf32, #tpu.memory_space<vmem>>, vector<2x32xf32>
    tpu.vector_store %arg24[%c14_111, %c0_112], %489 {strides = array<i32>} : memref<16x64xf32, #tpu.memory_space<vmem>>, vector<2x32xf32>,
    %c0_113 = arith.constant 0 : index
    %c32_114 = arith.constant 32 : index
    %520 = vector.load %arg24[%c0_113, %c32_114] : memref<16x64xf32, #tpu.memory_space<vmem>>, vector<2x32xf32>
    tpu.vector_store %arg24[%c0_113, %c32_114], %518 {strides = array<i32>} : memref<16x64xf32, #tpu.memory_space<vmem>>, vector<2x32xf32>,
    %c0_115 = arith.constant 0 : index
    %c0_116 = arith.constant 0 : index
    %521 = vector.load %arg24[%c0_115, %c0_116] : memref<16x64xf32, #tpu.memory_space<vmem>>, vector<16x64xf32>
    %c0_117 = arith.constant 0 : index
    %c0_118 = arith.constant 0 : index
    %c0_119 = arith.constant 0 : index
    %522 = vector.load %arg5[%c0_117, %c0_118, %c0_119] : memref<2x64x96xf32, #tpu.memory_space<vmem>>, vector<1x64x96xf32>
    %523 = vector.shape_cast %522 : vector<1x64x96xf32> to vector<64x96xf32>
    %cst_120 = arith.constant dense<0.000000e+00> : vector<16x96xf32>
    %524 = tpu.matmul %521, %523, %cst_120 {dimension_numbers = #tpu.dot_dimension_numbers<[1], [0], [0], [1], [0, 0, 1, 1], [], []>} : vector<16x64xf32>, vector<64x96xf32>, vector<16x96xf32> -> vector<16x96xf32>
    %c0_121 = arith.constant 0 : index
    %c0_122 = arith.constant 0 : index
    %c0_123 = arith.constant 0 : index
    %525 = vector.load %arg7[%c0_121, %c0_122, %c0_123] : memref<2x1x96xf32, #tpu.memory_space<vmem>>, vector<1x1x96xf32>
    %526 = vector.shape_cast %525 : vector<1x1x96xf32> to vector<1x96xf32>
    %527 = vector.broadcast %526 : vector<1x96xf32> to vector<16x96xf32>
    %528 = arith.addf %524, %527 : vector<16x96xf32>
    %c1_124 = arith.constant 1 : index
    %c0_125 = arith.constant 0 : index
    %c0_126 = arith.constant 0 : index
    %529 = vector.load %arg5[%c1_124, %c0_125, %c0_126] : memref<2x64x96xf32, #tpu.memory_space<vmem>>, vector<1x64x96xf32>
    %530 = vector.shape_cast %529 : vector<1x64x96xf32> to vector<64x96xf32>
    %cst_127 = arith.constant dense<0.000000e+00> : vector<16x96xf32>
    %531 = tpu.matmul %521, %530, %cst_127 {dimension_numbers = #tpu.dot_dimension_numbers<[1], [0], [0], [1], [0, 0, 1, 1], [], []>} : vector<16x64xf32>, vector<64x96xf32>, vector<16x96xf32> -> vector<16x96xf32>
    %c1_128 = arith.constant 1 : index
    %c0_129 = arith.constant 0 : index
    %c0_130 = arith.constant 0 : index
    %532 = vector.load %arg7[%c1_128, %c0_129, %c0_130] : memref<2x1x96xf32, #tpu.memory_space<vmem>>, vector<1x1x96xf32>
    %533 = vector.shape_cast %532 : vector<1x1x96xf32> to vector<1x96xf32>
    %534 = vector.broadcast %533 : vector<1x96xf32> to vector<16x96xf32>
    %535 = arith.addf %531, %534 : vector<16x96xf32>
    %c0_131 = arith.constant 0 : index
    %c0_132 = arith.constant 0 : index
    %c0_133 = arith.constant 0 : index
    %536 = vector.load %arg6[%c0_131, %c0_132, %c0_133] : memref<2x32x96xf32, #tpu.memory_space<vmem>>, vector<1x32x96xf32>
    %537 = vector.shape_cast %536 : vector<1x32x96xf32> to vector<32x96xf32>
    %c1_134 = arith.constant 1 : index
    %c0_135 = arith.constant 0 : index
    %c0_136 = arith.constant 0 : index
    %538 = vector.load %arg6[%c1_134, %c0_135, %c0_136] : memref<2x32x96xf32, #tpu.memory_space<vmem>>, vector<1x32x96xf32>
    %539 = vector.shape_cast %538 : vector<1x32x96xf32> to vector<32x96xf32>
    %c0_137 = arith.constant 0 : index
    %c0_138 = arith.constant 0 : index
    %c0_139 = arith.constant 0 : index
    %540 = vector.load %arg8[%c0_137, %c0_138, %c0_139] : memref<2x1x32xf32, #tpu.memory_space<vmem>>, vector<1x1x32xf32>
    %541 = vector.shape_cast %540 : vector<1x1x32xf32> to vector<1x32xf32>
    %c1_140 = arith.constant 1 : index
    %c0_141 = arith.constant 0 : index
    %c0_142 = arith.constant 0 : index
    %542 = vector.load %arg8[%c1_140, %c0_141, %c0_142] : memref<2x1x32xf32, #tpu.memory_space<vmem>>, vector<1x1x32xf32>
    %543 = vector.shape_cast %542 : vector<1x1x32xf32> to vector<1x32xf32>
    %cst_143 = arith.constant 0.000000e+00 : f32
    %544 = vector.broadcast %cst_143 : f32 to vector<2x32xf32>
    %cst_144 = arith.constant 0.000000e+00 : f32
    %545 = vector.broadcast %cst_144 : f32 to vector<2x32xf32>
    %cst_145 = arith.constant dense<0.000000e+00> : vector<2x96xf32>
    %546 = tpu.matmul %544, %537, %cst_145 {dimension_numbers = #tpu.dot_dimension_numbers<[1], [0], [0], [1], [0, 0, 1, 1], [], []>} : vector<2x32xf32>, vector<32x96xf32>, vector<2x96xf32> -> vector<2x96xf32>
    %cst_146 = arith.constant dense<0.000000e+00> : vector<2x96xf32>
    %547 = tpu.matmul %545, %539, %cst_146 {dimension_numbers = #tpu.dot_dimension_numbers<[1], [0], [0], [1], [0, 0, 1, 1], [], []>} : vector<2x32xf32>, vector<32x96xf32>, vector<2x96xf32> -> vector<2x96xf32>
    %548 = vector.extract_strided_slice %528 {offsets = [0, 0], sizes = [2, 96], strides = [1, 1]} : vector<16x96xf32> to vector<2x96xf32>
    %549 = vector.extract_strided_slice %548 {offsets = [0, 0], sizes = [2, 32], strides = [1, 1]} : vector<2x96xf32> to vector<2x32xf32>
    %550 = vector.extract_strided_slice %546 {offsets = [0, 0], sizes = [2, 32], strides = [1, 1]} : vector<2x96xf32> to vector<2x32xf32>
    %551 = arith.addf %549, %550 : vector<2x32xf32>
    %552 = arith.negf %551 : vector<2x32xf32>
    %553 = math.exp %552 : vector<2x32xf32>
    %cst_147 = arith.constant 1.000000e+00 : f32
    %554 = vector.broadcast %cst_147 : f32 to vector<2x32xf32>
    %555 = arith.addf %554, %553 : vector<2x32xf32>
    %556 = arith.divf %554, %555 : vector<2x32xf32>
    %557 = vector.extract_strided_slice %548 {offsets = [0, 32], sizes = [2, 32], strides = [1, 1]} : vector<2x96xf32> to vector<2x32xf32>
    %558 = vector.extract_strided_slice %546 {offsets = [0, 32], sizes = [2, 32], strides = [1, 1]} : vector<2x96xf32> to vector<2x32xf32>
    %559 = arith.addf %557, %558 : vector<2x32xf32>
    %560 = arith.negf %559 : vector<2x32xf32>
    %561 = math.exp %560 : vector<2x32xf32>
    %cst_148 = arith.constant 1.000000e+00 : f32
    %562 = vector.broadcast %cst_148 : f32 to vector<2x32xf32>
    %563 = arith.addf %562, %561 : vector<2x32xf32>
    %564 = arith.divf %562, %563 : vector<2x32xf32>
    %565 = vector.extract_strided_slice %548 {offsets = [0, 64], sizes = [2, 32], strides = [1, 1]} : vector<2x96xf32> to vector<2x32xf32>
    %566 = vector.extract_strided_slice %546 {offsets = [0, 64], sizes = [2, 32], strides = [1, 1]} : vector<2x96xf32> to vector<2x32xf32>
    %567 = vector.broadcast %541 : vector<1x32xf32> to vector<2x32xf32>
    %568 = arith.addf %566, %567 : vector<2x32xf32>
    %569 = arith.mulf %556, %568 : vector<2x32xf32>
    %570 = arith.addf %565, %569 : vector<2x32xf32>
    %571 = math.tanh %570 : vector<2x32xf32>
    %cst_149 = arith.constant 1.000000e+00 : f32
    %572 = vector.broadcast %cst_149 : f32 to vector<2x32xf32>
    %573 = arith.subf %572, %564 : vector<2x32xf32>
    %574 = arith.mulf %573, %571 : vector<2x32xf32>
    %575 = arith.mulf %564, %544 : vector<2x32xf32>
    %576 = arith.addf %574, %575 : vector<2x32xf32>
    %577 = vector.extract_strided_slice %535 {offsets = [14, 0], sizes = [2, 96], strides = [1, 1]} : vector<16x96xf32> to vector<2x96xf32>
    %578 = vector.extract_strided_slice %577 {offsets = [0, 0], sizes = [2, 32], strides = [1, 1]} : vector<2x96xf32> to vector<2x32xf32>
    %579 = vector.extract_strided_slice %547 {offsets = [0, 0], sizes = [2, 32], strides = [1, 1]} : vector<2x96xf32> to vector<2x32xf32>
    %580 = arith.addf %578, %579 : vector<2x32xf32>
    %581 = arith.negf %580 : vector<2x32xf32>
    %582 = math.exp %581 : vector<2x32xf32>
    %cst_150 = arith.constant 1.000000e+00 : f32
    %583 = vector.broadcast %cst_150 : f32 to vector<2x32xf32>
    %584 = arith.addf %583, %582 : vector<2x32xf32>
    %585 = arith.divf %583, %584 : vector<2x32xf32>
    %586 = vector.extract_strided_slice %577 {offsets = [0, 32], sizes = [2, 32], strides = [1, 1]} : vector<2x96xf32> to vector<2x32xf32>
    %587 = vector.extract_strided_slice %547 {offsets = [0, 32], sizes = [2, 32], strides = [1, 1]} : vector<2x96xf32> to vector<2x32xf32>
    %588 = arith.addf %586, %587 : vector<2x32xf32>
    %589 = arith.negf %588 : vector<2x32xf32>
    %590 = math.exp %589 : vector<2x32xf32>
    %cst_151 = arith.constant 1.000000e+00 : f32
    %591 = vector.broadcast %cst_151 : f32 to vector<2x32xf32>
    %592 = arith.addf %591, %590 : vector<2x32xf32>
    %593 = arith.divf %591, %592 : vector<2x32xf32>
    %594 = vector.extract_strided_slice %577 {offsets = [0, 64], sizes = [2, 32], strides = [1, 1]} : vector<2x96xf32> to vector<2x32xf32>
    %595 = vector.extract_strided_slice %547 {offsets = [0, 64], sizes = [2, 32], strides = [1, 1]} : vector<2x96xf32> to vector<2x32xf32>
    %596 = vector.broadcast %543 : vector<1x32xf32> to vector<2x32xf32>
    %597 = arith.addf %595, %596 : vector<2x32xf32>
    %598 = arith.mulf %585, %597 : vector<2x32xf32>
    %599 = arith.addf %594, %598 : vector<2x32xf32>
    %600 = math.tanh %599 : vector<2x32xf32>
    %cst_152 = arith.constant 1.000000e+00 : f32
    %601 = vector.broadcast %cst_152 : f32 to vector<2x32xf32>
    %602 = arith.subf %601, %593 : vector<2x32xf32>
    %603 = arith.mulf %602, %600 : vector<2x32xf32>
    %604 = arith.mulf %593, %545 : vector<2x32xf32>
    %605 = arith.addf %603, %604 : vector<2x32xf32>
    %c0_153 = arith.constant 0 : index
    %c0_154 = arith.constant 0 : index
    %606 = vector.load %arg24[%c0_153, %c0_154] : memref<16x64xf32, #tpu.memory_space<vmem>>, vector<2x32xf32>
    tpu.vector_store %arg24[%c0_153, %c0_154], %576 {strides = array<i32>} : memref<16x64xf32, #tpu.memory_space<vmem>>, vector<2x32xf32>,
    %c14_155 = arith.constant 14 : index
    %c32_156 = arith.constant 32 : index
    %607 = vector.load %arg24[%c14_155, %c32_156] : memref<16x64xf32, #tpu.memory_space<vmem>>, vector<2x32xf32>
    tpu.vector_store %arg24[%c14_155, %c32_156], %605 {strides = array<i32>} : memref<16x64xf32, #tpu.memory_space<vmem>>, vector<2x32xf32>,
    %cst_157 = arith.constant dense<0.000000e+00> : vector<2x96xf32>
    %608 = tpu.matmul %576, %537, %cst_157 {dimension_numbers = #tpu.dot_dimension_numbers<[1], [0], [0], [1], [0, 0, 1, 1], [], []>} : vector<2x32xf32>, vector<32x96xf32>, vector<2x96xf32> -> vector<2x96xf32>
    %cst_158 = arith.constant dense<0.000000e+00> : vector<2x96xf32>
    %609 = tpu.matmul %605, %539, %cst_158 {dimension_numbers = #tpu.dot_dimension_numbers<[1], [0], [0], [1], [0, 0, 1, 1], [], []>} : vector<2x32xf32>, vector<32x96xf32>, vector<2x96xf32> -> vector<2x96xf32>
    %610 = vector.extract_strided_slice %528 {offsets = [2, 0], sizes = [2, 96], strides = [1, 1]} : vector<16x96xf32> to vector<2x96xf32>
    %611 = vector.extract_strided_slice %610 {offsets = [0, 0], sizes = [2, 32], strides = [1, 1]} : vector<2x96xf32> to vector<2x32xf32>
    %612 = vector.extract_strided_slice %608 {offsets = [0, 0], sizes = [2, 32], strides = [1, 1]} : vector<2x96xf32> to vector<2x32xf32>
    %613 = arith.addf %611, %612 : vector<2x32xf32>
    %614 = arith.negf %613 : vector<2x32xf32>
    %615 = math.exp %614 : vector<2x32xf32>
    %cst_159 = arith.constant 1.000000e+00 : f32
    %616 = vector.broadcast %cst_159 : f32 to vector<2x32xf32>
    %617 = arith.addf %616, %615 : vector<2x32xf32>
    %618 = arith.divf %616, %617 : vector<2x32xf32>
    %619 = vector.extract_strided_slice %610 {offsets = [0, 32], sizes = [2, 32], strides = [1, 1]} : vector<2x96xf32> to vector<2x32xf32>
    %620 = vector.extract_strided_slice %608 {offsets = [0, 32], sizes = [2, 32], strides = [1, 1]} : vector<2x96xf32> to vector<2x32xf32>
    %621 = arith.addf %619, %620 : vector<2x32xf32>
    %622 = arith.negf %621 : vector<2x32xf32>
    %623 = math.exp %622 : vector<2x32xf32>
    %cst_160 = arith.constant 1.000000e+00 : f32
    %624 = vector.broadcast %cst_160 : f32 to vector<2x32xf32>
    %625 = arith.addf %624, %623 : vector<2x32xf32>
    %626 = arith.divf %624, %625 : vector<2x32xf32>
    %627 = vector.extract_strided_slice %610 {offsets = [0, 64], sizes = [2, 32], strides = [1, 1]} : vector<2x96xf32> to vector<2x32xf32>
    %628 = vector.extract_strided_slice %608 {offsets = [0, 64], sizes = [2, 32], strides = [1, 1]} : vector<2x96xf32> to vector<2x32xf32>
    %629 = vector.broadcast %541 : vector<1x32xf32> to vector<2x32xf32>
    %630 = arith.addf %628, %629 : vector<2x32xf32>
    %631 = arith.mulf %618, %630 : vector<2x32xf32>
    %632 = arith.addf %627, %631 : vector<2x32xf32>
    %633 = math.tanh %632 : vector<2x32xf32>
    %cst_161 = arith.constant 1.000000e+00 : f32
    %634 = vector.broadcast %cst_161 : f32 to vector<2x32xf32>
    %635 = arith.subf %634, %626 : vector<2x32xf32>
    %636 = arith.mulf %635, %633 : vector<2x32xf32>
    %637 = arith.mulf %626, %576 : vector<2x32xf32>
    %638 = arith.addf %636, %637 : vector<2x32xf32>
    %639 = vector.extract_strided_slice %535 {offsets = [12, 0], sizes = [2, 96], strides = [1, 1]} : vector<16x96xf32> to vector<2x96xf32>
    %640 = vector.extract_strided_slice %639 {offsets = [0, 0], sizes = [2, 32], strides = [1, 1]} : vector<2x96xf32> to vector<2x32xf32>
    %641 = vector.extract_strided_slice %609 {offsets = [0, 0], sizes = [2, 32], strides = [1, 1]} : vector<2x96xf32> to vector<2x32xf32>
    %642 = arith.addf %640, %641 : vector<2x32xf32>
    %643 = arith.negf %642 : vector<2x32xf32>
    %644 = math.exp %643 : vector<2x32xf32>
    %cst_162 = arith.constant 1.000000e+00 : f32
    %645 = vector.broadcast %cst_162 : f32 to vector<2x32xf32>
    %646 = arith.addf %645, %644 : vector<2x32xf32>
    %647 = arith.divf %645, %646 : vector<2x32xf32>
    %648 = vector.extract_strided_slice %639 {offsets = [0, 32], sizes = [2, 32], strides = [1, 1]} : vector<2x96xf32> to vector<2x32xf32>
    %649 = vector.extract_strided_slice %609 {offsets = [0, 32], sizes = [2, 32], strides = [1, 1]} : vector<2x96xf32> to vector<2x32xf32>
    %650 = arith.addf %648, %649 : vector<2x32xf32>
    %651 = arith.negf %650 : vector<2x32xf32>
    %652 = math.exp %651 : vector<2x32xf32>
    %cst_163 = arith.constant 1.000000e+00 : f32
    %653 = vector.broadcast %cst_163 : f32 to vector<2x32xf32>
    %654 = arith.addf %653, %652 : vector<2x32xf32>
    %655 = arith.divf %653, %654 : vector<2x32xf32>
    %656 = vector.extract_strided_slice %639 {offsets = [0, 64], sizes = [2, 32], strides = [1, 1]} : vector<2x96xf32> to vector<2x32xf32>
    %657 = vector.extract_strided_slice %609 {offsets = [0, 64], sizes = [2, 32], strides = [1, 1]} : vector<2x96xf32> to vector<2x32xf32>
    %658 = vector.broadcast %543 : vector<1x32xf32> to vector<2x32xf32>
    %659 = arith.addf %657, %658 : vector<2x32xf32>
    %660 = arith.mulf %647, %659 : vector<2x32xf32>
    %661 = arith.addf %656, %660 : vector<2x32xf32>
    %662 = math.tanh %661 : vector<2x32xf32>
    %cst_164 = arith.constant 1.000000e+00 : f32
    %663 = vector.broadcast %cst_164 : f32 to vector<2x32xf32>
    %664 = arith.subf %663, %655 : vector<2x32xf32>
    %665 = arith.mulf %664, %662 : vector<2x32xf32>
    %666 = arith.mulf %655, %605 : vector<2x32xf32>
    %667 = arith.addf %665, %666 : vector<2x32xf32>
    %c2_165 = arith.constant 2 : index
    %c0_166 = arith.constant 0 : index
    %668 = vector.load %arg24[%c2_165, %c0_166] : memref<16x64xf32, #tpu.memory_space<vmem>>, vector<2x32xf32>
    tpu.vector_store %arg24[%c2_165, %c0_166], %638 {strides = array<i32>} : memref<16x64xf32, #tpu.memory_space<vmem>>, vector<2x32xf32>,
    %c12_167 = arith.constant 12 : index
    %c32_168 = arith.constant 32 : index
    %669 = vector.load %arg24[%c12_167, %c32_168] : memref<16x64xf32, #tpu.memory_space<vmem>>, vector<2x32xf32>
    tpu.vector_store %arg24[%c12_167, %c32_168], %667 {strides = array<i32>} : memref<16x64xf32, #tpu.memory_space<vmem>>, vector<2x32xf32>,
    %cst_169 = arith.constant dense<0.000000e+00> : vector<2x96xf32>
    %670 = tpu.matmul %638, %537, %cst_169 {dimension_numbers = #tpu.dot_dimension_numbers<[1], [0], [0], [1], [0, 0, 1, 1], [], []>} : vector<2x32xf32>, vector<32x96xf32>, vector<2x96xf32> -> vector<2x96xf32>
    %cst_170 = arith.constant dense<0.000000e+00> : vector<2x96xf32>
    %671 = tpu.matmul %667, %539, %cst_170 {dimension_numbers = #tpu.dot_dimension_numbers<[1], [0], [0], [1], [0, 0, 1, 1], [], []>} : vector<2x32xf32>, vector<32x96xf32>, vector<2x96xf32> -> vector<2x96xf32>
    %672 = vector.extract_strided_slice %528 {offsets = [4, 0], sizes = [2, 96], strides = [1, 1]} : vector<16x96xf32> to vector<2x96xf32>
    %673 = vector.extract_strided_slice %672 {offsets = [0, 0], sizes = [2, 32], strides = [1, 1]} : vector<2x96xf32> to vector<2x32xf32>
    %674 = vector.extract_strided_slice %670 {offsets = [0, 0], sizes = [2, 32], strides = [1, 1]} : vector<2x96xf32> to vector<2x32xf32>
    %675 = arith.addf %673, %674 : vector<2x32xf32>
    %676 = arith.negf %675 : vector<2x32xf32>
    %677 = math.exp %676 : vector<2x32xf32>
    %cst_171 = arith.constant 1.000000e+00 : f32
    %678 = vector.broadcast %cst_171 : f32 to vector<2x32xf32>
    %679 = arith.addf %678, %677 : vector<2x32xf32>
    %680 = arith.divf %678, %679 : vector<2x32xf32>
    %681 = vector.extract_strided_slice %672 {offsets = [0, 32], sizes = [2, 32], strides = [1, 1]} : vector<2x96xf32> to vector<2x32xf32>
    %682 = vector.extract_strided_slice %670 {offsets = [0, 32], sizes = [2, 32], strides = [1, 1]} : vector<2x96xf32> to vector<2x32xf32>
    %683 = arith.addf %681, %682 : vector<2x32xf32>
    %684 = arith.negf %683 : vector<2x32xf32>
    %685 = math.exp %684 : vector<2x32xf32>
    %cst_172 = arith.constant 1.000000e+00 : f32
    %686 = vector.broadcast %cst_172 : f32 to vector<2x32xf32>
    %687 = arith.addf %686, %685 : vector<2x32xf32>
    %688 = arith.divf %686, %687 : vector<2x32xf32>
    %689 = vector.extract_strided_slice %672 {offsets = [0, 64], sizes = [2, 32], strides = [1, 1]} : vector<2x96xf32> to vector<2x32xf32>
    %690 = vector.extract_strided_slice %670 {offsets = [0, 64], sizes = [2, 32], strides = [1, 1]} : vector<2x96xf32> to vector<2x32xf32>
    %691 = vector.broadcast %541 : vector<1x32xf32> to vector<2x32xf32>
    %692 = arith.addf %690, %691 : vector<2x32xf32>
    %693 = arith.mulf %680, %692 : vector<2x32xf32>
    %694 = arith.addf %689, %693 : vector<2x32xf32>
    %695 = math.tanh %694 : vector<2x32xf32>
    %cst_173 = arith.constant 1.000000e+00 : f32
    %696 = vector.broadcast %cst_173 : f32 to vector<2x32xf32>
    %697 = arith.subf %696, %688 : vector<2x32xf32>
    %698 = arith.mulf %697, %695 : vector<2x32xf32>
    %699 = arith.mulf %688, %638 : vector<2x32xf32>
    %700 = arith.addf %698, %699 : vector<2x32xf32>
    %701 = vector.extract_strided_slice %535 {offsets = [10, 0], sizes = [2, 96], strides = [1, 1]} : vector<16x96xf32> to vector<2x96xf32>
    %702 = vector.extract_strided_slice %701 {offsets = [0, 0], sizes = [2, 32], strides = [1, 1]} : vector<2x96xf32> to vector<2x32xf32>
    %703 = vector.extract_strided_slice %671 {offsets = [0, 0], sizes = [2, 32], strides = [1, 1]} : vector<2x96xf32> to vector<2x32xf32>
    %704 = arith.addf %702, %703 : vector<2x32xf32>
    %705 = arith.negf %704 : vector<2x32xf32>
    %706 = math.exp %705 : vector<2x32xf32>
    %cst_174 = arith.constant 1.000000e+00 : f32
    %707 = vector.broadcast %cst_174 : f32 to vector<2x32xf32>
    %708 = arith.addf %707, %706 : vector<2x32xf32>
    %709 = arith.divf %707, %708 : vector<2x32xf32>
    %710 = vector.extract_strided_slice %701 {offsets = [0, 32], sizes = [2, 32], strides = [1, 1]} : vector<2x96xf32> to vector<2x32xf32>
    %711 = vector.extract_strided_slice %671 {offsets = [0, 32], sizes = [2, 32], strides = [1, 1]} : vector<2x96xf32> to vector<2x32xf32>
    %712 = arith.addf %710, %711 : vector<2x32xf32>
    %713 = arith.negf %712 : vector<2x32xf32>
    %714 = math.exp %713 : vector<2x32xf32>
    %cst_175 = arith.constant 1.000000e+00 : f32
    %715 = vector.broadcast %cst_175 : f32 to vector<2x32xf32>
    %716 = arith.addf %715, %714 : vector<2x32xf32>
    %717 = arith.divf %715, %716 : vector<2x32xf32>
    %718 = vector.extract_strided_slice %701 {offsets = [0, 64], sizes = [2, 32], strides = [1, 1]} : vector<2x96xf32> to vector<2x32xf32>
    %719 = vector.extract_strided_slice %671 {offsets = [0, 64], sizes = [2, 32], strides = [1, 1]} : vector<2x96xf32> to vector<2x32xf32>
    %720 = vector.broadcast %543 : vector<1x32xf32> to vector<2x32xf32>
    %721 = arith.addf %719, %720 : vector<2x32xf32>
    %722 = arith.mulf %709, %721 : vector<2x32xf32>
    %723 = arith.addf %718, %722 : vector<2x32xf32>
    %724 = math.tanh %723 : vector<2x32xf32>
    %cst_176 = arith.constant 1.000000e+00 : f32
    %725 = vector.broadcast %cst_176 : f32 to vector<2x32xf32>
    %726 = arith.subf %725, %717 : vector<2x32xf32>
    %727 = arith.mulf %726, %724 : vector<2x32xf32>
    %728 = arith.mulf %717, %667 : vector<2x32xf32>
    %729 = arith.addf %727, %728 : vector<2x32xf32>
    %c4_177 = arith.constant 4 : index
    %c0_178 = arith.constant 0 : index
    %730 = vector.load %arg24[%c4_177, %c0_178] : memref<16x64xf32, #tpu.memory_space<vmem>>, vector<2x32xf32>
    tpu.vector_store %arg24[%c4_177, %c0_178], %700 {strides = array<i32>} : memref<16x64xf32, #tpu.memory_space<vmem>>, vector<2x32xf32>,
    %c10_179 = arith.constant 10 : index
    %c32_180 = arith.constant 32 : index
    %731 = vector.load %arg24[%c10_179, %c32_180] : memref<16x64xf32, #tpu.memory_space<vmem>>, vector<2x32xf32>
    tpu.vector_store %arg24[%c10_179, %c32_180], %729 {strides = array<i32>} : memref<16x64xf32, #tpu.memory_space<vmem>>, vector<2x32xf32>,
    %cst_181 = arith.constant dense<0.000000e+00> : vector<2x96xf32>
    %732 = tpu.matmul %700, %537, %cst_181 {dimension_numbers = #tpu.dot_dimension_numbers<[1], [0], [0], [1], [0, 0, 1, 1], [], []>} : vector<2x32xf32>, vector<32x96xf32>, vector<2x96xf32> -> vector<2x96xf32>
    %cst_182 = arith.constant dense<0.000000e+00> : vector<2x96xf32>
    %733 = tpu.matmul %729, %539, %cst_182 {dimension_numbers = #tpu.dot_dimension_numbers<[1], [0], [0], [1], [0, 0, 1, 1], [], []>} : vector<2x32xf32>, vector<32x96xf32>, vector<2x96xf32> -> vector<2x96xf32>
    %734 = vector.extract_strided_slice %528 {offsets = [6, 0], sizes = [2, 96], strides = [1, 1]} : vector<16x96xf32> to vector<2x96xf32>
    %735 = vector.extract_strided_slice %734 {offsets = [0, 0], sizes = [2, 32], strides = [1, 1]} : vector<2x96xf32> to vector<2x32xf32>
    %736 = vector.extract_strided_slice %732 {offsets = [0, 0], sizes = [2, 32], strides = [1, 1]} : vector<2x96xf32> to vector<2x32xf32>
    %737 = arith.addf %735, %736 : vector<2x32xf32>
    %738 = arith.negf %737 : vector<2x32xf32>
    %739 = math.exp %738 : vector<2x32xf32>
    %cst_183 = arith.constant 1.000000e+00 : f32
    %740 = vector.broadcast %cst_183 : f32 to vector<2x32xf32>
    %741 = arith.addf %740, %739 : vector<2x32xf32>
    %742 = arith.divf %740, %741 : vector<2x32xf32>
    %743 = vector.extract_strided_slice %734 {offsets = [0, 32], sizes = [2, 32], strides = [1, 1]} : vector<2x96xf32> to vector<2x32xf32>
    %744 = vector.extract_strided_slice %732 {offsets = [0, 32], sizes = [2, 32], strides = [1, 1]} : vector<2x96xf32> to vector<2x32xf32>
    %745 = arith.addf %743, %744 : vector<2x32xf32>
    %746 = arith.negf %745 : vector<2x32xf32>
    %747 = math.exp %746 : vector<2x32xf32>
    %cst_184 = arith.constant 1.000000e+00 : f32
    %748 = vector.broadcast %cst_184 : f32 to vector<2x32xf32>
    %749 = arith.addf %748, %747 : vector<2x32xf32>
    %750 = arith.divf %748, %749 : vector<2x32xf32>
    %751 = vector.extract_strided_slice %734 {offsets = [0, 64], sizes = [2, 32], strides = [1, 1]} : vector<2x96xf32> to vector<2x32xf32>
    %752 = vector.extract_strided_slice %732 {offsets = [0, 64], sizes = [2, 32], strides = [1, 1]} : vector<2x96xf32> to vector<2x32xf32>
    %753 = vector.broadcast %541 : vector<1x32xf32> to vector<2x32xf32>
    %754 = arith.addf %752, %753 : vector<2x32xf32>
    %755 = arith.mulf %742, %754 : vector<2x32xf32>
    %756 = arith.addf %751, %755 : vector<2x32xf32>
    %757 = math.tanh %756 : vector<2x32xf32>
    %cst_185 = arith.constant 1.000000e+00 : f32
    %758 = vector.broadcast %cst_185 : f32 to vector<2x32xf32>
    %759 = arith.subf %758, %750 : vector<2x32xf32>
    %760 = arith.mulf %759, %757 : vector<2x32xf32>
    %761 = arith.mulf %750, %700 : vector<2x32xf32>
    %762 = arith.addf %760, %761 : vector<2x32xf32>
    %763 = vector.extract_strided_slice %535 {offsets = [8, 0], sizes = [2, 96], strides = [1, 1]} : vector<16x96xf32> to vector<2x96xf32>
    %764 = vector.extract_strided_slice %763 {offsets = [0, 0], sizes = [2, 32], strides = [1, 1]} : vector<2x96xf32> to vector<2x32xf32>
    %765 = vector.extract_strided_slice %733 {offsets = [0, 0], sizes = [2, 32], strides = [1, 1]} : vector<2x96xf32> to vector<2x32xf32>
    %766 = arith.addf %764, %765 : vector<2x32xf32>
    %767 = arith.negf %766 : vector<2x32xf32>
    %768 = math.exp %767 : vector<2x32xf32>
    %cst_186 = arith.constant 1.000000e+00 : f32
    %769 = vector.broadcast %cst_186 : f32 to vector<2x32xf32>
    %770 = arith.addf %769, %768 : vector<2x32xf32>
    %771 = arith.divf %769, %770 : vector<2x32xf32>
    %772 = vector.extract_strided_slice %763 {offsets = [0, 32], sizes = [2, 32], strides = [1, 1]} : vector<2x96xf32> to vector<2x32xf32>
    %773 = vector.extract_strided_slice %733 {offsets = [0, 32], sizes = [2, 32], strides = [1, 1]} : vector<2x96xf32> to vector<2x32xf32>
    %774 = arith.addf %772, %773 : vector<2x32xf32>
    %775 = arith.negf %774 : vector<2x32xf32>
    %776 = math.exp %775 : vector<2x32xf32>
    %cst_187 = arith.constant 1.000000e+00 : f32
    %777 = vector.broadcast %cst_187 : f32 to vector<2x32xf32>
    %778 = arith.addf %777, %776 : vector<2x32xf32>
    %779 = arith.divf %777, %778 : vector<2x32xf32>
    %780 = vector.extract_strided_slice %763 {offsets = [0, 64], sizes = [2, 32], strides = [1, 1]} : vector<2x96xf32> to vector<2x32xf32>
    %781 = vector.extract_strided_slice %733 {offsets = [0, 64], sizes = [2, 32], strides = [1, 1]} : vector<2x96xf32> to vector<2x32xf32>
    %782 = vector.broadcast %543 : vector<1x32xf32> to vector<2x32xf32>
    %783 = arith.addf %781, %782 : vector<2x32xf32>
    %784 = arith.mulf %771, %783 : vector<2x32xf32>
    %785 = arith.addf %780, %784 : vector<2x32xf32>
    %786 = math.tanh %785 : vector<2x32xf32>
    %cst_188 = arith.constant 1.000000e+00 : f32
    %787 = vector.broadcast %cst_188 : f32 to vector<2x32xf32>
    %788 = arith.subf %787, %779 : vector<2x32xf32>
    %789 = arith.mulf %788, %786 : vector<2x32xf32>
    %790 = arith.mulf %779, %729 : vector<2x32xf32>
    %791 = arith.addf %789, %790 : vector<2x32xf32>
    %c6_189 = arith.constant 6 : index
    %c0_190 = arith.constant 0 : index
    %792 = vector.load %arg24[%c6_189, %c0_190] : memref<16x64xf32, #tpu.memory_space<vmem>>, vector<2x32xf32>
    tpu.vector_store %arg24[%c6_189, %c0_190], %762 {strides = array<i32>} : memref<16x64xf32, #tpu.memory_space<vmem>>, vector<2x32xf32>,
    %c8_191 = arith.constant 8 : index
    %c32_192 = arith.constant 32 : index
    %793 = vector.load %arg24[%c8_191, %c32_192] : memref<16x64xf32, #tpu.memory_space<vmem>>, vector<2x32xf32>
    tpu.vector_store %arg24[%c8_191, %c32_192], %791 {strides = array<i32>} : memref<16x64xf32, #tpu.memory_space<vmem>>, vector<2x32xf32>,
    %cst_193 = arith.constant dense<0.000000e+00> : vector<2x96xf32>
    %794 = tpu.matmul %762, %537, %cst_193 {dimension_numbers = #tpu.dot_dimension_numbers<[1], [0], [0], [1], [0, 0, 1, 1], [], []>} : vector<2x32xf32>, vector<32x96xf32>, vector<2x96xf32> -> vector<2x96xf32>
    %cst_194 = arith.constant dense<0.000000e+00> : vector<2x96xf32>
    %795 = tpu.matmul %791, %539, %cst_194 {dimension_numbers = #tpu.dot_dimension_numbers<[1], [0], [0], [1], [0, 0, 1, 1], [], []>} : vector<2x32xf32>, vector<32x96xf32>, vector<2x96xf32> -> vector<2x96xf32>
    %796 = vector.extract_strided_slice %528 {offsets = [8, 0], sizes = [2, 96], strides = [1, 1]} : vector<16x96xf32> to vector<2x96xf32>
    %797 = vector.extract_strided_slice %796 {offsets = [0, 0], sizes = [2, 32], strides = [1, 1]} : vector<2x96xf32> to vector<2x32xf32>
    %798 = vector.extract_strided_slice %794 {offsets = [0, 0], sizes = [2, 32], strides = [1, 1]} : vector<2x96xf32> to vector<2x32xf32>
    %799 = arith.addf %797, %798 : vector<2x32xf32>
    %800 = arith.negf %799 : vector<2x32xf32>
    %801 = math.exp %800 : vector<2x32xf32>
    %cst_195 = arith.constant 1.000000e+00 : f32
    %802 = vector.broadcast %cst_195 : f32 to vector<2x32xf32>
    %803 = arith.addf %802, %801 : vector<2x32xf32>
    %804 = arith.divf %802, %803 : vector<2x32xf32>
    %805 = vector.extract_strided_slice %796 {offsets = [0, 32], sizes = [2, 32], strides = [1, 1]} : vector<2x96xf32> to vector<2x32xf32>
    %806 = vector.extract_strided_slice %794 {offsets = [0, 32], sizes = [2, 32], strides = [1, 1]} : vector<2x96xf32> to vector<2x32xf32>
    %807 = arith.addf %805, %806 : vector<2x32xf32>
    %808 = arith.negf %807 : vector<2x32xf32>
    %809 = math.exp %808 : vector<2x32xf32>
    %cst_196 = arith.constant 1.000000e+00 : f32
    %810 = vector.broadcast %cst_196 : f32 to vector<2x32xf32>
    %811 = arith.addf %810, %809 : vector<2x32xf32>
    %812 = arith.divf %810, %811 : vector<2x32xf32>
    %813 = vector.extract_strided_slice %796 {offsets = [0, 64], sizes = [2, 32], strides = [1, 1]} : vector<2x96xf32> to vector<2x32xf32>
    %814 = vector.extract_strided_slice %794 {offsets = [0, 64], sizes = [2, 32], strides = [1, 1]} : vector<2x96xf32> to vector<2x32xf32>
    %815 = vector.broadcast %541 : vector<1x32xf32> to vector<2x32xf32>
    %816 = arith.addf %814, %815 : vector<2x32xf32>
    %817 = arith.mulf %804, %816 : vector<2x32xf32>
    %818 = arith.addf %813, %817 : vector<2x32xf32>
    %819 = math.tanh %818 : vector<2x32xf32>
    %cst_197 = arith.constant 1.000000e+00 : f32
    %820 = vector.broadcast %cst_197 : f32 to vector<2x32xf32>
    %821 = arith.subf %820, %812 : vector<2x32xf32>
    %822 = arith.mulf %821, %819 : vector<2x32xf32>
    %823 = arith.mulf %812, %762 : vector<2x32xf32>
    %824 = arith.addf %822, %823 : vector<2x32xf32>
    %825 = vector.extract_strided_slice %535 {offsets = [6, 0], sizes = [2, 96], strides = [1, 1]} : vector<16x96xf32> to vector<2x96xf32>
    %826 = vector.extract_strided_slice %825 {offsets = [0, 0], sizes = [2, 32], strides = [1, 1]} : vector<2x96xf32> to vector<2x32xf32>
    %827 = vector.extract_strided_slice %795 {offsets = [0, 0], sizes = [2, 32], strides = [1, 1]} : vector<2x96xf32> to vector<2x32xf32>
    %828 = arith.addf %826, %827 : vector<2x32xf32>
    %829 = arith.negf %828 : vector<2x32xf32>
    %830 = math.exp %829 : vector<2x32xf32>
    %cst_198 = arith.constant 1.000000e+00 : f32
    %831 = vector.broadcast %cst_198 : f32 to vector<2x32xf32>
    %832 = arith.addf %831, %830 : vector<2x32xf32>
    %833 = arith.divf %831, %832 : vector<2x32xf32>
    %834 = vector.extract_strided_slice %825 {offsets = [0, 32], sizes = [2, 32], strides = [1, 1]} : vector<2x96xf32> to vector<2x32xf32>
    %835 = vector.extract_strided_slice %795 {offsets = [0, 32], sizes = [2, 32], strides = [1, 1]} : vector<2x96xf32> to vector<2x32xf32>
    %836 = arith.addf %834, %835 : vector<2x32xf32>
    %837 = arith.negf %836 : vector<2x32xf32>
    %838 = math.exp %837 : vector<2x32xf32>
    %cst_199 = arith.constant 1.000000e+00 : f32
    %839 = vector.broadcast %cst_199 : f32 to vector<2x32xf32>
    %840 = arith.addf %839, %838 : vector<2x32xf32>
    %841 = arith.divf %839, %840 : vector<2x32xf32>
    %842 = vector.extract_strided_slice %825 {offsets = [0, 64], sizes = [2, 32], strides = [1, 1]} : vector<2x96xf32> to vector<2x32xf32>
    %843 = vector.extract_strided_slice %795 {offsets = [0, 64], sizes = [2, 32], strides = [1, 1]} : vector<2x96xf32> to vector<2x32xf32>
    %844 = vector.broadcast %543 : vector<1x32xf32> to vector<2x32xf32>
    %845 = arith.addf %843, %844 : vector<2x32xf32>
    %846 = arith.mulf %833, %845 : vector<2x32xf32>
    %847 = arith.addf %842, %846 : vector<2x32xf32>
    %848 = math.tanh %847 : vector<2x32xf32>
    %cst_200 = arith.constant 1.000000e+00 : f32
    %849 = vector.broadcast %cst_200 : f32 to vector<2x32xf32>
    %850 = arith.subf %849, %841 : vector<2x32xf32>
    %851 = arith.mulf %850, %848 : vector<2x32xf32>
    %852 = arith.mulf %841, %791 : vector<2x32xf32>
    %853 = arith.addf %851, %852 : vector<2x32xf32>
    %c8_201 = arith.constant 8 : index
    %c0_202 = arith.constant 0 : index
    %854 = vector.load %arg24[%c8_201, %c0_202] : memref<16x64xf32, #tpu.memory_space<vmem>>, vector<2x32xf32>
    tpu.vector_store %arg24[%c8_201, %c0_202], %824 {strides = array<i32>} : memref<16x64xf32, #tpu.memory_space<vmem>>, vector<2x32xf32>,
    %c6_203 = arith.constant 6 : index
    %c32_204 = arith.constant 32 : index
    %855 = vector.load %arg24[%c6_203, %c32_204] : memref<16x64xf32, #tpu.memory_space<vmem>>, vector<2x32xf32>
    tpu.vector_store %arg24[%c6_203, %c32_204], %853 {strides = array<i32>} : memref<16x64xf32, #tpu.memory_space<vmem>>, vector<2x32xf32>,
    %cst_205 = arith.constant dense<0.000000e+00> : vector<2x96xf32>
    %856 = tpu.matmul %824, %537, %cst_205 {dimension_numbers = #tpu.dot_dimension_numbers<[1], [0], [0], [1], [0, 0, 1, 1], [], []>} : vector<2x32xf32>, vector<32x96xf32>, vector<2x96xf32> -> vector<2x96xf32>
    %cst_206 = arith.constant dense<0.000000e+00> : vector<2x96xf32>
    %857 = tpu.matmul %853, %539, %cst_206 {dimension_numbers = #tpu.dot_dimension_numbers<[1], [0], [0], [1], [0, 0, 1, 1], [], []>} : vector<2x32xf32>, vector<32x96xf32>, vector<2x96xf32> -> vector<2x96xf32>
    %858 = vector.extract_strided_slice %528 {offsets = [10, 0], sizes = [2, 96], strides = [1, 1]} : vector<16x96xf32> to vector<2x96xf32>
    %859 = vector.extract_strided_slice %858 {offsets = [0, 0], sizes = [2, 32], strides = [1, 1]} : vector<2x96xf32> to vector<2x32xf32>
    %860 = vector.extract_strided_slice %856 {offsets = [0, 0], sizes = [2, 32], strides = [1, 1]} : vector<2x96xf32> to vector<2x32xf32>
    %861 = arith.addf %859, %860 : vector<2x32xf32>
    %862 = arith.negf %861 : vector<2x32xf32>
    %863 = math.exp %862 : vector<2x32xf32>
    %cst_207 = arith.constant 1.000000e+00 : f32
    %864 = vector.broadcast %cst_207 : f32 to vector<2x32xf32>
    %865 = arith.addf %864, %863 : vector<2x32xf32>
    %866 = arith.divf %864, %865 : vector<2x32xf32>
    %867 = vector.extract_strided_slice %858 {offsets = [0, 32], sizes = [2, 32], strides = [1, 1]} : vector<2x96xf32> to vector<2x32xf32>
    %868 = vector.extract_strided_slice %856 {offsets = [0, 32], sizes = [2, 32], strides = [1, 1]} : vector<2x96xf32> to vector<2x32xf32>
    %869 = arith.addf %867, %868 : vector<2x32xf32>
    %870 = arith.negf %869 : vector<2x32xf32>
    %871 = math.exp %870 : vector<2x32xf32>
    %cst_208 = arith.constant 1.000000e+00 : f32
    %872 = vector.broadcast %cst_208 : f32 to vector<2x32xf32>
    %873 = arith.addf %872, %871 : vector<2x32xf32>
    %874 = arith.divf %872, %873 : vector<2x32xf32>
    %875 = vector.extract_strided_slice %858 {offsets = [0, 64], sizes = [2, 32], strides = [1, 1]} : vector<2x96xf32> to vector<2x32xf32>
    %876 = vector.extract_strided_slice %856 {offsets = [0, 64], sizes = [2, 32], strides = [1, 1]} : vector<2x96xf32> to vector<2x32xf32>
    %877 = vector.broadcast %541 : vector<1x32xf32> to vector<2x32xf32>
    %878 = arith.addf %876, %877 : vector<2x32xf32>
    %879 = arith.mulf %866, %878 : vector<2x32xf32>
    %880 = arith.addf %875, %879 : vector<2x32xf32>
    %881 = math.tanh %880 : vector<2x32xf32>
    %cst_209 = arith.constant 1.000000e+00 : f32
    %882 = vector.broadcast %cst_209 : f32 to vector<2x32xf32>
    %883 = arith.subf %882, %874 : vector<2x32xf32>
    %884 = arith.mulf %883, %881 : vector<2x32xf32>
    %885 = arith.mulf %874, %824 : vector<2x32xf32>
    %886 = arith.addf %884, %885 : vector<2x32xf32>
    %887 = vector.extract_strided_slice %535 {offsets = [4, 0], sizes = [2, 96], strides = [1, 1]} : vector<16x96xf32> to vector<2x96xf32>
    %888 = vector.extract_strided_slice %887 {offsets = [0, 0], sizes = [2, 32], strides = [1, 1]} : vector<2x96xf32> to vector<2x32xf32>
    %889 = vector.extract_strided_slice %857 {offsets = [0, 0], sizes = [2, 32], strides = [1, 1]} : vector<2x96xf32> to vector<2x32xf32>
    %890 = arith.addf %888, %889 : vector<2x32xf32>
    %891 = arith.negf %890 : vector<2x32xf32>
    %892 = math.exp %891 : vector<2x32xf32>
    %cst_210 = arith.constant 1.000000e+00 : f32
    %893 = vector.broadcast %cst_210 : f32 to vector<2x32xf32>
    %894 = arith.addf %893, %892 : vector<2x32xf32>
    %895 = arith.divf %893, %894 : vector<2x32xf32>
    %896 = vector.extract_strided_slice %887 {offsets = [0, 32], sizes = [2, 32], strides = [1, 1]} : vector<2x96xf32> to vector<2x32xf32>
    %897 = vector.extract_strided_slice %857 {offsets = [0, 32], sizes = [2, 32], strides = [1, 1]} : vector<2x96xf32> to vector<2x32xf32>
    %898 = arith.addf %896, %897 : vector<2x32xf32>
    %899 = arith.negf %898 : vector<2x32xf32>
    %900 = math.exp %899 : vector<2x32xf32>
    %cst_211 = arith.constant 1.000000e+00 : f32
    %901 = vector.broadcast %cst_211 : f32 to vector<2x32xf32>
    %902 = arith.addf %901, %900 : vector<2x32xf32>
    %903 = arith.divf %901, %902 : vector<2x32xf32>
    %904 = vector.extract_strided_slice %887 {offsets = [0, 64], sizes = [2, 32], strides = [1, 1]} : vector<2x96xf32> to vector<2x32xf32>
    %905 = vector.extract_strided_slice %857 {offsets = [0, 64], sizes = [2, 32], strides = [1, 1]} : vector<2x96xf32> to vector<2x32xf32>
    %906 = vector.broadcast %543 : vector<1x32xf32> to vector<2x32xf32>
    %907 = arith.addf %905, %906 : vector<2x32xf32>
    %908 = arith.mulf %895, %907 : vector<2x32xf32>
    %909 = arith.addf %904, %908 : vector<2x32xf32>
    %910 = math.tanh %909 : vector<2x32xf32>
    %cst_212 = arith.constant 1.000000e+00 : f32
    %911 = vector.broadcast %cst_212 : f32 to vector<2x32xf32>
    %912 = arith.subf %911, %903 : vector<2x32xf32>
    %913 = arith.mulf %912, %910 : vector<2x32xf32>
    %914 = arith.mulf %903, %853 : vector<2x32xf32>
    %915 = arith.addf %913, %914 : vector<2x32xf32>
    %c10_213 = arith.constant 10 : index
    %c0_214 = arith.constant 0 : index
    %916 = vector.load %arg24[%c10_213, %c0_214] : memref<16x64xf32, #tpu.memory_space<vmem>>, vector<2x32xf32>
    tpu.vector_store %arg24[%c10_213, %c0_214], %886 {strides = array<i32>} : memref<16x64xf32, #tpu.memory_space<vmem>>, vector<2x32xf32>,
    %c4_215 = arith.constant 4 : index
    %c32_216 = arith.constant 32 : index
    %917 = vector.load %arg24[%c4_215, %c32_216] : memref<16x64xf32, #tpu.memory_space<vmem>>, vector<2x32xf32>
    tpu.vector_store %arg24[%c4_215, %c32_216], %915 {strides = array<i32>} : memref<16x64xf32, #tpu.memory_space<vmem>>, vector<2x32xf32>,
    %cst_217 = arith.constant dense<0.000000e+00> : vector<2x96xf32>
    %918 = tpu.matmul %886, %537, %cst_217 {dimension_numbers = #tpu.dot_dimension_numbers<[1], [0], [0], [1], [0, 0, 1, 1], [], []>} : vector<2x32xf32>, vector<32x96xf32>, vector<2x96xf32> -> vector<2x96xf32>
    %cst_218 = arith.constant dense<0.000000e+00> : vector<2x96xf32>
    %919 = tpu.matmul %915, %539, %cst_218 {dimension_numbers = #tpu.dot_dimension_numbers<[1], [0], [0], [1], [0, 0, 1, 1], [], []>} : vector<2x32xf32>, vector<32x96xf32>, vector<2x96xf32> -> vector<2x96xf32>
    %920 = vector.extract_strided_slice %528 {offsets = [12, 0], sizes = [2, 96], strides = [1, 1]} : vector<16x96xf32> to vector<2x96xf32>
    %921 = vector.extract_strided_slice %920 {offsets = [0, 0], sizes = [2, 32], strides = [1, 1]} : vector<2x96xf32> to vector<2x32xf32>
    %922 = vector.extract_strided_slice %918 {offsets = [0, 0], sizes = [2, 32], strides = [1, 1]} : vector<2x96xf32> to vector<2x32xf32>
    %923 = arith.addf %921, %922 : vector<2x32xf32>
    %924 = arith.negf %923 : vector<2x32xf32>
    %925 = math.exp %924 : vector<2x32xf32>
    %cst_219 = arith.constant 1.000000e+00 : f32
    %926 = vector.broadcast %cst_219 : f32 to vector<2x32xf32>
    %927 = arith.addf %926, %925 : vector<2x32xf32>
    %928 = arith.divf %926, %927 : vector<2x32xf32>
    %929 = vector.extract_strided_slice %920 {offsets = [0, 32], sizes = [2, 32], strides = [1, 1]} : vector<2x96xf32> to vector<2x32xf32>
    %930 = vector.extract_strided_slice %918 {offsets = [0, 32], sizes = [2, 32], strides = [1, 1]} : vector<2x96xf32> to vector<2x32xf32>
    %931 = arith.addf %929, %930 : vector<2x32xf32>
    %932 = arith.negf %931 : vector<2x32xf32>
    %933 = math.exp %932 : vector<2x32xf32>
    %cst_220 = arith.constant 1.000000e+00 : f32
    %934 = vector.broadcast %cst_220 : f32 to vector<2x32xf32>
    %935 = arith.addf %934, %933 : vector<2x32xf32>
    %936 = arith.divf %934, %935 : vector<2x32xf32>
    %937 = vector.extract_strided_slice %920 {offsets = [0, 64], sizes = [2, 32], strides = [1, 1]} : vector<2x96xf32> to vector<2x32xf32>
    %938 = vector.extract_strided_slice %918 {offsets = [0, 64], sizes = [2, 32], strides = [1, 1]} : vector<2x96xf32> to vector<2x32xf32>
    %939 = vector.broadcast %541 : vector<1x32xf32> to vector<2x32xf32>
    %940 = arith.addf %938, %939 : vector<2x32xf32>
    %941 = arith.mulf %928, %940 : vector<2x32xf32>
    %942 = arith.addf %937, %941 : vector<2x32xf32>
    %943 = math.tanh %942 : vector<2x32xf32>
    %cst_221 = arith.constant 1.000000e+00 : f32
    %944 = vector.broadcast %cst_221 : f32 to vector<2x32xf32>
    %945 = arith.subf %944, %936 : vector<2x32xf32>
    %946 = arith.mulf %945, %943 : vector<2x32xf32>
    %947 = arith.mulf %936, %886 : vector<2x32xf32>
    %948 = arith.addf %946, %947 : vector<2x32xf32>
    %949 = vector.extract_strided_slice %535 {offsets = [2, 0], sizes = [2, 96], strides = [1, 1]} : vector<16x96xf32> to vector<2x96xf32>
    %950 = vector.extract_strided_slice %949 {offsets = [0, 0], sizes = [2, 32], strides = [1, 1]} : vector<2x96xf32> to vector<2x32xf32>
    %951 = vector.extract_strided_slice %919 {offsets = [0, 0], sizes = [2, 32], strides = [1, 1]} : vector<2x96xf32> to vector<2x32xf32>
    %952 = arith.addf %950, %951 : vector<2x32xf32>
    %953 = arith.negf %952 : vector<2x32xf32>
    %954 = math.exp %953 : vector<2x32xf32>
    %cst_222 = arith.constant 1.000000e+00 : f32
    %955 = vector.broadcast %cst_222 : f32 to vector<2x32xf32>
    %956 = arith.addf %955, %954 : vector<2x32xf32>
    %957 = arith.divf %955, %956 : vector<2x32xf32>
    %958 = vector.extract_strided_slice %949 {offsets = [0, 32], sizes = [2, 32], strides = [1, 1]} : vector<2x96xf32> to vector<2x32xf32>
    %959 = vector.extract_strided_slice %919 {offsets = [0, 32], sizes = [2, 32], strides = [1, 1]} : vector<2x96xf32> to vector<2x32xf32>
    %960 = arith.addf %958, %959 : vector<2x32xf32>
    %961 = arith.negf %960 : vector<2x32xf32>
    %962 = math.exp %961 : vector<2x32xf32>
    %cst_223 = arith.constant 1.000000e+00 : f32
    %963 = vector.broadcast %cst_223 : f32 to vector<2x32xf32>
    %964 = arith.addf %963, %962 : vector<2x32xf32>
    %965 = arith.divf %963, %964 : vector<2x32xf32>
    %966 = vector.extract_strided_slice %949 {offsets = [0, 64], sizes = [2, 32], strides = [1, 1]} : vector<2x96xf32> to vector<2x32xf32>
    %967 = vector.extract_strided_slice %919 {offsets = [0, 64], sizes = [2, 32], strides = [1, 1]} : vector<2x96xf32> to vector<2x32xf32>
    %968 = vector.broadcast %543 : vector<1x32xf32> to vector<2x32xf32>
    %969 = arith.addf %967, %968 : vector<2x32xf32>
    %970 = arith.mulf %957, %969 : vector<2x32xf32>
    %971 = arith.addf %966, %970 : vector<2x32xf32>
    %972 = math.tanh %971 : vector<2x32xf32>
    %cst_224 = arith.constant 1.000000e+00 : f32
    %973 = vector.broadcast %cst_224 : f32 to vector<2x32xf32>
    %974 = arith.subf %973, %965 : vector<2x32xf32>
    %975 = arith.mulf %974, %972 : vector<2x32xf32>
    %976 = arith.mulf %965, %915 : vector<2x32xf32>
    %977 = arith.addf %975, %976 : vector<2x32xf32>
    %c12_225 = arith.constant 12 : index
    %c0_226 = arith.constant 0 : index
    %978 = vector.load %arg24[%c12_225, %c0_226] : memref<16x64xf32, #tpu.memory_space<vmem>>, vector<2x32xf32>
    tpu.vector_store %arg24[%c12_225, %c0_226], %948 {strides = array<i32>} : memref<16x64xf32, #tpu.memory_space<vmem>>, vector<2x32xf32>,
    %c2_227 = arith.constant 2 : index
    %c32_228 = arith.constant 32 : index
    %979 = vector.load %arg24[%c2_227, %c32_228] : memref<16x64xf32, #tpu.memory_space<vmem>>, vector<2x32xf32>
    tpu.vector_store %arg24[%c2_227, %c32_228], %977 {strides = array<i32>} : memref<16x64xf32, #tpu.memory_space<vmem>>, vector<2x32xf32>,
    %cst_229 = arith.constant dense<0.000000e+00> : vector<2x96xf32>
    %980 = tpu.matmul %948, %537, %cst_229 {dimension_numbers = #tpu.dot_dimension_numbers<[1], [0], [0], [1], [0, 0, 1, 1], [], []>} : vector<2x32xf32>, vector<32x96xf32>, vector<2x96xf32> -> vector<2x96xf32>
    %cst_230 = arith.constant dense<0.000000e+00> : vector<2x96xf32>
    %981 = tpu.matmul %977, %539, %cst_230 {dimension_numbers = #tpu.dot_dimension_numbers<[1], [0], [0], [1], [0, 0, 1, 1], [], []>} : vector<2x32xf32>, vector<32x96xf32>, vector<2x96xf32> -> vector<2x96xf32>
    %982 = vector.extract_strided_slice %528 {offsets = [14, 0], sizes = [2, 96], strides = [1, 1]} : vector<16x96xf32> to vector<2x96xf32>
    %983 = vector.extract_strided_slice %982 {offsets = [0, 0], sizes = [2, 32], strides = [1, 1]} : vector<2x96xf32> to vector<2x32xf32>
    %984 = vector.extract_strided_slice %980 {offsets = [0, 0], sizes = [2, 32], strides = [1, 1]} : vector<2x96xf32> to vector<2x32xf32>
    %985 = arith.addf %983, %984 : vector<2x32xf32>
    %986 = arith.negf %985 : vector<2x32xf32>
    %987 = math.exp %986 : vector<2x32xf32>
    %cst_231 = arith.constant 1.000000e+00 : f32
    %988 = vector.broadcast %cst_231 : f32 to vector<2x32xf32>
    %989 = arith.addf %988, %987 : vector<2x32xf32>
    %990 = arith.divf %988, %989 : vector<2x32xf32>
    %991 = vector.extract_strided_slice %982 {offsets = [0, 32], sizes = [2, 32], strides = [1, 1]} : vector<2x96xf32> to vector<2x32xf32>
    %992 = vector.extract_strided_slice %980 {offsets = [0, 32], sizes = [2, 32], strides = [1, 1]} : vector<2x96xf32> to vector<2x32xf32>
    %993 = arith.addf %991, %992 : vector<2x32xf32>
    %994 = arith.negf %993 : vector<2x32xf32>
    %995 = math.exp %994 : vector<2x32xf32>
    %cst_232 = arith.constant 1.000000e+00 : f32
    %996 = vector.broadcast %cst_232 : f32 to vector<2x32xf32>
    %997 = arith.addf %996, %995 : vector<2x32xf32>
    %998 = arith.divf %996, %997 : vector<2x32xf32>
    %999 = vector.extract_strided_slice %982 {offsets = [0, 64], sizes = [2, 32], strides = [1, 1]} : vector<2x96xf32> to vector<2x32xf32>
    %1000 = vector.extract_strided_slice %980 {offsets = [0, 64], sizes = [2, 32], strides = [1, 1]} : vector<2x96xf32> to vector<2x32xf32>
    %1001 = vector.broadcast %541 : vector<1x32xf32> to vector<2x32xf32>
    %1002 = arith.addf %1000, %1001 : vector<2x32xf32>
    %1003 = arith.mulf %990, %1002 : vector<2x32xf32>
    %1004 = arith.addf %999, %1003 : vector<2x32xf32>
    %1005 = math.tanh %1004 : vector<2x32xf32>
    %cst_233 = arith.constant 1.000000e+00 : f32
    %1006 = vector.broadcast %cst_233 : f32 to vector<2x32xf32>
    %1007 = arith.subf %1006, %998 : vector<2x32xf32>
    %1008 = arith.mulf %1007, %1005 : vector<2x32xf32>
    %1009 = arith.mulf %998, %948 : vector<2x32xf32>
    %1010 = arith.addf %1008, %1009 : vector<2x32xf32>
    %1011 = vector.extract_strided_slice %535 {offsets = [0, 0], sizes = [2, 96], strides = [1, 1]} : vector<16x96xf32> to vector<2x96xf32>
    %1012 = vector.extract_strided_slice %1011 {offsets = [0, 0], sizes = [2, 32], strides = [1, 1]} : vector<2x96xf32> to vector<2x32xf32>
    %1013 = vector.extract_strided_slice %981 {offsets = [0, 0], sizes = [2, 32], strides = [1, 1]} : vector<2x96xf32> to vector<2x32xf32>
    %1014 = arith.addf %1012, %1013 : vector<2x32xf32>
    %1015 = arith.negf %1014 : vector<2x32xf32>
    %1016 = math.exp %1015 : vector<2x32xf32>
    %cst_234 = arith.constant 1.000000e+00 : f32
    %1017 = vector.broadcast %cst_234 : f32 to vector<2x32xf32>
    %1018 = arith.addf %1017, %1016 : vector<2x32xf32>
    %1019 = arith.divf %1017, %1018 : vector<2x32xf32>
    %1020 = vector.extract_strided_slice %1011 {offsets = [0, 32], sizes = [2, 32], strides = [1, 1]} : vector<2x96xf32> to vector<2x32xf32>
    %1021 = vector.extract_strided_slice %981 {offsets = [0, 32], sizes = [2, 32], strides = [1, 1]} : vector<2x96xf32> to vector<2x32xf32>
    %1022 = arith.addf %1020, %1021 : vector<2x32xf32>
    %1023 = arith.negf %1022 : vector<2x32xf32>
    %1024 = math.exp %1023 : vector<2x32xf32>
    %cst_235 = arith.constant 1.000000e+00 : f32
    %1025 = vector.broadcast %cst_235 : f32 to vector<2x32xf32>
    %1026 = arith.addf %1025, %1024 : vector<2x32xf32>
    %1027 = arith.divf %1025, %1026 : vector<2x32xf32>
    %1028 = vector.extract_strided_slice %1011 {offsets = [0, 64], sizes = [2, 32], strides = [1, 1]} : vector<2x96xf32> to vector<2x32xf32>
    %1029 = vector.extract_strided_slice %981 {offsets = [0, 64], sizes = [2, 32], strides = [1, 1]} : vector<2x96xf32> to vector<2x32xf32>
    %1030 = vector.broadcast %543 : vector<1x32xf32> to vector<2x32xf32>
    %1031 = arith.addf %1029, %1030 : vector<2x32xf32>
    %1032 = arith.mulf %1019, %1031 : vector<2x32xf32>
    %1033 = arith.addf %1028, %1032 : vector<2x32xf32>
    %1034 = math.tanh %1033 : vector<2x32xf32>
    %cst_236 = arith.constant 1.000000e+00 : f32
    %1035 = vector.broadcast %cst_236 : f32 to vector<2x32xf32>
    %1036 = arith.subf %1035, %1027 : vector<2x32xf32>
    %1037 = arith.mulf %1036, %1034 : vector<2x32xf32>
    %1038 = arith.mulf %1027, %977 : vector<2x32xf32>
    %1039 = arith.addf %1037, %1038 : vector<2x32xf32>
    %c14_237 = arith.constant 14 : index
    %c0_238 = arith.constant 0 : index
    %1040 = vector.load %arg24[%c14_237, %c0_238] : memref<16x64xf32, #tpu.memory_space<vmem>>, vector<2x32xf32>
    tpu.vector_store %arg24[%c14_237, %c0_238], %1010 {strides = array<i32>} : memref<16x64xf32, #tpu.memory_space<vmem>>, vector<2x32xf32>,
    %c0_239 = arith.constant 0 : index
    %c32_240 = arith.constant 32 : index
    %1041 = vector.load %arg24[%c0_239, %c32_240] : memref<16x64xf32, #tpu.memory_space<vmem>>, vector<2x32xf32>
    tpu.vector_store %arg24[%c0_239, %c32_240], %1039 {strides = array<i32>} : memref<16x64xf32, #tpu.memory_space<vmem>>, vector<2x32xf32>,
    %c0_241 = arith.constant 0 : index
    %c0_242 = arith.constant 0 : index
    %1042 = vector.load %arg24[%c0_241, %c0_242] : memref<16x64xf32, #tpu.memory_space<vmem>>, vector<16x64xf32>
    %c0_243 = arith.constant 0 : index
    %c0_244 = arith.constant 0 : index
    %1043 = vector.load %arg9[%c0_243, %c0_244] : memref<64x192xf32, #tpu.memory_space<vmem>>, vector<64x192xf32>
    %cst_245 = arith.constant dense<0.000000e+00> : vector<16x192xf32>
    %1044 = tpu.matmul %1042, %1043, %cst_245 {dimension_numbers = #tpu.dot_dimension_numbers<[1], [0], [0], [1], [0, 0, 1, 1], [], []>} : vector<16x64xf32>, vector<64x192xf32>, vector<16x192xf32> -> vector<16x192xf32>
    %c0_246 = arith.constant 0 : index
    %c0_247 = arith.constant 0 : index
    %1045 = vector.load %arg10[%c0_246, %c0_247] : memref<1x192xf32, #tpu.memory_space<vmem>>, vector<1x192xf32>
    %1046 = vector.broadcast %1045 : vector<1x192xf32> to vector<16x192xf32>
    %1047 = arith.addf %1044, %1046 : vector<16x192xf32>
    %1048 = vector.extract_strided_slice %1047 {offsets = [0, 0], sizes = [16, 64], strides = [1, 1]} : vector<16x192xf32> to vector<16x64xf32>
    %cst_248 = arith.constant 0.353553385 : f32
    %1049 = vector.broadcast %cst_248 : f32 to vector<16x64xf32>
    %1050 = arith.mulf %1048, %1049 : vector<16x64xf32>
    %1051 = vector.extract_strided_slice %1047 {offsets = [0, 64], sizes = [16, 64], strides = [1, 1]} : vector<16x192xf32> to vector<16x64xf32>
    %1052 = vector.extract_strided_slice %1047 {offsets = [0, 128], sizes = [16, 64], strides = [1, 1]} : vector<16x192xf32> to vector<16x64xf32>
    %1053 = tpu.iota {dimensions = array<i32: 0>} : vector<16x16xi32>
    %c2_i32 = arith.constant 2 : i32
    %c0_i32 = arith.constant 0 : i32
    %1054 = arith.cmpi eq, %c2_i32, %c0_i32 : i32
    %c1_i32 = arith.constant 1 : i32
    %1055 = arith.select %1054, %c1_i32, %c2_i32 : i32
    %1056 = vector.broadcast %1055 : i32 to vector<16x16xi32>
    %1057 = arith.remsi %1053, %1056 : vector<16x16xi32>
    %c0_i32_249 = arith.constant 0 : i32
    %1058 = vector.broadcast %c0_i32_249 : i32 to vector<16x16xi32>
    %1059 = arith.cmpi ne, %1057, %1058 : vector<16x16xi32>
    %c0_i32_250 = arith.constant 0 : i32
    %1060 = vector.broadcast %c0_i32_250 : i32 to vector<16x16xi32>
    %1061 = arith.cmpi slt, %1057, %1060 : vector<16x16xi32>
    %c0_i32_251 = arith.constant 0 : i32
    %1062 = arith.cmpi slt, %1055, %c0_i32_251 : i32
    %1063 = vector.broadcast %1062 : i1 to vector<16x16xi1>
    %1064 = vector.broadcast %1063 : vector<16x16xi1> to vector<16x16xi1>
    %1065 = arith.xori %1061, %1064 : vector<16x16xi1>
    %1066 = arith.andi %1065, %1059 : vector<16x16xi1>
    %1067 = vector.broadcast %1055 : i32 to vector<16x16xi32>
    %1068 = arith.addi %1057, %1067 : vector<16x16xi32>
    %1069 = arith.select %1066, %1068, %1057 : vector<16x16xi1>, vector<16x16xi32>
    %1070 = tpu.iota {dimensions = array<i32: 1>} : vector<16x16xi32>
    %c2_i32_252 = arith.constant 2 : i32
    %c0_i32_253 = arith.constant 0 : i32
    %1071 = arith.cmpi eq, %c2_i32_252, %c0_i32_253 : i32
    %c1_i32_254 = arith.constant 1 : i32
    %1072 = arith.select %1071, %c1_i32_254, %c2_i32_252 : i32
    %1073 = vector.broadcast %1072 : i32 to vector<16x16xi32>
    %1074 = arith.remsi %1070, %1073 : vector<16x16xi32>
    %c0_i32_255 = arith.constant 0 : i32
    %1075 = vector.broadcast %c0_i32_255 : i32 to vector<16x16xi32>
    %1076 = arith.cmpi ne, %1074, %1075 : vector<16x16xi32>
    %c0_i32_256 = arith.constant 0 : i32
    %1077 = vector.broadcast %c0_i32_256 : i32 to vector<16x16xi32>
    %1078 = arith.cmpi slt, %1074, %1077 : vector<16x16xi32>
    %c0_i32_257 = arith.constant 0 : i32
    %1079 = arith.cmpi slt, %1072, %c0_i32_257 : i32
    %1080 = vector.broadcast %1079 : i1 to vector<16x16xi1>
    %1081 = vector.broadcast %1080 : vector<16x16xi1> to vector<16x16xi1>
    %1082 = arith.xori %1078, %1081 : vector<16x16xi1>
    %1083 = arith.andi %1082, %1076 : vector<16x16xi1>
    %1084 = vector.broadcast %1072 : i32 to vector<16x16xi32>
    %1085 = arith.addi %1074, %1084 : vector<16x16xi32>
    %1086 = arith.select %1083, %1085, %1074 : vector<16x16xi1>, vector<16x16xi32>
    %1087 = arith.cmpi eq, %1069, %1086 : vector<16x16xi32>
    %cst_258 = arith.constant 0.000000e+00 : f32
    %cst_259 = arith.constant -1.000000e+30 : f32
    %1088 = vector.broadcast %cst_258 : f32 to vector<16x16xf32>
    %1089 = vector.broadcast %cst_259 : f32 to vector<16x16xf32>
    %1090 = arith.select %1087, %1088, %1089 : vector<16x16xi1>, vector<16x16xf32>
    %c0_260 = arith.constant 0 : index
    %c0_261 = arith.constant 0 : index
    %1091 = vector.load %arg11[%c0_260, %c0_261] : memref<64x64xf32, #tpu.memory_space<vmem>>, vector<64x64xf32>
    %cst_262 = arith.constant 0.000000e+00 : f32
    %1092 = vector.broadcast %cst_262 : f32 to vector<16x64xf32>
    %1093 = vector.extract_strided_slice %1050 {offsets = [0, 0], sizes = [16, 8], strides = [1, 1]} : vector<16x64xf32> to vector<16x8xf32>
    %1094 = vector.extract_strided_slice %1051 {offsets = [0, 0], sizes = [16, 8], strides = [1, 1]} : vector<16x64xf32> to vector<16x8xf32>
    %cst_263 = arith.constant dense<0.000000e+00> : vector<16x16xf32>
    %1095 = tpu.matmul %1093, %1094, %cst_263 {dimension_numbers = #tpu.dot_dimension_numbers<[1], [1], [0], [0], [0, 0, 1, 0], [], []>} : vector<16x8xf32>, vector<16x8xf32>, vector<16x16xf32> -> vector<16x16xf32>
    %1096 = arith.addf %1095, %1090 : vector<16x16xf32>
    %cst_264 = arith.constant dense<0xFF800000> : vector<16xf32>
    %1097 = vector.multi_reduction <maximumf>, %1096, %cst_264 [1] : vector<16x16xf32> to vector<16xf32>
    %1098 = vector.shape_cast %1097 : vector<16xf32> to vector<16x1xf32>
    %1099 = vector.broadcast %1098 : vector<16x1xf32> to vector<16x16xf32>
    %1100 = arith.subf %1096, %1099 : vector<16x16xf32>
    %1101 = math.exp %1100 : vector<16x16xf32>
    %cst_265 = arith.constant dense<0.000000e+00> : vector<16xf32>
    %1102 = vector.multi_reduction <add>, %1101, %cst_265 [1] : vector<16x16xf32> to vector<16xf32>
    %1103 = vector.shape_cast %1102 : vector<16xf32> to vector<16x1xf32>
    %1104 = vector.broadcast %1103 : vector<16x1xf32> to vector<16x16xf32>
    %1105 = arith.divf %1101, %1104 : vector<16x16xf32>
    %1106 = vector.extract_strided_slice %1052 {offsets = [0, 0], sizes = [16, 8], strides = [1, 1]} : vector<16x64xf32> to vector<16x8xf32>
    %cst_266 = arith.constant dense<0.000000e+00> : vector<16x8xf32>
    %1107 = tpu.matmul %1105, %1106, %cst_266 {dimension_numbers = #tpu.dot_dimension_numbers<[1], [0], [0], [1], [0, 0, 1, 1], [], []>} : vector<16x16xf32>, vector<16x8xf32>, vector<16x8xf32> -> vector<16x8xf32>
    %1108 = vector.extract_strided_slice %1091 {offsets = [0, 0], sizes = [8, 64], strides = [1, 1]} : vector<64x64xf32> to vector<8x64xf32>
    %cst_267 = arith.constant dense<0.000000e+00> : vector<16x64xf32>
    %1109 = tpu.matmul %1107, %1108, %cst_267 {dimension_numbers = #tpu.dot_dimension_numbers<[1], [0], [0], [1], [0, 0, 1, 1], [], []>} : vector<16x8xf32>, vector<8x64xf32>, vector<16x64xf32> -> vector<16x64xf32>
    %1110 = arith.addf %1092, %1109 : vector<16x64xf32>
    %1111 = vector.extract_strided_slice %1050 {offsets = [0, 8], sizes = [16, 8], strides = [1, 1]} : vector<16x64xf32> to vector<16x8xf32>
    %1112 = vector.extract_strided_slice %1051 {offsets = [0, 8], sizes = [16, 8], strides = [1, 1]} : vector<16x64xf32> to vector<16x8xf32>
    %cst_268 = arith.constant dense<0.000000e+00> : vector<16x16xf32>
    %1113 = tpu.matmul %1111, %1112, %cst_268 {dimension_numbers = #tpu.dot_dimension_numbers<[1], [1], [0], [0], [0, 0, 1, 0], [], []>} : vector<16x8xf32>, vector<16x8xf32>, vector<16x16xf32> -> vector<16x16xf32>
    %1114 = arith.addf %1113, %1090 : vector<16x16xf32>
    %cst_269 = arith.constant dense<0xFF800000> : vector<16xf32>
    %1115 = vector.multi_reduction <maximumf>, %1114, %cst_269 [1] : vector<16x16xf32> to vector<16xf32>
    %1116 = vector.shape_cast %1115 : vector<16xf32> to vector<16x1xf32>
    %1117 = vector.broadcast %1116 : vector<16x1xf32> to vector<16x16xf32>
    %1118 = arith.subf %1114, %1117 : vector<16x16xf32>
    %1119 = math.exp %1118 : vector<16x16xf32>
    %cst_270 = arith.constant dense<0.000000e+00> : vector<16xf32>
    %1120 = vector.multi_reduction <add>, %1119, %cst_270 [1] : vector<16x16xf32> to vector<16xf32>
    %1121 = vector.shape_cast %1120 : vector<16xf32> to vector<16x1xf32>
    %1122 = vector.broadcast %1121 : vector<16x1xf32> to vector<16x16xf32>
    %1123 = arith.divf %1119, %1122 : vector<16x16xf32>
    %1124 = vector.extract_strided_slice %1052 {offsets = [0, 8], sizes = [16, 8], strides = [1, 1]} : vector<16x64xf32> to vector<16x8xf32>
    %cst_271 = arith.constant dense<0.000000e+00> : vector<16x8xf32>
    %1125 = tpu.matmul %1123, %1124, %cst_271 {dimension_numbers = #tpu.dot_dimension_numbers<[1], [0], [0], [1], [0, 0, 1, 1], [], []>} : vector<16x16xf32>, vector<16x8xf32>, vector<16x8xf32> -> vector<16x8xf32>
    %1126 = vector.extract_strided_slice %1091 {offsets = [8, 0], sizes = [8, 64], strides = [1, 1]} : vector<64x64xf32> to vector<8x64xf32>
    %cst_272 = arith.constant dense<0.000000e+00> : vector<16x64xf32>
    %1127 = tpu.matmul %1125, %1126, %cst_272 {dimension_numbers = #tpu.dot_dimension_numbers<[1], [0], [0], [1], [0, 0, 1, 1], [], []>} : vector<16x8xf32>, vector<8x64xf32>, vector<16x64xf32> -> vector<16x64xf32>
    %1128 = arith.addf %1110, %1127 : vector<16x64xf32>
    %1129 = vector.extract_strided_slice %1050 {offsets = [0, 16], sizes = [16, 8], strides = [1, 1]} : vector<16x64xf32> to vector<16x8xf32>
    %1130 = vector.extract_strided_slice %1051 {offsets = [0, 16], sizes = [16, 8], strides = [1, 1]} : vector<16x64xf32> to vector<16x8xf32>
    %cst_273 = arith.constant dense<0.000000e+00> : vector<16x16xf32>
    %1131 = tpu.matmul %1129, %1130, %cst_273 {dimension_numbers = #tpu.dot_dimension_numbers<[1], [1], [0], [0], [0, 0, 1, 0], [], []>} : vector<16x8xf32>, vector<16x8xf32>, vector<16x16xf32> -> vector<16x16xf32>
    %1132 = arith.addf %1131, %1090 : vector<16x16xf32>
    %cst_274 = arith.constant dense<0xFF800000> : vector<16xf32>
    %1133 = vector.multi_reduction <maximumf>, %1132, %cst_274 [1] : vector<16x16xf32> to vector<16xf32>
    %1134 = vector.shape_cast %1133 : vector<16xf32> to vector<16x1xf32>
    %1135 = vector.broadcast %1134 : vector<16x1xf32> to vector<16x16xf32>
    %1136 = arith.subf %1132, %1135 : vector<16x16xf32>
    %1137 = math.exp %1136 : vector<16x16xf32>
    %cst_275 = arith.constant dense<0.000000e+00> : vector<16xf32>
    %1138 = vector.multi_reduction <add>, %1137, %cst_275 [1] : vector<16x16xf32> to vector<16xf32>
    %1139 = vector.shape_cast %1138 : vector<16xf32> to vector<16x1xf32>
    %1140 = vector.broadcast %1139 : vector<16x1xf32> to vector<16x16xf32>
    %1141 = arith.divf %1137, %1140 : vector<16x16xf32>
    %1142 = vector.extract_strided_slice %1052 {offsets = [0, 16], sizes = [16, 8], strides = [1, 1]} : vector<16x64xf32> to vector<16x8xf32>
    %cst_276 = arith.constant dense<0.000000e+00> : vector<16x8xf32>
    %1143 = tpu.matmul %1141, %1142, %cst_276 {dimension_numbers = #tpu.dot_dimension_numbers<[1], [0], [0], [1], [0, 0, 1, 1], [], []>} : vector<16x16xf32>, vector<16x8xf32>, vector<16x8xf32> -> vector<16x8xf32>
    %1144 = vector.extract_strided_slice %1091 {offsets = [16, 0], sizes = [8, 64], strides = [1, 1]} : vector<64x64xf32> to vector<8x64xf32>
    %cst_277 = arith.constant dense<0.000000e+00> : vector<16x64xf32>
    %1145 = tpu.matmul %1143, %1144, %cst_277 {dimension_numbers = #tpu.dot_dimension_numbers<[1], [0], [0], [1], [0, 0, 1, 1], [], []>} : vector<16x8xf32>, vector<8x64xf32>, vector<16x64xf32> -> vector<16x64xf32>
    %1146 = arith.addf %1128, %1145 : vector<16x64xf32>
    %1147 = vector.extract_strided_slice %1050 {offsets = [0, 24], sizes = [16, 8], strides = [1, 1]} : vector<16x64xf32> to vector<16x8xf32>
    %1148 = vector.extract_strided_slice %1051 {offsets = [0, 24], sizes = [16, 8], strides = [1, 1]} : vector<16x64xf32> to vector<16x8xf32>
    %cst_278 = arith.constant dense<0.000000e+00> : vector<16x16xf32>
    %1149 = tpu.matmul %1147, %1148, %cst_278 {dimension_numbers = #tpu.dot_dimension_numbers<[1], [1], [0], [0], [0, 0, 1, 0], [], []>} : vector<16x8xf32>, vector<16x8xf32>, vector<16x16xf32> -> vector<16x16xf32>
    %1150 = arith.addf %1149, %1090 : vector<16x16xf32>
    %cst_279 = arith.constant dense<0xFF800000> : vector<16xf32>
    %1151 = vector.multi_reduction <maximumf>, %1150, %cst_279 [1] : vector<16x16xf32> to vector<16xf32>
    %1152 = vector.shape_cast %1151 : vector<16xf32> to vector<16x1xf32>
    %1153 = vector.broadcast %1152 : vector<16x1xf32> to vector<16x16xf32>
    %1154 = arith.subf %1150, %1153 : vector<16x16xf32>
    %1155 = math.exp %1154 : vector<16x16xf32>
    %cst_280 = arith.constant dense<0.000000e+00> : vector<16xf32>
    %1156 = vector.multi_reduction <add>, %1155, %cst_280 [1] : vector<16x16xf32> to vector<16xf32>
    %1157 = vector.shape_cast %1156 : vector<16xf32> to vector<16x1xf32>
    %1158 = vector.broadcast %1157 : vector<16x1xf32> to vector<16x16xf32>
    %1159 = arith.divf %1155, %1158 : vector<16x16xf32>
    %1160 = vector.extract_strided_slice %1052 {offsets = [0, 24], sizes = [16, 8], strides = [1, 1]} : vector<16x64xf32> to vector<16x8xf32>
    %cst_281 = arith.constant dense<0.000000e+00> : vector<16x8xf32>
    %1161 = tpu.matmul %1159, %1160, %cst_281 {dimension_numbers = #tpu.dot_dimension_numbers<[1], [0], [0], [1], [0, 0, 1, 1], [], []>} : vector<16x16xf32>, vector<16x8xf32>, vector<16x8xf32> -> vector<16x8xf32>
    %1162 = vector.extract_strided_slice %1091 {offsets = [24, 0], sizes = [8, 64], strides = [1, 1]} : vector<64x64xf32> to vector<8x64xf32>
    %cst_282 = arith.constant dense<0.000000e+00> : vector<16x64xf32>
    %1163 = tpu.matmul %1161, %1162, %cst_282 {dimension_numbers = #tpu.dot_dimension_numbers<[1], [0], [0], [1], [0, 0, 1, 1], [], []>} : vector<16x8xf32>, vector<8x64xf32>, vector<16x64xf32> -> vector<16x64xf32>
    %1164 = arith.addf %1146, %1163 : vector<16x64xf32>
    %1165 = vector.extract_strided_slice %1050 {offsets = [0, 32], sizes = [16, 8], strides = [1, 1]} : vector<16x64xf32> to vector<16x8xf32>
    %1166 = vector.extract_strided_slice %1051 {offsets = [0, 32], sizes = [16, 8], strides = [1, 1]} : vector<16x64xf32> to vector<16x8xf32>
    %cst_283 = arith.constant dense<0.000000e+00> : vector<16x16xf32>
    %1167 = tpu.matmul %1165, %1166, %cst_283 {dimension_numbers = #tpu.dot_dimension_numbers<[1], [1], [0], [0], [0, 0, 1, 0], [], []>} : vector<16x8xf32>, vector<16x8xf32>, vector<16x16xf32> -> vector<16x16xf32>
    %1168 = arith.addf %1167, %1090 : vector<16x16xf32>
    %cst_284 = arith.constant dense<0xFF800000> : vector<16xf32>
    %1169 = vector.multi_reduction <maximumf>, %1168, %cst_284 [1] : vector<16x16xf32> to vector<16xf32>
    %1170 = vector.shape_cast %1169 : vector<16xf32> to vector<16x1xf32>
    %1171 = vector.broadcast %1170 : vector<16x1xf32> to vector<16x16xf32>
    %1172 = arith.subf %1168, %1171 : vector<16x16xf32>
    %1173 = math.exp %1172 : vector<16x16xf32>
    %cst_285 = arith.constant dense<0.000000e+00> : vector<16xf32>
    %1174 = vector.multi_reduction <add>, %1173, %cst_285 [1] : vector<16x16xf32> to vector<16xf32>
    %1175 = vector.shape_cast %1174 : vector<16xf32> to vector<16x1xf32>
    %1176 = vector.broadcast %1175 : vector<16x1xf32> to vector<16x16xf32>
    %1177 = arith.divf %1173, %1176 : vector<16x16xf32>
    %1178 = vector.extract_strided_slice %1052 {offsets = [0, 32], sizes = [16, 8], strides = [1, 1]} : vector<16x64xf32> to vector<16x8xf32>
    %cst_286 = arith.constant dense<0.000000e+00> : vector<16x8xf32>
    %1179 = tpu.matmul %1177, %1178, %cst_286 {dimension_numbers = #tpu.dot_dimension_numbers<[1], [0], [0], [1], [0, 0, 1, 1], [], []>} : vector<16x16xf32>, vector<16x8xf32>, vector<16x8xf32> -> vector<16x8xf32>
    %1180 = vector.extract_strided_slice %1091 {offsets = [32, 0], sizes = [8, 64], strides = [1, 1]} : vector<64x64xf32> to vector<8x64xf32>
    %cst_287 = arith.constant dense<0.000000e+00> : vector<16x64xf32>
    %1181 = tpu.matmul %1179, %1180, %cst_287 {dimension_numbers = #tpu.dot_dimension_numbers<[1], [0], [0], [1], [0, 0, 1, 1], [], []>} : vector<16x8xf32>, vector<8x64xf32>, vector<16x64xf32> -> vector<16x64xf32>
    %1182 = arith.addf %1164, %1181 : vector<16x64xf32>
    %1183 = vector.extract_strided_slice %1050 {offsets = [0, 40], sizes = [16, 8], strides = [1, 1]} : vector<16x64xf32> to vector<16x8xf32>
    %1184 = vector.extract_strided_slice %1051 {offsets = [0, 40], sizes = [16, 8], strides = [1, 1]} : vector<16x64xf32> to vector<16x8xf32>
    %cst_288 = arith.constant dense<0.000000e+00> : vector<16x16xf32>
    %1185 = tpu.matmul %1183, %1184, %cst_288 {dimension_numbers = #tpu.dot_dimension_numbers<[1], [1], [0], [0], [0, 0, 1, 0], [], []>} : vector<16x8xf32>, vector<16x8xf32>, vector<16x16xf32> -> vector<16x16xf32>
    %1186 = arith.addf %1185, %1090 : vector<16x16xf32>
    %cst_289 = arith.constant dense<0xFF800000> : vector<16xf32>
    %1187 = vector.multi_reduction <maximumf>, %1186, %cst_289 [1] : vector<16x16xf32> to vector<16xf32>
    %1188 = vector.shape_cast %1187 : vector<16xf32> to vector<16x1xf32>
    %1189 = vector.broadcast %1188 : vector<16x1xf32> to vector<16x16xf32>
    %1190 = arith.subf %1186, %1189 : vector<16x16xf32>
    %1191 = math.exp %1190 : vector<16x16xf32>
    %cst_290 = arith.constant dense<0.000000e+00> : vector<16xf32>
    %1192 = vector.multi_reduction <add>, %1191, %cst_290 [1] : vector<16x16xf32> to vector<16xf32>
    %1193 = vector.shape_cast %1192 : vector<16xf32> to vector<16x1xf32>
    %1194 = vector.broadcast %1193 : vector<16x1xf32> to vector<16x16xf32>
    %1195 = arith.divf %1191, %1194 : vector<16x16xf32>
    %1196 = vector.extract_strided_slice %1052 {offsets = [0, 40], sizes = [16, 8], strides = [1, 1]} : vector<16x64xf32> to vector<16x8xf32>
    %cst_291 = arith.constant dense<0.000000e+00> : vector<16x8xf32>
    %1197 = tpu.matmul %1195, %1196, %cst_291 {dimension_numbers = #tpu.dot_dimension_numbers<[1], [0], [0], [1], [0, 0, 1, 1], [], []>} : vector<16x16xf32>, vector<16x8xf32>, vector<16x8xf32> -> vector<16x8xf32>
    %1198 = vector.extract_strided_slice %1091 {offsets = [40, 0], sizes = [8, 64], strides = [1, 1]} : vector<64x64xf32> to vector<8x64xf32>
    %cst_292 = arith.constant dense<0.000000e+00> : vector<16x64xf32>
    %1199 = tpu.matmul %1197, %1198, %cst_292 {dimension_numbers = #tpu.dot_dimension_numbers<[1], [0], [0], [1], [0, 0, 1, 1], [], []>} : vector<16x8xf32>, vector<8x64xf32>, vector<16x64xf32> -> vector<16x64xf32>
    %1200 = arith.addf %1182, %1199 : vector<16x64xf32>
    %1201 = vector.extract_strided_slice %1050 {offsets = [0, 48], sizes = [16, 8], strides = [1, 1]} : vector<16x64xf32> to vector<16x8xf32>
    %1202 = vector.extract_strided_slice %1051 {offsets = [0, 48], sizes = [16, 8], strides = [1, 1]} : vector<16x64xf32> to vector<16x8xf32>
    %cst_293 = arith.constant dense<0.000000e+00> : vector<16x16xf32>
    %1203 = tpu.matmul %1201, %1202, %cst_293 {dimension_numbers = #tpu.dot_dimension_numbers<[1], [1], [0], [0], [0, 0, 1, 0], [], []>} : vector<16x8xf32>, vector<16x8xf32>, vector<16x16xf32> -> vector<16x16xf32>
    %1204 = arith.addf %1203, %1090 : vector<16x16xf32>
    %cst_294 = arith.constant dense<0xFF800000> : vector<16xf32>
    %1205 = vector.multi_reduction <maximumf>, %1204, %cst_294 [1] : vector<16x16xf32> to vector<16xf32>
    %1206 = vector.shape_cast %1205 : vector<16xf32> to vector<16x1xf32>
    %1207 = vector.broadcast %1206 : vector<16x1xf32> to vector<16x16xf32>
    %1208 = arith.subf %1204, %1207 : vector<16x16xf32>
    %1209 = math.exp %1208 : vector<16x16xf32>
    %cst_295 = arith.constant dense<0.000000e+00> : vector<16xf32>
    %1210 = vector.multi_reduction <add>, %1209, %cst_295 [1] : vector<16x16xf32> to vector<16xf32>
    %1211 = vector.shape_cast %1210 : vector<16xf32> to vector<16x1xf32>
    %1212 = vector.broadcast %1211 : vector<16x1xf32> to vector<16x16xf32>
    %1213 = arith.divf %1209, %1212 : vector<16x16xf32>
    %1214 = vector.extract_strided_slice %1052 {offsets = [0, 48], sizes = [16, 8], strides = [1, 1]} : vector<16x64xf32> to vector<16x8xf32>
    %cst_296 = arith.constant dense<0.000000e+00> : vector<16x8xf32>
    %1215 = tpu.matmul %1213, %1214, %cst_296 {dimension_numbers = #tpu.dot_dimension_numbers<[1], [0], [0], [1], [0, 0, 1, 1], [], []>} : vector<16x16xf32>, vector<16x8xf32>, vector<16x8xf32> -> vector<16x8xf32>
    %1216 = vector.extract_strided_slice %1091 {offsets = [48, 0], sizes = [8, 64], strides = [1, 1]} : vector<64x64xf32> to vector<8x64xf32>
    %cst_297 = arith.constant dense<0.000000e+00> : vector<16x64xf32>
    %1217 = tpu.matmul %1215, %1216, %cst_297 {dimension_numbers = #tpu.dot_dimension_numbers<[1], [0], [0], [1], [0, 0, 1, 1], [], []>} : vector<16x8xf32>, vector<8x64xf32>, vector<16x64xf32> -> vector<16x64xf32>
    %1218 = arith.addf %1200, %1217 : vector<16x64xf32>
    %1219 = vector.extract_strided_slice %1050 {offsets = [0, 56], sizes = [16, 8], strides = [1, 1]} : vector<16x64xf32> to vector<16x8xf32>
    %1220 = vector.extract_strided_slice %1051 {offsets = [0, 56], sizes = [16, 8], strides = [1, 1]} : vector<16x64xf32> to vector<16x8xf32>
    %cst_298 = arith.constant dense<0.000000e+00> : vector<16x16xf32>
    %1221 = tpu.matmul %1219, %1220, %cst_298 {dimension_numbers = #tpu.dot_dimension_numbers<[1], [1], [0], [0], [0, 0, 1, 0], [], []>} : vector<16x8xf32>, vector<16x8xf32>, vector<16x16xf32> -> vector<16x16xf32>
    %1222 = arith.addf %1221, %1090 : vector<16x16xf32>
    %cst_299 = arith.constant dense<0xFF800000> : vector<16xf32>
    %1223 = vector.multi_reduction <maximumf>, %1222, %cst_299 [1] : vector<16x16xf32> to vector<16xf32>
    %1224 = vector.shape_cast %1223 : vector<16xf32> to vector<16x1xf32>
    %1225 = vector.broadcast %1224 : vector<16x1xf32> to vector<16x16xf32>
    %1226 = arith.subf %1222, %1225 : vector<16x16xf32>
    %1227 = math.exp %1226 : vector<16x16xf32>
    %cst_300 = arith.constant dense<0.000000e+00> : vector<16xf32>
    %1228 = vector.multi_reduction <add>, %1227, %cst_300 [1] : vector<16x16xf32> to vector<16xf32>
    %1229 = vector.shape_cast %1228 : vector<16xf32> to vector<16x1xf32>
    %1230 = vector.broadcast %1229 : vector<16x1xf32> to vector<16x16xf32>
    %1231 = arith.divf %1227, %1230 : vector<16x16xf32>
    %1232 = vector.extract_strided_slice %1052 {offsets = [0, 56], sizes = [16, 8], strides = [1, 1]} : vector<16x64xf32> to vector<16x8xf32>
    %cst_301 = arith.constant dense<0.000000e+00> : vector<16x8xf32>
    %1233 = tpu.matmul %1231, %1232, %cst_301 {dimension_numbers = #tpu.dot_dimension_numbers<[1], [0], [0], [1], [0, 0, 1, 1], [], []>} : vector<16x16xf32>, vector<16x8xf32>, vector<16x8xf32> -> vector<16x8xf32>
    %1234 = vector.extract_strided_slice %1091 {offsets = [56, 0], sizes = [8, 64], strides = [1, 1]} : vector<64x64xf32> to vector<8x64xf32>
    %cst_302 = arith.constant dense<0.000000e+00> : vector<16x64xf32>
    %1235 = tpu.matmul %1233, %1234, %cst_302 {dimension_numbers = #tpu.dot_dimension_numbers<[1], [0], [0], [1], [0, 0, 1, 1], [], []>} : vector<16x8xf32>, vector<8x64xf32>, vector<16x64xf32> -> vector<16x64xf32>
    %1236 = arith.addf %1218, %1235 : vector<16x64xf32>
    %c0_303 = arith.constant 0 : index
    %c0_304 = arith.constant 0 : index
    %1237 = vector.load %arg12[%c0_303, %c0_304] : memref<1x64xf32, #tpu.memory_space<vmem>>, vector<1x64xf32>
    %1238 = vector.broadcast %1237 : vector<1x64xf32> to vector<16x64xf32>
    %1239 = arith.addf %1236, %1238 : vector<16x64xf32>
    %cst_305 = arith.constant 0.000000e+00 : f32
    %1240 = vector.broadcast %cst_305 : f32 to vector<2x128xf32>
    %c0_306 = arith.constant 0 : index
    %c0_307 = arith.constant 0 : index
    %1241 = vector.load %arg20[%c0_306, %c0_307] : memref<1x128xf32, #tpu.memory_space<vmem>>, vector<1x128xf32>
    %1242 = vector.broadcast %1241 : vector<1x128xf32> to vector<2x128xf32>
    %1243 = arith.addf %1240, %1242 : vector<2x128xf32>
    %cst_308 = arith.constant 0.000000e+00 : f32
    %1244 = vector.broadcast %cst_308 : f32 to vector<12x256xf32>
    %1245 = vector.extract_strided_slice %1239 {offsets = [0, 0], sizes = [12, 64], strides = [1, 1]} : vector<16x64xf32> to vector<12x64xf32>
    %c0_309 = arith.constant 0 : index
    %c0_310 = arith.constant 0 : index
    %c0_311 = arith.constant 0 : index
    %1246 = vector.load %arg13[%c0_309, %c0_310, %c0_311] : memref<3x64x256xf32, #tpu.memory_space<vmem>>, vector<1x64x256xf32>
    %1247 = vector.shape_cast %1246 : vector<1x64x256xf32> to vector<64x256xf32>
    %cst_312 = arith.constant dense<0.000000e+00> : vector<12x256xf32>
    %1248 = tpu.matmul %1245, %1247, %cst_312 {dimension_numbers = #tpu.dot_dimension_numbers<[1], [0], [0], [1], [0, 0, 1, 1], [], []>} : vector<12x64xf32>, vector<64x256xf32>, vector<12x256xf32> -> vector<12x256xf32>
    %1249 = arith.addf %1244, %1248 : vector<12x256xf32>
    %1250 = vector.extract_strided_slice %1239 {offsets = [2, 0], sizes = [12, 64], strides = [1, 1]} : vector<16x64xf32> to vector<12x64xf32>
    %c1_313 = arith.constant 1 : index
    %c0_314 = arith.constant 0 : index
    %c0_315 = arith.constant 0 : index
    %1251 = vector.load %arg13[%c1_313, %c0_314, %c0_315] : memref<3x64x256xf32, #tpu.memory_space<vmem>>, vector<1x64x256xf32>
    %1252 = vector.shape_cast %1251 : vector<1x64x256xf32> to vector<64x256xf32>
    %cst_316 = arith.constant dense<0.000000e+00> : vector<12x256xf32>
    %1253 = tpu.matmul %1250, %1252, %cst_316 {dimension_numbers = #tpu.dot_dimension_numbers<[1], [0], [0], [1], [0, 0, 1, 1], [], []>} : vector<12x64xf32>, vector<64x256xf32>, vector<12x256xf32> -> vector<12x256xf32>
    %1254 = arith.addf %1249, %1253 : vector<12x256xf32>
    %1255 = vector.extract_strided_slice %1239 {offsets = [4, 0], sizes = [12, 64], strides = [1, 1]} : vector<16x64xf32> to vector<12x64xf32>
    %c2_317 = arith.constant 2 : index
    %c0_318 = arith.constant 0 : index
    %c0_319 = arith.constant 0 : index
    %1256 = vector.load %arg13[%c2_317, %c0_318, %c0_319] : memref<3x64x256xf32, #tpu.memory_space<vmem>>, vector<1x64x256xf32>
    %1257 = vector.shape_cast %1256 : vector<1x64x256xf32> to vector<64x256xf32>
    %cst_320 = arith.constant dense<0.000000e+00> : vector<12x256xf32>
    %1258 = tpu.matmul %1255, %1257, %cst_320 {dimension_numbers = #tpu.dot_dimension_numbers<[1], [0], [0], [1], [0, 0, 1, 1], [], []>} : vector<12x64xf32>, vector<64x256xf32>, vector<12x256xf32> -> vector<12x256xf32>
    %1259 = arith.addf %1254, %1258 : vector<12x256xf32>
    %c0_321 = arith.constant 0 : index
    %c0_322 = arith.constant 0 : index
    %1260 = vector.load %arg14[%c0_321, %c0_322] : memref<1x256xf32, #tpu.memory_space<vmem>>, vector<1x256xf32>
    %1261 = vector.broadcast %1260 : vector<1x256xf32> to vector<12x256xf32>
    %1262 = arith.addf %1259, %1261 : vector<12x256xf32>
    %cst_323 = arith.constant 0.000000e+00 : f32
    %1263 = vector.broadcast %cst_323 : f32 to vector<12x256xf32>
    %1264 = arith.maximumf %1262, %1263 : vector<12x256xf32>
    %1265 = vector.extract_strided_slice %1264 {offsets = [0, 0], sizes = [2, 256], strides = [1, 1]} : vector<12x256xf32> to vector<2x256xf32>
    %1266 = vector.extract_strided_slice %1264 {offsets = [2, 0], sizes = [2, 256], strides = [1, 1]} : vector<12x256xf32> to vector<2x256xf32>
    %1267 = arith.maximumf %1265, %1266 : vector<2x256xf32>
    %1268 = vector.extract_strided_slice %1264 {offsets = [4, 0], sizes = [2, 256], strides = [1, 1]} : vector<12x256xf32> to vector<2x256xf32>
    %1269 = arith.maximumf %1267, %1268 : vector<2x256xf32>
    %1270 = vector.extract_strided_slice %1264 {offsets = [6, 0], sizes = [2, 256], strides = [1, 1]} : vector<12x256xf32> to vector<2x256xf32>
    %1271 = arith.maximumf %1269, %1270 : vector<2x256xf32>
    %1272 = vector.extract_strided_slice %1264 {offsets = [8, 0], sizes = [2, 256], strides = [1, 1]} : vector<12x256xf32> to vector<2x256xf32>
    %1273 = arith.maximumf %1271, %1272 : vector<2x256xf32>
    %1274 = vector.extract_strided_slice %1264 {offsets = [10, 0], sizes = [2, 256], strides = [1, 1]} : vector<12x256xf32> to vector<2x256xf32>
    %1275 = arith.maximumf %1273, %1274 : vector<2x256xf32>
    %c0_324 = arith.constant 0 : index
    %c0_325 = arith.constant 0 : index
    %c0_326 = arith.constant 0 : index
    %1276 = vector.load %arg19[%c0_324, %c0_325, %c0_326] : memref<3x256x128xf32, #tpu.memory_space<vmem>>, vector<1x256x128xf32>
    %1277 = vector.shape_cast %1276 : vector<1x256x128xf32> to vector<256x128xf32>
    %cst_327 = arith.constant dense<0.000000e+00> : vector<2x128xf32>
    %1278 = tpu.matmul %1275, %1277, %cst_327 {dimension_numbers = #tpu.dot_dimension_numbers<[1], [0], [0], [1], [0, 0, 1, 1], [], []>} : vector<2x256xf32>, vector<256x128xf32>, vector<2x128xf32> -> vector<2x128xf32>
    %1279 = arith.addf %1243, %1278 : vector<2x128xf32>
    %cst_328 = arith.constant 0.000000e+00 : f32
    %1280 = vector.broadcast %cst_328 : f32 to vector<8x256xf32>
    %1281 = vector.extract_strided_slice %1239 {offsets = [0, 0], sizes = [8, 64], strides = [1, 1]} : vector<16x64xf32> to vector<8x64xf32>
    %c0_329 = arith.constant 0 : index
    %c0_330 = arith.constant 0 : index
    %c0_331 = arith.constant 0 : index
    %1282 = vector.load %arg15[%c0_329, %c0_330, %c0_331] : memref<5x64x256xf32, #tpu.memory_space<vmem>>, vector<1x64x256xf32>
    %1283 = vector.shape_cast %1282 : vector<1x64x256xf32> to vector<64x256xf32>
    %cst_332 = arith.constant dense<0.000000e+00> : vector<8x256xf32>
    %1284 = tpu.matmul %1281, %1283, %cst_332 {dimension_numbers = #tpu.dot_dimension_numbers<[1], [0], [0], [1], [0, 0, 1, 1], [], []>} : vector<8x64xf32>, vector<64x256xf32>, vector<8x256xf32> -> vector<8x256xf32>
    %1285 = arith.addf %1280, %1284 : vector<8x256xf32>
    %1286 = vector.extract_strided_slice %1239 {offsets = [2, 0], sizes = [8, 64], strides = [1, 1]} : vector<16x64xf32> to vector<8x64xf32>
    %c1_333 = arith.constant 1 : index
    %c0_334 = arith.constant 0 : index
    %c0_335 = arith.constant 0 : index
    %1287 = vector.load %arg15[%c1_333, %c0_334, %c0_335] : memref<5x64x256xf32, #tpu.memory_space<vmem>>, vector<1x64x256xf32>
    %1288 = vector.shape_cast %1287 : vector<1x64x256xf32> to vector<64x256xf32>
    %cst_336 = arith.constant dense<0.000000e+00> : vector<8x256xf32>
    %1289 = tpu.matmul %1286, %1288, %cst_336 {dimension_numbers = #tpu.dot_dimension_numbers<[1], [0], [0], [1], [0, 0, 1, 1], [], []>} : vector<8x64xf32>, vector<64x256xf32>, vector<8x256xf32> -> vector<8x256xf32>
    %1290 = arith.addf %1285, %1289 : vector<8x256xf32>
    %1291 = vector.extract_strided_slice %1239 {offsets = [4, 0], sizes = [8, 64], strides = [1, 1]} : vector<16x64xf32> to vector<8x64xf32>
    %c2_337 = arith.constant 2 : index
    %c0_338 = arith.constant 0 : index
    %c0_339 = arith.constant 0 : index
    %1292 = vector.load %arg15[%c2_337, %c0_338, %c0_339] : memref<5x64x256xf32, #tpu.memory_space<vmem>>, vector<1x64x256xf32>
    %1293 = vector.shape_cast %1292 : vector<1x64x256xf32> to vector<64x256xf32>
    %cst_340 = arith.constant dense<0.000000e+00> : vector<8x256xf32>
    %1294 = tpu.matmul %1291, %1293, %cst_340 {dimension_numbers = #tpu.dot_dimension_numbers<[1], [0], [0], [1], [0, 0, 1, 1], [], []>} : vector<8x64xf32>, vector<64x256xf32>, vector<8x256xf32> -> vector<8x256xf32>
    %1295 = arith.addf %1290, %1294 : vector<8x256xf32>
    %1296 = vector.extract_strided_slice %1239 {offsets = [6, 0], sizes = [8, 64], strides = [1, 1]} : vector<16x64xf32> to vector<8x64xf32>
    %c3 = arith.constant 3 : index
    %c0_341 = arith.constant 0 : index
    %c0_342 = arith.constant 0 : index
    %1297 = vector.load %arg15[%c3, %c0_341, %c0_342] : memref<5x64x256xf32, #tpu.memory_space<vmem>>, vector<1x64x256xf32>
    %1298 = vector.shape_cast %1297 : vector<1x64x256xf32> to vector<64x256xf32>
    %cst_343 = arith.constant dense<0.000000e+00> : vector<8x256xf32>
    %1299 = tpu.matmul %1296, %1298, %cst_343 {dimension_numbers = #tpu.dot_dimension_numbers<[1], [0], [0], [1], [0, 0, 1, 1], [], []>} : vector<8x64xf32>, vector<64x256xf32>, vector<8x256xf32> -> vector<8x256xf32>
    %1300 = arith.addf %1295, %1299 : vector<8x256xf32>
    %1301 = vector.extract_strided_slice %1239 {offsets = [8, 0], sizes = [8, 64], strides = [1, 1]} : vector<16x64xf32> to vector<8x64xf32>
    %c4_344 = arith.constant 4 : index
    %c0_345 = arith.constant 0 : index
    %c0_346 = arith.constant 0 : index
    %1302 = vector.load %arg15[%c4_344, %c0_345, %c0_346] : memref<5x64x256xf32, #tpu.memory_space<vmem>>, vector<1x64x256xf32>
    %1303 = vector.shape_cast %1302 : vector<1x64x256xf32> to vector<64x256xf32>
    %cst_347 = arith.constant dense<0.000000e+00> : vector<8x256xf32>
    %1304 = tpu.matmul %1301, %1303, %cst_347 {dimension_numbers = #tpu.dot_dimension_numbers<[1], [0], [0], [1], [0, 0, 1, 1], [], []>} : vector<8x64xf32>, vector<64x256xf32>, vector<8x256xf32> -> vector<8x256xf32>
    %1305 = arith.addf %1300, %1304 : vector<8x256xf32>
    %c0_348 = arith.constant 0 : index
    %c0_349 = arith.constant 0 : index
    %1306 = vector.load %arg16[%c0_348, %c0_349] : memref<1x256xf32, #tpu.memory_space<vmem>>, vector<1x256xf32>
    %1307 = vector.broadcast %1306 : vector<1x256xf32> to vector<8x256xf32>
    %1308 = arith.addf %1305, %1307 : vector<8x256xf32>
    %cst_350 = arith.constant 0.000000e+00 : f32
    %1309 = vector.broadcast %cst_350 : f32 to vector<8x256xf32>
    %1310 = arith.maximumf %1308, %1309 : vector<8x256xf32>
    %1311 = vector.extract_strided_slice %1310 {offsets = [0, 0], sizes = [2, 256], strides = [1, 1]} : vector<8x256xf32> to vector<2x256xf32>
    %1312 = vector.extract_strided_slice %1310 {offsets = [2, 0], sizes = [2, 256], strides = [1, 1]} : vector<8x256xf32> to vector<2x256xf32>
    %1313 = arith.maximumf %1311, %1312 : vector<2x256xf32>
    %1314 = vector.extract_strided_slice %1310 {offsets = [4, 0], sizes = [2, 256], strides = [1, 1]} : vector<8x256xf32> to vector<2x256xf32>
    %1315 = arith.maximumf %1313, %1314 : vector<2x256xf32>
    %1316 = vector.extract_strided_slice %1310 {offsets = [6, 0], sizes = [2, 256], strides = [1, 1]} : vector<8x256xf32> to vector<2x256xf32>
    %1317 = arith.maximumf %1315, %1316 : vector<2x256xf32>
    %c1_351 = arith.constant 1 : index
    %c0_352 = arith.constant 0 : index
    %c0_353 = arith.constant 0 : index
    %1318 = vector.load %arg19[%c1_351, %c0_352, %c0_353] : memref<3x256x128xf32, #tpu.memory_space<vmem>>, vector<1x256x128xf32>
    %1319 = vector.shape_cast %1318 : vector<1x256x128xf32> to vector<256x128xf32>
    %cst_354 = arith.constant dense<0.000000e+00> : vector<2x128xf32>
    %1320 = tpu.matmul %1317, %1319, %cst_354 {dimension_numbers = #tpu.dot_dimension_numbers<[1], [0], [0], [1], [0, 0, 1, 1], [], []>} : vector<2x256xf32>, vector<256x128xf32>, vector<2x128xf32> -> vector<2x128xf32>
    %1321 = arith.addf %1279, %1320 : vector<2x128xf32>
    %cst_355 = arith.constant 0.000000e+00 : f32
    %1322 = vector.broadcast %cst_355 : f32 to vector<4x256xf32>
    %1323 = vector.extract_strided_slice %1239 {offsets = [0, 0], sizes = [4, 64], strides = [1, 1]} : vector<16x64xf32> to vector<4x64xf32>
    %c0_356 = arith.constant 0 : index
    %c0_357 = arith.constant 0 : index
    %c0_358 = arith.constant 0 : index
    %1324 = vector.load %arg17[%c0_356, %c0_357, %c0_358] : memref<7x64x256xf32, #tpu.memory_space<vmem>>, vector<1x64x256xf32>
    %1325 = vector.shape_cast %1324 : vector<1x64x256xf32> to vector<64x256xf32>
    %cst_359 = arith.constant dense<0.000000e+00> : vector<4x256xf32>
    %1326 = tpu.matmul %1323, %1325, %cst_359 {dimension_numbers = #tpu.dot_dimension_numbers<[1], [0], [0], [1], [0, 0, 1, 1], [], []>} : vector<4x64xf32>, vector<64x256xf32>, vector<4x256xf32> -> vector<4x256xf32>
    %1327 = arith.addf %1322, %1326 : vector<4x256xf32>
    %1328 = vector.extract_strided_slice %1239 {offsets = [2, 0], sizes = [4, 64], strides = [1, 1]} : vector<16x64xf32> to vector<4x64xf32>
    %c1_360 = arith.constant 1 : index
    %c0_361 = arith.constant 0 : index
    %c0_362 = arith.constant 0 : index
    %1329 = vector.load %arg17[%c1_360, %c0_361, %c0_362] : memref<7x64x256xf32, #tpu.memory_space<vmem>>, vector<1x64x256xf32>
    %1330 = vector.shape_cast %1329 : vector<1x64x256xf32> to vector<64x256xf32>
    %cst_363 = arith.constant dense<0.000000e+00> : vector<4x256xf32>
    %1331 = tpu.matmul %1328, %1330, %cst_363 {dimension_numbers = #tpu.dot_dimension_numbers<[1], [0], [0], [1], [0, 0, 1, 1], [], []>} : vector<4x64xf32>, vector<64x256xf32>, vector<4x256xf32> -> vector<4x256xf32>
    %1332 = arith.addf %1327, %1331 : vector<4x256xf32>
    %1333 = vector.extract_strided_slice %1239 {offsets = [4, 0], sizes = [4, 64], strides = [1, 1]} : vector<16x64xf32> to vector<4x64xf32>
    %c2_364 = arith.constant 2 : index
    %c0_365 = arith.constant 0 : index
    %c0_366 = arith.constant 0 : index
    %1334 = vector.load %arg17[%c2_364, %c0_365, %c0_366] : memref<7x64x256xf32, #tpu.memory_space<vmem>>, vector<1x64x256xf32>
    %1335 = vector.shape_cast %1334 : vector<1x64x256xf32> to vector<64x256xf32>
    %cst_367 = arith.constant dense<0.000000e+00> : vector<4x256xf32>
    %1336 = tpu.matmul %1333, %1335, %cst_367 {dimension_numbers = #tpu.dot_dimension_numbers<[1], [0], [0], [1], [0, 0, 1, 1], [], []>} : vector<4x64xf32>, vector<64x256xf32>, vector<4x256xf32> -> vector<4x256xf32>
    %1337 = arith.addf %1332, %1336 : vector<4x256xf32>
    %1338 = vector.extract_strided_slice %1239 {offsets = [6, 0], sizes = [4, 64], strides = [1, 1]} : vector<16x64xf32> to vector<4x64xf32>
    %c3_368 = arith.constant 3 : index
    %c0_369 = arith.constant 0 : index
    %c0_370 = arith.constant 0 : index
    %1339 = vector.load %arg17[%c3_368, %c0_369, %c0_370] : memref<7x64x256xf32, #tpu.memory_space<vmem>>, vector<1x64x256xf32>
    %1340 = vector.shape_cast %1339 : vector<1x64x256xf32> to vector<64x256xf32>
    %cst_371 = arith.constant dense<0.000000e+00> : vector<4x256xf32>
    %1341 = tpu.matmul %1338, %1340, %cst_371 {dimension_numbers = #tpu.dot_dimension_numbers<[1], [0], [0], [1], [0, 0, 1, 1], [], []>} : vector<4x64xf32>, vector<64x256xf32>, vector<4x256xf32> -> vector<4x256xf32>
    %1342 = arith.addf %1337, %1341 : vector<4x256xf32>
    %1343 = vector.extract_strided_slice %1239 {offsets = [8, 0], sizes = [4, 64], strides = [1, 1]} : vector<16x64xf32> to vector<4x64xf32>
    %c4_372 = arith.constant 4 : index
    %c0_373 = arith.constant 0 : index
    %c0_374 = arith.constant 0 : index
    %1344 = vector.load %arg17[%c4_372, %c0_373, %c0_374] : memref<7x64x256xf32, #tpu.memory_space<vmem>>, vector<1x64x256xf32>
    %1345 = vector.shape_cast %1344 : vector<1x64x256xf32> to vector<64x256xf32>
    %cst_375 = arith.constant dense<0.000000e+00> : vector<4x256xf32>
    %1346 = tpu.matmul %1343, %1345, %cst_375 {dimension_numbers = #tpu.dot_dimension_numbers<[1], [0], [0], [1], [0, 0, 1, 1], [], []>} : vector<4x64xf32>, vector<64x256xf32>, vector<4x256xf32> -> vector<4x256xf32>
    %1347 = arith.addf %1342, %1346 : vector<4x256xf32>
    %1348 = vector.extract_strided_slice %1239 {offsets = [10, 0], sizes = [4, 64], strides = [1, 1]} : vector<16x64xf32> to vector<4x64xf32>
    %c5 = arith.constant 5 : index
    %c0_376 = arith.constant 0 : index
    %c0_377 = arith.constant 0 : index
    %1349 = vector.load %arg17[%c5, %c0_376, %c0_377] : memref<7x64x256xf32, #tpu.memory_space<vmem>>, vector<1x64x256xf32>
    %1350 = vector.shape_cast %1349 : vector<1x64x256xf32> to vector<64x256xf32>
    %cst_378 = arith.constant dense<0.000000e+00> : vector<4x256xf32>
    %1351 = tpu.matmul %1348, %1350, %cst_378 {dimension_numbers = #tpu.dot_dimension_numbers<[1], [0], [0], [1], [0, 0, 1, 1], [], []>} : vector<4x64xf32>, vector<64x256xf32>, vector<4x256xf32> -> vector<4x256xf32>
    %1352 = arith.addf %1347, %1351 : vector<4x256xf32>
    %1353 = vector.extract_strided_slice %1239 {offsets = [12, 0], sizes = [4, 64], strides = [1, 1]} : vector<16x64xf32> to vector<4x64xf32>
    %c6_379 = arith.constant 6 : index
    %c0_380 = arith.constant 0 : index
    %c0_381 = arith.constant 0 : index
    %1354 = vector.load %arg17[%c6_379, %c0_380, %c0_381] : memref<7x64x256xf32, #tpu.memory_space<vmem>>, vector<1x64x256xf32>
    %1355 = vector.shape_cast %1354 : vector<1x64x256xf32> to vector<64x256xf32>
    %cst_382 = arith.constant dense<0.000000e+00> : vector<4x256xf32>
    %1356 = tpu.matmul %1353, %1355, %cst_382 {dimension_numbers = #tpu.dot_dimension_numbers<[1], [0], [0], [1], [0, 0, 1, 1], [], []>} : vector<4x64xf32>, vector<64x256xf32>, vector<4x256xf32> -> vector<4x256xf32>
    %1357 = arith.addf %1352, %1356 : vector<4x256xf32>
    %c0_383 = arith.constant 0 : index
    %c0_384 = arith.constant 0 : index
    %1358 = vector.load %arg18[%c0_383, %c0_384] : memref<1x256xf32, #tpu.memory_space<vmem>>, vector<1x256xf32>
    %1359 = vector.broadcast %1358 : vector<1x256xf32> to vector<4x256xf32>
    %1360 = arith.addf %1357, %1359 : vector<4x256xf32>
    %cst_385 = arith.constant 0.000000e+00 : f32
    %1361 = vector.broadcast %cst_385 : f32 to vector<4x256xf32>
    %1362 = arith.maximumf %1360, %1361 : vector<4x256xf32>
    %1363 = vector.extract_strided_slice %1362 {offsets = [0, 0], sizes = [2, 256], strides = [1, 1]} : vector<4x256xf32> to vector<2x256xf32>
    %1364 = vector.extract_strided_slice %1362 {offsets = [2, 0], sizes = [2, 256], strides = [1, 1]} : vector<4x256xf32> to vector<2x256xf32>
    %1365 = arith.maximumf %1363, %1364 : vector<2x256xf32>
    %c2_386 = arith.constant 2 : index
    %c0_387 = arith.constant 0 : index
    %c0_388 = arith.constant 0 : index
    %1366 = vector.load %arg19[%c2_386, %c0_387, %c0_388] : memref<3x256x128xf32, #tpu.memory_space<vmem>>, vector<1x256x128xf32>
    %1367 = vector.shape_cast %1366 : vector<1x256x128xf32> to vector<256x128xf32>
    %cst_389 = arith.constant dense<0.000000e+00> : vector<2x128xf32>
    %1368 = tpu.matmul %1365, %1367, %cst_389 {dimension_numbers = #tpu.dot_dimension_numbers<[1], [0], [0], [1], [0, 0, 1, 1], [], []>} : vector<2x256xf32>, vector<256x128xf32>, vector<2x128xf32> -> vector<2x128xf32>
    %1369 = arith.addf %1321, %1368 : vector<2x128xf32>
    %cst_390 = arith.constant 0.000000e+00 : f32
    %1370 = vector.broadcast %cst_390 : f32 to vector<2x128xf32>
    %1371 = arith.maximumf %1369, %1370 : vector<2x128xf32>
    %c0_391 = arith.constant 0 : index
    %c0_392 = arith.constant 0 : index
    %1372 = vector.load %arg21[%c0_391, %c0_392] : memref<128x8xf32, #tpu.memory_space<vmem>>, vector<128x8xf32>
    %cst_393 = arith.constant dense<0.000000e+00> : vector<2x8xf32>
    %1373 = tpu.matmul %1371, %1372, %cst_393 {dimension_numbers = #tpu.dot_dimension_numbers<[1], [0], [0], [1], [0, 0, 1, 1], [], []>} : vector<2x128xf32>, vector<128x8xf32>, vector<2x8xf32> -> vector<2x8xf32>
    %c0_394 = arith.constant 0 : index
    %c0_395 = arith.constant 0 : index
    %1374 = vector.load %arg22[%c0_394, %c0_395] : memref<1x8xf32, #tpu.memory_space<vmem>>, vector<1x8xf32>
    %1375 = vector.broadcast %1374 : vector<1x8xf32> to vector<2x8xf32>
    %1376 = arith.addf %1373, %1375 : vector<2x8xf32>
    %c0_396 = arith.constant 0 : index
    %c0_397 = arith.constant 0 : index
    %1377 = vector.load %arg23[%c0_396, %c0_397] : memref<2x8xf32, #tpu.memory_space<vmem>>, vector<2x8xf32>
    tpu.vector_store %arg23[%c0_396, %c0_397], %1376 {strides = array<i32>} : memref<2x8xf32, #tpu.memory_space<vmem>>, vector<2x8xf32>,
    return
  }
}

</mosaic_0001>

<llo_original>
// kernel: mjnet_forward.1
$region0: #{mjnet_forward.1}
  #allocation0 [shape = 'u32[]', space=smem, size = 0x4, offset = 0x4, fixed_abs, tag = 'smem constant byte address 0x4 - core index']
  #allocation1 [shape = 'u32[144,128]{1,0:T(1,128)}', space=vmem, size = 0x12000, scoped, tag = 'internal scratch']
  #allocation2 [shape = 'f32[16,64]{1,0:T(8,128)}', space=vmem, size = 0x2000, scoped, tag = 'scratch operand']
  %s0 = inlined_call_operand.vmem [shape: f32[16,32], index: 0, kind: input, shape index: {}]
  %s1 = inlined_call_operand.hbm [shape: f32[2,32,96], index: 1, kind: input, shape index: {}]
  %s2 = inlined_call_operand.hbm [shape: f32[2,32,96], index: 2, kind: input, shape index: {}]
  %s3 = inlined_call_operand.hbm [shape: f32[2,1,96], index: 3, kind: input, shape index: {}]
  %s4 = inlined_call_operand.hbm [shape: f32[2,1,32], index: 4, kind: input, shape index: {}]
  %s5 = inlined_call_operand.vmem [shape: f32[2,64,96], index: 5, kind: input, shape index: {}]
  %s6 = inlined_call_operand.hbm [shape: f32[2,32,96], index: 6, kind: input, shape index: {}]
  %s7 = inlined_call_operand.vmem [shape: f32[2,1,96], index: 7, kind: input, shape index: {}]
  %s8 = inlined_call_operand.hbm [shape: f32[2,1,32], index: 8, kind: input, shape index: {}]
  %s9 = inlined_call_operand.vmem [shape: f32[64,192], index: 9, kind: input, shape index: {}]
  %s10 = inlined_call_operand.hbm [shape: f32[1,192], index: 10, kind: input, shape index: {}]
  %s11 = inlined_call_operand.hbm [shape: f32[64,64], index: 11, kind: input, shape index: {}]
  %s12 = inlined_call_operand.hbm [shape: f32[1,64], index: 12, kind: input, shape index: {}]
  %s13 = inlined_call_operand.hbm [shape: f32[3,64,256], index: 13, kind: input, shape index: {}]
  %s14 = inlined_call_operand.hbm [shape: f32[1,256], index: 14, kind: input, shape index: {}]
  %s15 = inlined_call_operand.hbm [shape: f32[5,64,256], index: 15, kind: input, shape index: {}]
  %s16 = inlined_call_operand.hbm [shape: f32[1,256], index: 16, kind: input, shape index: {}]
  %s17 = inlined_call_operand.hbm [shape: f32[7,64,256], index: 17, kind: input, shape index: {}]
  %s18 = inlined_call_operand.hbm [shape: f32[1,256], index: 18, kind: input, shape index: {}]
  %s19 = inlined_call_operand.hbm [shape: f32[3,256,128], index: 19, kind: input, shape index: {}]
  %s20 = inlined_call_operand.vmem [shape: f32[1,128], index: 20, kind: input, shape index: {}]
  %s21 = inlined_call_operand.vmem [shape: f32[128,8], index: 21, kind: input, shape index: {}]
  %s22 = inlined_call_operand.hbm [shape: f32[1,8], index: 22, kind: input, shape index: {}]
  %s23 = inlined_call_operand.hbm [shape: f32[2,8], index: 23, kind: output, shape index: {}]
  %s24 = sld [smem:[#allocation0]]
  $region170: #{mjnet_forward.1} parent=0
    _
  %s26 = ssub.s32 1, %s24
  %s27 = scalar_select 0, %s26, %s24
  $region1: #{mjnet_forward.1} parent=0
    #allocation3 [shape = 'u8[32768]{0}', space=vmem, size = 0x8000, scoped, tag = 'input window, operand 1, single buffered']
    #allocation4 [shape = 's32[1]{0}', space=sflag, size = 0x4, scoped, tag = 'scoped memory for mjnet_forward.1']
    #allocation5 [shape = 's32[1]{0}', space=sflag, size = 0x4, scoped, tag = 'scoped memory for mjnet_forward.1']
    #allocation6 [shape = 'u8[32768]{0}', space=vmem, size = 0x8000, scoped, tag = 'input window, operand 2, single buffered']
    #allocation7 [shape = 's32[1]{0}', space=sflag, size = 0x4, scoped, tag = 'scoped memory for mjnet_forward.1']
    #allocation8 [shape = 'u8[1024]{0}', space=vmem, size = 0x400, scoped, tag = 'input window, operand 3, single buffered']
    #allocation9 [shape = 'u8[1024]{0}', space=vmem, size = 0x400, scoped, tag = 'input window, operand 4, single buffered']
    #allocation10 [shape = 's32[1]{0}', space=sflag, size = 0x4, scoped, tag = 'scoped memory for mjnet_forward.1']
    #allocation11 [shape = 'u8[32768]{0}', space=vmem, size = 0x8000, scoped, tag = 'input window, operand 6, single buffered']
    #allocation12 [shape = 'u8[1024]{0}', space=vmem, size = 0x400, scoped, tag = 'input window, operand 8, single buffered']
    #allocation13 [shape = 's32[1]{0}', space=sflag, size = 0x4, scoped, tag = 'scoped memory for mjnet_forward.1']
    #allocation14 [shape = 'u8[1024]{0}', space=vmem, size = 0x400, scoped, tag = 'input window, operand 10, single buffered']
    #allocation15 [shape = 'u8[32768]{0}', space=vmem, size = 0x8000, scoped, tag = 'input window, operand 11, single buffered']
    #allocation16 [shape = 's32[1]{0}', space=sflag, size = 0x4, scoped, tag = 'scoped memory for mjnet_forward.1']
    #allocation17 [shape = 'u8[512]{0}', space=vmem, size = 0x400, scoped, tag = 'input window, operand 12, single buffered']
    #allocation18 [shape = 'u8[196608]{0}', space=vmem, size = 0x30000, scoped, tag = 'input window, operand 13, single buffered']
    #allocation19 [shape = 's32[1]{0}', space=sflag, size = 0x4, scoped, tag = 'scoped memory for mjnet_forward.1']
    #allocation20 [shape = 'u8[1024]{0}', space=vmem, size = 0x400, scoped, tag = 'input window, operand 14, single buffered']
    #allocation21 [shape = 'u8[327680]{0}', space=vmem, size = 0x50000, scoped, tag = 'input window, operand 15, single buffered']
    #allocation22 [shape = 's32[1]{0}', space=sflag, size = 0x4, scoped, tag = 'scoped memory for mjnet_forward.1']
    #allocation23 [shape = 'u8[1024]{0}', space=vmem, size = 0x400, scoped, tag = 'input window, operand 16, single buffered']
    #allocation24 [shape = 'u8[458752]{0}', space=vmem, size = 0x70000, scoped, tag = 'input window, operand 17, single buffered']
    #allocation25 [shape = 's32[1]{0}', space=sflag, size = 0x4, scoped, tag = 'scoped memory for mjnet_forward.1']
    #allocation26 [shape = 'u8[1024]{0}', space=vmem, size = 0x400, scoped, tag = 'input window, operand 18, single buffered']
    #allocation27 [shape = 'u8[393216]{0}', space=vmem, size = 0x60000, scoped, tag = 'input window, operand 19, single buffered']
    #allocation28 [shape = 's32[1]{0}', space=sflag, size = 0x4, scoped, tag = 'scoped memory for mjnet_forward.1']
    #allocation29 [shape = 'u8[512]{0}', space=vmem, size = 0x400, scoped, tag = 'input window, operand 22, single buffered']
    #allocation30 [shape = 'u8[1024]{0}', space=vmem, size = 0x400, scoped, tag = 'output window, operand 0, single buffered']
    %28 = vsyncpa [#allocation4], 0
    %29 = vsyncpa [#allocation7], 0
    %30 = vsyncpa [#allocation10], 0
    %31 = vsyncpa [#allocation13], 0
    %32 = vsyncpa [#allocation16], 0
    %33 = vsyncpa [#allocation19], 0
    %34 = vsyncpa [#allocation22], 0
    %35 = vsyncpa [#allocation25], 0
    %36 = vsyncpa [#allocation28], 0
    %37 = vsyncpa [#allocation5], 0
    // Predicated region
    $region2: #{mjnet_forward.1} parent=1 // pred_check
      _
    $region3: #{mjnet_forward.1} parent=1 // pred_check_branch
      %39 = sbr.rel (0) target = $region5
    $region4: #{mjnet_forward.1} parent=1 // pred_region
      _
    $region5: #{mjnet_forward.1} parent=1 // pred_fallthru
      _
    // Predicated region
    $region6: #{mjnet_forward.1} parent=1 // pred_check
      _
    $region7: #{mjnet_forward.1} parent=1 // pred_check_branch
      %41 = sbr.rel (0) target = $region9
    $region8: #{mjnet_forward.1} parent=1 // pred_region
      %s43 = ssub.s32 1024, 1024
      %44 = vsyncadd [#allocation4], %s43
      %s45 = sshll.u32 [#allocation3], 4
      %s46 = int_to_ptr.vmem [resolvable:$true] %s45
      %51 = dma.hbm_to_vmem [thread:$0]  %s1, 1024, %s46, [#allocation4], 128, 128, 8
    $region9: #{mjnet_forward.1} parent=1 // pred_fallthru
      _
    // Predicated region
    $region10: #{mjnet_forward.1} parent=1 // pred_check
      _
    $region11: #{mjnet_forward.1} parent=1 // pred_check_branch
      %53 = sbr.rel (0) target = $region13
    $region12: #{mjnet_forward.1} parent=1 // pred_region
      %s55 = ssub.s32 1024, 1024
      %56 = vsyncadd [#allocation7], %s55
      %s57 = sshll.u32 [#allocation6], 4
      %s58 = int_to_ptr.vmem [resolvable:$true] %s57
      %63 = dma.hbm_to_vmem [thread:$0]  %s2, 1024, %s58, [#allocation7], 128, 128, 8
    $region13: #{mjnet_forward.1} parent=1 // pred_fallthru
      _
    // Predicated region
    $region14: #{mjnet_forward.1} parent=1 // pred_check
      _
    $region15: #{mjnet_forward.1} parent=1 // pred_check_branch
      %65 = sbr.rel (0) target = $region17
    $region16: #{mjnet_forward.1} parent=1 // pred_region
      %s67 = ssub.s32 32, 32
      %68 = vsyncadd [#allocation7], %s67
      %s69 = sshll.u32 [#allocation8], 4
      %s70 = int_to_ptr.vmem [resolvable:$true] %s69
      %75 = dma.hbm_to_vmem [thread:$0]  %s3, 32, %s70, [#allocation7], 16, 16, 1
    $region17: #{mjnet_forward.1} parent=1 // pred_fallthru
      _
    // Predicated region
    $region18: #{mjnet_forward.1} parent=1 // pred_check
      _
    $region19: #{mjnet_forward.1} parent=1 // pred_check_branch
      %77 = sbr.rel (0) target = $region21
    $region20: #{mjnet_forward.1} parent=1 // pred_region
      %s79 = ssub.s32 32, 32
      %80 = vsyncadd [#allocation10], %s79
      %s81 = sshll.u32 [#allocation9], 4
      %s82 = int_to_ptr.vmem [resolvable:$true] %s81
      %87 = dma.hbm_to_vmem [thread:$0]  %s4, 32, %s82, [#allocation10], 16, 16, 1
    $region21: #{mjnet_forward.1} parent=1 // pred_fallthru
      _
    // Predicated region
    $region22: #{mjnet_forward.1} parent=1 // pred_check
      _
    $region23: #{mjnet_forward.1} parent=1 // pred_check_branch
      %89 = sbr.rel (0) target = $region25
    $region24: #{mjnet_forward.1} parent=1 // pred_region
      _
    $region25: #{mjnet_forward.1} parent=1 // pred_fallthru
      _
    // Predicated region
    $region26: #{mjnet_forward.1} parent=1 // pred_check
      _
    $region27: #{mjnet_forward.1} parent=1 // pred_check_branch
      %91 = sbr.rel (0) target = $region29
    $region28: #{mjnet_forward.1} parent=1 // pred_region
      %s93 = ssub.s32 1024, 1024
      %94 = vsyncadd [#allocation10], %s93
      %s95 = sshll.u32 [#allocation11], 4
      %s96 = int_to_ptr.vmem [resolvable:$true] %s95
      %101 = dma.hbm_to_vmem [thread:$0]  %s6, 1024, %s96, [#allocation10], 128, 128, 8
    $region29: #{mjnet_forward.1} parent=1 // pred_fallthru
      _
    // Predicated region
    $region30: #{mjnet_forward.1} parent=1 // pred_check
      _
    $region31: #{mjnet_forward.1} parent=1 // pred_check_branch
      %103 = sbr.rel (0) target = $region33
    $region32: #{mjnet_forward.1} parent=1 // pred_region
      _
    $region33: #{mjnet_forward.1} parent=1 // pred_fallthru
      _
    // Predicated region
    $region34: #{mjnet_forward.1} parent=1 // pred_check
      _
    $region35: #{mjnet_forward.1} parent=1 // pred_check_branch
      %105 = sbr.rel (0) target = $region37
    $region36: #{mjnet_forward.1} parent=1 // pred_region
      %s107 = ssub.s32 32, 32
      %108 = vsyncadd [#allocation13], %s107
      %s109 = sshll.u32 [#allocation12], 4
      %s110 = int_to_ptr.vmem [resolvable:$true] %s109
      %115 = dma.hbm_to_vmem [thread:$0]  %s8, 32, %s110, [#allocation13], 16, 16, 1
    $region37: #{mjnet_forward.1} parent=1 // pred_fallthru
      _
    // Predicated region
    $region38: #{mjnet_forward.1} parent=1 // pred_check
      _
    $region39: #{mjnet_forward.1} parent=1 // pred_check_branch
      %117 = sbr.rel (0) target = $region41
    $region40: #{mjnet_forward.1} parent=1 // pred_region
      _
    $region41: #{mjnet_forward.1} parent=1 // pred_fallthru
      _
    // Predicated region
    $region42: #{mjnet_forward.1} parent=1 // pred_check
      _
    $region43: #{mjnet_forward.1} parent=1 // pred_check_branch
      %119 = sbr.rel (0) target = $region45
    $region44: #{mjnet_forward.1} parent=1 // pred_region
      %s121 = ssub.s32 32, 32
      %122 = vsyncadd [#allocation13], %s121
      %s124 = sshll.u32 [#allocation14], 4
      %s125 = int_to_ptr.vmem [resolvable:$true] %s124
      %127 = dma.hbm_to_vmem [thread:$0]  %s10, 32, %s125, [#allocation13]
    $region45: #{mjnet_forward.1} parent=1 // pred_fallthru
      _
    // Predicated region
    $region46: #{mjnet_forward.1} parent=1 // pred_check
      _
    $region47: #{mjnet_forward.1} parent=1 // pred_check_branch
      %129 = sbr.rel (0) target = $region49
    $region48: #{mjnet_forward.1} parent=1 // pred_region
      %s131 = ssub.s32 1024, 1024
      %132 = vsyncadd [#allocation16], %s131
      %s133 = sshll.u32 [#allocation15], 4
      %s134 = int_to_ptr.vmem [resolvable:$true] %s133
      %139 = dma.hbm_to_vmem [thread:$0]  %s11, 1024, %s134, [#allocation16], 128, 128, 8
    $region49: #{mjnet_forward.1} parent=1 // pred_fallthru
      _
    // Predicated region
    $region50: #{mjnet_forward.1} parent=1 // pred_check
      _
    $region51: #{mjnet_forward.1} parent=1 // pred_check_branch
      %141 = sbr.rel (0) target = $region53
    $region52: #{mjnet_forward.1} parent=1 // pred_region
      %s143 = ssub.s32 16, 16
      %144 = vsyncadd [#allocation16], %s143
      %s146 = sshll.u32 [#allocation17], 4
      %s147 = int_to_ptr.vmem [resolvable:$true] %s146
      %149 = dma.hbm_to_vmem [thread:$0]  %s12, 16, %s147, [#allocation16]
    $region53: #{mjnet_forward.1} parent=1 // pred_fallthru
      _
    // Predicated region
    $region54: #{mjnet_forward.1} parent=1 // pred_check
      _
    $region55: #{mjnet_forward.1} parent=1 // pred_check_branch
      %151 = sbr.rel (0) target = $region57
    $region56: #{mjnet_forward.1} parent=1 // pred_region
      %s153 = ssub.s32 6144, 6144
      %154 = vsyncadd [#allocation19], %s153
      %s155 = sshll.u32 [#allocation18], 4
      %s156 = int_to_ptr.vmem [resolvable:$true] %s155
      %161 = dma.hbm_to_vmem [thread:$0]  %s13, 6144, %s156, [#allocation19], 256, 256, 16
    $region57: #{mjnet_forward.1} parent=1 // pred_fallthru
      _
    // Predicated region
    $region58: #{mjnet_forward.1} parent=1 // pred_check
      _
    $region59: #{mjnet_forward.1} parent=1 // pred_check_branch
      %163 = sbr.rel (0) target = $region61
    $region60: #{mjnet_forward.1} parent=1 // pred_region
      %s165 = ssub.s32 32, 32
      %166 = vsyncadd [#allocation19], %s165
      %s168 = sshll.u32 [#allocation20], 4
      %s169 = int_to_ptr.vmem [resolvable:$true] %s168
      %171 = dma.hbm_to_vmem [thread:$0]  %s14, 32, %s169, [#allocation19]
    $region61: #{mjnet_forward.1} parent=1 // pred_fallthru
      _
    // Predicated region
    $region62: #{mjnet_forward.1} parent=1 // pred_check
      _
    $region63: #{mjnet_forward.1} parent=1 // pred_check_branch
      %173 = sbr.rel (0) target = $region65
    $region64: #{mjnet_forward.1} parent=1 // pred_region
      %s175 = ssub.s32 10240, 10240
      %176 = vsyncadd [#allocation22], %s175
      %s177 = sshll.u32 [#allocation21], 4
      %s178 = int_to_ptr.vmem [resolvable:$true] %s177
      %183 = dma.hbm_to_vmem [thread:$0]  %s15, 10240, %s178, [#allocation22], 256, 256, 16
    $region65: #{mjnet_forward.1} parent=1 // pred_fallthru
      _
    // Predicated region
    $region66: #{mjnet_forward.1} parent=1 // pred_check
      _
    $region67: #{mjnet_forward.1} parent=1 // pred_check_branch
      %185 = sbr.rel (0) target = $region69
    $region68: #{mjnet_forward.1} parent=1 // pred_region
      %s187 = ssub.s32 32, 32
      %188 = vsyncadd [#allocation22], %s187
      %s190 = sshll.u32 [#allocation23], 4
      %s191 = int_to_ptr.vmem [resolvable:$true] %s190
      %193 = dma.hbm_to_vmem [thread:$0]  %s16, 32, %s191, [#allocation22]
    $region69: #{mjnet_forward.1} parent=1 // pred_fallthru
      _
    // Predicated region
    $region70: #{mjnet_forward.1} parent=1 // pred_check
      _
    $region71: #{mjnet_forward.1} parent=1 // pred_check_branch
      %195 = sbr.rel (0) target = $region73
    $region72: #{mjnet_forward.1} parent=1 // pred_region
      %s197 = ssub.s32 14336, 14336
      %198 = vsyncadd [#allocation25], %s197
      %s199 = sshll.u32 [#allocation24], 4
      %s200 = int_to_ptr.vmem [resolvable:$true] %s199
      %205 = dma.hbm_to_vmem [thread:$0]  %s17, 14336, %s200, [#allocation25], 256, 256, 16
    $region73: #{mjnet_forward.1} parent=1 // pred_fallthru
      _
    // Predicated region
    $region74: #{mjnet_forward.1} parent=1 // pred_check
      _
    $region75: #{mjnet_forward.1} parent=1 // pred_check_branch
      %207 = sbr.rel (0) target = $region77
    $region76: #{mjnet_forward.1} parent=1 // pred_region
      %s209 = ssub.s32 32, 32
      %210 = vsyncadd [#allocation25], %s209
      %s212 = sshll.u32 [#allocation26], 4
      %s213 = int_to_ptr.vmem [resolvable:$true] %s212
      %215 = dma.hbm_to_vmem [thread:$0]  %s18, 32, %s213, [#allocation25]
    $region77: #{mjnet_forward.1} parent=1 // pred_fallthru
      _
    // Predicated region
    $region78: #{mjnet_forward.1} parent=1 // pred_check
      _
    $region79: #{mjnet_forward.1} parent=1 // pred_check_branch
      %217 = sbr.rel (0) target = $region81
    $region80: #{mjnet_forward.1} parent=1 // pred_region
      %s219 = ssub.s32 12288, 12288
      %220 = vsyncadd [#allocation28], %s219
      %s221 = sshll.u32 [#allocation27], 4
      %s222 = int_to_ptr.vmem [resolvable:$true] %s221
      %227 = dma.hbm_to_vmem [thread:$0]  %s19, 12288, %s222, [#allocation28], 128, 128, 8
    $region81: #{mjnet_forward.1} parent=1 // pred_fallthru
      _
    // Predicated region
    $region82: #{mjnet_forward.1} parent=1 // pred_check
      _
    $region83: #{mjnet_forward.1} parent=1 // pred_check_branch
      %229 = sbr.rel (0) target = $region85
    $region84: #{mjnet_forward.1} parent=1 // pred_region
      _
    $region85: #{mjnet_forward.1} parent=1 // pred_fallthru
      _
    // Predicated region
    $region86: #{mjnet_forward.1} parent=1 // pred_check
      _
    $region87: #{mjnet_forward.1} parent=1 // pred_check_branch
      %231 = sbr.rel (0) target = $region89
    $region88: #{mjnet_forward.1} parent=1 // pred_region
      _
    $region89: #{mjnet_forward.1} parent=1 // pred_fallthru
      _
    // Predicated region
    $region90: #{mjnet_forward.1} parent=1 // pred_check
      _
    $region91: #{mjnet_forward.1} parent=1 // pred_check_branch
      %233 = sbr.rel (0) target = $region93
    $region92: #{mjnet_forward.1} parent=1 // pred_region
      %s235 = ssub.s32 16, 16
      %236 = vsyncadd [#allocation28], %s235
      %s238 = sshll.u32 [#allocation29], 4
      %s239 = int_to_ptr.vmem [resolvable:$true] %s238
      %241 = dma.hbm_to_vmem [thread:$0]  %s22, 16, %s239, [#allocation28]
    $region93: #{mjnet_forward.1} parent=1 // pred_fallthru
      _
    // Predicated region
    $region94: #{mjnet_forward.1} parent=1 // pred_check
      _
    $region95: #{mjnet_forward.1} parent=1 // pred_check_branch
      %243 = sbr.rel (0) target = $region97
    $region96: #{mjnet_forward.1} parent=1 // pred_region
      %244 = dma.done [#allocation4], 1024
    $region97: #{mjnet_forward.1} parent=1 // pred_fallthru
      _
    // Predicated region
    $region98: #{mjnet_forward.1} parent=1 // pred_check
      _
    $region99: #{mjnet_forward.1} parent=1 // pred_check_branch
      %246 = sbr.rel (0) target = $region101
    $region100: #{mjnet_forward.1} parent=1 // pred_region
      %247 = dma.done [#allocation7], 1024
    $region101: #{mjnet_forward.1} parent=1 // pred_fallthru
      _
    // Predicated region
    $region102: #{mjnet_forward.1} parent=1 // pred_check
      _
    $region103: #{mjnet_forward.1} parent=1 // pred_check_branch
      %249 = sbr.rel (0) target = $region105
    $region104: #{mjnet_forward.1} parent=1 // pred_region
      %250 = dma.done [#allocation7], 32
    $region105: #{mjnet_forward.1} parent=1 // pred_fallthru
      _
    // Predicated region
    $region106: #{mjnet_forward.1} parent=1 // pred_check
      _
    $region107: #{mjnet_forward.1} parent=1 // pred_check_branch
      %252 = sbr.rel (0) target = $region109
    $region108: #{mjnet_forward.1} parent=1 // pred_region
      %253 = dma.done [#allocation10], 32
    $region109: #{mjnet_forward.1} parent=1 // pred_fallthru
      _
    // Predicated region
    $region110: #{mjnet_forward.1} parent=1 // pred_check
      _
    $region111: #{mjnet_forward.1} parent=1 // pred_check_branch
      %255 = sbr.rel (0) target = $region113
    $region112: #{mjnet_forward.1} parent=1 // pred_region
      %256 = dma.done [#allocation10], 1024
    $region113: #{mjnet_forward.1} parent=1 // pred_fallthru
      _
    // Predicated region
    $region114: #{mjnet_forward.1} parent=1 // pred_check
      _
    $region115: #{mjnet_forward.1} parent=1 // pred_check_branch
      %258 = sbr.rel (0) target = $region117
    $region116: #{mjnet_forward.1} parent=1 // pred_region
      %259 = dma.done [#allocation13], 32
    $region117: #{mjnet_forward.1} parent=1 // pred_fallthru
      _
    // Predicated region
    $region118: #{mjnet_forward.1} parent=1 // pred_check
      _
    $region119: #{mjnet_forward.1} parent=1 // pred_check_branch
      %261 = sbr.rel (0) target = $region121
    $region120: #{mjnet_forward.1} parent=1 // pred_region
      %262 = dma.done [#allocation13], 32
    $region121: #{mjnet_forward.1} parent=1 // pred_fallthru
      _
    // Predicated region
    $region122: #{mjnet_forward.1} parent=1 // pred_check
      _
    $region123: #{mjnet_forward.1} parent=1 // pred_check_branch
      %264 = sbr.rel (0) target = $region125
    $region124: #{mjnet_forward.1} parent=1 // pred_region
      %265 = dma.done [#allocation16], 1024
    $region125: #{mjnet_forward.1} parent=1 // pred_fallthru
      _
    // Predicated region
    $region126: #{mjnet_forward.1} parent=1 // pred_check
      _
    $region127: #{mjnet_forward.1} parent=1 // pred_check_branch
      %267 = sbr.rel (0) target = $region129
    $region128: #{mjnet_forward.1} parent=1 // pred_region
      %268 = dma.done [#allocation16], 16
    $region129: #{mjnet_forward.1} parent=1 // pred_fallthru
      _
    // Predicated region
    $region130: #{mjnet_forward.1} parent=1 // pred_check
      _
    $region131: #{mjnet_forward.1} parent=1 // pred_check_branch
      %270 = sbr.rel (0) target = $region133
    $region132: #{mjnet_forward.1} parent=1 // pred_region
      %271 = dma.done [#allocation19], 6144
    $region133: #{mjnet_forward.1} parent=1 // pred_fallthru
      _
    // Predicated region
    $region134: #{mjnet_forward.1} parent=1 // pred_check
      _
    $region135: #{mjnet_forward.1} parent=1 // pred_check_branch
      %273 = sbr.rel (0) target = $region137
    $region136: #{mjnet_forward.1} parent=1 // pred_region
      %274 = dma.done [#allocation19], 32
    $region137: #{mjnet_forward.1} parent=1 // pred_fallthru
      _
    // Predicated region
    $region138: #{mjnet_forward.1} parent=1 // pred_check
      _
    $region139: #{mjnet_forward.1} parent=1 // pred_check_branch
      %276 = sbr.rel (0) target = $region141
    $region140: #{mjnet_forward.1} parent=1 // pred_region
      %277 = dma.done [#allocation22], 10240
    $region141: #{mjnet_forward.1} parent=1 // pred_fallthru
      _
    // Predicated region
    $region142: #{mjnet_forward.1} parent=1 // pred_check
      _
    $region143: #{mjnet_forward.1} parent=1 // pred_check_branch
      %279 = sbr.rel (0) target = $region145
    $region144: #{mjnet_forward.1} parent=1 // pred_region
      %280 = dma.done [#allocation22], 32
    $region145: #{mjnet_forward.1} parent=1 // pred_fallthru
      _
    // Predicated region
    $region146: #{mjnet_forward.1} parent=1 // pred_check
      _
    $region147: #{mjnet_forward.1} parent=1 // pred_check_branch
      %282 = sbr.rel (0) target = $region149
    $region148: #{mjnet_forward.1} parent=1 // pred_region
      %283 = dma.done [#allocation25], 14336
    $region149: #{mjnet_forward.1} parent=1 // pred_fallthru
      _
    // Predicated region
    $region150: #{mjnet_forward.1} parent=1 // pred_check
      _
    $region151: #{mjnet_forward.1} parent=1 // pred_check_branch
      %285 = sbr.rel (0) target = $region153
    $region152: #{mjnet_forward.1} parent=1 // pred_region
      %286 = dma.done [#allocation25], 32
    $region153: #{mjnet_forward.1} parent=1 // pred_fallthru
      _
    // Predicated region
    $region154: #{mjnet_forward.1} parent=1 // pred_check
      _
    $region155: #{mjnet_forward.1} parent=1 // pred_check_branch
      %288 = sbr.rel (0) target = $region157
    $region156: #{mjnet_forward.1} parent=1 // pred_region
      %289 = dma.done [#allocation28], 12288
    $region157: #{mjnet_forward.1} parent=1 // pred_fallthru
      _
    // Predicated region
    $region158: #{mjnet_forward.1} parent=1 // pred_check
      _
    $region159: #{mjnet_forward.1} parent=1 // pred_check_branch
      %291 = sbr.rel (0) target = $region161
    $region160: #{mjnet_forward.1} parent=1 // pred_region
      %292 = dma.done [#allocation28], 16
    $region161: #{mjnet_forward.1} parent=1 // pred_fallthru
      _
    %v293 = vld [vmem:[%s0] sm:$0xff]
    %v294 = vld [vmem:[%s0 + $0x8] sm:$0xff]
    %v295 = vld [vmem:[#allocation3] sm:$0xff]
    %v296 = vld [vmem:[#allocation3 + $0x8] sm:$0xff]
    %v297 = vld [vmem:[#allocation3 + $0x10] sm:$0xff]
    %v298 = vld [vmem:[#allocation3 + $0x18] sm:$0xff]
    %v299 = vld [vmem:[#allocation8] sm:$0x1]
    %v301 = vlaneseq
    %v302 = vshrl.u32 %v301, 7
    %v303 = vsub.s32 0, %v302
    %v304 = vrot.slane %v299, %v303
    %vm306 = vcmask 261120
    %v308 = vsel %vm306, %v293, 0
    %v311 = vsel %vm306, %v294, 0
    %313 = vmatprep.subr.mxu0 0.0
    %314 = vmatpush1.msra.mxu0 %v295
    %315 = vmatprep.subr.mxu0 0.0
    %316 = vmatpush1.msra.mxu0 %v296
    %317 = vmatprep.subr.mxu0 0.0
    %318 = vmatpush1.msra.mxu0 %v297
    %319 = vmatprep.subr.mxu0 0.0
    %320 = vmatpush1.msra.mxu0 %v298
    %321 = vmatprep.subr.mxu0 0.0
    %322 = vmatpush1.msra.mxu0 0.0
    %323 = vmatprep.subr.mxu0 0.0
    %324 = vmatpush1.msra.mxu0 0.0
    %325 = vmatprep.subr.mxu0 0.0
    %326 = vmatpush1.msra.mxu0 0.0
    %327 = vmatprep.subr.mxu0 0.0
    %328 = vmatpush1.msra.mxu0 0.0
    %329 = vmatprep.subr.mxu0 0.0
    %330 = vmatpush1.msra.mxu0 0.0
    %331 = vmatprep.subr.mxu0 0.0
    %332 = vmatpush1.msra.mxu0 0.0
    %333 = vmatprep.subr.mxu0 0.0
    %334 = vmatpush1.msra.mxu0 0.0
    %335 = vmatprep.subr.mxu0 0.0
    %336 = vmatpush1.msra.mxu0 0.0
    %337 = vmatprep.subr.mxu0 0.0
    %338 = vmatpush1.msra.mxu0 0.0
    %339 = vmatprep.subr.mxu0 0.0
    %340 = vmatpush1.msra.mxu0 0.0
    %341 = vmatprep.subr.mxu0 0.0
    %342 = vmatpush1.msra.mxu0 0.0
    %343 = vmatprep.subr.mxu0 0.0
    %344 = vmatpush1.msra.mxu0 0.0
    %345 = vmatprep.subr.mxu0 0.0
    %346 = vmatpush1.msra.mxu0 0.0
    %347 = vmatprep.subr.mxu0 0.0
    %348 = vmatpush1.msra.mxu0 0.0
    %349 = vmatprep.subr.mxu0 0.0
    %350 = vmatpush1.msra.mxu0 0.0
    %351 = vmatprep.subr.mxu0 0.0
    %352 = vmatpush1.msra.mxu0 0.0
    %353 = vmatprep.subr.mxu0 0.0
    %354 = vmatpush1.msra.mxu0 0.0
    %355 = vmatprep.subr.mxu0 0.0
    %356 = vmatpush1.msra.mxu0 0.0
    %357 = vmatprep.subr.mxu0 0.0
    %358 = vmatpush1.msra.mxu0 0.0
    %359 = vmatprep.subr.mxu0 0.0
    %360 = vmatpush1.msra.mxu0 0.0
    %361 = vmatprep.subr.mxu0 0.0
    %362 = vmatpush1.msra.mxu0 0.0
    %363 = vmatprep.subr.mxu0 0.0
    %364 = vmatpush1.msra.mxu0 0.0
    %365 = vmatprep.subr.mxu0 0.0
    %366 = vmatpush1.msra.mxu0 0.0
    %367 = vmatprep.subr.mxu0 0.0
    %368 = vmatpush1.msra.mxu0 0.0
    %369 = vmatprep.subr.mxu0 0.0
    %370 = vmatpush1.msra.mxu0 0.0
    %371 = vmatprep.subr.mxu0 0.0
    %372 = vmatpush1.msra.mxu0 0.0
    %373 = vmatprep.subr.mxu0 0.0
    %374 = vmatpush1.msra.mxu0 0.0
    %375 = vmatprep.subr.mxu0 0.0
    %376 = vmatpush1.msra.mxu0 0.0
    %377 = vmatprep.mubr.f32.mxu0 0.0
    %378 = vmatmul.mubr.f32.gmra.mrb[0].mxu0 %v308
    %v379 = vpop.f32.mrb[0].mxu0
    %v380 = vadd.f32 %v304, %v379
    %v381 = vpop.f32.mrb[0].mxu0
    %382 = vmatprep.mubr.f32.mxu0 0.0
    %383 = vmatmul.mubr.f32.gmra.mrb[0].mxu0 %v311
    %v384 = vpop.f32.mrb[0].mxu0
    %v385 = vadd.f32 %v304, %v384
    %v386 = vpop.f32.mrb[0].mxu0
    %387 = vdwg.mxu0
    %s388 = scalar_lea.vmem [#allocation3], 32
    %v389 = vld [vmem:[%s388] sm:$0xff]
    %v390 = vld [vmem:[%s388 + $0x8] sm:$0xff]
    %v391 = vld [vmem:[%s388 + $0x10] sm:$0xff]
    %v392 = vld [vmem:[%s388 + $0x18] sm:$0xff]
    %s393 = scalar_lea.vmem [#allocation8], 1
    %v394 = vld [vmem:[%s393] sm:$0x1]
    %v396 = vlaneseq
    %v397 = vshrl.u32 %v396, 7
    %v398 = vsub.s32 0, %v397
    %v399 = vrot.slane %v394, %v398
    %401 = vmatprep.subr.mxu0 0.0
    %402 = vmatpush1.msra.mxu0 %v389
    %403 = vmatprep.subr.mxu0 0.0
    %404 = vmatpush1.msra.mxu0 %v390
    %405 = vmatprep.subr.mxu0 0.0
    %406 = vmatpush1.msra.mxu0 %v391
    %407 = vmatprep.subr.mxu0 0.0
    %408 = vmatpush1.msra.mxu0 %v392
    %409 = vmatprep.subr.mxu0 0.0
    %410 = vmatpush1.msra.mxu0 0.0
    %411 = vmatprep.subr.mxu0 0.0
    %412 = vmatpush1.msra.mxu0 0.0
    %413 = vmatprep.subr.mxu0 0.0
    %414 = vmatpush1.msra.mxu0 0.0
    %415 = vmatprep.subr.mxu0 0.0
    %416 = vmatpush1.msra.mxu0 0.0
    %417 = vmatprep.subr.mxu0 0.0
    %418 = vmatpush1.msra.mxu0 0.0
    %419 = vmatprep.subr.mxu0 0.0
    %420 = vmatpush1.msra.mxu0 0.0
    %421 = vmatprep.subr.mxu0 0.0
    %422 = vmatpush1.msra.mxu0 0.0
    %423 = vmatprep.subr.mxu0 0.0
    %424 = vmatpush1.msra.mxu0 0.0
    %425 = vmatprep.subr.mxu0 0.0
    %426 = vmatpush1.msra.mxu0 0.0
    %427 = vmatprep.subr.mxu0 0.0
    %428 = vmatpush1.msra.mxu0 0.0
    %429 = vmatprep.subr.mxu0 0.0
    %430 = vmatpush1.msra.mxu0 0.0
    %431 = vmatprep.subr.mxu0 0.0
    %432 = vmatpush1.msra.mxu0 0.0
    %433 = vmatprep.subr.mxu0 0.0
    %434 = vmatpush1.msra.mxu0 0.0
    %435 = vmatprep.subr.mxu0 0.0
    %436 = vmatpush1.msra.mxu0 0.0
    %437 = vmatprep.subr.mxu0 0.0
    %438 = vmatpush1.msra.mxu0 0.0
    %439 = vmatprep.subr.mxu0 0.0
    %440 = vmatpush1.msra.mxu0 0.0
    %441 = vmatprep.subr.mxu0 0.0
    %442 = vmatpush1.msra.mxu0 0.0
    %443 = vmatprep.subr.mxu0 0.0
    %444 = vmatpush1.msra.mxu0 0.0
    %445 = vmatprep.subr.mxu0 0.0
    %446 = vmatpush1.msra.mxu0 0.0
    %447 = vmatprep.subr.mxu0 0.0
    %448 = vmatpush1.msra.mxu0 0.0
    %449 = vmatprep.subr.mxu0 0.0
    %450 = vmatpush1.msra.mxu0 0.0
    %451 = vmatprep.subr.mxu0 0.0
    %452 = vmatpush1.msra.mxu0 0.0
    %453 = vmatprep.subr.mxu0 0.0
    %454 = vmatpush1.msra.mxu0 0.0
    %455 = vmatprep.subr.mxu0 0.0
    %456 = vmatpush1.msra.mxu0 0.0
    %457 = vmatprep.subr.mxu0 0.0
    %458 = vmatpush1.msra.mxu0 0.0
    %459 = vmatprep.subr.mxu0 0.0
    %460 = vmatpush1.msra.mxu0 0.0
    %461 = vmatprep.subr.mxu0 0.0
    %462 = vmatpush1.msra.mxu0 0.0
    %463 = vmatprep.subr.mxu0 0.0
    %464 = vmatpush1.msra.mxu0 0.0
    %465 = vmatprep.mubr.f32.mxu0 0.0
    %466 = vmatmul.mubr.f32.gmra.mrb[0].mxu0 %v308
    %v467 = vpop.f32.mrb[0].mxu0
    %v468 = vadd.f32 %v399, %v467
    %v469 = vpop.f32.mrb[0].mxu0
    %470 = vmatprep.mubr.f32.mxu0 0.0
    %471 = vmatmul.mubr.f32.gmra.mrb[0].mxu0 %v311
    %v472 = vpop.f32.mrb[0].mxu0
    %v473 = vadd.f32 %v399, %v472
    %v474 = vpop.f32.mrb[0].mxu0
    %475 = vdwg.mxu0
    %v476 = vld [vmem:[#allocation6] sm:$0xff]
    %v477 = vld [vmem:[#allocation6 + $0x8] sm:$0xff]
    %v478 = vld [vmem:[#allocation6 + $0x10] sm:$0xff]
    %v479 = vld [vmem:[#allocation6 + $0x18] sm:$0xff]
    %s480 = scalar_lea.vmem [#allocation6], 32
    %v481 = vld [vmem:[%s480] sm:$0xff]
    %v482 = vld [vmem:[%s480 + $0x8] sm:$0xff]
    %v483 = vld [vmem:[%s480 + $0x10] sm:$0xff]
    %v484 = vld [vmem:[%s480 + $0x18] sm:$0xff]
    %v485 = vld [vmem:[#allocation9] sm:$0x1]
    %s486 = scalar_lea.vmem [#allocation9], 1
    %v487 = vld [vmem:[%s486] sm:$0x1]
    %v489 = vsel %vm306, 0.0, 0
    %491 = vmatprep.subr.mxu0 0.0
    %492 = vmatpush1.msra.mxu0 %v476
    %493 = vmatprep.subr.mxu0 0.0
    %494 = vmatpush1.msra.mxu0 %v477
    %495 = vmatprep.subr.mxu0 0.0
    %496 = vmatpush1.msra.mxu0 %v478
    %497 = vmatprep.subr.mxu0 0.0
    %498 = vmatpush1.msra.mxu0 %v479
    %499 = vmatprep.subr.mxu0 0.0
    %500 = vmatpush1.msra.mxu0 0.0
    %501 = vmatprep.subr.mxu0 0.0
    %502 = vmatpush1.msra.mxu0 0.0
    %503 = vmatprep.subr.mxu0 0.0
    %504 = vmatpush1.msra.mxu0 0.0
    %505 = vmatprep.subr.mxu0 0.0
    %506 = vmatpush1.msra.mxu0 0.0
    %507 = vmatprep.subr.mxu0 0.0
    %508 = vmatpush1.msra.mxu0 0.0
    %509 = vmatprep.subr.mxu0 0.0
    %510 = vmatpush1.msra.mxu0 0.0
    %511 = vmatprep.subr.mxu0 0.0
    %512 = vmatpush1.msra.mxu0 0.0
    %513 = vmatprep.subr.mxu0 0.0
    %514 = vmatpush1.msra.mxu0 0.0
    %515 = vmatprep.subr.mxu0 0.0
    %516 = vmatpush1.msra.mxu0 0.0
    %517 = vmatprep.subr.mxu0 0.0
    %518 = vmatpush1.msra.mxu0 0.0
    %519 = vmatprep.subr.mxu0 0.0
    %520 = vmatpush1.msra.mxu0 0.0
    %521 = vmatprep.subr.mxu0 0.0
    %522 = vmatpush1.msra.mxu0 0.0
    %523 = vmatprep.subr.mxu0 0.0
    %524 = vmatpush1.msra.mxu0 0.0
    %525 = vmatprep.subr.mxu0 0.0
    %526 = vmatpush1.msra.mxu0 0.0
    %527 = vmatprep.subr.mxu0 0.0
    %528 = vmatpush1.msra.mxu0 0.0
    %529 = vmatprep.subr.mxu0 0.0
    %530 = vmatpush1.msra.mxu0 0.0
    %531 = vmatprep.subr.mxu0 0.0
    %532 = vmatpush1.msra.mxu0 0.0
    %533 = vmatprep.subr.mxu0 0.0
    %534 = vmatpush1.msra.mxu0 0.0
    %535 = vmatprep.subr.mxu0 0.0
    %536 = vmatpush1.msra.mxu0 0.0
    %537 = vmatprep.subr.mxu0 0.0
    %538 = vmatpush1.msra.mxu0 0.0
    %539 = vmatprep.subr.mxu0 0.0
    %540 = vmatpush1.msra.mxu0 0.0
    %541 = vmatprep.subr.mxu0 0.0
    %542 = vmatpush1.msra.mxu0 0.0
    %543 = vmatprep.subr.mxu0 0.0
    %544 = vmatpush1.msra.mxu0 0.0
    %545 = vmatprep.subr.mxu0 0.0
    %546 = vmatpush1.msra.mxu0 0.0
    %547 = vmatprep.subr.mxu0 0.0
    %548 = vmatpush1.msra.mxu0 0.0
    %549 = vmatprep.subr.mxu0 0.0
    %550 = vmatpush1.msra.mxu0 0.0
    %551 = vmatprep.subr.mxu0 0.0
    %552 = vmatpush1.msra.mxu0 0.0
    %553 = vmatprep.subr.mxu0 0.0
    %554 = vmatpush1.msra.mxu0 0.0
    %555 = vmatprep.mubr.f32.mxu0 0.0
    %556 = vmatmul.mubr.f32.gmra.mrb[0].mxu0 %v489
    %v557 = vpop.f32.mrb[0].mxu0
    %v558 = vadd.f32 0.0, %v557
    %v559 = vpop.f32.mrb[0].mxu0
    %560 = vdwg.mxu0
    %561 = vmatprep.subr.mxu0 0.0
    %562 = vmatpush1.msra.mxu0 %v481
    %563 = vmatprep.subr.mxu0 0.0
    %564 = vmatpush1.msra.mxu0 %v482
    %565 = vmatprep.subr.mxu0 0.0
    %566 = vmatpush1.msra.mxu0 %v483
    %567 = vmatprep.subr.mxu0 0.0
    %568 = vmatpush1.msra.mxu0 %v484
    %569 = vmatprep.subr.mxu0 0.0
    %570 = vmatpush1.msra.mxu0 0.0
    %571 = vmatprep.subr.mxu0 0.0
    %572 = vmatpush1.msra.mxu0 0.0
    %573 = vmatprep.subr.mxu0 0.0
    %574 = vmatpush1.msra.mxu0 0.0
    %575 = vmatprep.subr.mxu0 0.0
    %576 = vmatpush1.msra.mxu0 0.0
    %577 = vmatprep.subr.mxu0 0.0
    %578 = vmatpush1.msra.mxu0 0.0
    %579 = vmatprep.subr.mxu0 0.0
    %580 = vmatpush1.msra.mxu0 0.0
    %581 = vmatprep.subr.mxu0 0.0
    %582 = vmatpush1.msra.mxu0 0.0
    %583 = vmatprep.subr.mxu0 0.0
    %584 = vmatpush1.msra.mxu0 0.0
    %585 = vmatprep.subr.mxu0 0.0
    %586 = vmatpush1.msra.mxu0 0.0
    %587 = vmatprep.subr.mxu0 0.0
    %588 = vmatpush1.msra.mxu0 0.0
    %589 = vmatprep.subr.mxu0 0.0
    %590 = vmatpush1.msra.mxu0 0.0
    %591 = vmatprep.subr.mxu0 0.0
    %592 = vmatpush1.msra.mxu0 0.0
    %593 = vmatprep.subr.mxu0 0.0
    %594 = vmatpush1.msra.mxu0 0.0
    %595 = vmatprep.subr.mxu0 0.0
    %596 = vmatpush1.msra.mxu0 0.0
    %597 = vmatprep.subr.mxu0 0.0
    %598 = vmatpush1.msra.mxu0 0.0
    %599 = vmatprep.subr.mxu0 0.0
    %600 = vmatpush1.msra.mxu0 0.0
    %601 = vmatprep.subr.mxu0 0.0
    %602 = vmatpush1.msra.mxu0 0.0
    %603 = vmatprep.subr.mxu0 0.0
    %604 = vmatpush1.msra.mxu0 0.0
    %605 = vmatprep.subr.mxu0 0.0
    %606 = vmatpush1.msra.mxu0 0.0
    %607 = vmatprep.subr.mxu0 0.0
    %608 = vmatpush1.msra.mxu0 0.0
    %609 = vmatprep.subr.mxu0 0.0
    %610 = vmatpush1.msra.mxu0 0.0
    %611 = vmatprep.subr.mxu0 0.0
    %612 = vmatpush1.msra.mxu0 0.0
    %613 = vmatprep.subr.mxu0 0.0
    %614 = vmatpush1.msra.mxu0 0.0
    %615 = vmatprep.subr.mxu0 0.0
    %616 = vmatpush1.msra.mxu0 0.0
    %617 = vmatprep.subr.mxu0 0.0
    %618 = vmatpush1.msra.mxu0 0.0
    %619 = vmatprep.subr.mxu0 0.0
    %620 = vmatpush1.msra.mxu0 0.0
    %621 = vmatprep.subr.mxu0 0.0
    %622 = vmatpush1.msra.mxu0 0.0
    %623 = vmatprep.subr.mxu0 0.0
    %624 = vmatpush1.msra.mxu0 0.0
    %625 = vmatprep.mubr.f32.mxu0 0.0
    %626 = vmatmul.mubr.f32.gmra.mrb[0].mxu0 %v489
    %v627 = vpop.f32.mrb[0].mxu0
    %v628 = vadd.f32 0.0, %v627
    %v629 = vpop.f32.mrb[0].mxu0
    %630 = vdwg.mxu0
    %v631 = vadd.f32 %v380, %v558
    %v632 = vxor.u32 %v631, 2147483648
    %v633 = vmul.f32 %v632, 1.442695
    %v634 = vpow.pop %v633
    %v635 = vadd.f32 %v634, 1.0
    %v636 = vrcp.pop %v635
    %v637 = vmul.f32 1.0, %v636
    %v639 = vlaneseq
    %v640 = vshrl.u32 %v639, 7
    %v641 = vsub.s32 0, %v640
    %v642 = vrot.slane %v485, %v641
    %643 = vrot.lane.b32.xlu0 %v642, 64
    %v644 = vpop.permute.xlu0 %643
    %v646 = vadd.f32 %v558, %v644
    %648 = vrot.lane.b32.xlu0 %v646, 64
    %v649 = vpop.permute.xlu0 %648
    %v651 = vmul.f32 %v637, %v649
    %653 = vrot.lane.b32.xlu0 %v651, 64
    %v654 = vpop.permute.xlu0 %653
    %v656 = vadd.f32 %v380, %v654
    %v657 = vtanh.pop %v656
    %v658 = vsub.f32 1.0, %v637
    %660 = vrot.lane.b32.xlu0 %v657, 96
    %v661 = vpop.permute.xlu0 %660
    %v663 = vmul.f32 %v658, %v661
    %v664 = vmul.f32 %v637, 0.0
    %v665 = vadd.f32 %v663, %v664
    %v667 = vrot.slane %v628, 2
    %v669 = vadd.f32 %v473, %v667
    %v670 = vxor.u32 %v669, 2147483648
    %v671 = vmul.f32 %v670, 1.442695
    %v672 = vpow.pop %v671
    %v673 = vadd.f32 %v672, 1.0
    %v674 = vrcp.pop %v673
    %v675 = vmul.f32 1.0, %v674
    %v677 = vlaneseq
    %v678 = vshrl.u32 %v677, 7
    %v679 = vsub.s32 0, %v678
    %v680 = vrot.slane %v487, %v679
    %681 = vrot.lane.b32.xlu0 %v680, 64
    %v682 = vpop.permute.xlu0 %681
    %v684 = vadd.f32 %v628, %v682
    %v686 = vrot.slane %v684, 2
    %687 = vrot.lane.b32.xlu0 %v686, 64
    %v688 = vpop.permute.xlu0 %687
    %v690 = vmul.f32 %v675, %v688
    %692 = vrot.lane.b32.xlu0 %v690, 64
    %v693 = vpop.permute.xlu0 %692
    %v695 = vadd.f32 %v473, %v693
    %v696 = vtanh.pop %v695
    %v697 = vsub.f32 1.0, %v675
    %699 = vrot.lane.b32.xlu0 %v696, 96
    %v700 = vpop.permute.xlu0 %699
    %v702 = vmul.f32 %v697, %v700
    %v703 = vmul.f32 %v675, 0.0
    %v704 = vadd.f32 %v702, %v703
    %706 = vrot.lane.b32.xlu0 %v665, 96
    %v707 = vpop.permute.xlu0 %706
    %vm709 = vcmask 254976
    %710 = vst.msk [vmem:[#allocation2] sm:$0x3] %vm709, %v707
    %vm711 = vcmask 523526
    %712 = vst.msk [vmem:[#allocation2 + $0x8] sm:$0xc0] %vm711, %v704
    %v713 = vsel %vm306, %v707, 0
    %715 = vmatprep.subr.mxu0 0.0
    %716 = vmatpush1.msra.mxu0 %v476
    %717 = vmatprep.subr.mxu0 0.0
    %718 = vmatpush1.msra.mxu0 %v477
    %719 = vmatprep.subr.mxu0 0.0
    %720 = vmatpush1.msra.mxu0 %v478
    %721 = vmatprep.subr.mxu0 0.0
    %722 = vmatpush1.msra.mxu0 %v479
    %723 = vmatprep.subr.mxu0 0.0
    %724 = vmatpush1.msra.mxu0 0.0
    %725 = vmatprep.subr.mxu0 0.0
    %726 = vmatpush1.msra.mxu0 0.0
    %727 = vmatprep.subr.mxu0 0.0
    %728 = vmatpush1.msra.mxu0 0.0
    %729 = vmatprep.subr.mxu0 0.0
    %730 = vmatpush1.msra.mxu0 0.0
    %731 = vmatprep.subr.mxu0 0.0
    %732 = vmatpush1.msra.mxu0 0.0
    %733 = vmatprep.subr.mxu0 0.0
    %734 = vmatpush1.msra.mxu0 0.0
    %735 = vmatprep.subr.mxu0 0.0
    %736 = vmatpush1.msra.mxu0 0.0
    %737 = vmatprep.subr.mxu0 0.0
    %738 = vmatpush1.msra.mxu0 0.0
    %739 = vmatprep.subr.mxu0 0.0
    %740 = vmatpush1.msra.mxu0 0.0
    %741 = vmatprep.subr.mxu0 0.0
    %742 = vmatpush1.msra.mxu0 0.0
    %743 = vmatprep.subr.mxu0 0.0
    %744 = vmatpush1.msra.mxu0 0.0
    %745 = vmatprep.subr.mxu0 0.0
    %746 = vmatpush1.msra.mxu0 0.0
    %747 = vmatprep.subr.mxu0 0.0
    %748 = vmatpush1.msra.mxu0 0.0
    %749 = vmatprep.subr.mxu0 0.0
    %750 = vmatpush1.msra.mxu0 0.0
    %751 = vmatprep.subr.mxu0 0.0
    %752 = vmatpush1.msra.mxu0 0.0
    %753 = vmatprep.subr.mxu0 0.0
    %754 = vmatpush1.msra.mxu0 0.0
    %755 = vmatprep.subr.mxu0 0.0
    %756 = vmatpush1.msra.mxu0 0.0
    %757 = vmatprep.subr.mxu0 0.0
    %758 = vmatpush1.msra.mxu0 0.0
    %759 = vmatprep.subr.mxu0 0.0
    %760 = vmatpush1.msra.mxu0 0.0
    %761 = vmatprep.subr.mxu0 0.0
    %762 = vmatpush1.msra.mxu0 0.0
    %763 = vmatprep.subr.mxu0 0.0
    %764 = vmatpush1.msra.mxu0 0.0
    %765 = vmatprep.subr.mxu0 0.0
    %766 = vmatpush1.msra.mxu0 0.0
    %767 = vmatprep.subr.mxu0 0.0
    %768 = vmatpush1.msra.mxu0 0.0
    %769 = vmatprep.subr.mxu0 0.0
    %770 = vmatpush1.msra.mxu0 0.0
    %771 = vmatprep.subr.mxu0 0.0
    %772 = vmatpush1.msra.mxu0 0.0
    %773 = vmatprep.subr.mxu0 0.0
    %774 = vmatpush1.msra.mxu0 0.0
    %775 = vmatprep.subr.mxu0 0.0
    %776 = vmatpush1.msra.mxu0 0.0
    %777 = vmatprep.subr.mxu0 0.0
    %778 = vmatpush1.msra.mxu0 0.0
    %779 = vmatprep.mubr.f32.mxu0 0.0
    %780 = vmatmul.mubr.f32.gmra.mrb[0].mxu0 %v713
    %v781 = vpop.f32.mrb[0].mxu0
    %v782 = vadd.f32 0.0, %v781
    %v783 = vpop.f32.mrb[0].mxu0
    %784 = vdwg.mxu0
    %v786 = vrot.slane %v704, 6
    %787 = vrot.lane.b32.xlu0 %v786, 96
    %v788 = vpop.permute.xlu0 %787
    %v789 = vsel %vm306, %v788, 0
    %791 = vmatprep.subr.mxu0 0.0
    %792 = vmatpush1.msra.mxu0 %v481
    %793 = vmatprep.subr.mxu0 0.0
    %794 = vmatpush1.msra.mxu0 %v482
    %795 = vmatprep.subr.mxu0 0.0
    %796 = vmatpush1.msra.mxu0 %v483
    %797 = vmatprep.subr.mxu0 0.0
    %798 = vmatpush1.msra.mxu0 %v484
    %799 = vmatprep.subr.mxu0 0.0
    %800 = vmatpush1.msra.mxu0 0.0
    %801 = vmatprep.subr.mxu0 0.0
    %802 = vmatpush1.msra.mxu0 0.0
    %803 = vmatprep.subr.mxu0 0.0
    %804 = vmatpush1.msra.mxu0 0.0
    %805 = vmatprep.subr.mxu0 0.0
    %806 = vmatpush1.msra.mxu0 0.0
    %807 = vmatprep.subr.mxu0 0.0
    %808 = vmatpush1.msra.mxu0 0.0
    %809 = vmatprep.subr.mxu0 0.0
    %810 = vmatpush1.msra.mxu0 0.0
    %811 = vmatprep.subr.mxu0 0.0
    %812 = vmatpush1.msra.mxu0 0.0
    %813 = vmatprep.subr.mxu0 0.0
    %814 = vmatpush1.msra.mxu0 0.0
    %815 = vmatprep.subr.mxu0 0.0
    %816 = vmatpush1.msra.mxu0 0.0
    %817 = vmatprep.subr.mxu0 0.0
    %818 = vmatpush1.msra.mxu0 0.0
    %819 = vmatprep.subr.mxu0 0.0
    %820 = vmatpush1.msra.mxu0 0.0
    %821 = vmatprep.subr.mxu0 0.0
    %822 = vmatpush1.msra.mxu0 0.0
    %823 = vmatprep.subr.mxu0 0.0
    %824 = vmatpush1.msra.mxu0 0.0
    %825 = vmatprep.subr.mxu0 0.0
    %826 = vmatpush1.msra.mxu0 0.0
    %827 = vmatprep.subr.mxu0 0.0
    %828 = vmatpush1.msra.mxu0 0.0
    %829 = vmatprep.subr.mxu0 0.0
    %830 = vmatpush1.msra.mxu0 0.0
    %831 = vmatprep.subr.mxu0 0.0
    %832 = vmatpush1.msra.mxu0 0.0
    %833 = vmatprep.subr.mxu0 0.0
    %834 = vmatpush1.msra.mxu0 0.0
    %835 = vmatprep.subr.mxu0 0.0
    %836 = vmatpush1.msra.mxu0 0.0
    %837 = vmatprep.subr.mxu0 0.0
    %838 = vmatpush1.msra.mxu0 0.0
    %839 = vmatprep.subr.mxu0 0.0
    %840 = vmatpush1.msra.mxu0 0.0
    %841 = vmatprep.subr.mxu0 0.0
    %842 = vmatpush1.msra.mxu0 0.0
    %843 = vmatprep.subr.mxu0 0.0
    %844 = vmatpush1.msra.mxu0 0.0
    %845 = vmatprep.subr.mxu0 0.0
    %846 = vmatpush1.msra.mxu0 0.0
    %847 = vmatprep.subr.mxu0 0.0
    %848 = vmatpush1.msra.mxu0 0.0
    %849 = vmatprep.subr.mxu0 0.0
    %850 = vmatpush1.msra.mxu0 0.0
    %851 = vmatprep.subr.mxu0 0.0
    %852 = vmatpush1.msra.mxu0 0.0
    %853 = vmatprep.subr.mxu0 0.0
    %854 = vmatpush1.msra.mxu0 0.0
    %855 = vmatprep.mubr.f32.mxu0 0.0
    %856 = vmatmul.mubr.f32.gmra.mrb[0].mxu0 %v789
    %v857 = vpop.f32.mrb[0].mxu0
    %v858 = vadd.f32 0.0, %v857
    %v859 = vpop.f32.mrb[0].mxu0
    %860 = vdwg.mxu0
    %v862 = vrot.slane %v782, 6
    %v864 = vadd.f32 %v380, %v862
    %v865 = vxor.u32 %v864, 2147483648
    %v866 = vmul.f32 %v865, 1.442695
    %v867 = vpow.pop %v866
    %v868 = vadd.f32 %v867, 1.0
    %v869 = vrcp.pop %v868
    %v870 = vmul.f32 1.0, %v869
    %v871 = vadd.f32 %v782, %v644
    %v873 = vrot.slane %v871, 6
    %874 = vrot.lane.b32.xlu0 %v873, 64
    %v875 = vpop.permute.xlu0 %874
    %v877 = vmul.f32 %v870, %v875
    %879 = vrot.lane.b32.xlu0 %v877, 64
    %v880 = vpop.permute.xlu0 %879
    %v882 = vadd.f32 %v380, %v880
    %v883 = vtanh.pop %v882
    %v884 = vsub.f32 1.0, %v870
    %886 = vrot.lane.b32.xlu0 %v883, 96
    %v887 = vpop.permute.xlu0 %886
    %v889 = vmul.f32 %v884, %v887
    %v890 = vrot.slane %v665, 6
    %v892 = vmul.f32 %v870, %v890
    %v893 = vadd.f32 %v889, %v892
    %v895 = vrot.slane %v858, 4
    %v897 = vadd.f32 %v473, %v895
    %v898 = vxor.u32 %v897, 2147483648
    %v899 = vmul.f32 %v898, 1.442695
    %v900 = vpow.pop %v899
    %v901 = vadd.f32 %v900, 1.0
    %v902 = vrcp.pop %v901
    %v903 = vmul.f32 1.0, %v902
    %v904 = vadd.f32 %v858, %v682
    %v906 = vrot.slane %v904, 4
    %907 = vrot.lane.b32.xlu0 %v906, 64
    %v908 = vpop.permute.xlu0 %907
    %v910 = vmul.f32 %v903, %v908
    %912 = vrot.lane.b32.xlu0 %v910, 64
    %v913 = vpop.permute.xlu0 %912
    %v915 = vadd.f32 %v473, %v913
    %v916 = vtanh.pop %v915
    %v917 = vsub.f32 1.0, %v903
    %919 = vrot.lane.b32.xlu0 %v916, 96
    %v920 = vpop.permute.xlu0 %919
    %v922 = vmul.f32 %v917, %v920
    %v923 = vrot.slane %v704, 2
    %v925 = vmul.f32 %v903, %v923
    %v926 = vadd.f32 %v922, %v925
    %928 = vrot.lane.b32.xlu0 %v893, 96
    %v929 = vpop.permute.xlu0 %928
    %vm931 = vcmask 257026
    %932 = vst.msk [vmem:[#allocation2] sm:$0xc] %vm931, %v929
    %vm933 = vcmask 521476
    %934 = vst.msk [vmem:[#allocation2 + $0x8] sm:$0x30] %vm933, %v926
    %v935 = vrot.slane %v893, 2
    %936 = vrot.lane.b32.xlu0 %v935, 96
    %v937 = vpop.permute.xlu0 %936
    %v938 = vsel %vm306, %v937, 0
    %940 = vmatprep.subr.mxu0 0.0
    %941 = vmatpush1.msra.mxu0 %v476
    %942 = vmatprep.subr.mxu0 0.0
    %943 = vmatpush1.msra.mxu0 %v477
    %944 = vmatprep.subr.mxu0 0.0
    %945 = vmatpush1.msra.mxu0 %v478
    %946 = vmatprep.subr.mxu0 0.0
    %947 = vmatpush1.msra.mxu0 %v479
    %948 = vmatprep.subr.mxu0 0.0
    %949 = vmatpush1.msra.mxu0 0.0
    %950 = vmatprep.subr.mxu0 0.0
    %951 = vmatpush1.msra.mxu0 0.0
    %952 = vmatprep.subr.mxu0 0.0
    %953 = vmatpush1.msra.mxu0 0.0
    %954 = vmatprep.subr.mxu0 0.0
    %955 = vmatpush1.msra.mxu0 0.0
    %956 = vmatprep.subr.mxu0 0.0
    %957 = vmatpush1.msra.mxu0 0.0
    %958 = vmatprep.subr.mxu0 0.0
    %959 = vmatpush1.msra.mxu0 0.0
    %960 = vmatprep.subr.mxu0 0.0
    %961 = vmatpush1.msra.mxu0 0.0
    %962 = vmatprep.subr.mxu0 0.0
    %963 = vmatpush1.msra.mxu0 0.0
    %964 = vmatprep.subr.mxu0 0.0
    %965 = vmatpush1.msra.mxu0 0.0
    %966 = vmatprep.subr.mxu0 0.0
    %967 = vmatpush1.msra.mxu0 0.0
    %968 = vmatprep.subr.mxu0 0.0
    %969 = vmatpush1.msra.mxu0 0.0
    %970 = vmatprep.subr.mxu0 0.0
    %971 = vmatpush1.msra.mxu0 0.0
    %972 = vmatprep.subr.mxu0 0.0
    %973 = vmatpush1.msra.mxu0 0.0
    %974 = vmatprep.subr.mxu0 0.0
    %975 = vmatpush1.msra.mxu0 0.0
    %976 = vmatprep.subr.mxu0 0.0
    %977 = vmatpush1.msra.mxu0 0.0
    %978 = vmatprep.subr.mxu0 0.0
    %979 = vmatpush1.msra.mxu0 0.0
    %980 = vmatprep.subr.mxu0 0.0
    %981 = vmatpush1.msra.mxu0 0.0
    %982 = vmatprep.subr.mxu0 0.0
    %983 = vmatpush1.msra.mxu0 0.0
    %984 = vmatprep.subr.mxu0 0.0
    %985 = vmatpush1.msra.mxu0 0.0
    %986 = vmatprep.subr.mxu0 0.0
    %987 = vmatpush1.msra.mxu0 0.0
    %988 = vmatprep.subr.mxu0 0.0
    %989 = vmatpush1.msra.mxu0 0.0
    %990 = vmatprep.subr.mxu0 0.0
    %991 = vmatpush1.msra.mxu0 0.0
    %992 = vmatprep.subr.mxu0 0.0
    %993 = vmatpush1.msra.mxu0 0.0
    %994 = vmatprep.subr.mxu0 0.0
    %995 = vmatpush1.msra.mxu0 0.0
    %996 = vmatprep.subr.mxu0 0.0
    %997 = vmatpush1.msra.mxu0 0.0
    %998 = vmatprep.subr.mxu0 0.0
    %999 = vmatpush1.msra.mxu0 0.0
    %1000 = vmatprep.subr.mxu0 0.0
    %1001 = vmatpush1.msra.mxu0 0.0
    %1002 = vmatprep.subr.mxu0 0.0
    %1003 = vmatpush1.msra.mxu0 0.0
    %1004 = vmatprep.mubr.f32.mxu0 0.0
    %1005 = vmatmul.mubr.f32.gmra.mrb[0].mxu0 %v938
    %v1006 = vpop.f32.mrb[0].mxu0
    %v1007 = vadd.f32 0.0, %v1006
    %v1008 = vpop.f32.mrb[0].mxu0
    %1009 = vdwg.mxu0
    %v1011 = vrot.slane %v926, 4
    %1012 = vrot.lane.b32.xlu0 %v1011, 96
    %v1013 = vpop.permute.xlu0 %1012
    %v1014 = vsel %vm306, %v1013, 0
    %1016 = vmatprep.subr.mxu0 0.0
    %1017 = vmatpush1.msra.mxu0 %v481
    %1018 = vmatprep.subr.mxu0 0.0
    %1019 = vmatpush1.msra.mxu0 %v482
    %1020 = vmatprep.subr.mxu0 0.0
    %1021 = vmatpush1.msra.mxu0 %v483
    %1022 = vmatprep.subr.mxu0 0.0
    %1023 = vmatpush1.msra.mxu0 %v484
    %1024 = vmatprep.subr.mxu0 0.0
    %1025 = vmatpush1.msra.mxu0 0.0
    %1026 = vmatprep.subr.mxu0 0.0
    %1027 = vmatpush1.msra.mxu0 0.0
    %1028 = vmatprep.subr.mxu0 0.0
    %1029 = vmatpush1.msra.mxu0 0.0
    %1030 = vmatprep.subr.mxu0 0.0
    %1031 = vmatpush1.msra.mxu0 0.0
    %1032 = vmatprep.subr.mxu0 0.0
    %1033 = vmatpush1.msra.mxu0 0.0
    %1034 = vmatprep.subr.mxu0 0.0
    %1035 = vmatpush1.msra.mxu0 0.0
    %1036 = vmatprep.subr.mxu0 0.0
    %1037 = vmatpush1.msra.mxu0 0.0
    %1038 = vmatprep.subr.mxu0 0.0
    %1039 = vmatpush1.msra.mxu0 0.0
    %1040 = vmatprep.subr.mxu0 0.0
    %1041 = vmatpush1.msra.mxu0 0.0
    %1042 = vmatprep.subr.mxu0 0.0
    %1043 = vmatpush1.msra.mxu0 0.0
    %1044 = vmatprep.subr.mxu0 0.0
    %1045 = vmatpush1.msra.mxu0 0.0
    %1046 = vmatprep.subr.mxu0 0.0
    %1047 = vmatpush1.msra.mxu0 0.0
    %1048 = vmatprep.subr.mxu0 0.0
    %1049 = vmatpush1.msra.mxu0 0.0
    %1050 = vmatprep.subr.mxu0 0.0
    %1051 = vmatpush1.msra.mxu0 0.0
    %1052 = vmatprep.subr.mxu0 0.0
    %1053 = vmatpush1.msra.mxu0 0.0
    %1054 = vmatprep.subr.mxu0 0.0
    %1055 = vmatpush1.msra.mxu0 0.0
    %1056 = vmatprep.subr.mxu0 0.0
    %1057 = vmatpush1.msra.mxu0 0.0
    %1058 = vmatprep.subr.mxu0 0.0
    %1059 = vmatpush1.msra.mxu0 0.0
    %1060 = vmatprep.subr.mxu0 0.0
    %1061 = vmatpush1.msra.mxu0 0.0
    %1062 = vmatprep.subr.mxu0 0.0
    %1063 = vmatpush1.msra.mxu0 0.0
    %1064 = vmatprep.subr.mxu0 0.0
    %1065 = vmatpush1.msra.mxu0 0.0
    %1066 = vmatprep.subr.mxu0 0.0
    %1067 = vmatpush1.msra.mxu0 0.0
    %1068 = vmatprep.subr.mxu0 0.0
    %1069 = vmatpush1.msra.mxu0 0.0
    %1070 = vmatprep.subr.mxu0 0.0
    %1071 = vmatpush1.msra.mxu0 0.0
    %1072 = vmatprep.subr.mxu0 0.0
    %1073 = vmatpush1.msra.mxu0 0.0
    %1074 = vmatprep.subr.mxu0 0.0
    %1075 = vmatpush1.msra.mxu0 0.0
    %1076 = vmatprep.subr.mxu0 0.0
    %1077 = vmatpush1.msra.mxu0 0.0
    %1078 = vmatprep.subr.mxu0 0.0
    %1079 = vmatpush1.msra.mxu0 0.0
    %1080 = vmatprep.mubr.f32.mxu0 0.0
    %1081 = vmatmul.mubr.f32.gmra.mrb[0].mxu0 %v1014
    %v1082 = vpop.f32.mrb[0].mxu0
    %v1083 = vadd.f32 0.0, %v1082
    %v1084 = vpop.f32.mrb[0].mxu0
    %1085 = vdwg.mxu0
    %v1087 = vrot.slane %v1007, 4
    %v1089 = vadd.f32 %v380, %v1087
    %v1090 = vxor.u32 %v1089, 2147483648
    %v1091 = vmul.f32 %v1090, 1.442695
    %v1092 = vpow.pop %v1091
    %v1093 = vadd.f32 %v1092, 1.0
    %v1094 = vrcp.pop %v1093
    %v1095 = vmul.f32 1.0, %v1094
    %v1096 = vadd.f32 %v1007, %v644
    %v1098 = vrot.slane %v1096, 4
    %1099 = vrot.lane.b32.xlu0 %v1098, 64
    %v1100 = vpop.permute.xlu0 %1099
    %v1102 = vmul.f32 %v1095, %v1100
    %1104 = vrot.lane.b32.xlu0 %v1102, 64
    %v1105 = vpop.permute.xlu0 %1104
    %v1107 = vadd.f32 %v380, %v1105
    %v1108 = vtanh.pop %v1107
    %v1109 = vsub.f32 1.0, %v1095
    %1111 = vrot.lane.b32.xlu0 %v1108, 96
    %v1112 = vpop.permute.xlu0 %1111
    %v1114 = vmul.f32 %v1109, %v1112
    %v1115 = vrot.slane %v893, 6
    %v1117 = vmul.f32 %v1095, %v1115
    %v1118 = vadd.f32 %v1114, %v1117
    %v1120 = vrot.slane %v1083, 6
    %v1122 = vadd.f32 %v473, %v1120
    %v1123 = vxor.u32 %v1122, 2147483648
    %v1124 = vmul.f32 %v1123, 1.442695
    %v1125 = vpow.pop %v1124
    %v1126 = vadd.f32 %v1125, 1.0
    %v1127 = vrcp.pop %v1126
    %v1128 = vmul.f32 1.0, %v1127
    %v1129 = vadd.f32 %v1083, %v682
    %v1131 = vrot.slane %v1129, 6
    %1132 = vrot.lane.b32.xlu0 %v1131, 64
    %v1133 = vpop.permute.xlu0 %1132
    %v1135 = vmul.f32 %v1128, %v1133
    %1137 = vrot.lane.b32.xlu0 %v1135, 64
    %v1138 = vpop.permute.xlu0 %1137
    %v1140 = vadd.f32 %v473, %v1138
    %v1141 = vtanh.pop %v1140
    %v1142 = vsub.f32 1.0, %v1128
    %1144 = vrot.lane.b32.xlu0 %v1141, 96
    %v1145 = vpop.permute.xlu0 %1144
    %v1147 = vmul.f32 %v1142, %v1145
    %v1148 = vrot.slane %v926, 2
    %v1150 = vmul.f32 %v1128, %v1148
    %v1151 = vadd.f32 %v1147, %v1150
    %1153 = vrot.lane.b32.xlu0 %v1118, 96
    %v1154 = vpop.permute.xlu0 %1153
    %vm1156 = vcmask 259076
    %1157 = vst.msk [vmem:[#allocation2] sm:$0x30] %vm1156, %v1154
    %vm1158 = vcmask 519426
    %1159 = vst.msk [vmem:[#allocation2 + $0x8] sm:$0xc] %vm1158, %v1151
    %v1160 = vrot.slane %v1118, 4
    %1161 = vrot.lane.b32.xlu0 %v1160, 96
    %v1162 = vpop.permute.xlu0 %1161
    %v1163 = vsel %vm306, %v1162, 0
    %1165 = vmatprep.subr.mxu0 0.0
    %1166 = vmatpush1.msra.mxu0 %v476
    %1167 = vmatprep.subr.mxu0 0.0
    %1168 = vmatpush1.msra.mxu0 %v477
    %1169 = vmatprep.subr.mxu0 0.0
    %1170 = vmatpush1.msra.mxu0 %v478
    %1171 = vmatprep.subr.mxu0 0.0
    %1172 = vmatpush1.msra.mxu0 %v479
    %1173 = vmatprep.subr.mxu0 0.0
    %1174 = vmatpush1.msra.mxu0 0.0
    %1175 = vmatprep.subr.mxu0 0.0
    %1176 = vmatpush1.msra.mxu0 0.0
    %1177 = vmatprep.subr.mxu0 0.0
    %1178 = vmatpush1.msra.mxu0 0.0
    %1179 = vmatprep.subr.mxu0 0.0
    %1180 = vmatpush1.msra.mxu0 0.0
    %1181 = vmatprep.subr.mxu0 0.0
    %1182 = vmatpush1.msra.mxu0 0.0
    %1183 = vmatprep.subr.mxu0 0.0
    %1184 = vmatpush1.msra.mxu0 0.0
    %1185 = vmatprep.subr.mxu0 0.0
    %1186 = vmatpush1.msra.mxu0 0.0
    %1187 = vmatprep.subr.mxu0 0.0
    %1188 = vmatpush1.msra.mxu0 0.0
    %1189 = vmatprep.subr.mxu0 0.0
    %1190 = vmatpush1.msra.mxu0 0.0
    %1191 = vmatprep.subr.mxu0 0.0
    %1192 = vmatpush1.msra.mxu0 0.0
    %1193 = vmatprep.subr.mxu0 0.0
    %1194 = vmatpush1.msra.mxu0 0.0
    %1195 = vmatprep.subr.mxu0 0.0
    %1196 = vmatpush1.msra.mxu0 0.0
    %1197 = vmatprep.subr.mxu0 0.0
    %1198 = vmatpush1.msra.mxu0 0.0
    %1199 = vmatprep.subr.mxu0 0.0
    %1200 = vmatpush1.msra.mxu0 0.0
    %1201 = vmatprep.subr.mxu0 0.0
    %1202 = vmatpush1.msra.mxu0 0.0
    %1203 = vmatprep.subr.mxu0 0.0
    %1204 = vmatpush1.msra.mxu0 0.0
    %1205 = vmatprep.subr.mxu0 0.0
    %1206 = vmatpush1.msra.mxu0 0.0
    %1207 = vmatprep.subr.mxu0 0.0
    %1208 = vmatpush1.msra.mxu0 0.0
    %1209 = vmatprep.subr.mxu0 0.0
    %1210 = vmatpush1.msra.mxu0 0.0
    %1211 = vmatprep.subr.mxu0 0.0
    %1212 = vmatpush1.msra.mxu0 0.0
    %1213 = vmatprep.subr.mxu0 0.0
    %1214 = vmatpush1.msra.mxu0 0.0
    %1215 = vmatprep.subr.mxu0 0.0
    %1216 = vmatpush1.msra.mxu0 0.0
    %1217 = vmatprep.subr.mxu0 0.0
    %1218 = vmatpush1.msra.mxu0 0.0
    %1219 = vmatprep.subr.mxu0 0.0
    %1220 = vmatpush1.msra.mxu0 0.0
    %1221 = vmatprep.subr.mxu0 0.0
    %1222 = vmatpush1.msra.mxu0 0.0
    %1223 = vmatprep.subr.mxu0 0.0
    %1224 = vmatpush1.msra.mxu0 0.0
    %1225 = vmatprep.subr.mxu0 0.0
    %1226 = vmatpush1.msra.mxu0 0.0
    %1227 = vmatprep.subr.mxu0 0.0
    %1228 = vmatpush1.msra.mxu0 0.0
    %1229 = vmatprep.mubr.f32.mxu0 0.0
    %1230 = vmatmul.mubr.f32.gmra.mrb[0].mxu0 %v1163
    %v1231 = vpop.f32.mrb[0].mxu0
    %v1232 = vadd.f32 0.0, %v1231
    %v1233 = vpop.f32.mrb[0].mxu0
    %1234 = vdwg.mxu0
    %v1236 = vrot.slane %v1151, 2
    %1237 = vrot.lane.b32.xlu0 %v1236, 96
    %v1238 = vpop.permute.xlu0 %1237
    %v1239 = vsel %vm306, %v1238, 0
    %1241 = vmatprep.subr.mxu0 0.0
    %1242 = vmatpush1.msra.mxu0 %v481
    %1243 = vmatprep.subr.mxu0 0.0
    %1244 = vmatpush1.msra.mxu0 %v482
    %1245 = vmatprep.subr.mxu0 0.0
    %1246 = vmatpush1.msra.mxu0 %v483
    %1247 = vmatprep.subr.mxu0 0.0
    %1248 = vmatpush1.msra.mxu0 %v484
    %1249 = vmatprep.subr.mxu0 0.0
    %1250 = vmatpush1.msra.mxu0 0.0
    %1251 = vmatprep.subr.mxu0 0.0
    %1252 = vmatpush1.msra.mxu0 0.0
    %1253 = vmatprep.subr.mxu0 0.0
    %1254 = vmatpush1.msra.mxu0 0.0
    %1255 = vmatprep.subr.mxu0 0.0
    %1256 = vmatpush1.msra.mxu0 0.0
    %1257 = vmatprep.subr.mxu0 0.0
    %1258 = vmatpush1.msra.mxu0 0.0
    %1259 = vmatprep.subr.mxu0 0.0
    %1260 = vmatpush1.msra.mxu0 0.0
    %1261 = vmatprep.subr.mxu0 0.0
    %1262 = vmatpush1.msra.mxu0 0.0
    %1263 = vmatprep.subr.mxu0 0.0
    %1264 = vmatpush1.msra.mxu0 0.0
    %1265 = vmatprep.subr.mxu0 0.0
    %1266 = vmatpush1.msra.mxu0 0.0
    %1267 = vmatprep.subr.mxu0 0.0
    %1268 = vmatpush1.msra.mxu0 0.0
    %1269 = vmatprep.subr.mxu0 0.0
    %1270 = vmatpush1.msra.mxu0 0.0
    %1271 = vmatprep.subr.mxu0 0.0
    %1272 = vmatpush1.msra.mxu0 0.0
    %1273 = vmatprep.subr.mxu0 0.0
    %1274 = vmatpush1.msra.mxu0 0.0
    %1275 = vmatprep.subr.mxu0 0.0
    %1276 = vmatpush1.msra.mxu0 0.0
    %1277 = vmatprep.subr.mxu0 0.0
    %1278 = vmatpush1.msra.mxu0 0.0
    %1279 = vmatprep.subr.mxu0 0.0
    %1280 = vmatpush1.msra.mxu0 0.0
    %1281 = vmatprep.subr.mxu0 0.0
    %1282 = vmatpush1.msra.mxu0 0.0
    %1283 = vmatprep.subr.mxu0 0.0
    %1284 = vmatpush1.msra.mxu0 0.0
    %1285 = vmatprep.subr.mxu0 0.0
    %1286 = vmatpush1.msra.mxu0 0.0
    %1287 = vmatprep.subr.mxu0 0.0
    %1288 = vmatpush1.msra.mxu0 0.0
    %1289 = vmatprep.subr.mxu0 0.0
    %1290 = vmatpush1.msra.mxu0 0.0
    %1291 = vmatprep.subr.mxu0 0.0
    %1292 = vmatpush1.msra.mxu0 0.0
    %1293 = vmatprep.subr.mxu0 0.0
    %1294 = vmatpush1.msra.mxu0 0.0
    %1295 = vmatprep.subr.mxu0 0.0
    %1296 = vmatpush1.msra.mxu0 0.0
    %1297 = vmatprep.subr.mxu0 0.0
    %1298 = vmatpush1.msra.mxu0 0.0
    %1299 = vmatprep.subr.mxu0 0.0
    %1300 = vmatpush1.msra.mxu0 0.0
    %1301 = vmatprep.subr.mxu0 0.0
    %1302 = vmatpush1.msra.mxu0 0.0
    %1303 = vmatprep.subr.mxu0 0.0
    %1304 = vmatpush1.msra.mxu0 0.0
    %1305 = vmatprep.mubr.f32.mxu0 0.0
    %1306 = vmatmul.mubr.f32.gmra.mrb[0].mxu0 %v1239
    %v1307 = vpop.f32.mrb[0].mxu0
    %v1308 = vadd.f32 0.0, %v1307
    %v1309 = vpop.f32.mrb[0].mxu0
    %1310 = vdwg.mxu0
    %v1312 = vrot.slane %v1232, 2
    %v1314 = vadd.f32 %v380, %v1312
    %v1315 = vxor.u32 %v1314, 2147483648
    %v1316 = vmul.f32 %v1315, 1.442695
    %v1317 = vpow.pop %v1316
    %v1318 = vadd.f32 %v1317, 1.0
    %v1319 = vrcp.pop %v1318
    %v1320 = vmul.f32 1.0, %v1319
    %v1321 = vadd.f32 %v1232, %v644
    %v1323 = vrot.slane %v1321, 2
    %1324 = vrot.lane.b32.xlu0 %v1323, 64
    %v1325 = vpop.permute.xlu0 %1324
    %v1327 = vmul.f32 %v1320, %v1325
    %1329 = vrot.lane.b32.xlu0 %v1327, 64
    %v1330 = vpop.permute.xlu0 %1329
    %v1332 = vadd.f32 %v380, %v1330
    %v1333 = vtanh.pop %v1332
    %v1334 = vsub.f32 1.0, %v1320
    %1336 = vrot.lane.b32.xlu0 %v1333, 96
    %v1337 = vpop.permute.xlu0 %1336
    %v1339 = vmul.f32 %v1334, %v1337
    %v1340 = vrot.slane %v1118, 6
    %v1342 = vmul.f32 %v1320, %v1340
    %v1343 = vadd.f32 %v1339, %v1342
    %v1344 = vadd.f32 %v473, %v1308
    %v1345 = vxor.u32 %v1344, 2147483648
    %v1346 = vmul.f32 %v1345, 1.442695
    %v1347 = vpow.pop %v1346
    %v1348 = vadd.f32 %v1347, 1.0
    %v1349 = vrcp.pop %v1348
    %v1350 = vmul.f32 1.0, %v1349
    %v1351 = vadd.f32 %v1308, %v682
    %1353 = vrot.lane.b32.xlu0 %v1351, 64
    %v1354 = vpop.permute.xlu0 %1353
    %v1356 = vmul.f32 %v1350, %v1354
    %1358 = vrot.lane.b32.xlu0 %v1356, 64
    %v1359 = vpop.permute.xlu0 %1358
    %v1361 = vadd.f32 %v473, %v1359
    %v1362 = vtanh.pop %v1361
    %v1363 = vsub.f32 1.0, %v1350
    %1365 = vrot.lane.b32.xlu0 %v1362, 96
    %v1366 = vpop.permute.xlu0 %1365
    %v1368 = vmul.f32 %v1363, %v1366
    %v1370 = vmul.f32 %v1350, %v1236
    %v1371 = vadd.f32 %v1368, %v1370
    %1373 = vrot.lane.b32.xlu0 %v1343, 96
    %v1374 = vpop.permute.xlu0 %1373
    %vm1376 = vcmask 261126
    %1377 = vst.msk [vmem:[#allocation2] sm:$0xc0] %vm1376, %v1374
    %vm1378 = vcmask 517376
    %1379 = vst.msk [vmem:[#allocation2 + $0x8] sm:$0x3] %vm1378, %v1371
    %v1380 = vrot.slane %v1343, 6
    %1381 = vrot.lane.b32.xlu0 %v1380, 96
    %v1382 = vpop.permute.xlu0 %1381
    %v1383 = vsel %vm306, %v1382, 0
    %1385 = vmatprep.subr.mxu0 0.0
    %1386 = vmatpush1.msra.mxu0 %v476
    %1387 = vmatprep.subr.mxu0 0.0
    %1388 = vmatpush1.msra.mxu0 %v477
    %1389 = vmatprep.subr.mxu0 0.0
    %1390 = vmatpush1.msra.mxu0 %v478
    %1391 = vmatprep.subr.mxu0 0.0
    %1392 = vmatpush1.msra.mxu0 %v479
    %1393 = vmatprep.subr.mxu0 0.0
    %1394 = vmatpush1.msra.mxu0 0.0
    %1395 = vmatprep.subr.mxu0 0.0
    %1396 = vmatpush1.msra.mxu0 0.0
    %1397 = vmatprep.subr.mxu0 0.0
    %1398 = vmatpush1.msra.mxu0 0.0
    %1399 = vmatprep.subr.mxu0 0.0
    %1400 = vmatpush1.msra.mxu0 0.0
    %1401 = vmatprep.subr.mxu0 0.0
    %1402 = vmatpush1.msra.mxu0 0.0
    %1403 = vmatprep.subr.mxu0 0.0
    %1404 = vmatpush1.msra.mxu0 0.0
    %1405 = vmatprep.subr.mxu0 0.0
    %1406 = vmatpush1.msra.mxu0 0.0
    %1407 = vmatprep.subr.mxu0 0.0
    %1408 = vmatpush1.msra.mxu0 0.0
    %1409 = vmatprep.subr.mxu0 0.0
    %1410 = vmatpush1.msra.mxu0 0.0
    %1411 = vmatprep.subr.mxu0 0.0
    %1412 = vmatpush1.msra.mxu0 0.0
    %1413 = vmatprep.subr.mxu0 0.0
    %1414 = vmatpush1.msra.mxu0 0.0
    %1415 = vmatprep.subr.mxu0 0.0
    %1416 = vmatpush1.msra.mxu0 0.0
    %1417 = vmatprep.subr.mxu0 0.0
    %1418 = vmatpush1.msra.mxu0 0.0
    %1419 = vmatprep.subr.mxu0 0.0
    %1420 = vmatpush1.msra.mxu0 0.0
    %1421 = vmatprep.subr.mxu0 0.0
    %1422 = vmatpush1.msra.mxu0 0.0
    %1423 = vmatprep.subr.mxu0 0.0
    %1424 = vmatpush1.msra.mxu0 0.0
    %1425 = vmatprep.subr.mxu0 0.0
    %1426 = vmatpush1.msra.mxu0 0.0
    %1427 = vmatprep.subr.mxu0 0.0
    %1428 = vmatpush1.msra.mxu0 0.0
    %1429 = vmatprep.subr.mxu0 0.0
    %1430 = vmatpush1.msra.mxu0 0.0
    %1431 = vmatprep.subr.mxu0 0.0
    %1432 = vmatpush1.msra.mxu0 0.0
    %1433 = vmatprep.subr.mxu0 0.0
    %1434 = vmatpush1.msra.mxu0 0.0
    %1435 = vmatprep.subr.mxu0 0.0
    %1436 = vmatpush1.msra.mxu0 0.0
    %1437 = vmatprep.subr.mxu0 0.0
    %1438 = vmatpush1.msra.mxu0 0.0
    %1439 = vmatprep.subr.mxu0 0.0
    %1440 = vmatpush1.msra.mxu0 0.0
    %1441 = vmatprep.subr.mxu0 0.0
    %1442 = vmatpush1.msra.mxu0 0.0
    %1443 = vmatprep.subr.mxu0 0.0
    %1444 = vmatpush1.msra.mxu0 0.0
    %1445 = vmatprep.subr.mxu0 0.0
    %1446 = vmatpush1.msra.mxu0 0.0
    %1447 = vmatprep.subr.mxu0 0.0
    %1448 = vmatpush1.msra.mxu0 0.0
    %1449 = vmatprep.mubr.f32.mxu0 0.0
    %1450 = vmatmul.mubr.f32.gmra.mrb[0].mxu0 %v1383
    %v1451 = vpop.f32.mrb[0].mxu0
    %v1452 = vadd.f32 0.0, %v1451
    %v1453 = vpop.f32.mrb[0].mxu0
    %1454 = vdwg.mxu0
    %1456 = vrot.lane.b32.xlu0 %v1371, 96
    %v1457 = vpop.permute.xlu0 %1456
    %v1458 = vsel %vm306, %v1457, 0
    %1460 = vmatprep.subr.mxu0 0.0
    %1461 = vmatpush1.msra.mxu0 %v481
    %1462 = vmatprep.subr.mxu0 0.0
    %1463 = vmatpush1.msra.mxu0 %v482
    %1464 = vmatprep.subr.mxu0 0.0
    %1465 = vmatpush1.msra.mxu0 %v483
    %1466 = vmatprep.subr.mxu0 0.0
    %1467 = vmatpush1.msra.mxu0 %v484
    %1468 = vmatprep.subr.mxu0 0.0
    %1469 = vmatpush1.msra.mxu0 0.0
    %1470 = vmatprep.subr.mxu0 0.0
    %1471 = vmatpush1.msra.mxu0 0.0
    %1472 = vmatprep.subr.mxu0 0.0
    %1473 = vmatpush1.msra.mxu0 0.0
    %1474 = vmatprep.subr.mxu0 0.0
    %1475 = vmatpush1.msra.mxu0 0.0
    %1476 = vmatprep.subr.mxu0 0.0
    %1477 = vmatpush1.msra.mxu0 0.0
    %1478 = vmatprep.subr.mxu0 0.0
    %1479 = vmatpush1.msra.mxu0 0.0
    %1480 = vmatprep.subr.mxu0 0.0
    %1481 = vmatpush1.msra.mxu0 0.0
    %1482 = vmatprep.subr.mxu0 0.0
    %1483 = vmatpush1.msra.mxu0 0.0
    %1484 = vmatprep.subr.mxu0 0.0
    %1485 = vmatpush1.msra.mxu0 0.0
    %1486 = vmatprep.subr.mxu0 0.0
    %1487 = vmatpush1.msra.mxu0 0.0
    %1488 = vmatprep.subr.mxu0 0.0
    %1489 = vmatpush1.msra.mxu0 0.0
    %1490 = vmatprep.subr.mxu0 0.0
    %1491 = vmatpush1.msra.mxu0 0.0
    %1492 = vmatprep.subr.mxu0 0.0
    %1493 = vmatpush1.msra.mxu0 0.0
    %1494 = vmatprep.subr.mxu0 0.0
    %1495 = vmatpush1.msra.mxu0 0.0
    %1496 = vmatprep.subr.mxu0 0.0
    %1497 = vmatpush1.msra.mxu0 0.0
    %1498 = vmatprep.subr.mxu0 0.0
    %1499 = vmatpush1.msra.mxu0 0.0
    %1500 = vmatprep.subr.mxu0 0.0
    %1501 = vmatpush1.msra.mxu0 0.0
    %1502 = vmatprep.subr.mxu0 0.0
    %1503 = vmatpush1.msra.mxu0 0.0
    %1504 = vmatprep.subr.mxu0 0.0
    %1505 = vmatpush1.msra.mxu0 0.0
    %1506 = vmatprep.subr.mxu0 0.0
    %1507 = vmatpush1.msra.mxu0 0.0
    %1508 = vmatprep.subr.mxu0 0.0
    %1509 = vmatpush1.msra.mxu0 0.0
    %1510 = vmatprep.subr.mxu0 0.0
    %1511 = vmatpush1.msra.mxu0 0.0
    %1512 = vmatprep.subr.mxu0 0.0
    %1513 = vmatpush1.msra.mxu0 0.0
    %1514 = vmatprep.subr.mxu0 0.0
    %1515 = vmatpush1.msra.mxu0 0.0
    %1516 = vmatprep.subr.mxu0 0.0
    %1517 = vmatpush1.msra.mxu0 0.0
    %1518 = vmatprep.subr.mxu0 0.0
    %1519 = vmatpush1.msra.mxu0 0.0
    %1520 = vmatprep.subr.mxu0 0.0
    %1521 = vmatpush1.msra.mxu0 0.0
    %1522 = vmatprep.subr.mxu0 0.0
    %1523 = vmatpush1.msra.mxu0 0.0
    %1524 = vmatprep.mubr.f32.mxu0 0.0
    %1525 = vmatmul.mubr.f32.gmra.mrb[0].mxu0 %v1458
    %v1526 = vpop.f32.mrb[0].mxu0
    %v1527 = vadd.f32 0.0, %v1526
    %v1528 = vpop.f32.mrb[0].mxu0
    %1529 = vdwg.mxu0
    %v1530 = vadd.f32 %v385, %v1452
    %v1531 = vxor.u32 %v1530, 2147483648
    %v1532 = vmul.f32 %v1531, 1.442695
    %v1533 = vpow.pop %v1532
    %v1534 = vadd.f32 %v1533, 1.0
    %v1535 = vrcp.pop %v1534
    %v1536 = vmul.f32 1.0, %v1535
    %v1537 = vadd.f32 %v1452, %v644
    %1539 = vrot.lane.b32.xlu0 %v1537, 64
    %v1540 = vpop.permute.xlu0 %1539
    %v1542 = vmul.f32 %v1536, %v1540
    %1544 = vrot.lane.b32.xlu0 %v1542, 64
    %v1545 = vpop.permute.xlu0 %1544
    %v1547 = vadd.f32 %v385, %v1545
    %v1548 = vtanh.pop %v1547
    %v1549 = vsub.f32 1.0, %v1536
    %1551 = vrot.lane.b32.xlu0 %v1548, 96
    %v1552 = vpop.permute.xlu0 %1551
    %v1554 = vmul.f32 %v1549, %v1552
    %v1556 = vmul.f32 %v1536, %v1380
    %v1557 = vadd.f32 %v1554, %v1556
    %v1559 = vrot.slane %v1527, 2
    %v1561 = vadd.f32 %v468, %v1559
    %v1562 = vxor.u32 %v1561, 2147483648
    %v1563 = vmul.f32 %v1562, 1.442695
    %v1564 = vpow.pop %v1563
    %v1565 = vadd.f32 %v1564, 1.0
    %v1566 = vrcp.pop %v1565
    %v1567 = vmul.f32 1.0, %v1566
    %v1568 = vadd.f32 %v1527, %v682
    %v1570 = vrot.slane %v1568, 2
    %1571 = vrot.lane.b32.xlu0 %v1570, 64
    %v1572 = vpop.permute.xlu0 %1571
    %v1574 = vmul.f32 %v1567, %v1572
    %1576 = vrot.lane.b32.xlu0 %v1574, 64
    %v1577 = vpop.permute.xlu0 %1576
    %v1579 = vadd.f32 %v468, %v1577
    %v1580 = vtanh.pop %v1579
    %v1581 = vsub.f32 1.0, %v1567
    %1583 = vrot.lane.b32.xlu0 %v1580, 96
    %v1584 = vpop.permute.xlu0 %1583
    %v1586 = vmul.f32 %v1581, %v1584
    %v1587 = vrot.slane %v1371, 2
    %v1589 = vmul.f32 %v1567, %v1587
    %v1590 = vadd.f32 %v1586, %v1589
    %1592 = vrot.lane.b32.xlu0 %v1557, 96
    %v1593 = vpop.permute.xlu0 %1592
    %1595 = vst.msk [vmem:[#allocation2 + $0x8] sm:$0x3] %vm709, %v1593
    %1596 = vst.msk [vmem:[#allocation2] sm:$0xc0] %vm711, %v1590
    %v1597 = vsel %vm306, %v1593, 0
    %1599 = vmatprep.subr.mxu0 0.0
    %1600 = vmatpush1.msra.mxu0 %v476
    %1601 = vmatprep.subr.mxu0 0.0
    %1602 = vmatpush1.msra.mxu0 %v477
    %1603 = vmatprep.subr.mxu0 0.0
    %1604 = vmatpush1.msra.mxu0 %v478
    %1605 = vmatprep.subr.mxu0 0.0
    %1606 = vmatpush1.msra.mxu0 %v479
    %1607 = vmatprep.subr.mxu0 0.0
    %1608 = vmatpush1.msra.mxu0 0.0
    %1609 = vmatprep.subr.mxu0 0.0
    %1610 = vmatpush1.msra.mxu0 0.0
    %1611 = vmatprep.subr.mxu0 0.0
    %1612 = vmatpush1.msra.mxu0 0.0
    %1613 = vmatprep.subr.mxu0 0.0
    %1614 = vmatpush1.msra.mxu0 0.0
    %1615 = vmatprep.subr.mxu0 0.0
    %1616 = vmatpush1.msra.mxu0 0.0
    %1617 = vmatprep.subr.mxu0 0.0
    %1618 = vmatpush1.msra.mxu0 0.0
    %1619 = vmatprep.subr.mxu0 0.0
    %1620 = vmatpush1.msra.mxu0 0.0
    %1621 = vmatprep.subr.mxu0 0.0
    %1622 = vmatpush1.msra.mxu0 0.0
    %1623 = vmatprep.subr.mxu0 0.0
    %1624 = vmatpush1.msra.mxu0 0.0
    %1625 = vmatprep.subr.mxu0 0.0
    %1626 = vmatpush1.msra.mxu0 0.0
    %1627 = vmatprep.subr.mxu0 0.0
    %1628 = vmatpush1.msra.mxu0 0.0
    %1629 = vmatprep.subr.mxu0 0.0
    %1630 = vmatpush1.msra.mxu0 0.0
    %1631 = vmatprep.subr.mxu0 0.0
    %1632 = vmatpush1.msra.mxu0 0.0
    %1633 = vmatprep.subr.mxu0 0.0
    %1634 = vmatpush1.msra.mxu0 0.0
    %1635 = vmatprep.subr.mxu0 0.0
    %1636 = vmatpush1.msra.mxu0 0.0
    %1637 = vmatprep.subr.mxu0 0.0
    %1638 = vmatpush1.msra.mxu0 0.0
    %1639 = vmatprep.subr.mxu0 0.0
    %1640 = vmatpush1.msra.mxu0 0.0
    %1641 = vmatprep.subr.mxu0 0.0
    %1642 = vmatpush1.msra.mxu0 0.0
    %1643 = vmatprep.subr.mxu0 0.0
    %1644 = vmatpush1.msra.mxu0 0.0
    %1645 = vmatprep.subr.mxu0 0.0
    %1646 = vmatpush1.msra.mxu0 0.0
    %1647 = vmatprep.subr.mxu0 0.0
    %1648 = vmatpush1.msra.mxu0 0.0
    %1649 = vmatprep.subr.mxu0 0.0
    %1650 = vmatpush1.msra.mxu0 0.0
    %1651 = vmatprep.subr.mxu0 0.0
    %1652 = vmatpush1.msra.mxu0 0.0
    %1653 = vmatprep.subr.mxu0 0.0
    %1654 = vmatpush1.msra.mxu0 0.0
    %1655 = vmatprep.subr.mxu0 0.0
    %1656 = vmatpush1.msra.mxu0 0.0
    %1657 = vmatprep.subr.mxu0 0.0
    %1658 = vmatpush1.msra.mxu0 0.0
    %1659 = vmatprep.subr.mxu0 0.0
    %1660 = vmatpush1.msra.mxu0 0.0
    %1661 = vmatprep.subr.mxu0 0.0
    %1662 = vmatpush1.msra.mxu0 0.0
    %1663 = vmatprep.mubr.f32.mxu0 0.0
    %1664 = vmatmul.mubr.f32.gmra.mrb[0].mxu0 %v1597
    %v1665 = vpop.f32.mrb[0].mxu0
    %v1666 = vadd.f32 0.0, %v1665
    %v1667 = vpop.f32.mrb[0].mxu0
    %1668 = vdwg.mxu0
    %v1670 = vrot.slane %v1590, 6
    %1671 = vrot.lane.b32.xlu0 %v1670, 96
    %v1672 = vpop.permute.xlu0 %1671
    %v1673 = vsel %vm306, %v1672, 0
    %1675 = vmatprep.subr.mxu0 0.0
    %1676 = vmatpush1.msra.mxu0 %v481
    %1677 = vmatprep.subr.mxu0 0.0
    %1678 = vmatpush1.msra.mxu0 %v482
    %1679 = vmatprep.subr.mxu0 0.0
    %1680 = vmatpush1.msra.mxu0 %v483
    %1681 = vmatprep.subr.mxu0 0.0
    %1682 = vmatpush1.msra.mxu0 %v484
    %1683 = vmatprep.subr.mxu0 0.0
    %1684 = vmatpush1.msra.mxu0 0.0
    %1685 = vmatprep.subr.mxu0 0.0
    %1686 = vmatpush1.msra.mxu0 0.0
    %1687 = vmatprep.subr.mxu0 0.0
    %1688 = vmatpush1.msra.mxu0 0.0
    %1689 = vmatprep.subr.mxu0 0.0
    %1690 = vmatpush1.msra.mxu0 0.0
    %1691 = vmatprep.subr.mxu0 0.0
    %1692 = vmatpush1.msra.mxu0 0.0
    %1693 = vmatprep.subr.mxu0 0.0
    %1694 = vmatpush1.msra.mxu0 0.0
    %1695 = vmatprep.subr.mxu0 0.0
    %1696 = vmatpush1.msra.mxu0 0.0
    %1697 = vmatprep.subr.mxu0 0.0
    %1698 = vmatpush1.msra.mxu0 0.0
    %1699 = vmatprep.subr.mxu0 0.0
    %1700 = vmatpush1.msra.mxu0 0.0
    %1701 = vmatprep.subr.mxu0 0.0
    %1702 = vmatpush1.msra.mxu0 0.0
    %1703 = vmatprep.subr.mxu0 0.0
    %1704 = vmatpush1.msra.mxu0 0.0
    %1705 = vmatprep.subr.mxu0 0.0
    %1706 = vmatpush1.msra.mxu0 0.0
    %1707 = vmatprep.subr.mxu0 0.0
    %1708 = vmatpush1.msra.mxu0 0.0
    %1709 = vmatprep.subr.mxu0 0.0
    %1710 = vmatpush1.msra.mxu0 0.0
    %1711 = vmatprep.subr.mxu0 0.0
    %1712 = vmatpush1.msra.mxu0 0.0
    %1713 = vmatprep.subr.mxu0 0.0
    %1714 = vmatpush1.msra.mxu0 0.0
    %1715 = vmatprep.subr.mxu0 0.0
    %1716 = vmatpush1.msra.mxu0 0.0
    %1717 = vmatprep.subr.mxu0 0.0
    %1718 = vmatpush1.msra.mxu0 0.0
    %1719 = vmatprep.subr.mxu0 0.0
    %1720 = vmatpush1.msra.mxu0 0.0
    %1721 = vmatprep.subr.mxu0 0.0
    %1722 = vmatpush1.msra.mxu0 0.0
    %1723 = vmatprep.subr.mxu0 0.0
    %1724 = vmatpush1.msra.mxu0 0.0
    %1725 = vmatprep.subr.mxu0 0.0
    %1726 = vmatpush1.msra.mxu0 0.0
    %1727 = vmatprep.subr.mxu0 0.0
    %1728 = vmatpush1.msra.mxu0 0.0
    %1729 = vmatprep.subr.mxu0 0.0
    %1730 = vmatpush1.msra.mxu0 0.0
    %1731 = vmatprep.subr.mxu0 0.0
    %1732 = vmatpush1.msra.mxu0 0.0
    %1733 = vmatprep.subr.mxu0 0.0
    %1734 = vmatpush1.msra.mxu0 0.0
    %1735 = vmatprep.subr.mxu0 0.0
    %1736 = vmatpush1.msra.mxu0 0.0
    %1737 = vmatprep.subr.mxu0 0.0
    %1738 = vmatpush1.msra.mxu0 0.0
    %1739 = vmatprep.mubr.f32.mxu0 0.0
    %1740 = vmatmul.mubr.f32.gmra.mrb[0].mxu0 %v1673
    %v1741 = vpop.f32.mrb[0].mxu0
    %v1742 = vadd.f32 0.0, %v1741
    %v1743 = vpop.f32.mrb[0].mxu0
    %1744 = vdwg.mxu0
    %v1746 = vrot.slane %v1666, 6
    %v1748 = vadd.f32 %v385, %v1746
    %v1749 = vxor.u32 %v1748, 2147483648
    %v1750 = vmul.f32 %v1749, 1.442695
    %v1751 = vpow.pop %v1750
    %v1752 = vadd.f32 %v1751, 1.0
    %v1753 = vrcp.pop %v1752
    %v1754 = vmul.f32 1.0, %v1753
    %v1755 = vadd.f32 %v1666, %v644
    %v1757 = vrot.slane %v1755, 6
    %1758 = vrot.lane.b32.xlu0 %v1757, 64
    %v1759 = vpop.permute.xlu0 %1758
    %v1761 = vmul.f32 %v1754, %v1759
    %1763 = vrot.lane.b32.xlu0 %v1761, 64
    %v1764 = vpop.permute.xlu0 %1763
    %v1766 = vadd.f32 %v385, %v1764
    %v1767 = vtanh.pop %v1766
    %v1768 = vsub.f32 1.0, %v1754
    %1770 = vrot.lane.b32.xlu0 %v1767, 96
    %v1771 = vpop.permute.xlu0 %1770
    %v1773 = vmul.f32 %v1768, %v1771
    %v1774 = vrot.slane %v1557, 6
    %v1776 = vmul.f32 %v1754, %v1774
    %v1777 = vadd.f32 %v1773, %v1776
    %v1779 = vrot.slane %v1742, 4
    %v1781 = vadd.f32 %v468, %v1779
    %v1782 = vxor.u32 %v1781, 2147483648
    %v1783 = vmul.f32 %v1782, 1.442695
    %v1784 = vpow.pop %v1783
    %v1785 = vadd.f32 %v1784, 1.0
    %v1786 = vrcp.pop %v1785
    %v1787 = vmul.f32 1.0, %v1786
    %v1788 = vadd.f32 %v1742, %v682
    %v1790 = vrot.slane %v1788, 4
    %1791 = vrot.lane.b32.xlu0 %v1790, 64
    %v1792 = vpop.permute.xlu0 %1791
    %v1794 = vmul.f32 %v1787, %v1792
    %1796 = vrot.lane.b32.xlu0 %v1794, 64
    %v1797 = vpop.permute.xlu0 %1796
    %v1799 = vadd.f32 %v468, %v1797
    %v1800 = vtanh.pop %v1799
    %v1801 = vsub.f32 1.0, %v1787
    %1803 = vrot.lane.b32.xlu0 %v1800, 96
    %v1804 = vpop.permute.xlu0 %1803
    %v1806 = vmul.f32 %v1801, %v1804
    %v1807 = vrot.slane %v1590, 2
    %v1809 = vmul.f32 %v1787, %v1807
    %v1810 = vadd.f32 %v1806, %v1809
    %1812 = vrot.lane.b32.xlu0 %v1777, 96
    %v1813 = vpop.permute.xlu0 %1812
    %1815 = vst.msk [vmem:[#allocation2 + $0x8] sm:$0xc] %vm931, %v1813
    %1816 = vst.msk [vmem:[#allocation2] sm:$0x30] %vm933, %v1810
    %v1817 = vrot.slane %v1777, 2
    %1818 = vrot.lane.b32.xlu0 %v1817, 96
    %v1819 = vpop.permute.xlu0 %1818
    %v1820 = vsel %vm306, %v1819, 0
    %1822 = vmatprep.subr.mxu0 0.0
    %1823 = vmatpush1.msra.mxu0 %v476
    %1824 = vmatprep.subr.mxu0 0.0
    %1825 = vmatpush1.msra.mxu0 %v477
    %1826 = vmatprep.subr.mxu0 0.0
    %1827 = vmatpush1.msra.mxu0 %v478
    %1828 = vmatprep.subr.mxu0 0.0
    %1829 = vmatpush1.msra.mxu0 %v479
    %1830 = vmatprep.subr.mxu0 0.0
    %1831 = vmatpush1.msra.mxu0 0.0
    %1832 = vmatprep.subr.mxu0 0.0
    %1833 = vmatpush1.msra.mxu0 0.0
    %1834 = vmatprep.subr.mxu0 0.0
    %1835 = vmatpush1.msra.mxu0 0.0
    %1836 = vmatprep.subr.mxu0 0.0
    %1837 = vmatpush1.msra.mxu0 0.0
    %1838 = vmatprep.subr.mxu0 0.0
    %1839 = vmatpush1.msra.mxu0 0.0
    %1840 = vmatprep.subr.mxu0 0.0
    %1841 = vmatpush1.msra.mxu0 0.0
    %1842 = vmatprep.subr.mxu0 0.0
    %1843 = vmatpush1.msra.mxu0 0.0
    %1844 = vmatprep.subr.mxu0 0.0
    %1845 = vmatpush1.msra.mxu0 0.0
    %1846 = vmatprep.subr.mxu0 0.0
    %1847 = vmatpush1.msra.mxu0 0.0
    %1848 = vmatprep.subr.mxu0 0.0
    %1849 = vmatpush1.msra.mxu0 0.0
    %1850 = vmatprep.subr.mxu0 0.0
    %1851 = vmatpush1.msra.mxu0 0.0
    %1852 = vmatprep.subr.mxu0 0.0
    %1853 = vmatpush1.msra.mxu0 0.0
    %1854 = vmatprep.subr.mxu0 0.0
    %1855 = vmatpush1.msra.mxu0 0.0
    %1856 = vmatprep.subr.mxu0 0.0
    %1857 = vmatpush1.msra.mxu0 0.0
    %1858 = vmatprep.subr.mxu0 0.0
    %1859 = vmatpush1.msra.mxu0 0.0
    %1860 = vmatprep.subr.mxu0 0.0
    %1861 = vmatpush1.msra.mxu0 0.0
    %1862 = vmatprep.subr.mxu0 0.0
    %1863 = vmatpush1.msra.mxu0 0.0
    %1864 = vmatprep.subr.mxu0 0.0
    %1865 = vmatpush1.msra.mxu0 0.0
    %1866 = vmatprep.subr.mxu0 0.0
    %1867 = vmatpush1.msra.mxu0 0.0
    %1868 = vmatprep.subr.mxu0 0.0
    %1869 = vmatpush1.msra.mxu0 0.0
    %1870 = vmatprep.subr.mxu0 0.0
    %1871 = vmatpush1.msra.mxu0 0.0
    %1872 = vmatprep.subr.mxu0 0.0
    %1873 = vmatpush1.msra.mxu0 0.0
    %1874 = vmatprep.subr.mxu0 0.0
    %1875 = vmatpush1.msra.mxu0 0.0
    %1876 = vmatprep.subr.mxu0 0.0
    %1877 = vmatpush1.msra.mxu0 0.0
    %1878 = vmatprep.subr.mxu0 0.0
    %1879 = vmatpush1.msra.mxu0 0.0
    %1880 = vmatprep.subr.mxu0 0.0
    %1881 = vmatpush1.msra.mxu0 0.0
    %1882 = vmatprep.subr.mxu0 0.0
    %1883 = vmatpush1.msra.mxu0 0.0
    %1884 = vmatprep.subr.mxu0 0.0
    %1885 = vmatpush1.msra.mxu0 0.0
    %1886 = vmatprep.mubr.f32.mxu0 0.0
    %1887 = vmatmul.mubr.f32.gmra.mrb[0].mxu0 %v1820
    %v1888 = vpop.f32.mrb[0].mxu0
    %v1889 = vadd.f32 0.0, %v1888
    %v1890 = vpop.f32.mrb[0].mxu0
    %1891 = vdwg.mxu0
    %v1893 = vrot.slane %v1810, 4
    %1894 = vrot.lane.b32.xlu0 %v1893, 96
    %v1895 = vpop.permute.xlu0 %1894
    %v1896 = vsel %vm306, %v1895, 0
    %1898 = vmatprep.subr.mxu0 0.0
    %1899 = vmatpush1.msra.mxu0 %v481
    %1900 = vmatprep.subr.mxu0 0.0
    %1901 = vmatpush1.msra.mxu0 %v482
    %1902 = vmatprep.subr.mxu0 0.0
    %1903 = vmatpush1.msra.mxu0 %v483
    %1904 = vmatprep.subr.mxu0 0.0
    %1905 = vmatpush1.msra.mxu0 %v484
    %1906 = vmatprep.subr.mxu0 0.0
    %1907 = vmatpush1.msra.mxu0 0.0
    %1908 = vmatprep.subr.mxu0 0.0
    %1909 = vmatpush1.msra.mxu0 0.0
    %1910 = vmatprep.subr.mxu0 0.0
    %1911 = vmatpush1.msra.mxu0 0.0
    %1912 = vmatprep.subr.mxu0 0.0
    %1913 = vmatpush1.msra.mxu0 0.0
    %1914 = vmatprep.subr.mxu0 0.0
    %1915 = vmatpush1.msra.mxu0 0.0
    %1916 = vmatprep.subr.mxu0 0.0
    %1917 = vmatpush1.msra.mxu0 0.0
    %1918 = vmatprep.subr.mxu0 0.0
    %1919 = vmatpush1.msra.mxu0 0.0
    %1920 = vmatprep.subr.mxu0 0.0
    %1921 = vmatpush1.msra.mxu0 0.0
    %1922 = vmatprep.subr.mxu0 0.0
    %1923 = vmatpush1.msra.mxu0 0.0
    %1924 = vmatprep.subr.mxu0 0.0
    %1925 = vmatpush1.msra.mxu0 0.0
    %1926 = vmatprep.subr.mxu0 0.0
    %1927 = vmatpush1.msra.mxu0 0.0
    %1928 = vmatprep.subr.mxu0 0.0
    %1929 = vmatpush1.msra.mxu0 0.0
    %1930 = vmatprep.subr.mxu0 0.0
    %1931 = vmatpush1.msra.mxu0 0.0
    %1932 = vmatprep.subr.mxu0 0.0
    %1933 = vmatpush1.msra.mxu0 0.0
    %1934 = vmatprep.subr.mxu0 0.0
    %1935 = vmatpush1.msra.mxu0 0.0
    %1936 = vmatprep.subr.mxu0 0.0
    %1937 = vmatpush1.msra.mxu0 0.0
    %1938 = vmatprep.subr.mxu0 0.0
    %1939 = vmatpush1.msra.mxu0 0.0
    %1940 = vmatprep.subr.mxu0 0.0
    %1941 = vmatpush1.msra.mxu0 0.0
    %1942 = vmatprep.subr.mxu0 0.0
    %1943 = vmatpush1.msra.mxu0 0.0
    %1944 = vmatprep.subr.mxu0 0.0
    %1945 = vmatpush1.msra.mxu0 0.0
    %1946 = vmatprep.subr.mxu0 0.0
    %1947 = vmatpush1.msra.mxu0 0.0
    %1948 = vmatprep.subr.mxu0 0.0
    %1949 = vmatpush1.msra.mxu0 0.0
    %1950 = vmatprep.subr.mxu0 0.0
    %1951 = vmatpush1.msra.mxu0 0.0
    %1952 = vmatprep.subr.mxu0 0.0
    %1953 = vmatpush1.msra.mxu0 0.0
    %1954 = vmatprep.subr.mxu0 0.0
    %1955 = vmatpush1.msra.mxu0 0.0
    %1956 = vmatprep.subr.mxu0 0.0
    %1957 = vmatpush1.msra.mxu0 0.0
    %1958 = vmatprep.subr.mxu0 0.0
    %1959 = vmatpush1.msra.mxu0 0.0
    %1960 = vmatprep.subr.mxu0 0.0
    %1961 = vmatpush1.msra.mxu0 0.0
    %1962 = vmatprep.mubr.f32.mxu0 0.0
    %1963 = vmatmul.mubr.f32.gmra.mrb[0].mxu0 %v1896
    %v1964 = vpop.f32.mrb[0].mxu0
    %v1965 = vadd.f32 0.0, %v1964
    %v1966 = vpop.f32.mrb[0].mxu0
    %1967 = vdwg.mxu0
    %v1969 = vrot.slane %v1889, 4
    %v1971 = vadd.f32 %v385, %v1969
    %v1972 = vxor.u32 %v1971, 2147483648
    %v1973 = vmul.f32 %v1972, 1.442695
    %v1974 = vpow.pop %v1973
    %v1975 = vadd.f32 %v1974, 1.0
    %v1976 = vrcp.pop %v1975
    %v1977 = vmul.f32 1.0, %v1976
    %v1978 = vadd.f32 %v1889, %v644
    %v1980 = vrot.slane %v1978, 4
    %1981 = vrot.lane.b32.xlu0 %v1980, 64
    %v1982 = vpop.permute.xlu0 %1981
    %v1984 = vmul.f32 %v1977, %v1982
    %1986 = vrot.lane.b32.xlu0 %v1984, 64
    %v1987 = vpop.permute.xlu0 %1986
    %v1989 = vadd.f32 %v385, %v1987
    %v1990 = vtanh.pop %v1989
    %v1991 = vsub.f32 1.0, %v1977
    %1993 = vrot.lane.b32.xlu0 %v1990, 96
    %v1994 = vpop.permute.xlu0 %1993
    %v1996 = vmul.f32 %v1991, %v1994
    %v1997 = vrot.slane %v1777, 6
    %v1999 = vmul.f32 %v1977, %v1997
    %v2000 = vadd.f32 %v1996, %v1999
    %v2002 = vrot.slane %v1965, 6
    %v2004 = vadd.f32 %v468, %v2002
    %v2005 = vxor.u32 %v2004, 2147483648
    %v2006 = vmul.f32 %v2005, 1.442695
    %v2007 = vpow.pop %v2006
    %v2008 = vadd.f32 %v2007, 1.0
    %v2009 = vrcp.pop %v2008
    %v2010 = vmul.f32 1.0, %v2009
    %v2011 = vadd.f32 %v1965, %v682
    %v2013 = vrot.slane %v2011, 6
    %2014 = vrot.lane.b32.xlu0 %v2013, 64
    %v2015 = vpop.permute.xlu0 %2014
    %v2017 = vmul.f32 %v2010, %v2015
    %2019 = vrot.lane.b32.xlu0 %v2017, 64
    %v2020 = vpop.permute.xlu0 %2019
    %v2022 = vadd.f32 %v468, %v2020
    %v2023 = vtanh.pop %v2022
    %v2024 = vsub.f32 1.0, %v2010
    %2026 = vrot.lane.b32.xlu0 %v2023, 96
    %v2027 = vpop.permute.xlu0 %2026
    %v2029 = vmul.f32 %v2024, %v2027
    %v2030 = vrot.slane %v1810, 2
    %v2032 = vmul.f32 %v2010, %v2030
    %v2033 = vadd.f32 %v2029, %v2032
    %2035 = vrot.lane.b32.xlu0 %v2000, 96
    %v2036 = vpop.permute.xlu0 %2035
    %2038 = vst.msk [vmem:[#allocation2 + $0x8] sm:$0x30] %vm1156, %v2036
    %2039 = vst.msk [vmem:[#allocation2] sm:$0xc] %vm1158, %v2033
    %v2040 = vrot.slane %v2000, 4
    %2041 = vrot.lane.b32.xlu0 %v2040, 96
    %v2042 = vpop.permute.xlu0 %2041
    %v2043 = vsel %vm306, %v2042, 0
    %2045 = vmatprep.subr.mxu0 0.0
    %2046 = vmatpush1.msra.mxu0 %v476
    %2047 = vmatprep.subr.mxu0 0.0
    %2048 = vmatpush1.msra.mxu0 %v477
    %2049 = vmatprep.subr.mxu0 0.0
    %2050 = vmatpush1.msra.mxu0 %v478
    %2051 = vmatprep.subr.mxu0 0.0
    %2052 = vmatpush1.msra.mxu0 %v479
    %2053 = vmatprep.subr.mxu0 0.0
    %2054 = vmatpush1.msra.mxu0 0.0
    %2055 = vmatprep.subr.mxu0 0.0
    %2056 = vmatpush1.msra.mxu0 0.0
    %2057 = vmatprep.subr.mxu0 0.0
    %2058 = vmatpush1.msra.mxu0 0.0
    %2059 = vmatprep.subr.mxu0 0.0
    %2060 = vmatpush1.msra.mxu0 0.0
    %2061 = vmatprep.subr.mxu0 0.0
    %2062 = vmatpush1.msra.mxu0 0.0
    %2063 = vmatprep.subr.mxu0 0.0
    %2064 = vmatpush1.msra.mxu0 0.0
    %2065 = vmatprep.subr.mxu0 0.0
    %2066 = vmatpush1.msra.mxu0 0.0
    %2067 = vmatprep.subr.mxu0 0.0
    %2068 = vmatpush1.msra.mxu0 0.0
    %2069 = vmatprep.subr.mxu0 0.0
    %2070 = vmatpush1.msra.mxu0 0.0
    %2071 = vmatprep.subr.mxu0 0.0
    %2072 = vmatpush1.msra.mxu0 0.0
    %2073 = vmatprep.subr.mxu0 0.0
    %2074 = vmatpush1.msra.mxu0 0.0
    %2075 = vmatprep.subr.mxu0 0.0
    %2076 = vmatpush1.msra.mxu0 0.0
    %2077 = vmatprep.subr.mxu0 0.0
    %2078 = vmatpush1.msra.mxu0 0.0
    %2079 = vmatprep.subr.mxu0 0.0
    %2080 = vmatpush1.msra.mxu0 0.0
    %2081 = vmatprep.subr.mxu0 0.0
    %2082 = vmatpush1.msra.mxu0 0.0
    %2083 = vmatprep.subr.mxu0 0.0
    %2084 = vmatpush1.msra.mxu0 0.0
    %2085 = vmatprep.subr.mxu0 0.0
    %2086 = vmatpush1.msra.mxu0 0.0
    %2087 = vmatprep.subr.mxu0 0.0
    %2088 = vmatpush1.msra.mxu0 0.0
    %2089 = vmatprep.subr.mxu0 0.0
    %2090 = vmatpush1.msra.mxu0 0.0
    %2091 = vmatprep.subr.mxu0 0.0
    %2092 = vmatpush1.msra.mxu0 0.0
    %2093 = vmatprep.subr.mxu0 0.0
    %2094 = vmatpush1.msra.mxu0 0.0
    %2095 = vmatprep.subr.mxu0 0.0
    %2096 = vmatpush1.msra.mxu0 0.0
    %2097 = vmatprep.subr.mxu0 0.0
    %2098 = vmatpush1.msra.mxu0 0.0
    %2099 = vmatprep.subr.mxu0 0.0
    %2100 = vmatpush1.msra.mxu0 0.0
    %2101 = vmatprep.subr.mxu0 0.0
    %2102 = vmatpush1.msra.mxu0 0.0
    %2103 = vmatprep.subr.mxu0 0.0
    %2104 = vmatpush1.msra.mxu0 0.0
    %2105 = vmatprep.subr.mxu0 0.0
    %2106 = vmatpush1.msra.mxu0 0.0
    %2107 = vmatprep.subr.mxu0 0.0
    %2108 = vmatpush1.msra.mxu0 0.0
    %2109 = vmatprep.mubr.f32.mxu0 0.0
    %2110 = vmatmul.mubr.f32.gmra.mrb[0].mxu0 %v2043
    %v2111 = vpop.f32.mrb[0].mxu0
    %v2112 = vadd.f32 0.0, %v2111
    %v2113 = vpop.f32.mrb[0].mxu0
    %2114 = vdwg.mxu0
    %v2116 = vrot.slane %v2033, 2
    %2117 = vrot.lane.b32.xlu0 %v2116, 96
    %v2118 = vpop.permute.xlu0 %2117
    %v2119 = vsel %vm306, %v2118, 0
    %2121 = vmatprep.subr.mxu0 0.0
    %2122 = vmatpush1.msra.mxu0 %v481
    %2123 = vmatprep.subr.mxu0 0.0
    %2124 = vmatpush1.msra.mxu0 %v482
    %2125 = vmatprep.subr.mxu0 0.0
    %2126 = vmatpush1.msra.mxu0 %v483
    %2127 = vmatprep.subr.mxu0 0.0
    %2128 = vmatpush1.msra.mxu0 %v484
    %2129 = vmatprep.subr.mxu0 0.0
    %2130 = vmatpush1.msra.mxu0 0.0
    %2131 = vmatprep.subr.mxu0 0.0
    %2132 = vmatpush1.msra.mxu0 0.0
    %2133 = vmatprep.subr.mxu0 0.0
    %2134 = vmatpush1.msra.mxu0 0.0
    %2135 = vmatprep.subr.mxu0 0.0
    %2136 = vmatpush1.msra.mxu0 0.0
    %2137 = vmatprep.subr.mxu0 0.0
    %2138 = vmatpush1.msra.mxu0 0.0
    %2139 = vmatprep.subr.mxu0 0.0
    %2140 = vmatpush1.msra.mxu0 0.0
    %2141 = vmatprep.subr.mxu0 0.0
    %2142 = vmatpush1.msra.mxu0 0.0
    %2143 = vmatprep.subr.mxu0 0.0
    %2144 = vmatpush1.msra.mxu0 0.0
    %2145 = vmatprep.subr.mxu0 0.0
    %2146 = vmatpush1.msra.mxu0 0.0
    %2147 = vmatprep.subr.mxu0 0.0
    %2148 = vmatpush1.msra.mxu0 0.0
    %2149 = vmatprep.subr.mxu0 0.0
    %2150 = vmatpush1.msra.mxu0 0.0
    %2151 = vmatprep.subr.mxu0 0.0
    %2152 = vmatpush1.msra.mxu0 0.0
    %2153 = vmatprep.subr.mxu0 0.0
    %2154 = vmatpush1.msra.mxu0 0.0
    %2155 = vmatprep.subr.mxu0 0.0
    %2156 = vmatpush1.msra.mxu0 0.0
    %2157 = vmatprep.subr.mxu0 0.0
    %2158 = vmatpush1.msra.mxu0 0.0
    %2159 = vmatprep.subr.mxu0 0.0
    %2160 = vmatpush1.msra.mxu0 0.0
    %2161 = vmatprep.subr.mxu0 0.0
    %2162 = vmatpush1.msra.mxu0 0.0
    %2163 = vmatprep.subr.mxu0 0.0
    %2164 = vmatpush1.msra.mxu0 0.0
    %2165 = vmatprep.subr.mxu0 0.0
    %2166 = vmatpush1.msra.mxu0 0.0
    %2167 = vmatprep.subr.mxu0 0.0
    %2168 = vmatpush1.msra.mxu0 0.0
    %2169 = vmatprep.subr.mxu0 0.0
    %2170 = vmatpush1.msra.mxu0 0.0
    %2171 = vmatprep.subr.mxu0 0.0
    %2172 = vmatpush1.msra.mxu0 0.0
    %2173 = vmatprep.subr.mxu0 0.0
    %2174 = vmatpush1.msra.mxu0 0.0
    %2175 = vmatprep.subr.mxu0 0.0
    %2176 = vmatpush1.msra.mxu0 0.0
    %2177 = vmatprep.subr.mxu0 0.0
    %2178 = vmatpush1.msra.mxu0 0.0
    %2179 = vmatprep.subr.mxu0 0.0
    %2180 = vmatpush1.msra.mxu0 0.0
    %2181 = vmatprep.subr.mxu0 0.0
    %2182 = vmatpush1.msra.mxu0 0.0
    %2183 = vmatprep.subr.mxu0 0.0
    %2184 = vmatpush1.msra.mxu0 0.0
    %2185 = vmatprep.mubr.f32.mxu0 0.0
    %2186 = vmatmul.mubr.f32.gmra.mrb[0].mxu0 %v2119
    %v2187 = vpop.f32.mrb[0].mxu0
    %v2188 = vadd.f32 0.0, %v2187
    %v2189 = vpop.f32.mrb[0].mxu0
    %2190 = vdwg.mxu0
    %v2192 = vrot.slane %v2112, 2
    %v2194 = vadd.f32 %v385, %v2192
    %v2195 = vxor.u32 %v2194, 2147483648
    %v2196 = vmul.f32 %v2195, 1.442695
    %v2197 = vpow.pop %v2196
    %v2198 = vadd.f32 %v2197, 1.0
    %v2199 = vrcp.pop %v2198
    %v2200 = vmul.f32 1.0, %v2199
    %v2201 = vadd.f32 %v2112, %v644
    %v2203 = vrot.slane %v2201, 2
    %2204 = vrot.lane.b32.xlu0 %v2203, 64
    %v2205 = vpop.permute.xlu0 %2204
    %v2207 = vmul.f32 %v2200, %v2205
    %2209 = vrot.lane.b32.xlu0 %v2207, 64
    %v2210 = vpop.permute.xlu0 %2209
    %v2212 = vadd.f32 %v385, %v2210
    %v2213 = vtanh.pop %v2212
    %v2214 = vsub.f32 1.0, %v2200
    %2216 = vrot.lane.b32.xlu0 %v2213, 96
    %v2217 = vpop.permute.xlu0 %2216
    %v2219 = vmul.f32 %v2214, %v2217
    %v2220 = vrot.slane %v2000, 6
    %v2222 = vmul.f32 %v2200, %v2220
    %v2223 = vadd.f32 %v2219, %v2222
    %v2224 = vadd.f32 %v468, %v2188
    %v2225 = vxor.u32 %v2224, 2147483648
    %v2226 = vmul.f32 %v2225, 1.442695
    %v2227 = vpow.pop %v2226
    %v2228 = vadd.f32 %v2227, 1.0
    %v2229 = vrcp.pop %v2228
    %v2230 = vmul.f32 1.0, %v2229
    %v2231 = vadd.f32 %v2188, %v682
    %2233 = vrot.lane.b32.xlu0 %v2231, 64
    %v2234 = vpop.permute.xlu0 %2233
    %v2236 = vmul.f32 %v2230, %v2234
    %2238 = vrot.lane.b32.xlu0 %v2236, 64
    %v2239 = vpop.permute.xlu0 %2238
    %v2241 = vadd.f32 %v468, %v2239
    %v2242 = vtanh.pop %v2241
    %v2243 = vsub.f32 1.0, %v2230
    %2245 = vrot.lane.b32.xlu0 %v2242, 96
    %v2246 = vpop.permute.xlu0 %2245
    %v2248 = vmul.f32 %v2243, %v2246
    %v2250 = vmul.f32 %v2230, %v2116
    %v2251 = vadd.f32 %v2248, %v2250
    %2253 = vrot.lane.b32.xlu0 %v2223, 96
    %v2254 = vpop.permute.xlu0 %2253
    %2256 = vst.msk [vmem:[#allocation2 + $0x8] sm:$0xc0] %vm1376, %v2254
    %2257 = vst.msk [vmem:[#allocation2] sm:$0x3] %vm1378, %v2251
    %v2258 = vld [vmem:[#allocation2] sm:$0xff]
    %v2259 = vld [vmem:[#allocation2 + $0x8] sm:$0xff]
    %v2260 = vld [vmem:[%s5] sm:$0xff]
    %v2261 = vld [vmem:[%s5 + $0x8] sm:$0xff]
    %v2262 = vld [vmem:[%s5 + $0x10] sm:$0xff]
    %v2263 = vld [vmem:[%s5 + $0x18] sm:$0xff]
    %v2264 = vld [vmem:[%s5 + $0x20] sm:$0xff]
    %v2265 = vld [vmem:[%s5 + $0x28] sm:$0xff]
    %v2266 = vld [vmem:[%s5 + $0x30] sm:$0xff]
    %v2267 = vld [vmem:[%s5 + $0x38] sm:$0xff]
    %v2268 = vld [vmem:[%s7] sm:$0x1]
    %v2270 = vlaneseq
    %v2271 = vshrl.u32 %v2270, 7
    %v2272 = vsub.s32 0, %v2271
    %v2273 = vrot.slane %v2268, %v2272
    %vm2275 = vcmask 523264
    %v2277 = vsel %vm2275, %v2258, 0
    %v2280 = vsel %vm2275, %v2259, 0
    %2282 = vmatprep.subr.mxu0 0.0
    %2283 = vmatpush1.msra.mxu0 %v2260
    %2284 = vmatprep.subr.mxu0 0.0
    %2285 = vmatpush1.msra.mxu0 %v2261
    %2286 = vmatprep.subr.mxu0 0.0
    %2287 = vmatpush1.msra.mxu0 %v2262
    %2288 = vmatprep.subr.mxu0 0.0
    %2289 = vmatpush1.msra.mxu0 %v2263
    %2290 = vmatprep.subr.mxu0 0.0
    %2291 = vmatpush1.msra.mxu0 %v2264
    %2292 = vmatprep.subr.mxu0 0.0
    %2293 = vmatpush1.msra.mxu0 %v2265
    %2294 = vmatprep.subr.mxu0 0.0
    %2295 = vmatpush1.msra.mxu0 %v2266
    %2296 = vmatprep.subr.mxu0 0.0
    %2297 = vmatpush1.msra.mxu0 %v2267
    %2298 = vmatprep.subr.mxu0 0.0
    %2299 = vmatpush1.msra.mxu0 0.0
    %2300 = vmatprep.subr.mxu0 0.0
    %2301 = vmatpush1.msra.mxu0 0.0
    %2302 = vmatprep.subr.mxu0 0.0
    %2303 = vmatpush1.msra.mxu0 0.0
    %2304 = vmatprep.subr.mxu0 0.0
    %2305 = vmatpush1.msra.mxu0 0.0
    %2306 = vmatprep.subr.mxu0 0.0
    %2307 = vmatpush1.msra.mxu0 0.0
    %2308 = vmatprep.subr.mxu0 0.0
    %2309 = vmatpush1.msra.mxu0 0.0
    %2310 = vmatprep.subr.mxu0 0.0
    %2311 = vmatpush1.msra.mxu0 0.0
    %2312 = vmatprep.subr.mxu0 0.0
    %2313 = vmatpush1.msra.mxu0 0.0
    %2314 = vmatprep.subr.mxu0 0.0
    %2315 = vmatpush1.msra.mxu0 0.0
    %2316 = vmatprep.subr.mxu0 0.0
    %2317 = vmatpush1.msra.mxu0 0.0
    %2318 = vmatprep.subr.mxu0 0.0
    %2319 = vmatpush1.msra.mxu0 0.0
    %2320 = vmatprep.subr.mxu0 0.0
    %2321 = vmatpush1.msra.mxu0 0.0
    %2322 = vmatprep.subr.mxu0 0.0
    %2323 = vmatpush1.msra.mxu0 0.0
    %2324 = vmatprep.subr.mxu0 0.0
    %2325 = vmatpush1.msra.mxu0 0.0
    %2326 = vmatprep.subr.mxu0 0.0
    %2327 = vmatpush1.msra.mxu0 0.0
    %2328 = vmatprep.subr.mxu0 0.0
    %2329 = vmatpush1.msra.mxu0 0.0
    %2330 = vmatprep.subr.mxu0 0.0
    %2331 = vmatpush1.msra.mxu0 0.0
    %2332 = vmatprep.subr.mxu0 0.0
    %2333 = vmatpush1.msra.mxu0 0.0
    %2334 = vmatprep.subr.mxu0 0.0
    %2335 = vmatpush1.msra.mxu0 0.0
    %2336 = vmatprep.subr.mxu0 0.0
    %2337 = vmatpush1.msra.mxu0 0.0
    %2338 = vmatprep.subr.mxu0 0.0
    %2339 = vmatpush1.msra.mxu0 0.0
    %2340 = vmatprep.subr.mxu0 0.0
    %2341 = vmatpush1.msra.mxu0 0.0
    %2342 = vmatprep.subr.mxu0 0.0
    %2343 = vmatpush1.msra.mxu0 0.0
    %2344 = vmatprep.subr.mxu0 0.0
    %2345 = vmatpush1.msra.mxu0 0.0
    %2346 = vmatprep.mubr.f32.mxu0 0.0
    %2347 = vmatmul.mubr.f32.gmra.mrb[0].mxu0 %v2277
    %v2348 = vpop.f32.mrb[0].mxu0
    %v2349 = vadd.f32 %v2273, %v2348
    %v2350 = vpop.f32.mrb[0].mxu0
    %2351 = vmatprep.mubr.f32.mxu0 0.0
    %2352 = vmatmul.mubr.f32.gmra.mrb[0].mxu0 %v2280
    %v2353 = vpop.f32.mrb[0].mxu0
    %v2354 = vadd.f32 %v2273, %v2353
    %v2355 = vpop.f32.mrb[0].mxu0
    %2356 = vdwg.mxu0
    %s2357 = scalar_lea.vmem %s5, 64
    %v2358 = vld [vmem:[%s2357] sm:$0xff]
    %v2359 = vld [vmem:[%s2357 + $0x8] sm:$0xff]
    %v2360 = vld [vmem:[%s2357 + $0x10] sm:$0xff]
    %v2361 = vld [vmem:[%s2357 + $0x18] sm:$0xff]
    %v2362 = vld [vmem:[%s2357 + $0x20] sm:$0xff]
    %v2363 = vld [vmem:[%s2357 + $0x28] sm:$0xff]
    %v2364 = vld [vmem:[%s2357 + $0x30] sm:$0xff]
    %v2365 = vld [vmem:[%s2357 + $0x38] sm:$0xff]
    %s2366 = scalar_lea.vmem %s7, 1
    %v2367 = vld [vmem:[%s2366] sm:$0x1]
    %v2369 = vlaneseq
    %v2370 = vshrl.u32 %v2369, 7
    %v2371 = vsub.s32 0, %v2370
    %v2372 = vrot.slane %v2367, %v2371
    %2374 = vmatprep.subr.mxu0 0.0
    %2375 = vmatpush1.msra.mxu0 %v2358
    %2376 = vmatprep.subr.mxu0 0.0
    %2377 = vmatpush1.msra.mxu0 %v2359
    %2378 = vmatprep.subr.mxu0 0.0
    %2379 = vmatpush1.msra.mxu0 %v2360
    %2380 = vmatprep.subr.mxu0 0.0
    %2381 = vmatpush1.msra.mxu0 %v2361
    %2382 = vmatprep.subr.mxu0 0.0
    %2383 = vmatpush1.msra.mxu0 %v2362
    %2384 = vmatprep.subr.mxu0 0.0
    %2385 = vmatpush1.msra.mxu0 %v2363
    %2386 = vmatprep.subr.mxu0 0.0
    %2387 = vmatpush1.msra.mxu0 %v2364
    %2388 = vmatprep.subr.mxu0 0.0
    %2389 = vmatpush1.msra.mxu0 %v2365
    %2390 = vmatprep.subr.mxu0 0.0
    %2391 = vmatpush1.msra.mxu0 0.0
    %2392 = vmatprep.subr.mxu0 0.0
    %2393 = vmatpush1.msra.mxu0 0.0
    %2394 = vmatprep.subr.mxu0 0.0
    %2395 = vmatpush1.msra.mxu0 0.0
    %2396 = vmatprep.subr.mxu0 0.0
    %2397 = vmatpush1.msra.mxu0 0.0
    %2398 = vmatprep.subr.mxu0 0.0
    %2399 = vmatpush1.msra.mxu0 0.0
    %2400 = vmatprep.subr.mxu0 0.0
    %2401 = vmatpush1.msra.mxu0 0.0
    %2402 = vmatprep.subr.mxu0 0.0
    %2403 = vmatpush1.msra.mxu0 0.0
    %2404 = vmatprep.subr.mxu0 0.0
    %2405 = vmatpush1.msra.mxu0 0.0
    %2406 = vmatprep.subr.mxu0 0.0
    %2407 = vmatpush1.msra.mxu0 0.0
    %2408 = vmatprep.subr.mxu0 0.0
    %2409 = vmatpush1.msra.mxu0 0.0
    %2410 = vmatprep.subr.mxu0 0.0
    %2411 = vmatpush1.msra.mxu0 0.0
    %2412 = vmatprep.subr.mxu0 0.0
    %2413 = vmatpush1.msra.mxu0 0.0
    %2414 = vmatprep.subr.mxu0 0.0
    %2415 = vmatpush1.msra.mxu0 0.0
    %2416 = vmatprep.subr.mxu0 0.0
    %2417 = vmatpush1.msra.mxu0 0.0
    %2418 = vmatprep.subr.mxu0 0.0
    %2419 = vmatpush1.msra.mxu0 0.0
    %2420 = vmatprep.subr.mxu0 0.0
    %2421 = vmatpush1.msra.mxu0 0.0
    %2422 = vmatprep.subr.mxu0 0.0
    %2423 = vmatpush1.msra.mxu0 0.0
    %2424 = vmatprep.subr.mxu0 0.0
    %2425 = vmatpush1.msra.mxu0 0.0
    %2426 = vmatprep.subr.mxu0 0.0
    %2427 = vmatpush1.msra.mxu0 0.0
    %2428 = vmatprep.subr.mxu0 0.0
    %2429 = vmatpush1.msra.mxu0 0.0
    %2430 = vmatprep.subr.mxu0 0.0
    %2431 = vmatpush1.msra.mxu0 0.0
    %2432 = vmatprep.subr.mxu0 0.0
    %2433 = vmatpush1.msra.mxu0 0.0
    %2434 = vmatprep.subr.mxu0 0.0
    %2435 = vmatpush1.msra.mxu0 0.0
    %2436 = vmatprep.subr.mxu0 0.0
    %2437 = vmatpush1.msra.mxu0 0.0
    %2438 = vmatprep.mubr.f32.mxu0 0.0
    %2439 = vmatmul.mubr.f32.gmra.mrb[0].mxu0 %v2277
    %v2440 = vpop.f32.mrb[0].mxu0
    %v2441 = vadd.f32 %v2372, %v2440
    %v2442 = vpop.f32.mrb[0].mxu0
    %2443 = vmatprep.mubr.f32.mxu0 0.0
    %2444 = vmatmul.mubr.f32.gmra.mrb[0].mxu0 %v2280
    %v2445 = vpop.f32.mrb[0].mxu0
    %v2446 = vadd.f32 %v2372, %v2445
    %v2447 = vpop.f32.mrb[0].mxu0
    %2448 = vdwg.mxu0
    %v2449 = vld [vmem:[#allocation11] sm:$0xff]
    %v2450 = vld [vmem:[#allocation11 + $0x8] sm:$0xff]
    %v2451 = vld [vmem:[#allocation11 + $0x10] sm:$0xff]
    %v2452 = vld [vmem:[#allocation11 + $0x18] sm:$0xff]
    %s2453 = scalar_lea.vmem [#allocation11], 32
    %v2454 = vld [vmem:[%s2453] sm:$0xff]
    %v2455 = vld [vmem:[%s2453 + $0x8] sm:$0xff]
    %v2456 = vld [vmem:[%s2453 + $0x10] sm:$0xff]
    %v2457 = vld [vmem:[%s2453 + $0x18] sm:$0xff]
    %v2458 = vld [vmem:[#allocation12] sm:$0x1]
    %s2459 = scalar_lea.vmem [#allocation12], 1
    %v2460 = vld [vmem:[%s2459] sm:$0x1]
    %2461 = vmatprep.subr.mxu0 0.0
    %2462 = vmatpush1.msra.mxu0 %v2449
    %2463 = vmatprep.subr.mxu0 0.0
    %2464 = vmatpush1.msra.mxu0 %v2450
    %2465 = vmatprep.subr.mxu0 0.0
    %2466 = vmatpush1.msra.mxu0 %v2451
    %2467 = vmatprep.subr.mxu0 0.0
    %2468 = vmatpush1.msra.mxu0 %v2452
    %2469 = vmatprep.subr.mxu0 0.0
    %2470 = vmatpush1.msra.mxu0 0.0
    %2471 = vmatprep.subr.mxu0 0.0
    %2472 = vmatpush1.msra.mxu0 0.0
    %2473 = vmatprep.subr.mxu0 0.0
    %2474 = vmatpush1.msra.mxu0 0.0
    %2475 = vmatprep.subr.mxu0 0.0
    %2476 = vmatpush1.msra.mxu0 0.0
    %2477 = vmatprep.subr.mxu0 0.0
    %2478 = vmatpush1.msra.mxu0 0.0
    %2479 = vmatprep.subr.mxu0 0.0
    %2480 = vmatpush1.msra.mxu0 0.0
    %2481 = vmatprep.subr.mxu0 0.0
    %2482 = vmatpush1.msra.mxu0 0.0
    %2483 = vmatprep.subr.mxu0 0.0
    %2484 = vmatpush1.msra.mxu0 0.0
    %2485 = vmatprep.subr.mxu0 0.0
    %2486 = vmatpush1.msra.mxu0 0.0
    %2487 = vmatprep.subr.mxu0 0.0
    %2488 = vmatpush1.msra.mxu0 0.0
    %2489 = vmatprep.subr.mxu0 0.0
    %2490 = vmatpush1.msra.mxu0 0.0
    %2491 = vmatprep.subr.mxu0 0.0
    %2492 = vmatpush1.msra.mxu0 0.0
    %2493 = vmatprep.subr.mxu0 0.0
    %2494 = vmatpush1.msra.mxu0 0.0
    %2495 = vmatprep.subr.mxu0 0.0
    %2496 = vmatpush1.msra.mxu0 0.0
    %2497 = vmatprep.subr.mxu0 0.0
    %2498 = vmatpush1.msra.mxu0 0.0
    %2499 = vmatprep.subr.mxu0 0.0
    %2500 = vmatpush1.msra.mxu0 0.0
    %2501 = vmatprep.subr.mxu0 0.0
    %2502 = vmatpush1.msra.mxu0 0.0
    %2503 = vmatprep.subr.mxu0 0.0
    %2504 = vmatpush1.msra.mxu0 0.0
    %2505 = vmatprep.subr.mxu0 0.0
    %2506 = vmatpush1.msra.mxu0 0.0
    %2507 = vmatprep.subr.mxu0 0.0
    %2508 = vmatpush1.msra.mxu0 0.0
    %2509 = vmatprep.subr.mxu0 0.0
    %2510 = vmatpush1.msra.mxu0 0.0
    %2511 = vmatprep.subr.mxu0 0.0
    %2512 = vmatpush1.msra.mxu0 0.0
    %2513 = vmatprep.subr.mxu0 0.0
    %2514 = vmatpush1.msra.mxu0 0.0
    %2515 = vmatprep.subr.mxu0 0.0
    %2516 = vmatpush1.msra.mxu0 0.0
    %2517 = vmatprep.subr.mxu0 0.0
    %2518 = vmatpush1.msra.mxu0 0.0
    %2519 = vmatprep.subr.mxu0 0.0
    %2520 = vmatpush1.msra.mxu0 0.0
    %2521 = vmatprep.subr.mxu0 0.0
    %2522 = vmatpush1.msra.mxu0 0.0
    %2523 = vmatprep.subr.mxu0 0.0
    %2524 = vmatpush1.msra.mxu0 0.0
    %2525 = vmatprep.mubr.f32.mxu0 0.0
    %2526 = vmatmul.mubr.f32.gmra.mrb[0].mxu0 %v489
    %v2527 = vpop.f32.mrb[0].mxu0
    %v2528 = vadd.f32 0.0, %v2527
    %v2529 = vpop.f32.mrb[0].mxu0
    %2530 = vdwg.mxu0
    %2531 = vmatprep.subr.mxu0 0.0
    %2532 = vmatpush1.msra.mxu0 %v2454
    %2533 = vmatprep.subr.mxu0 0.0
    %2534 = vmatpush1.msra.mxu0 %v2455
    %2535 = vmatprep.subr.mxu0 0.0
    %2536 = vmatpush1.msra.mxu0 %v2456
    %2537 = vmatprep.subr.mxu0 0.0
    %2538 = vmatpush1.msra.mxu0 %v2457
    %2539 = vmatprep.subr.mxu0 0.0
    %2540 = vmatpush1.msra.mxu0 0.0
    %2541 = vmatprep.subr.mxu0 0.0
    %2542 = vmatpush1.msra.mxu0 0.0
    %2543 = vmatprep.subr.mxu0 0.0
    %2544 = vmatpush1.msra.mxu0 0.0
    %2545 = vmatprep.subr.mxu0 0.0
    %2546 = vmatpush1.msra.mxu0 0.0
    %2547 = vmatprep.subr.mxu0 0.0
    %2548 = vmatpush1.msra.mxu0 0.0
    %2549 = vmatprep.subr.mxu0 0.0
    %2550 = vmatpush1.msra.mxu0 0.0
    %2551 = vmatprep.subr.mxu0 0.0
    %2552 = vmatpush1.msra.mxu0 0.0
    %2553 = vmatprep.subr.mxu0 0.0
    %2554 = vmatpush1.msra.mxu0 0.0
    %2555 = vmatprep.subr.mxu0 0.0
    %2556 = vmatpush1.msra.mxu0 0.0
    %2557 = vmatprep.subr.mxu0 0.0
    %2558 = vmatpush1.msra.mxu0 0.0
    %2559 = vmatprep.subr.mxu0 0.0
    %2560 = vmatpush1.msra.mxu0 0.0
    %2561 = vmatprep.subr.mxu0 0.0
    %2562 = vmatpush1.msra.mxu0 0.0
    %2563 = vmatprep.subr.mxu0 0.0
    %2564 = vmatpush1.msra.mxu0 0.0
    %2565 = vmatprep.subr.mxu0 0.0
    %2566 = vmatpush1.msra.mxu0 0.0
    %2567 = vmatprep.subr.mxu0 0.0
    %2568 = vmatpush1.msra.mxu0 0.0
    %2569 = vmatprep.subr.mxu0 0.0
    %2570 = vmatpush1.msra.mxu0 0.0
    %2571 = vmatprep.subr.mxu0 0.0
    %2572 = vmatpush1.msra.mxu0 0.0
    %2573 = vmatprep.subr.mxu0 0.0
    %2574 = vmatpush1.msra.mxu0 0.0
    %2575 = vmatprep.subr.mxu0 0.0
    %2576 = vmatpush1.msra.mxu0 0.0
    %2577 = vmatprep.subr.mxu0 0.0
    %2578 = vmatpush1.msra.mxu0 0.0
    %2579 = vmatprep.subr.mxu0 0.0
    %2580 = vmatpush1.msra.mxu0 0.0
    %2581 = vmatprep.subr.mxu0 0.0
    %2582 = vmatpush1.msra.mxu0 0.0
    %2583 = vmatprep.subr.mxu0 0.0
    %2584 = vmatpush1.msra.mxu0 0.0
    %2585 = vmatprep.subr.mxu0 0.0
    %2586 = vmatpush1.msra.mxu0 0.0
    %2587 = vmatprep.subr.mxu0 0.0
    %2588 = vmatpush1.msra.mxu0 0.0
    %2589 = vmatprep.subr.mxu0 0.0
    %2590 = vmatpush1.msra.mxu0 0.0
    %2591 = vmatprep.subr.mxu0 0.0
    %2592 = vmatpush1.msra.mxu0 0.0
    %2593 = vmatprep.subr.mxu0 0.0
    %2594 = vmatpush1.msra.mxu0 0.0
    %2595 = vmatprep.mubr.f32.mxu0 0.0
    %2596 = vmatmul.mubr.f32.gmra.mrb[0].mxu0 %v489
    %v2597 = vpop.f32.mrb[0].mxu0
    %v2598 = vadd.f32 0.0, %v2597
    %v2599 = vpop.f32.mrb[0].mxu0
    %2600 = vdwg.mxu0
    %v2601 = vadd.f32 %v2349, %v2528
    %v2602 = vxor.u32 %v2601, 2147483648
    %v2603 = vmul.f32 %v2602, 1.442695
    %v2604 = vpow.pop %v2603
    %v2605 = vadd.f32 %v2604, 1.0
    %v2606 = vrcp.pop %v2605
    %v2607 = vmul.f32 1.0, %v2606
    %v2609 = vlaneseq
    %v2610 = vshrl.u32 %v2609, 7
    %v2611 = vsub.s32 0, %v2610
    %v2612 = vrot.slane %v2458, %v2611
    %2613 = vrot.lane.b32.xlu0 %v2612, 64
    %v2614 = vpop.permute.xlu0 %2613
    %v2616 = vadd.f32 %v2528, %v2614
    %2618 = vrot.lane.b32.xlu0 %v2616, 64
    %v2619 = vpop.permute.xlu0 %2618
    %v2621 = vmul.f32 %v2607, %v2619
    %2623 = vrot.lane.b32.xlu0 %v2621, 64
    %v2624 = vpop.permute.xlu0 %2623
    %v2626 = vadd.f32 %v2349, %v2624
    %v2627 = vtanh.pop %v2626
    %v2628 = vsub.f32 1.0, %v2607
    %2630 = vrot.lane.b32.xlu0 %v2627, 96
    %v2631 = vpop.permute.xlu0 %2630
    %v2633 = vmul.f32 %v2628, %v2631
    %v2634 = vmul.f32 %v2607, 0.0
    %v2635 = vadd.f32 %v2633, %v2634
    %v2637 = vrot.slane %v2598, 2
    %v2639 = vadd.f32 %v2446, %v2637
    %v2640 = vxor.u32 %v2639, 2147483648
    %v2641 = vmul.f32 %v2640, 1.442695
    %v2642 = vpow.pop %v2641
    %v2643 = vadd.f32 %v2642, 1.0
    %v2644 = vrcp.pop %v2643
    %v2645 = vmul.f32 1.0, %v2644
    %v2647 = vlaneseq
    %v2648 = vshrl.u32 %v2647, 7
    %v2649 = vsub.s32 0, %v2648
    %v2650 = vrot.slane %v2460, %v2649
    %2651 = vrot.lane.b32.xlu0 %v2650, 64
    %v2652 = vpop.permute.xlu0 %2651
    %v2654 = vadd.f32 %v2598, %v2652
    %v2656 = vrot.slane %v2654, 2
    %2657 = vrot.lane.b32.xlu0 %v2656, 64
    %v2658 = vpop.permute.xlu0 %2657
    %v2660 = vmul.f32 %v2645, %v2658
    %2662 = vrot.lane.b32.xlu0 %v2660, 64
    %v2663 = vpop.permute.xlu0 %2662
    %v2665 = vadd.f32 %v2446, %v2663
    %v2666 = vtanh.pop %v2665
    %v2667 = vsub.f32 1.0, %v2645
    %2669 = vrot.lane.b32.xlu0 %v2666, 96
    %v2670 = vpop.permute.xlu0 %2669
    %v2672 = vmul.f32 %v2667, %v2670
    %v2673 = vmul.f32 %v2645, 0.0
    %v2674 = vadd.f32 %v2672, %v2673
    %2676 = vrot.lane.b32.xlu0 %v2635, 96
    %v2677 = vpop.permute.xlu0 %2676
    %2679 = vst.msk [vmem:[#allocation2] sm:$0x3] %vm709, %v2677
    %2680 = vst.msk [vmem:[#allocation2 + $0x8] sm:$0xc0] %vm711, %v2674
    %v2681 = vsel %vm306, %v2677, 0
    %2683 = vmatprep.subr.mxu0 0.0
    %2684 = vmatpush1.msra.mxu0 %v2449
    %2685 = vmatprep.subr.mxu0 0.0
    %2686 = vmatpush1.msra.mxu0 %v2450
    %2687 = vmatprep.subr.mxu0 0.0
    %2688 = vmatpush1.msra.mxu0 %v2451
    %2689 = vmatprep.subr.mxu0 0.0
    %2690 = vmatpush1.msra.mxu0 %v2452
    %2691 = vmatprep.subr.mxu0 0.0
    %2692 = vmatpush1.msra.mxu0 0.0
    %2693 = vmatprep.subr.mxu0 0.0
    %2694 = vmatpush1.msra.mxu0 0.0
    %2695 = vmatprep.subr.mxu0 0.0
    %2696 = vmatpush1.msra.mxu0 0.0
    %2697 = vmatprep.subr.mxu0 0.0
    %2698 = vmatpush1.msra.mxu0 0.0
    %2699 = vmatprep.subr.mxu0 0.0
    %2700 = vmatpush1.msra.mxu0 0.0
    %2701 = vmatprep.subr.mxu0 0.0
    %2702 = vmatpush1.msra.mxu0 0.0
    %2703 = vmatprep.subr.mxu0 0.0
    %2704 = vmatpush1.msra.mxu0 0.0
    %2705 = vmatprep.subr.mxu0 0.0
    %2706 = vmatpush1.msra.mxu0 0.0
    %2707 = vmatprep.subr.mxu0 0.0
    %2708 = vmatpush1.msra.mxu0 0.0
    %2709 = vmatprep.subr.mxu0 0.0
    %2710 = vmatpush1.msra.mxu0 0.0
    %2711 = vmatprep.subr.mxu0 0.0
    %2712 = vmatpush1.msra.mxu0 0.0
    %2713 = vmatprep.subr.mxu0 0.0
    %2714 = vmatpush1.msra.mxu0 0.0
    %2715 = vmatprep.subr.mxu0 0.0
    %2716 = vmatpush1.msra.mxu0 0.0
    %2717 = vmatprep.subr.mxu0 0.0
    %2718 = vmatpush1.msra.mxu0 0.0
    %2719 = vmatprep.subr.mxu0 0.0
    %2720 = vmatpush1.msra.mxu0 0.0
    %2721 = vmatprep.subr.mxu0 0.0
    %2722 = vmatpush1.msra.mxu0 0.0
    %2723 = vmatprep.subr.mxu0 0.0
    %2724 = vmatpush1.msra.mxu0 0.0
    %2725 = vmatprep.subr.mxu0 0.0
    %2726 = vmatpush1.msra.mxu0 0.0
    %2727 = vmatprep.subr.mxu0 0.0
    %2728 = vmatpush1.msra.mxu0 0.0
    %2729 = vmatprep.subr.mxu0 0.0
    %2730 = vmatpush1.msra.mxu0 0.0
    %2731 = vmatprep.subr.mxu0 0.0
    %2732 = vmatpush1.msra.mxu0 0.0
    %2733 = vmatprep.subr.mxu0 0.0
    %2734 = vmatpush1.msra.mxu0 0.0
    %2735 = vmatprep.subr.mxu0 0.0
    %2736 = vmatpush1.msra.mxu0 0.0
    %2737 = vmatprep.subr.mxu0 0.0
    %2738 = vmatpush1.msra.mxu0 0.0
    %2739 = vmatprep.subr.mxu0 0.0
    %2740 = vmatpush1.msra.mxu0 0.0
    %2741 = vmatprep.subr.mxu0 0.0
    %2742 = vmatpush1.msra.mxu0 0.0
    %2743 = vmatprep.subr.mxu0 0.0
    %2744 = vmatpush1.msra.mxu0 0.0
    %2745 = vmatprep.subr.mxu0 0.0
    %2746 = vmatpush1.msra.mxu0 0.0
    %2747 = vmatprep.mubr.f32.mxu0 0.0
    %2748 = vmatmul.mubr.f32.gmra.mrb[0].mxu0 %v2681
    %v2749 = vpop.f32.mrb[0].mxu0
    %v2750 = vadd.f32 0.0, %v2749
    %v2751 = vpop.f32.mrb[0].mxu0
    %2752 = vdwg.mxu0
    %v2754 = vrot.slane %v2674, 6
    %2755 = vrot.lane.b32.xlu0 %v2754, 96
    %v2756 = vpop.permute.xlu0 %2755
    %v2757 = vsel %vm306, %v2756, 0
    %2759 = vmatprep.subr.mxu0 0.0
    %2760 = vmatpush1.msra.mxu0 %v2454
    %2761 = vmatprep.subr.mxu0 0.0
    %2762 = vmatpush1.msra.mxu0 %v2455
    %2763 = vmatprep.subr.mxu0 0.0
    %2764 = vmatpush1.msra.mxu0 %v2456
    %2765 = vmatprep.subr.mxu0 0.0
    %2766 = vmatpush1.msra.mxu0 %v2457
    %2767 = vmatprep.subr.mxu0 0.0
    %2768 = vmatpush1.msra.mxu0 0.0
    %2769 = vmatprep.subr.mxu0 0.0
    %2770 = vmatpush1.msra.mxu0 0.0
    %2771 = vmatprep.subr.mxu0 0.0
    %2772 = vmatpush1.msra.mxu0 0.0
    %2773 = vmatprep.subr.mxu0 0.0
    %2774 = vmatpush1.msra.mxu0 0.0
    %2775 = vmatprep.subr.mxu0 0.0
    %2776 = vmatpush1.msra.mxu0 0.0
    %2777 = vmatprep.subr.mxu0 0.0
    %2778 = vmatpush1.msra.mxu0 0.0
    %2779 = vmatprep.subr.mxu0 0.0
    %2780 = vmatpush1.msra.mxu0 0.0
    %2781 = vmatprep.subr.mxu0 0.0
    %2782 = vmatpush1.msra.mxu0 0.0
    %2783 = vmatprep.subr.mxu0 0.0
    %2784 = vmatpush1.msra.mxu0 0.0
    %2785 = vmatprep.subr.mxu0 0.0
    %2786 = vmatpush1.msra.mxu0 0.0
    %2787 = vmatprep.subr.mxu0 0.0
    %2788 = vmatpush1.msra.mxu0 0.0
    %2789 = vmatprep.subr.mxu0 0.0
    %2790 = vmatpush1.msra.mxu0 0.0
    %2791 = vmatprep.subr.mxu0 0.0
    %2792 = vmatpush1.msra.mxu0 0.0
    %2793 = vmatprep.subr.mxu0 0.0
    %2794 = vmatpush1.msra.mxu0 0.0
    %2795 = vmatprep.subr.mxu0 0.0
    %2796 = vmatpush1.msra.mxu0 0.0
    %2797 = vmatprep.subr.mxu0 0.0
    %2798 = vmatpush1.msra.mxu0 0.0
    %2799 = vmatprep.subr.mxu0 0.0
    %2800 = vmatpush1.msra.mxu0 0.0
    %2801 = vmatprep.subr.mxu0 0.0
    %2802 = vmatpush1.msra.mxu0 0.0
    %2803 = vmatprep.subr.mxu0 0.0
    %2804 = vmatpush1.msra.mxu0 0.0
    %2805 = vmatprep.subr.mxu0 0.0
    %2806 = vmatpush1.msra.mxu0 0.0
    %2807 = vmatprep.subr.mxu0 0.0
    %2808 = vmatpush1.msra.mxu0 0.0
    %2809 = vmatprep.subr.mxu0 0.0
    %2810 = vmatpush1.msra.mxu0 0.0
    %2811 = vmatprep.subr.mxu0 0.0
    %2812 = vmatpush1.msra.mxu0 0.0
    %2813 = vmatprep.subr.mxu0 0.0
    %2814 = vmatpush1.msra.mxu0 0.0
    %2815 = vmatprep.subr.mxu0 0.0
    %2816 = vmatpush1.msra.mxu0 0.0
    %2817 = vmatprep.subr.mxu0 0.0
    %2818 = vmatpush1.msra.mxu0 0.0
    %2819 = vmatprep.subr.mxu0 0.0
    %2820 = vmatpush1.msra.mxu0 0.0
    %2821 = vmatprep.subr.mxu0 0.0
    %2822 = vmatpush1.msra.mxu0 0.0
    %2823 = vmatprep.mubr.f32.mxu0 0.0
    %2824 = vmatmul.mubr.f32.gmra.mrb[0].mxu0 %v2757
    %v2825 = vpop.f32.mrb[0].mxu0
    %v2826 = vadd.f32 0.0, %v2825
    %v2827 = vpop.f32.mrb[0].mxu0
    %2828 = vdwg.mxu0
    %v2830 = vrot.slane %v2750, 6
    %v2832 = vadd.f32 %v2349, %v2830
    %v2833 = vxor.u32 %v2832, 2147483648
    %v2834 = vmul.f32 %v2833, 1.442695
    %v2835 = vpow.pop %v2834
    %v2836 = vadd.f32 %v2835, 1.0
    %v2837 = vrcp.pop %v2836
    %v2838 = vmul.f32 1.0, %v2837
    %v2839 = vadd.f32 %v2750, %v2614
    %v2841 = vrot.slane %v2839, 6
    %2842 = vrot.lane.b32.xlu0 %v2841, 64
    %v2843 = vpop.permute.xlu0 %2842
    %v2845 = vmul.f32 %v2838, %v2843
    %2847 = vrot.lane.b32.xlu0 %v2845, 64
    %v2848 = vpop.permute.xlu0 %2847
    %v2850 = vadd.f32 %v2349, %v2848
    %v2851 = vtanh.pop %v2850
    %v2852 = vsub.f32 1.0, %v2838
    %2854 = vrot.lane.b32.xlu0 %v2851, 96
    %v2855 = vpop.permute.xlu0 %2854
    %v2857 = vmul.f32 %v2852, %v2855
    %v2858 = vrot.slane %v2635, 6
    %v2860 = vmul.f32 %v2838, %v2858
    %v2861 = vadd.f32 %v2857, %v2860
    %v2863 = vrot.slane %v2826, 4
    %v2865 = vadd.f32 %v2446, %v2863
    %v2866 = vxor.u32 %v2865, 2147483648
    %v2867 = vmul.f32 %v2866, 1.442695
    %v2868 = vpow.pop %v2867
    %v2869 = vadd.f32 %v2868, 1.0
    %v2870 = vrcp.pop %v2869
    %v2871 = vmul.f32 1.0, %v2870
    %v2872 = vadd.f32 %v2826, %v2652
    %v2874 = vrot.slane %v2872, 4
    %2875 = vrot.lane.b32.xlu0 %v2874, 64
    %v2876 = vpop.permute.xlu0 %2875
    %v2878 = vmul.f32 %v2871, %v2876
    %2880 = vrot.lane.b32.xlu0 %v2878, 64
    %v2881 = vpop.permute.xlu0 %2880
    %v2883 = vadd.f32 %v2446, %v2881
    %v2884 = vtanh.pop %v2883
    %v2885 = vsub.f32 1.0, %v2871
    %2887 = vrot.lane.b32.xlu0 %v2884, 96
    %v2888 = vpop.permute.xlu0 %2887
    %v2890 = vmul.f32 %v2885, %v2888
    %v2891 = vrot.slane %v2674, 2
    %v2893 = vmul.f32 %v2871, %v2891
    %v2894 = vadd.f32 %v2890, %v2893
    %2896 = vrot.lane.b32.xlu0 %v2861, 96
    %v2897 = vpop.permute.xlu0 %2896
    %2899 = vst.msk [vmem:[#allocation2] sm:$0xc] %vm931, %v2897
    %2900 = vst.msk [vmem:[#allocation2 + $0x8] sm:$0x30] %vm933, %v2894
    %v2901 = vrot.slane %v2861, 2
    %2902 = vrot.lane.b32.xlu0 %v2901, 96
    %v2903 = vpop.permute.xlu0 %2902
    %v2904 = vsel %vm306, %v2903, 0
    %2906 = vmatprep.subr.mxu0 0.0
    %2907 = vmatpush1.msra.mxu0 %v2449
    %2908 = vmatprep.subr.mxu0 0.0
    %2909 = vmatpush1.msra.mxu0 %v2450
    %2910 = vmatprep.subr.mxu0 0.0
    %2911 = vmatpush1.msra.mxu0 %v2451
    %2912 = vmatprep.subr.mxu0 0.0
    %2913 = vmatpush1.msra.mxu0 %v2452
    %2914 = vmatprep.subr.mxu0 0.0
    %2915 = vmatpush1.msra.mxu0 0.0
    %2916 = vmatprep.subr.mxu0 0.0
    %2917 = vmatpush1.msra.mxu0 0.0
    %2918 = vmatprep.subr.mxu0 0.0
    %2919 = vmatpush1.msra.mxu0 0.0
    %2920 = vmatprep.subr.mxu0 0.0
    %2921 = vmatpush1.msra.mxu0 0.0
    %2922 = vmatprep.subr.mxu0 0.0
    %2923 = vmatpush1.msra.mxu0 0.0
    %2924 = vmatprep.subr.mxu0 0.0
    %2925 = vmatpush1.msra.mxu0 0.0
    %2926 = vmatprep.subr.mxu0 0.0
    %2927 = vmatpush1.msra.mxu0 0.0
    %2928 = vmatprep.subr.mxu0 0.0
    %2929 = vmatpush1.msra.mxu0 0.0
    %2930 = vmatprep.subr.mxu0 0.0
    %2931 = vmatpush1.msra.mxu0 0.0
    %2932 = vmatprep.subr.mxu0 0.0
    %2933 = vmatpush1.msra.mxu0 0.0
    %2934 = vmatprep.subr.mxu0 0.0
    %2935 = vmatpush1.msra.mxu0 0.0
    %2936 = vmatprep.subr.mxu0 0.0
    %2937 = vmatpush1.msra.mxu0 0.0
    %2938 = vmatprep.subr.mxu0 0.0
    %2939 = vmatpush1.msra.mxu0 0.0
    %2940 = vmatprep.subr.mxu0 0.0
    %2941 = vmatpush1.msra.mxu0 0.0
    %2942 = vmatprep.subr.mxu0 0.0
    %2943 = vmatpush1.msra.mxu0 0.0
    %2944 = vmatprep.subr.mxu0 0.0
    %2945 = vmatpush1.msra.mxu0 0.0
    %2946 = vmatprep.subr.mxu0 0.0
    %2947 = vmatpush1.msra.mxu0 0.0
    %2948 = vmatprep.subr.mxu0 0.0
    %2949 = vmatpush1.msra.mxu0 0.0
    %2950 = vmatprep.subr.mxu0 0.0
    %2951 = vmatpush1.msra.mxu0 0.0
    %2952 = vmatprep.subr.mxu0 0.0
    %2953 = vmatpush1.msra.mxu0 0.0
    %2954 = vmatprep.subr.mxu0 0.0
    %2955 = vmatpush1.msra.mxu0 0.0
    %2956 = vmatprep.subr.mxu0 0.0
    %2957 = vmatpush1.msra.mxu0 0.0
    %2958 = vmatprep.subr.mxu0 0.0
    %2959 = vmatpush1.msra.mxu0 0.0
    %2960 = vmatprep.subr.mxu0 0.0
    %2961 = vmatpush1.msra.mxu0 0.0
    %2962 = vmatprep.subr.mxu0 0.0
    %2963 = vmatpush1.msra.mxu0 0.0
    %2964 = vmatprep.subr.mxu0 0.0
    %2965 = vmatpush1.msra.mxu0 0.0
    %2966 = vmatprep.subr.mxu0 0.0
    %2967 = vmatpush1.msra.mxu0 0.0
    %2968 = vmatprep.subr.mxu0 0.0
    %2969 = vmatpush1.msra.mxu0 0.0
    %2970 = vmatprep.mubr.f32.mxu0 0.0
    %2971 = vmatmul.mubr.f32.gmra.mrb[0].mxu0 %v2904
    %v2972 = vpop.f32.mrb[0].mxu0
    %v2973 = vadd.f32 0.0, %v2972
    %v2974 = vpop.f32.mrb[0].mxu0
    %2975 = vdwg.mxu0
    %v2977 = vrot.slane %v2894, 4
    %2978 = vrot.lane.b32.xlu0 %v2977, 96
    %v2979 = vpop.permute.xlu0 %2978
    %v2980 = vsel %vm306, %v2979, 0
    %2982 = vmatprep.subr.mxu0 0.0
    %2983 = vmatpush1.msra.mxu0 %v2454
    %2984 = vmatprep.subr.mxu0 0.0
    %2985 = vmatpush1.msra.mxu0 %v2455
    %2986 = vmatprep.subr.mxu0 0.0
    %2987 = vmatpush1.msra.mxu0 %v2456
    %2988 = vmatprep.subr.mxu0 0.0
    %2989 = vmatpush1.msra.mxu0 %v2457
    %2990 = vmatprep.subr.mxu0 0.0
    %2991 = vmatpush1.msra.mxu0 0.0
    %2992 = vmatprep.subr.mxu0 0.0
    %2993 = vmatpush1.msra.mxu0 0.0
    %2994 = vmatprep.subr.mxu0 0.0
    %2995 = vmatpush1.msra.mxu0 0.0
    %2996 = vmatprep.subr.mxu0 0.0
    %2997 = vmatpush1.msra.mxu0 0.0
    %2998 = vmatprep.subr.mxu0 0.0
    %2999 = vmatpush1.msra.mxu0 0.0
    %3000 = vmatprep.subr.mxu0 0.0
    %3001 = vmatpush1.msra.mxu0 0.0
    %3002 = vmatprep.subr.mxu0 0.0
    %3003 = vmatpush1.msra.mxu0 0.0
    %3004 = vmatprep.subr.mxu0 0.0
    %3005 = vmatpush1.msra.mxu0 0.0
    %3006 = vmatprep.subr.mxu0 0.0
    %3007 = vmatpush1.msra.mxu0 0.0
    %3008 = vmatprep.subr.mxu0 0.0
    %3009 = vmatpush1.msra.mxu0 0.0
    %3010 = vmatprep.subr.mxu0 0.0
    %3011 = vmatpush1.msra.mxu0 0.0
    %3012 = vmatprep.subr.mxu0 0.0
    %3013 = vmatpush1.msra.mxu0 0.0
    %3014 = vmatprep.subr.mxu0 0.0
    %3015 = vmatpush1.msra.mxu0 0.0
    %3016 = vmatprep.subr.mxu0 0.0
    %3017 = vmatpush1.msra.mxu0 0.0
    %3018 = vmatprep.subr.mxu0 0.0
    %3019 = vmatpush1.msra.mxu0 0.0
    %3020 = vmatprep.subr.mxu0 0.0
    %3021 = vmatpush1.msra.mxu0 0.0
    %3022 = vmatprep.subr.mxu0 0.0
    %3023 = vmatpush1.msra.mxu0 0.0
    %3024 = vmatprep.subr.mxu0 0.0
    %3025 = vmatpush1.msra.mxu0 0.0
    %3026 = vmatprep.subr.mxu0 0.0
    %3027 = vmatpush1.msra.mxu0 0.0
    %3028 = vmatprep.subr.mxu0 0.0
    %3029 = vmatpush1.msra.mxu0 0.0
    %3030 = vmatprep.subr.mxu0 0.0
    %3031 = vmatpush1.msra.mxu0 0.0
    %3032 = vmatprep.subr.mxu0 0.0
    %3033 = vmatpush1.msra.mxu0 0.0
    %3034 = vmatprep.subr.mxu0 0.0
    %3035 = vmatpush1.msra.mxu0 0.0
    %3036 = vmatprep.subr.mxu0 0.0
    %3037 = vmatpush1.msra.mxu0 0.0
    %3038 = vmatprep.subr.mxu0 0.0
    %3039 = vmatpush1.msra.mxu0 0.0
    %3040 = vmatprep.subr.mxu0 0.0
    %3041 = vmatpush1.msra.mxu0 0.0
    %3042 = vmatprep.subr.mxu0 0.0
    %3043 = vmatpush1.msra.mxu0 0.0
    %3044 = vmatprep.subr.mxu0 0.0
    %3045 = vmatpush1.msra.mxu0 0.0
    %3046 = vmatprep.mubr.f32.mxu0 0.0
    %3047 = vmatmul.mubr.f32.gmra.mrb[0].mxu0 %v2980
    %v3048 = vpop.f32.mrb[0].mxu0
    %v3049 = vadd.f32 0.0, %v3048
    %v3050 = vpop.f32.mrb[0].mxu0
    %3051 = vdwg.mxu0
    %v3053 = vrot.slane %v2973, 4
    %v3055 = vadd.f32 %v2349, %v3053
    %v3056 = vxor.u32 %v3055, 2147483648
    %v3057 = vmul.f32 %v3056, 1.442695
    %v3058 = vpow.pop %v3057
    %v3059 = vadd.f32 %v3058, 1.0
    %v3060 = vrcp.pop %v3059
    %v3061 = vmul.f32 1.0, %v3060
    %v3062 = vadd.f32 %v2973, %v2614
    %v3064 = vrot.slane %v3062, 4
    %3065 = vrot.lane.b32.xlu0 %v3064, 64
    %v3066 = vpop.permute.xlu0 %3065
    %v3068 = vmul.f32 %v3061, %v3066
    %3070 = vrot.lane.b32.xlu0 %v3068, 64
    %v3071 = vpop.permute.xlu0 %3070
    %v3073 = vadd.f32 %v2349, %v3071
    %v3074 = vtanh.pop %v3073
    %v3075 = vsub.f32 1.0, %v3061
    %3077 = vrot.lane.b32.xlu0 %v3074, 96
    %v3078 = vpop.permute.xlu0 %3077
    %v3080 = vmul.f32 %v3075, %v3078
    %v3081 = vrot.slane %v2861, 6
    %v3083 = vmul.f32 %v3061, %v3081
    %v3084 = vadd.f32 %v3080, %v3083
    %v3086 = vrot.slane %v3049, 6
    %v3088 = vadd.f32 %v2446, %v3086
    %v3089 = vxor.u32 %v3088, 2147483648
    %v3090 = vmul.f32 %v3089, 1.442695
    %v3091 = vpow.pop %v3090
    %v3092 = vadd.f32 %v3091, 1.0
    %v3093 = vrcp.pop %v3092
    %v3094 = vmul.f32 1.0, %v3093
    %v3095 = vadd.f32 %v3049, %v2652
    %v3097 = vrot.slane %v3095, 6
    %3098 = vrot.lane.b32.xlu0 %v3097, 64
    %v3099 = vpop.permute.xlu0 %3098
    %v3101 = vmul.f32 %v3094, %v3099
    %3103 = vrot.lane.b32.xlu0 %v3101, 64
    %v3104 = vpop.permute.xlu0 %3103
    %v3106 = vadd.f32 %v2446, %v3104
    %v3107 = vtanh.pop %v3106
    %v3108 = vsub.f32 1.0, %v3094
    %3110 = vrot.lane.b32.xlu0 %v3107, 96
    %v3111 = vpop.permute.xlu0 %3110
    %v3113 = vmul.f32 %v3108, %v3111
    %v3114 = vrot.slane %v2894, 2
    %v3116 = vmul.f32 %v3094, %v3114
    %v3117 = vadd.f32 %v3113, %v3116
    %3119 = vrot.lane.b32.xlu0 %v3084, 96
    %v3120 = vpop.permute.xlu0 %3119
    %3122 = vst.msk [vmem:[#allocation2] sm:$0x30] %vm1156, %v3120
    %3123 = vst.msk [vmem:[#allocation2 + $0x8] sm:$0xc] %vm1158, %v3117
    %v3124 = vrot.slane %v3084, 4
    %3125 = vrot.lane.b32.xlu0 %v3124, 96
    %v3126 = vpop.permute.xlu0 %3125
    %v3127 = vsel %vm306, %v3126, 0
    %3129 = vmatprep.subr.mxu0 0.0
    %3130 = vmatpush1.msra.mxu0 %v2449
    %3131 = vmatprep.subr.mxu0 0.0
    %3132 = vmatpush1.msra.mxu0 %v2450
    %3133 = vmatprep.subr.mxu0 0.0
    %3134 = vmatpush1.msra.mxu0 %v2451
    %3135 = vmatprep.subr.mxu0 0.0
    %3136 = vmatpush1.msra.mxu0 %v2452
    %3137 = vmatprep.subr.mxu0 0.0
    %3138 = vmatpush1.msra.mxu0 0.0
    %3139 = vmatprep.subr.mxu0 0.0
    %3140 = vmatpush1.msra.mxu0 0.0
    %3141 = vmatprep.subr.mxu0 0.0
    %3142 = vmatpush1.msra.mxu0 0.0
    %3143 = vmatprep.subr.mxu0 0.0
    %3144 = vmatpush1.msra.mxu0 0.0
    %3145 = vmatprep.subr.mxu0 0.0
    %3146 = vmatpush1.msra.mxu0 0.0
    %3147 = vmatprep.subr.mxu0 0.0
    %3148 = vmatpush1.msra.mxu0 0.0
    %3149 = vmatprep.subr.mxu0 0.0
    %3150 = vmatpush1.msra.mxu0 0.0
    %3151 = vmatprep.subr.mxu0 0.0
    %3152 = vmatpush1.msra.mxu0 0.0
    %3153 = vmatprep.subr.mxu0 0.0
    %3154 = vmatpush1.msra.mxu0 0.0
    %3155 = vmatprep.subr.mxu0 0.0
    %3156 = vmatpush1.msra.mxu0 0.0
    %3157 = vmatprep.subr.mxu0 0.0
    %3158 = vmatpush1.msra.mxu0 0.0
    %3159 = vmatprep.subr.mxu0 0.0
    %3160 = vmatpush1.msra.mxu0 0.0
    %3161 = vmatprep.subr.mxu0 0.0
    %3162 = vmatpush1.msra.mxu0 0.0
    %3163 = vmatprep.subr.mxu0 0.0
    %3164 = vmatpush1.msra.mxu0 0.0
    %3165 = vmatprep.subr.mxu0 0.0
    %3166 = vmatpush1.msra.mxu0 0.0
    %3167 = vmatprep.subr.mxu0 0.0
    %3168 = vmatpush1.msra.mxu0 0.0
    %3169 = vmatprep.subr.mxu0 0.0
    %3170 = vmatpush1.msra.mxu0 0.0
    %3171 = vmatprep.subr.mxu0 0.0
    %3172 = vmatpush1.msra.mxu0 0.0
    %3173 = vmatprep.subr.mxu0 0.0
    %3174 = vmatpush1.msra.mxu0 0.0
    %3175 = vmatprep.subr.mxu0 0.0
    %3176 = vmatpush1.msra.mxu0 0.0
    %3177 = vmatprep.subr.mxu0 0.0
    %3178 = vmatpush1.msra.mxu0 0.0
    %3179 = vmatprep.subr.mxu0 0.0
    %3180 = vmatpush1.msra.mxu0 0.0
    %3181 = vmatprep.subr.mxu0 0.0
    %3182 = vmatpush1.msra.mxu0 0.0
    %3183 = vmatprep.subr.mxu0 0.0
    %3184 = vmatpush1.msra.mxu0 0.0
    %3185 = vmatprep.subr.mxu0 0.0
    %3186 = vmatpush1.msra.mxu0 0.0
    %3187 = vmatprep.subr.mxu0 0.0
    %3188 = vmatpush1.msra.mxu0 0.0
    %3189 = vmatprep.subr.mxu0 0.0
    %3190 = vmatpush1.msra.mxu0 0.0
    %3191 = vmatprep.subr.mxu0 0.0
    %3192 = vmatpush1.msra.mxu0 0.0
    %3193 = vmatprep.mubr.f32.mxu0 0.0
    %3194 = vmatmul.mubr.f32.gmra.mrb[0].mxu0 %v3127
    %v3195 = vpop.f32.mrb[0].mxu0
    %v3196 = vadd.f32 0.0, %v3195
    %v3197 = vpop.f32.mrb[0].mxu0
    %3198 = vdwg.mxu0
    %v3200 = vrot.slane %v3117, 2
    %3201 = vrot.lane.b32.xlu0 %v3200, 96
    %v3202 = vpop.permute.xlu0 %3201
    %v3203 = vsel %vm306, %v3202, 0
    %3205 = vmatprep.subr.mxu0 0.0
    %3206 = vmatpush1.msra.mxu0 %v2454
    %3207 = vmatprep.subr.mxu0 0.0
    %3208 = vmatpush1.msra.mxu0 %v2455
    %3209 = vmatprep.subr.mxu0 0.0
    %3210 = vmatpush1.msra.mxu0 %v2456
    %3211 = vmatprep.subr.mxu0 0.0
    %3212 = vmatpush1.msra.mxu0 %v2457
    %3213 = vmatprep.subr.mxu0 0.0
    %3214 = vmatpush1.msra.mxu0 0.0
    %3215 = vmatprep.subr.mxu0 0.0
    %3216 = vmatpush1.msra.mxu0 0.0
    %3217 = vmatprep.subr.mxu0 0.0
    %3218 = vmatpush1.msra.mxu0 0.0
    %3219 = vmatprep.subr.mxu0 0.0
    %3220 = vmatpush1.msra.mxu0 0.0
    %3221 = vmatprep.subr.mxu0 0.0
    %3222 = vmatpush1.msra.mxu0 0.0
    %3223 = vmatprep.subr.mxu0 0.0
    %3224 = vmatpush1.msra.mxu0 0.0
    %3225 = vmatprep.subr.mxu0 0.0
    %3226 = vmatpush1.msra.mxu0 0.0
    %3227 = vmatprep.subr.mxu0 0.0
    %3228 = vmatpush1.msra.mxu0 0.0
    %3229 = vmatprep.subr.mxu0 0.0
    %3230 = vmatpush1.msra.mxu0 0.0
    %3231 = vmatprep.subr.mxu0 0.0
    %3232 = vmatpush1.msra.mxu0 0.0
    %3233 = vmatprep.subr.mxu0 0.0
    %3234 = vmatpush1.msra.mxu0 0.0
    %3235 = vmatprep.subr.mxu0 0.0
    %3236 = vmatpush1.msra.mxu0 0.0
    %3237 = vmatprep.subr.mxu0 0.0
    %3238 = vmatpush1.msra.mxu0 0.0
    %3239 = vmatprep.subr.mxu0 0.0
    %3240 = vmatpush1.msra.mxu0 0.0
    %3241 = vmatprep.subr.mxu0 0.0
    %3242 = vmatpush1.msra.mxu0 0.0
    %3243 = vmatprep.subr.mxu0 0.0
    %3244 = vmatpush1.msra.mxu0 0.0
    %3245 = vmatprep.subr.mxu0 0.0
    %3246 = vmatpush1.msra.mxu0 0.0
    %3247 = vmatprep.subr.mxu0 0.0
    %3248 = vmatpush1.msra.mxu0 0.0
    %3249 = vmatprep.subr.mxu0 0.0
    %3250 = vmatpush1.msra.mxu0 0.0
    %3251 = vmatprep.subr.mxu0 0.0
    %3252 = vmatpush1.msra.mxu0 0.0
    %3253 = vmatprep.subr.mxu0 0.0
    %3254 = vmatpush1.msra.mxu0 0.0
    %3255 = vmatprep.subr.mxu0 0.0
    %3256 = vmatpush1.msra.mxu0 0.0
    %3257 = vmatprep.subr.mxu0 0.0
    %3258 = vmatpush1.msra.mxu0 0.0
    %3259 = vmatprep.subr.mxu0 0.0
    %3260 = vmatpush1.msra.mxu0 0.0
    %3261 = vmatprep.subr.mxu0 0.0
    %3262 = vmatpush1.msra.mxu0 0.0
    %3263 = vmatprep.subr.mxu0 0.0
    %3264 = vmatpush1.msra.mxu0 0.0
    %3265 = vmatprep.subr.mxu0 0.0
    %3266 = vmatpush1.msra.mxu0 0.0
    %3267 = vmatprep.subr.mxu0 0.0
    %3268 = vmatpush1.msra.mxu0 0.0
    %3269 = vmatprep.mubr.f32.mxu0 0.0
    %3270 = vmatmul.mubr.f32.gmra.mrb[0].mxu0 %v3203
    %v3271 = vpop.f32.mrb[0].mxu0
    %v3272 = vadd.f32 0.0, %v3271
    %v3273 = vpop.f32.mrb[0].mxu0
    %3274 = vdwg.mxu0
    %v3276 = vrot.slane %v3196, 2
    %v3278 = vadd.f32 %v2349, %v3276
    %v3279 = vxor.u32 %v3278, 2147483648
    %v3280 = vmul.f32 %v3279, 1.442695
    %v3281 = vpow.pop %v3280
    %v3282 = vadd.f32 %v3281, 1.0
    %v3283 = vrcp.pop %v3282
    %v3284 = vmul.f32 1.0, %v3283
    %v3285 = vadd.f32 %v3196, %v2614
    %v3287 = vrot.slane %v3285, 2
    %3288 = vrot.lane.b32.xlu0 %v3287, 64
    %v3289 = vpop.permute.xlu0 %3288
    %v3291 = vmul.f32 %v3284, %v3289
    %3293 = vrot.lane.b32.xlu0 %v3291, 64
    %v3294 = vpop.permute.xlu0 %3293
    %v3296 = vadd.f32 %v2349, %v3294
    %v3297 = vtanh.pop %v3296
    %v3298 = vsub.f32 1.0, %v3284
    %3300 = vrot.lane.b32.xlu0 %v3297, 96
    %v3301 = vpop.permute.xlu0 %3300
    %v3303 = vmul.f32 %v3298, %v3301
    %v3304 = vrot.slane %v3084, 6
    %v3306 = vmul.f32 %v3284, %v3304
    %v3307 = vadd.f32 %v3303, %v3306
    %v3308 = vadd.f32 %v2446, %v3272
    %v3309 = vxor.u32 %v3308, 2147483648
    %v3310 = vmul.f32 %v3309, 1.442695
    %v3311 = vpow.pop %v3310
    %v3312 = vadd.f32 %v3311, 1.0
    %v3313 = vrcp.pop %v3312
    %v3314 = vmul.f32 1.0, %v3313
    %v3315 = vadd.f32 %v3272, %v2652
    %3317 = vrot.lane.b32.xlu0 %v3315, 64
    %v3318 = vpop.permute.xlu0 %3317
    %v3320 = vmul.f32 %v3314, %v3318
    %3322 = vrot.lane.b32.xlu0 %v3320, 64
    %v3323 = vpop.permute.xlu0 %3322
    %v3325 = vadd.f32 %v2446, %v3323
    %v3326 = vtanh.pop %v3325
    %v3327 = vsub.f32 1.0, %v3314
    %3329 = vrot.lane.b32.xlu0 %v3326, 96
    %v3330 = vpop.permute.xlu0 %3329
    %v3332 = vmul.f32 %v3327, %v3330
    %v3334 = vmul.f32 %v3314, %v3200
    %v3335 = vadd.f32 %v3332, %v3334
    %3337 = vrot.lane.b32.xlu0 %v3307, 96
    %v3338 = vpop.permute.xlu0 %3337
    %3340 = vst.msk [vmem:[#allocation2] sm:$0xc0] %vm1376, %v3338
    %3341 = vst.msk [vmem:[#allocation2 + $0x8] sm:$0x3] %vm1378, %v3335
    %v3342 = vrot.slane %v3307, 6
    %3343 = vrot.lane.b32.xlu0 %v3342, 96
    %v3344 = vpop.permute.xlu0 %3343
    %v3345 = vsel %vm306, %v3344, 0
    %3347 = vmatprep.subr.mxu0 0.0
    %3348 = vmatpush1.msra.mxu0 %v2449
    %3349 = vmatprep.subr.mxu0 0.0
    %3350 = vmatpush1.msra.mxu0 %v2450
    %3351 = vmatprep.subr.mxu0 0.0
    %3352 = vmatpush1.msra.mxu0 %v2451
    %3353 = vmatprep.subr.mxu0 0.0
    %3354 = vmatpush1.msra.mxu0 %v2452
    %3355 = vmatprep.subr.mxu0 0.0
    %3356 = vmatpush1.msra.mxu0 0.0
    %3357 = vmatprep.subr.mxu0 0.0
    %3358 = vmatpush1.msra.mxu0 0.0
    %3359 = vmatprep.subr.mxu0 0.0
    %3360 = vmatpush1.msra.mxu0 0.0
    %3361 = vmatprep.subr.mxu0 0.0
    %3362 = vmatpush1.msra.mxu0 0.0
    %3363 = vmatprep.subr.mxu0 0.0
    %3364 = vmatpush1.msra.mxu0 0.0
    %3365 = vmatprep.subr.mxu0 0.0
    %3366 = vmatpush1.msra.mxu0 0.0
    %3367 = vmatprep.subr.mxu0 0.0
    %3368 = vmatpush1.msra.mxu0 0.0
    %3369 = vmatprep.subr.mxu0 0.0
    %3370 = vmatpush1.msra.mxu0 0.0
    %3371 = vmatprep.subr.mxu0 0.0
    %3372 = vmatpush1.msra.mxu0 0.0
    %3373 = vmatprep.subr.mxu0 0.0
    %3374 = vmatpush1.msra.mxu0 0.0
    %3375 = vmatprep.subr.mxu0 0.0
    %3376 = vmatpush1.msra.mxu0 0.0
    %3377 = vmatprep.subr.mxu0 0.0
    %3378 = vmatpush1.msra.mxu0 0.0
    %3379 = vmatprep.subr.mxu0 0.0
    %3380 = vmatpush1.msra.mxu0 0.0
    %3381 = vmatprep.subr.mxu0 0.0
    %3382 = vmatpush1.msra.mxu0 0.0
    %3383 = vmatprep.subr.mxu0 0.0
    %3384 = vmatpush1.msra.mxu0 0.0
    %3385 = vmatprep.subr.mxu0 0.0
    %3386 = vmatpush1.msra.mxu0 0.0
    %3387 = vmatprep.subr.mxu0 0.0
    %3388 = vmatpush1.msra.mxu0 0.0
    %3389 = vmatprep.subr.mxu0 0.0
    %3390 = vmatpush1.msra.mxu0 0.0
    %3391 = vmatprep.subr.mxu0 0.0
    %3392 = vmatpush1.msra.mxu0 0.0
    %3393 = vmatprep.subr.mxu0 0.0
    %3394 = vmatpush1.msra.mxu0 0.0
    %3395 = vmatprep.subr.mxu0 0.0
    %3396 = vmatpush1.msra.mxu0 0.0
    %3397 = vmatprep.subr.mxu0 0.0
    %3398 = vmatpush1.msra.mxu0 0.0
    %3399 = vmatprep.subr.mxu0 0.0
    %3400 = vmatpush1.msra.mxu0 0.0
    %3401 = vmatprep.subr.mxu0 0.0
    %3402 = vmatpush1.msra.mxu0 0.0
    %3403 = vmatprep.subr.mxu0 0.0
    %3404 = vmatpush1.msra.mxu0 0.0
    %3405 = vmatprep.subr.mxu0 0.0
    %3406 = vmatpush1.msra.mxu0 0.0
    %3407 = vmatprep.subr.mxu0 0.0
    %3408 = vmatpush1.msra.mxu0 0.0
    %3409 = vmatprep.subr.mxu0 0.0
    %3410 = vmatpush1.msra.mxu0 0.0
    %3411 = vmatprep.mubr.f32.mxu0 0.0
    %3412 = vmatmul.mubr.f32.gmra.mrb[0].mxu0 %v3345
    %v3413 = vpop.f32.mrb[0].mxu0
    %v3414 = vadd.f32 0.0, %v3413
    %v3415 = vpop.f32.mrb[0].mxu0
    %3416 = vdwg.mxu0
    %3418 = vrot.lane.b32.xlu0 %v3335, 96
    %v3419 = vpop.permute.xlu0 %3418
    %v3420 = vsel %vm306, %v3419, 0
    %3422 = vmatprep.subr.mxu0 0.0
    %3423 = vmatpush1.msra.mxu0 %v2454
    %3424 = vmatprep.subr.mxu0 0.0
    %3425 = vmatpush1.msra.mxu0 %v2455
    %3426 = vmatprep.subr.mxu0 0.0
    %3427 = vmatpush1.msra.mxu0 %v2456
    %3428 = vmatprep.subr.mxu0 0.0
    %3429 = vmatpush1.msra.mxu0 %v2457
    %3430 = vmatprep.subr.mxu0 0.0
    %3431 = vmatpush1.msra.mxu0 0.0
    %3432 = vmatprep.subr.mxu0 0.0
    %3433 = vmatpush1.msra.mxu0 0.0
    %3434 = vmatprep.subr.mxu0 0.0
    %3435 = vmatpush1.msra.mxu0 0.0
    %3436 = vmatprep.subr.mxu0 0.0
    %3437 = vmatpush1.msra.mxu0 0.0
    %3438 = vmatprep.subr.mxu0 0.0
    %3439 = vmatpush1.msra.mxu0 0.0
    %3440 = vmatprep.subr.mxu0 0.0
    %3441 = vmatpush1.msra.mxu0 0.0
    %3442 = vmatprep.subr.mxu0 0.0
    %3443 = vmatpush1.msra.mxu0 0.0
    %3444 = vmatprep.subr.mxu0 0.0
    %3445 = vmatpush1.msra.mxu0 0.0
    %3446 = vmatprep.subr.mxu0 0.0
    %3447 = vmatpush1.msra.mxu0 0.0
    %3448 = vmatprep.subr.mxu0 0.0
    %3449 = vmatpush1.msra.mxu0 0.0
    %3450 = vmatprep.subr.mxu0 0.0
    %3451 = vmatpush1.msra.mxu0 0.0
    %3452 = vmatprep.subr.mxu0 0.0
    %3453 = vmatpush1.msra.mxu0 0.0
    %3454 = vmatprep.subr.mxu0 0.0
    %3455 = vmatpush1.msra.mxu0 0.0
    %3456 = vmatprep.subr.mxu0 0.0
    %3457 = vmatpush1.msra.mxu0 0.0
    %3458 = vmatprep.subr.mxu0 0.0
    %3459 = vmatpush1.msra.mxu0 0.0
    %3460 = vmatprep.subr.mxu0 0.0
    %3461 = vmatpush1.msra.mxu0 0.0
    %3462 = vmatprep.subr.mxu0 0.0
    %3463 = vmatpush1.msra.mxu0 0.0
    %3464 = vmatprep.subr.mxu0 0.0
    %3465 = vmatpush1.msra.mxu0 0.0
    %3466 = vmatprep.subr.mxu0 0.0
    %3467 = vmatpush1.msra.mxu0 0.0
    %3468 = vmatprep.subr.mxu0 0.0
    %3469 = vmatpush1.msra.mxu0 0.0
    %3470 = vmatprep.subr.mxu0 0.0
    %3471 = vmatpush1.msra.mxu0 0.0
    %3472 = vmatprep.subr.mxu0 0.0
    %3473 = vmatpush1.msra.mxu0 0.0
    %3474 = vmatprep.subr.mxu0 0.0
    %3475 = vmatpush1.msra.mxu0 0.0
    %3476 = vmatprep.subr.mxu0 0.0
    %3477 = vmatpush1.msra.mxu0 0.0
    %3478 = vmatprep.subr.mxu0 0.0
    %3479 = vmatpush1.msra.mxu0 0.0
    %3480 = vmatprep.subr.mxu0 0.0
    %3481 = vmatpush1.msra.mxu0 0.0
    %3482 = vmatprep.subr.mxu0 0.0
    %3483 = vmatpush1.msra.mxu0 0.0
    %3484 = vmatprep.subr.mxu0 0.0
    %3485 = vmatpush1.msra.mxu0 0.0
    %3486 = vmatprep.mubr.f32.mxu0 0.0
    %3487 = vmatmul.mubr.f32.gmra.mrb[0].mxu0 %v3420
    %v3488 = vpop.f32.mrb[0].mxu0
    %v3489 = vadd.f32 0.0, %v3488
    %v3490 = vpop.f32.mrb[0].mxu0
    %3491 = vdwg.mxu0
    %v3492 = vadd.f32 %v2354, %v3414
    %v3493 = vxor.u32 %v3492, 2147483648
    %v3494 = vmul.f32 %v3493, 1.442695
    %v3495 = vpow.pop %v3494
    %v3496 = vadd.f32 %v3495, 1.0
    %v3497 = vrcp.pop %v3496
    %v3498 = vmul.f32 1.0, %v3497
    %v3499 = vadd.f32 %v3414, %v2614
    %3501 = vrot.lane.b32.xlu0 %v3499, 64
    %v3502 = vpop.permute.xlu0 %3501
    %v3504 = vmul.f32 %v3498, %v3502
    %3506 = vrot.lane.b32.xlu0 %v3504, 64
    %v3507 = vpop.permute.xlu0 %3506
    %v3509 = vadd.f32 %v2354, %v3507
    %v3510 = vtanh.pop %v3509
    %v3511 = vsub.f32 1.0, %v3498
    %3513 = vrot.lane.b32.xlu0 %v3510, 96
    %v3514 = vpop.permute.xlu0 %3513
    %v3516 = vmul.f32 %v3511, %v3514
    %v3518 = vmul.f32 %v3498, %v3342
    %v3519 = vadd.f32 %v3516, %v3518
    %v3521 = vrot.slane %v3489, 2
    %v3523 = vadd.f32 %v2441, %v3521
    %v3524 = vxor.u32 %v3523, 2147483648
    %v3525 = vmul.f32 %v3524, 1.442695
    %v3526 = vpow.pop %v3525
    %v3527 = vadd.f32 %v3526, 1.0
    %v3528 = vrcp.pop %v3527
    %v3529 = vmul.f32 1.0, %v3528
    %v3530 = vadd.f32 %v3489, %v2652
    %v3532 = vrot.slane %v3530, 2
    %3533 = vrot.lane.b32.xlu0 %v3532, 64
    %v3534 = vpop.permute.xlu0 %3533
    %v3536 = vmul.f32 %v3529, %v3534
    %3538 = vrot.lane.b32.xlu0 %v3536, 64
    %v3539 = vpop.permute.xlu0 %3538
    %v3541 = vadd.f32 %v2441, %v3539
    %v3542 = vtanh.pop %v3541
    %v3543 = vsub.f32 1.0, %v3529
    %3545 = vrot.lane.b32.xlu0 %v3542, 96
    %v3546 = vpop.permute.xlu0 %3545
    %v3548 = vmul.f32 %v3543, %v3546
    %v3549 = vrot.slane %v3335, 2
    %v3551 = vmul.f32 %v3529, %v3549
    %v3552 = vadd.f32 %v3548, %v3551
    %3554 = vrot.lane.b32.xlu0 %v3519, 96
    %v3555 = vpop.permute.xlu0 %3554
    %3557 = vst.msk [vmem:[#allocation2 + $0x8] sm:$0x3] %vm709, %v3555
    %3558 = vst.msk [vmem:[#allocation2] sm:$0xc0] %vm711, %v3552
    %v3559 = vsel %vm306, %v3555, 0
    %3561 = vmatprep.subr.mxu0 0.0
    %3562 = vmatpush1.msra.mxu0 %v2449
    %3563 = vmatprep.subr.mxu0 0.0
    %3564 = vmatpush1.msra.mxu0 %v2450
    %3565 = vmatprep.subr.mxu0 0.0
    %3566 = vmatpush1.msra.mxu0 %v2451
    %3567 = vmatprep.subr.mxu0 0.0
    %3568 = vmatpush1.msra.mxu0 %v2452
    %3569 = vmatprep.subr.mxu0 0.0
    %3570 = vmatpush1.msra.mxu0 0.0
    %3571 = vmatprep.subr.mxu0 0.0
    %3572 = vmatpush1.msra.mxu0 0.0
    %3573 = vmatprep.subr.mxu0 0.0
    %3574 = vmatpush1.msra.mxu0 0.0
    %3575 = vmatprep.subr.mxu0 0.0
    %3576 = vmatpush1.msra.mxu0 0.0
    %3577 = vmatprep.subr.mxu0 0.0
    %3578 = vmatpush1.msra.mxu0 0.0
    %3579 = vmatprep.subr.mxu0 0.0
    %3580 = vmatpush1.msra.mxu0 0.0
    %3581 = vmatprep.subr.mxu0 0.0
    %3582 = vmatpush1.msra.mxu0 0.0
    %3583 = vmatprep.subr.mxu0 0.0
    %3584 = vmatpush1.msra.mxu0 0.0
    %3585 = vmatprep.subr.mxu0 0.0
    %3586 = vmatpush1.msra.mxu0 0.0
    %3587 = vmatprep.subr.mxu0 0.0
    %3588 = vmatpush1.msra.mxu0 0.0
    %3589 = vmatprep.subr.mxu0 0.0
    %3590 = vmatpush1.msra.mxu0 0.0
    %3591 = vmatprep.subr.mxu0 0.0
    %3592 = vmatpush1.msra.mxu0 0.0
    %3593 = vmatprep.subr.mxu0 0.0
    %3594 = vmatpush1.msra.mxu0 0.0
    %3595 = vmatprep.subr.mxu0 0.0
    %3596 = vmatpush1.msra.mxu0 0.0
    %3597 = vmatprep.subr.mxu0 0.0
    %3598 = vmatpush1.msra.mxu0 0.0
    %3599 = vmatprep.subr.mxu0 0.0
    %3600 = vmatpush1.msra.mxu0 0.0
    %3601 = vmatprep.subr.mxu0 0.0
    %3602 = vmatpush1.msra.mxu0 0.0
    %3603 = vmatprep.subr.mxu0 0.0
    %3604 = vmatpush1.msra.mxu0 0.0
    %3605 = vmatprep.subr.mxu0 0.0
    %3606 = vmatpush1.msra.mxu0 0.0
    %3607 = vmatprep.subr.mxu0 0.0
    %3608 = vmatpush1.msra.mxu0 0.0
    %3609 = vmatprep.subr.mxu0 0.0
    %3610 = vmatpush1.msra.mxu0 0.0
    %3611 = vmatprep.subr.mxu0 0.0
    %3612 = vmatpush1.msra.mxu0 0.0
    %3613 = vmatprep.subr.mxu0 0.0
    %3614 = vmatpush1.msra.mxu0 0.0
    %3615 = vmatprep.subr.mxu0 0.0
    %3616 = vmatpush1.msra.mxu0 0.0
    %3617 = vmatprep.subr.mxu0 0.0
    %3618 = vmatpush1.msra.mxu0 0.0
    %3619 = vmatprep.subr.mxu0 0.0
    %3620 = vmatpush1.msra.mxu0 0.0
    %3621 = vmatprep.subr.mxu0 0.0
    %3622 = vmatpush1.msra.mxu0 0.0
    %3623 = vmatprep.subr.mxu0 0.0
    %3624 = vmatpush1.msra.mxu0 0.0
    %3625 = vmatprep.mubr.f32.mxu0 0.0
    %3626 = vmatmul.mubr.f32.gmra.mrb[0].mxu0 %v3559
    %v3627 = vpop.f32.mrb[0].mxu0
    %v3628 = vadd.f32 0.0, %v3627
    %v3629 = vpop.f32.mrb[0].mxu0
    %3630 = vdwg.mxu0
    %v3632 = vrot.slane %v3552, 6
    %3633 = vrot.lane.b32.xlu0 %v3632, 96
    %v3634 = vpop.permute.xlu0 %3633
    %v3635 = vsel %vm306, %v3634, 0
    %3637 = vmatprep.subr.mxu0 0.0
    %3638 = vmatpush1.msra.mxu0 %v2454
    %3639 = vmatprep.subr.mxu0 0.0
    %3640 = vmatpush1.msra.mxu0 %v2455
    %3641 = vmatprep.subr.mxu0 0.0
    %3642 = vmatpush1.msra.mxu0 %v2456
    %3643 = vmatprep.subr.mxu0 0.0
    %3644 = vmatpush1.msra.mxu0 %v2457
    %3645 = vmatprep.subr.mxu0 0.0
    %3646 = vmatpush1.msra.mxu0 0.0
    %3647 = vmatprep.subr.mxu0 0.0
    %3648 = vmatpush1.msra.mxu0 0.0
    %3649 = vmatprep.subr.mxu0 0.0
    %3650 = vmatpush1.msra.mxu0 0.0
    %3651 = vmatprep.subr.mxu0 0.0
    %3652 = vmatpush1.msra.mxu0 0.0
    %3653 = vmatprep.subr.mxu0 0.0
    %3654 = vmatpush1.msra.mxu0 0.0
    %3655 = vmatprep.subr.mxu0 0.0
    %3656 = vmatpush1.msra.mxu0 0.0
    %3657 = vmatprep.subr.mxu0 0.0
    %3658 = vmatpush1.msra.mxu0 0.0
    %3659 = vmatprep.subr.mxu0 0.0
    %3660 = vmatpush1.msra.mxu0 0.0
    %3661 = vmatprep.subr.mxu0 0.0
    %3662 = vmatpush1.msra.mxu0 0.0
    %3663 = vmatprep.subr.mxu0 0.0
    %3664 = vmatpush1.msra.mxu0 0.0
    %3665 = vmatprep.subr.mxu0 0.0
    %3666 = vmatpush1.msra.mxu0 0.0
    %3667 = vmatprep.subr.mxu0 0.0
    %3668 = vmatpush1.msra.mxu0 0.0
    %3669 = vmatprep.subr.mxu0 0.0
    %3670 = vmatpush1.msra.mxu0 0.0
    %3671 = vmatprep.subr.mxu0 0.0
    %3672 = vmatpush1.msra.mxu0 0.0
    %3673 = vmatprep.subr.mxu0 0.0
    %3674 = vmatpush1.msra.mxu0 0.0
    %3675 = vmatprep.subr.mxu0 0.0
    %3676 = vmatpush1.msra.mxu0 0.0
    %3677 = vmatprep.subr.mxu0 0.0
    %3678 = vmatpush1.msra.mxu0 0.0
    %3679 = vmatprep.subr.mxu0 0.0
    %3680 = vmatpush1.msra.mxu0 0.0
    %3681 = vmatprep.subr.mxu0 0.0
    %3682 = vmatpush1.msra.mxu0 0.0
    %3683 = vmatprep.subr.mxu0 0.0
    %3684 = vmatpush1.msra.mxu0 0.0
    %3685 = vmatprep.subr.mxu0 0.0
    %3686 = vmatpush1.msra.mxu0 0.0
    %3687 = vmatprep.subr.mxu0 0.0
    %3688 = vmatpush1.msra.mxu0 0.0
    %3689 = vmatprep.subr.mxu0 0.0
    %3690 = vmatpush1.msra.mxu0 0.0
    %3691 = vmatprep.subr.mxu0 0.0
    %3692 = vmatpush1.msra.mxu0 0.0
    %3693 = vmatprep.subr.mxu0 0.0
    %3694 = vmatpush1.msra.mxu0 0.0
    %3695 = vmatprep.subr.mxu0 0.0
    %3696 = vmatpush1.msra.mxu0 0.0
    %3697 = vmatprep.subr.mxu0 0.0
    %3698 = vmatpush1.msra.mxu0 0.0
    %3699 = vmatprep.subr.mxu0 0.0
    %3700 = vmatpush1.msra.mxu0 0.0
    %3701 = vmatprep.mubr.f32.mxu0 0.0
    %3702 = vmatmul.mubr.f32.gmra.mrb[0].mxu0 %v3635
    %v3703 = vpop.f32.mrb[0].mxu0
    %v3704 = vadd.f32 0.0, %v3703
    %v3705 = vpop.f32.mrb[0].mxu0
    %3706 = vdwg.mxu0
    %v3708 = vrot.slane %v3628, 6
    %v3710 = vadd.f32 %v2354, %v3708
    %v3711 = vxor.u32 %v3710, 2147483648
    %v3712 = vmul.f32 %v3711, 1.442695
    %v3713 = vpow.pop %v3712
    %v3714 = vadd.f32 %v3713, 1.0
    %v3715 = vrcp.pop %v3714
    %v3716 = vmul.f32 1.0, %v3715
    %v3717 = vadd.f32 %v3628, %v2614
    %v3719 = vrot.slane %v3717, 6
    %3720 = vrot.lane.b32.xlu0 %v3719, 64
    %v3721 = vpop.permute.xlu0 %3720
    %v3723 = vmul.f32 %v3716, %v3721
    %3725 = vrot.lane.b32.xlu0 %v3723, 64
    %v3726 = vpop.permute.xlu0 %3725
    %v3728 = vadd.f32 %v2354, %v3726
    %v3729 = vtanh.pop %v3728
    %v3730 = vsub.f32 1.0, %v3716
    %3732 = vrot.lane.b32.xlu0 %v3729, 96
    %v3733 = vpop.permute.xlu0 %3732
    %v3735 = vmul.f32 %v3730, %v3733
    %v3736 = vrot.slane %v3519, 6
    %v3738 = vmul.f32 %v3716, %v3736
    %v3739 = vadd.f32 %v3735, %v3738
    %v3741 = vrot.slane %v3704, 4
    %v3743 = vadd.f32 %v2441, %v3741
    %v3744 = vxor.u32 %v3743, 2147483648
    %v3745 = vmul.f32 %v3744, 1.442695
    %v3746 = vpow.pop %v3745
    %v3747 = vadd.f32 %v3746, 1.0
    %v3748 = vrcp.pop %v3747
    %v3749 = vmul.f32 1.0, %v3748
    %v3750 = vadd.f32 %v3704, %v2652
    %v3752 = vrot.slane %v3750, 4
    %3753 = vrot.lane.b32.xlu0 %v3752, 64
    %v3754 = vpop.permute.xlu0 %3753
    %v3756 = vmul.f32 %v3749, %v3754
    %3758 = vrot.lane.b32.xlu0 %v3756, 64
    %v3759 = vpop.permute.xlu0 %3758
    %v3761 = vadd.f32 %v2441, %v3759
    %v3762 = vtanh.pop %v3761
    %v3763 = vsub.f32 1.0, %v3749
    %3765 = vrot.lane.b32.xlu0 %v3762, 96
    %v3766 = vpop.permute.xlu0 %3765
    %v3768 = vmul.f32 %v3763, %v3766
    %v3769 = vrot.slane %v3552, 2
    %v3771 = vmul.f32 %v3749, %v3769
    %v3772 = vadd.f32 %v3768, %v3771
    %3774 = vrot.lane.b32.xlu0 %v3739, 96
    %v3775 = vpop.permute.xlu0 %3774
    %3777 = vst.msk [vmem:[#allocation2 + $0x8] sm:$0xc] %vm931, %v3775
    %3778 = vst.msk [vmem:[#allocation2] sm:$0x30] %vm933, %v3772
    %v3779 = vrot.slane %v3739, 2
    %3780 = vrot.lane.b32.xlu0 %v3779, 96
    %v3781 = vpop.permute.xlu0 %3780
    %v3782 = vsel %vm306, %v3781, 0
    %3784 = vmatprep.subr.mxu0 0.0
    %3785 = vmatpush1.msra.mxu0 %v2449
    %3786 = vmatprep.subr.mxu0 0.0
    %3787 = vmatpush1.msra.mxu0 %v2450
    %3788 = vmatprep.subr.mxu0 0.0
    %3789 = vmatpush1.msra.mxu0 %v2451
    %3790 = vmatprep.subr.mxu0 0.0
    %3791 = vmatpush1.msra.mxu0 %v2452
    %3792 = vmatprep.subr.mxu0 0.0
    %3793 = vmatpush1.msra.mxu0 0.0
    %3794 = vmatprep.subr.mxu0 0.0
    %3795 = vmatpush1.msra.mxu0 0.0
    %3796 = vmatprep.subr.mxu0 0.0
    %3797 = vmatpush1.msra.mxu0 0.0
    %3798 = vmatprep.subr.mxu0 0.0
    %3799 = vmatpush1.msra.mxu0 0.0
    %3800 = vmatprep.subr.mxu0 0.0
    %3801 = vmatpush1.msra.mxu0 0.0
    %3802 = vmatprep.subr.mxu0 0.0
    %3803 = vmatpush1.msra.mxu0 0.0
    %3804 = vmatprep.subr.mxu0 0.0
    %3805 = vmatpush1.msra.mxu0 0.0
    %3806 = vmatprep.subr.mxu0 0.0
    %3807 = vmatpush1.msra.mxu0 0.0
    %3808 = vmatprep.subr.mxu0 0.0
    %3809 = vmatpush1.msra.mxu0 0.0
    %3810 = vmatprep.subr.mxu0 0.0
    %3811 = vmatpush1.msra.mxu0 0.0
    %3812 = vmatprep.subr.mxu0 0.0
    %3813 = vmatpush1.msra.mxu0 0.0
    %3814 = vmatprep.subr.mxu0 0.0
    %3815 = vmatpush1.msra.mxu0 0.0
    %3816 = vmatprep.subr.mxu0 0.0
    %3817 = vmatpush1.msra.mxu0 0.0
    %3818 = vmatprep.subr.mxu0 0.0
    %3819 = vmatpush1.msra.mxu0 0.0
    %3820 = vmatprep.subr.mxu0 0.0
    %3821 = vmatpush1.msra.mxu0 0.0
    %3822 = vmatprep.subr.mxu0 0.0
    %3823 = vmatpush1.msra.mxu0 0.0
    %3824 = vmatprep.subr.mxu0 0.0
    %3825 = vmatpush1.msra.mxu0 0.0
    %3826 = vmatprep.subr.mxu0 0.0
    %3827 = vmatpush1.msra.mxu0 0.0
    %3828 = vmatprep.subr.mxu0 0.0
    %3829 = vmatpush1.msra.mxu0 0.0
    %3830 = vmatprep.subr.mxu0 0.0
    %3831 = vmatpush1.msra.mxu0 0.0
    %3832 = vmatprep.subr.mxu0 0.0
    %3833 = vmatpush1.msra.mxu0 0.0
    %3834 = vmatprep.subr.mxu0 0.0
    %3835 = vmatpush1.msra.mxu0 0.0
    %3836 = vmatprep.subr.mxu0 0.0
    %3837 = vmatpush1.msra.mxu0 0.0
    %3838 = vmatprep.subr.mxu0 0.0
    %3839 = vmatpush1.msra.mxu0 0.0
    %3840 = vmatprep.subr.mxu0 0.0
    %3841 = vmatpush1.msra.mxu0 0.0
    %3842 = vmatprep.subr.mxu0 0.0
    %3843 = vmatpush1.msra.mxu0 0.0
    %3844 = vmatprep.subr.mxu0 0.0
    %3845 = vmatpush1.msra.mxu0 0.0
    %3846 = vmatprep.subr.mxu0 0.0
    %3847 = vmatpush1.msra.mxu0 0.0
    %3848 = vmatprep.mubr.f32.mxu0 0.0
    %3849 = vmatmul.mubr.f32.gmra.mrb[0].mxu0 %v3782
    %v3850 = vpop.f32.mrb[0].mxu0
    %v3851 = vadd.f32 0.0, %v3850
    %v3852 = vpop.f32.mrb[0].mxu0
    %3853 = vdwg.mxu0
    %v3855 = vrot.slane %v3772, 4
    %3856 = vrot.lane.b32.xlu0 %v3855, 96
    %v3857 = vpop.permute.xlu0 %3856
    %v3858 = vsel %vm306, %v3857, 0
    %3860 = vmatprep.subr.mxu0 0.0
    %3861 = vmatpush1.msra.mxu0 %v2454
    %3862 = vmatprep.subr.mxu0 0.0
    %3863 = vmatpush1.msra.mxu0 %v2455
    %3864 = vmatprep.subr.mxu0 0.0
    %3865 = vmatpush1.msra.mxu0 %v2456
    %3866 = vmatprep.subr.mxu0 0.0
    %3867 = vmatpush1.msra.mxu0 %v2457
    %3868 = vmatprep.subr.mxu0 0.0
    %3869 = vmatpush1.msra.mxu0 0.0
    %3870 = vmatprep.subr.mxu0 0.0
    %3871 = vmatpush1.msra.mxu0 0.0
    %3872 = vmatprep.subr.mxu0 0.0
    %3873 = vmatpush1.msra.mxu0 0.0
    %3874 = vmatprep.subr.mxu0 0.0
    %3875 = vmatpush1.msra.mxu0 0.0
    %3876 = vmatprep.subr.mxu0 0.0
    %3877 = vmatpush1.msra.mxu0 0.0
    %3878 = vmatprep.subr.mxu0 0.0
    %3879 = vmatpush1.msra.mxu0 0.0
    %3880 = vmatprep.subr.mxu0 0.0
    %3881 = vmatpush1.msra.mxu0 0.0
    %3882 = vmatprep.subr.mxu0 0.0
    %3883 = vmatpush1.msra.mxu0 0.0
    %3884 = vmatprep.subr.mxu0 0.0
    %3885 = vmatpush1.msra.mxu0 0.0
    %3886 = vmatprep.subr.mxu0 0.0
    %3887 = vmatpush1.msra.mxu0 0.0
    %3888 = vmatprep.subr.mxu0 0.0
    %3889 = vmatpush1.msra.mxu0 0.0
    %3890 = vmatprep.subr.mxu0 0.0
    %3891 = vmatpush1.msra.mxu0 0.0
    %3892 = vmatprep.subr.mxu0 0.0
    %3893 = vmatpush1.msra.mxu0 0.0
    %3894 = vmatprep.subr.mxu0 0.0
    %3895 = vmatpush1.msra.mxu0 0.0
    %3896 = vmatprep.subr.mxu0 0.0
    %3897 = vmatpush1.msra.mxu0 0.0
    %3898 = vmatprep.subr.mxu0 0.0
    %3899 = vmatpush1.msra.mxu0 0.0
    %3900 = vmatprep.subr.mxu0 0.0
    %3901 = vmatpush1.msra.mxu0 0.0
    %3902 = vmatprep.subr.mxu0 0.0
    %3903 = vmatpush1.msra.mxu0 0.0
    %3904 = vmatprep.subr.mxu0 0.0
    %3905 = vmatpush1.msra.mxu0 0.0
    %3906 = vmatprep.subr.mxu0 0.0
    %3907 = vmatpush1.msra.mxu0 0.0
    %3908 = vmatprep.subr.mxu0 0.0
    %3909 = vmatpush1.msra.mxu0 0.0
    %3910 = vmatprep.subr.mxu0 0.0
    %3911 = vmatpush1.msra.mxu0 0.0
    %3912 = vmatprep.subr.mxu0 0.0
    %3913 = vmatpush1.msra.mxu0 0.0
    %3914 = vmatprep.subr.mxu0 0.0
    %3915 = vmatpush1.msra.mxu0 0.0
    %3916 = vmatprep.subr.mxu0 0.0
    %3917 = vmatpush1.msra.mxu0 0.0
    %3918 = vmatprep.subr.mxu0 0.0
    %3919 = vmatpush1.msra.mxu0 0.0
    %3920 = vmatprep.subr.mxu0 0.0
    %3921 = vmatpush1.msra.mxu0 0.0
    %3922 = vmatprep.subr.mxu0 0.0
    %3923 = vmatpush1.msra.mxu0 0.0
    %3924 = vmatprep.mubr.f32.mxu0 0.0
    %3925 = vmatmul.mubr.f32.gmra.mrb[0].mxu0 %v3858
    %v3926 = vpop.f32.mrb[0].mxu0
    %v3927 = vadd.f32 0.0, %v3926
    %v3928 = vpop.f32.mrb[0].mxu0
    %3929 = vdwg.mxu0
    %v3931 = vrot.slane %v3851, 4
    %v3933 = vadd.f32 %v2354, %v3931
    %v3934 = vxor.u32 %v3933, 2147483648
    %v3935 = vmul.f32 %v3934, 1.442695
    %v3936 = vpow.pop %v3935
    %v3937 = vadd.f32 %v3936, 1.0
    %v3938 = vrcp.pop %v3937
    %v3939 = vmul.f32 1.0, %v3938
    %v3940 = vadd.f32 %v3851, %v2614
    %v3942 = vrot.slane %v3940, 4
    %3943 = vrot.lane.b32.xlu0 %v3942, 64
    %v3944 = vpop.permute.xlu0 %3943
    %v3946 = vmul.f32 %v3939, %v3944
    %3948 = vrot.lane.b32.xlu0 %v3946, 64
    %v3949 = vpop.permute.xlu0 %3948
    %v3951 = vadd.f32 %v2354, %v3949
    %v3952 = vtanh.pop %v3951
    %v3953 = vsub.f32 1.0, %v3939
    %3955 = vrot.lane.b32.xlu0 %v3952, 96
    %v3956 = vpop.permute.xlu0 %3955
    %v3958 = vmul.f32 %v3953, %v3956
    %v3959 = vrot.slane %v3739, 6
    %v3961 = vmul.f32 %v3939, %v3959
    %v3962 = vadd.f32 %v3958, %v3961
    %v3964 = vrot.slane %v3927, 6
    %v3966 = vadd.f32 %v2441, %v3964
    %v3967 = vxor.u32 %v3966, 2147483648
    %v3968 = vmul.f32 %v3967, 1.442695
    %v3969 = vpow.pop %v3968
    %v3970 = vadd.f32 %v3969, 1.0
    %v3971 = vrcp.pop %v3970
    %v3972 = vmul.f32 1.0, %v3971
    %v3973 = vadd.f32 %v3927, %v2652
    %v3975 = vrot.slane %v3973, 6
    %3976 = vrot.lane.b32.xlu0 %v3975, 64
    %v3977 = vpop.permute.xlu0 %3976
    %v3979 = vmul.f32 %v3972, %v3977
    %3981 = vrot.lane.b32.xlu0 %v3979, 64
    %v3982 = vpop.permute.xlu0 %3981
    %v3984 = vadd.f32 %v2441, %v3982
    %v3985 = vtanh.pop %v3984
    %v3986 = vsub.f32 1.0, %v3972
    %3988 = vrot.lane.b32.xlu0 %v3985, 96
    %v3989 = vpop.permute.xlu0 %3988
    %v3991 = vmul.f32 %v3986, %v3989
    %v3992 = vrot.slane %v3772, 2
    %v3994 = vmul.f32 %v3972, %v3992
    %v3995 = vadd.f32 %v3991, %v3994
    %3997 = vrot.lane.b32.xlu0 %v3962, 96
    %v3998 = vpop.permute.xlu0 %3997
    %4000 = vst.msk [vmem:[#allocation2 + $0x8] sm:$0x30] %vm1156, %v3998
    %4001 = vst.msk [vmem:[#allocation2] sm:$0xc] %vm1158, %v3995
    %v4002 = vrot.slane %v3962, 4
    %4003 = vrot.lane.b32.xlu0 %v4002, 96
    %v4004 = vpop.permute.xlu0 %4003
    %v4005 = vsel %vm306, %v4004, 0
    %4007 = vmatprep.subr.mxu0 0.0
    %4008 = vmatpush1.msra.mxu0 %v2449
    %4009 = vmatprep.subr.mxu0 0.0
    %4010 = vmatpush1.msra.mxu0 %v2450
    %4011 = vmatprep.subr.mxu0 0.0
    %4012 = vmatpush1.msra.mxu0 %v2451
    %4013 = vmatprep.subr.mxu0 0.0
    %4014 = vmatpush1.msra.mxu0 %v2452
    %4015 = vmatprep.subr.mxu0 0.0
    %4016 = vmatpush1.msra.mxu0 0.0
    %4017 = vmatprep.subr.mxu0 0.0
    %4018 = vmatpush1.msra.mxu0 0.0
    %4019 = vmatprep.subr.mxu0 0.0
    %4020 = vmatpush1.msra.mxu0 0.0
    %4021 = vmatprep.subr.mxu0 0.0
    %4022 = vmatpush1.msra.mxu0 0.0
    %4023 = vmatprep.subr.mxu0 0.0
    %4024 = vmatpush1.msra.mxu0 0.0
    %4025 = vmatprep.subr.mxu0 0.0
    %4026 = vmatpush1.msra.mxu0 0.0
    %4027 = vmatprep.subr.mxu0 0.0
    %4028 = vmatpush1.msra.mxu0 0.0
    %4029 = vmatprep.subr.mxu0 0.0
    %4030 = vmatpush1.msra.mxu0 0.0
    %4031 = vmatprep.subr.mxu0 0.0
    %4032 = vmatpush1.msra.mxu0 0.0
    %4033 = vmatprep.subr.mxu0 0.0
    %4034 = vmatpush1.msra.mxu0 0.0
    %4035 = vmatprep.subr.mxu0 0.0
    %4036 = vmatpush1.msra.mxu0 0.0
    %4037 = vmatprep.subr.mxu0 0.0
    %4038 = vmatpush1.msra.mxu0 0.0
    %4039 = vmatprep.subr.mxu0 0.0
    %4040 = vmatpush1.msra.mxu0 0.0
    %4041 = vmatprep.subr.mxu0 0.0
    %4042 = vmatpush1.msra.mxu0 0.0
    %4043 = vmatprep.subr.mxu0 0.0
    %4044 = vmatpush1.msra.mxu0 0.0
    %4045 = vmatprep.subr.mxu0 0.0
    %4046 = vmatpush1.msra.mxu0 0.0
    %4047 = vmatprep.subr.mxu0 0.0
    %4048 = vmatpush1.msra.mxu0 0.0
    %4049 = vmatprep.subr.mxu0 0.0
    %4050 = vmatpush1.msra.mxu0 0.0
    %4051 = vmatprep.subr.mxu0 0.0
    %4052 = vmatpush1.msra.mxu0 0.0
    %4053 = vmatprep.subr.mxu0 0.0
    %4054 = vmatpush1.msra.mxu0 0.0
    %4055 = vmatprep.subr.mxu0 0.0
    %4056 = vmatpush1.msra.mxu0 0.0
    %4057 = vmatprep.subr.mxu0 0.0
    %4058 = vmatpush1.msra.mxu0 0.0
    %4059 = vmatprep.subr.mxu0 0.0
    %4060 = vmatpush1.msra.mxu0 0.0
    %4061 = vmatprep.subr.mxu0 0.0
    %4062 = vmatpush1.msra.mxu0 0.0
    %4063 = vmatprep.subr.mxu0 0.0
    %4064 = vmatpush1.msra.mxu0 0.0
    %4065 = vmatprep.subr.mxu0 0.0
    %4066 = vmatpush1.msra.mxu0 0.0
    %4067 = vmatprep.subr.mxu0 0.0
    %4068 = vmatpush1.msra.mxu0 0.0
    %4069 = vmatprep.subr.mxu0 0.0
    %4070 = vmatpush1.msra.mxu0 0.0
    %4071 = vmatprep.mubr.f32.mxu0 0.0
    %4072 = vmatmul.mubr.f32.gmra.mrb[0].mxu0 %v4005
    %v4073 = vpop.f32.mrb[0].mxu0
    %v4074 = vadd.f32 0.0, %v4073
    %v4075 = vpop.f32.mrb[0].mxu0
    %4076 = vdwg.mxu0
    %v4078 = vrot.slane %v3995, 2
    %4079 = vrot.lane.b32.xlu0 %v4078, 96
    %v4080 = vpop.permute.xlu0 %4079
    %v4081 = vsel %vm306, %v4080, 0
    %4083 = vmatprep.subr.mxu0 0.0
    %4084 = vmatpush1.msra.mxu0 %v2454
    %4085 = vmatprep.subr.mxu0 0.0
    %4086 = vmatpush1.msra.mxu0 %v2455
    %4087 = vmatprep.subr.mxu0 0.0
    %4088 = vmatpush1.msra.mxu0 %v2456
    %4089 = vmatprep.subr.mxu0 0.0
    %4090 = vmatpush1.msra.mxu0 %v2457
    %4091 = vmatprep.subr.mxu0 0.0
    %4092 = vmatpush1.msra.mxu0 0.0
    %4093 = vmatprep.subr.mxu0 0.0
    %4094 = vmatpush1.msra.mxu0 0.0
    %4095 = vmatprep.subr.mxu0 0.0
    %4096 = vmatpush1.msra.mxu0 0.0
    %4097 = vmatprep.subr.mxu0 0.0
    %4098 = vmatpush1.msra.mxu0 0.0
    %4099 = vmatprep.subr.mxu0 0.0
    %4100 = vmatpush1.msra.mxu0 0.0
    %4101 = vmatprep.subr.mxu0 0.0
    %4102 = vmatpush1.msra.mxu0 0.0
    %4103 = vmatprep.subr.mxu0 0.0
    %4104 = vmatpush1.msra.mxu0 0.0
    %4105 = vmatprep.subr.mxu0 0.0
    %4106 = vmatpush1.msra.mxu0 0.0
    %4107 = vmatprep.subr.mxu0 0.0
    %4108 = vmatpush1.msra.mxu0 0.0
    %4109 = vmatprep.subr.mxu0 0.0
    %4110 = vmatpush1.msra.mxu0 0.0
    %4111 = vmatprep.subr.mxu0 0.0
    %4112 = vmatpush1.msra.mxu0 0.0
    %4113 = vmatprep.subr.mxu0 0.0
    %4114 = vmatpush1.msra.mxu0 0.0
    %4115 = vmatprep.subr.mxu0 0.0
    %4116 = vmatpush1.msra.mxu0 0.0
    %4117 = vmatprep.subr.mxu0 0.0
    %4118 = vmatpush1.msra.mxu0 0.0
    %4119 = vmatprep.subr.mxu0 0.0
    %4120 = vmatpush1.msra.mxu0 0.0
    %4121 = vmatprep.subr.mxu0 0.0
    %4122 = vmatpush1.msra.mxu0 0.0
    %4123 = vmatprep.subr.mxu0 0.0
    %4124 = vmatpush1.msra.mxu0 0.0
    %4125 = vmatprep.subr.mxu0 0.0
    %4126 = vmatpush1.msra.mxu0 0.0
    %4127 = vmatprep.subr.mxu0 0.0
    %4128 = vmatpush1.msra.mxu0 0.0
    %4129 = vmatprep.subr.mxu0 0.0
    %4130 = vmatpush1.msra.mxu0 0.0
    %4131 = vmatprep.subr.mxu0 0.0
    %4132 = vmatpush1.msra.mxu0 0.0
    %4133 = vmatprep.subr.mxu0 0.0
    %4134 = vmatpush1.msra.mxu0 0.0
    %4135 = vmatprep.subr.mxu0 0.0
    %4136 = vmatpush1.msra.mxu0 0.0
    %4137 = vmatprep.subr.mxu0 0.0
    %4138 = vmatpush1.msra.mxu0 0.0
    %4139 = vmatprep.subr.mxu0 0.0
    %4140 = vmatpush1.msra.mxu0 0.0
    %4141 = vmatprep.subr.mxu0 0.0
    %4142 = vmatpush1.msra.mxu0 0.0
    %4143 = vmatprep.subr.mxu0 0.0
    %4144 = vmatpush1.msra.mxu0 0.0
    %4145 = vmatprep.subr.mxu0 0.0
    %4146 = vmatpush1.msra.mxu0 0.0
    %4147 = vmatprep.mubr.f32.mxu0 0.0
    %4148 = vmatmul.mubr.f32.gmra.mrb[0].mxu0 %v4081
    %v4149 = vpop.f32.mrb[0].mxu0
    %v4150 = vadd.f32 0.0, %v4149
    %v4151 = vpop.f32.mrb[0].mxu0
    %4152 = vdwg.mxu0
    %v4154 = vrot.slane %v4074, 2
    %v4156 = vadd.f32 %v2354, %v4154
    %v4157 = vxor.u32 %v4156, 2147483648
    %v4158 = vmul.f32 %v4157, 1.442695
    %v4159 = vpow.pop %v4158
    %v4160 = vadd.f32 %v4159, 1.0
    %v4161 = vrcp.pop %v4160
    %v4162 = vmul.f32 1.0, %v4161
    %v4163 = vadd.f32 %v4074, %v2614
    %v4165 = vrot.slane %v4163, 2
    %4166 = vrot.lane.b32.xlu0 %v4165, 64
    %v4167 = vpop.permute.xlu0 %4166
    %v4169 = vmul.f32 %v4162, %v4167
    %4171 = vrot.lane.b32.xlu0 %v4169, 64
    %v4172 = vpop.permute.xlu0 %4171
    %v4174 = vadd.f32 %v2354, %v4172
    %v4175 = vtanh.pop %v4174
    %v4176 = vsub.f32 1.0, %v4162
    %4178 = vrot.lane.b32.xlu0 %v4175, 96
    %v4179 = vpop.permute.xlu0 %4178
    %v4181 = vmul.f32 %v4176, %v4179
    %v4182 = vrot.slane %v3962, 6
    %v4184 = vmul.f32 %v4162, %v4182
    %v4185 = vadd.f32 %v4181, %v4184
    %v4186 = vadd.f32 %v2441, %v4150
    %v4187 = vxor.u32 %v4186, 2147483648
    %v4188 = vmul.f32 %v4187, 1.442695
    %v4189 = vpow.pop %v4188
    %v4190 = vadd.f32 %v4189, 1.0
    %v4191 = vrcp.pop %v4190
    %v4192 = vmul.f32 1.0, %v4191
    %v4193 = vadd.f32 %v4150, %v2652
    %4195 = vrot.lane.b32.xlu0 %v4193, 64
    %v4196 = vpop.permute.xlu0 %4195
    %v4198 = vmul.f32 %v4192, %v4196
    %4200 = vrot.lane.b32.xlu0 %v4198, 64
    %v4201 = vpop.permute.xlu0 %4200
    %v4203 = vadd.f32 %v2441, %v4201
    %v4204 = vtanh.pop %v4203
    %v4205 = vsub.f32 1.0, %v4192
    %4207 = vrot.lane.b32.xlu0 %v4204, 96
    %v4208 = vpop.permute.xlu0 %4207
    %v4210 = vmul.f32 %v4205, %v4208
    %v4212 = vmul.f32 %v4192, %v4078
    %v4213 = vadd.f32 %v4210, %v4212
    %4215 = vrot.lane.b32.xlu0 %v4185, 96
    %v4216 = vpop.permute.xlu0 %4215
    %4218 = vst.msk [vmem:[#allocation2 + $0x8] sm:$0xc0] %vm1376, %v4216
    %4219 = vst.msk [vmem:[#allocation2] sm:$0x3] %vm1378, %v4213
    %v4220 = vld [vmem:[#allocation2] sm:$0xff]
    %v4221 = vld [vmem:[#allocation2 + $0x8] sm:$0xff]
    %v4222 = vld [vmem:[%s9] sm:$0xff]
    %v4223 = vld [vmem:[%s9 + $0x8] sm:$0xff]
    %v4224 = vld [vmem:[%s9 + $0x10] sm:$0xff]
    %v4225 = vld [vmem:[%s9 + $0x18] sm:$0xff]
    %v4226 = vld [vmem:[%s9 + $0x20] sm:$0xff]
    %v4227 = vld [vmem:[%s9 + $0x28] sm:$0xff]
    %v4228 = vld [vmem:[%s9 + $0x30] sm:$0xff]
    %v4229 = vld [vmem:[%s9 + $0x38] sm:$0xff]
    %v4230 = vld [vmem:[%s9 + $0x40] sm:$0xff]
    %v4231 = vld [vmem:[%s9 + $0x48] sm:$0xff]
    %v4232 = vld [vmem:[%s9 + $0x50] sm:$0xff]
    %v4233 = vld [vmem:[%s9 + $0x58] sm:$0xff]
    %v4234 = vld [vmem:[%s9 + $0x60] sm:$0xff]
    %v4235 = vld [vmem:[%s9 + $0x68] sm:$0xff]
    %v4236 = vld [vmem:[%s9 + $0x70] sm:$0xff]
    %v4237 = vld [vmem:[%s9 + $0x78] sm:$0xff]
    %v4238 = vld [vmem:[#allocation14] sm:$0x3]
    %v4240 = vlaneseq
    %v4241 = vshrl.u32 %v4240, 7
    %v4242 = vsub.s32 0, %v4241
    %v4243 = vrot.slane %v4238, %v4242
    %v4244 = vlaneseq
    %v4245 = vshrl.u32 %v4244, 7
    %v4246 = vsub.s32 1, %v4245
    %v4247 = vrot.slane %v4238, %v4246
    %v4251 = vsel %vm2275, %v4220, 0
    %v4254 = vsel %vm2275, %v4221, 0
    %4256 = vmatprep.subr.mxu0 %v4223
    %4257 = vmatpush1.msra.mxu0 %v4222
    %4258 = vmatprep.subr.mxu0 %v4225
    %4259 = vmatpush1.msra.mxu0 %v4224
    %4260 = vmatprep.subr.mxu0 %v4227
    %4261 = vmatpush1.msra.mxu0 %v4226
    %4262 = vmatprep.subr.mxu0 %v4229
    %4263 = vmatpush1.msra.mxu0 %v4228
    %4264 = vmatprep.subr.mxu0 %v4231
    %4265 = vmatpush1.msra.mxu0 %v4230
    %4266 = vmatprep.subr.mxu0 %v4233
    %4267 = vmatpush1.msra.mxu0 %v4232
    %4268 = vmatprep.subr.mxu0 %v4235
    %4269 = vmatpush1.msra.mxu0 %v4234
    %4270 = vmatprep.subr.mxu0 %v4237
    %4271 = vmatpush1.msra.mxu0 %v4236
    %4272 = vmatprep.subr.mxu0 0.0
    %4273 = vmatpush1.msra.mxu0 0.0
    %4274 = vmatprep.subr.mxu0 0.0
    %4275 = vmatpush1.msra.mxu0 0.0
    %4276 = vmatprep.subr.mxu0 0.0
    %4277 = vmatpush1.msra.mxu0 0.0
    %4278 = vmatprep.subr.mxu0 0.0
    %4279 = vmatpush1.msra.mxu0 0.0
    %4280 = vmatprep.subr.mxu0 0.0
    %4281 = vmatpush1.msra.mxu0 0.0
    %4282 = vmatprep.subr.mxu0 0.0
    %4283 = vmatpush1.msra.mxu0 0.0
    %4284 = vmatprep.subr.mxu0 0.0
    %4285 = vmatpush1.msra.mxu0 0.0
    %4286 = vmatprep.subr.mxu0 0.0
    %4287 = vmatpush1.msra.mxu0 0.0
    %4288 = vmatprep.subr.mxu0 0.0
    %4289 = vmatpush1.msra.mxu0 0.0
    %4290 = vmatprep.subr.mxu0 0.0
    %4291 = vmatpush1.msra.mxu0 0.0
    %4292 = vmatprep.subr.mxu0 0.0
    %4293 = vmatpush1.msra.mxu0 0.0
    %4294 = vmatprep.subr.mxu0 0.0
    %4295 = vmatpush1.msra.mxu0 0.0
    %4296 = vmatprep.subr.mxu0 0.0
    %4297 = vmatpush1.msra.mxu0 0.0
    %4298 = vmatprep.subr.mxu0 0.0
    %4299 = vmatpush1.msra.mxu0 0.0
    %4300 = vmatprep.subr.mxu0 0.0
    %4301 = vmatpush1.msra.mxu0 0.0
    %4302 = vmatprep.subr.mxu0 0.0
    %4303 = vmatpush1.msra.mxu0 0.0
    %4304 = vmatprep.subr.mxu0 0.0
    %4305 = vmatpush1.msra.mxu0 0.0
    %4306 = vmatprep.subr.mxu0 0.0
    %4307 = vmatpush1.msra.mxu0 0.0
    %4308 = vmatprep.subr.mxu0 0.0
    %4309 = vmatpush1.msra.mxu0 0.0
    %4310 = vmatprep.subr.mxu0 0.0
    %4311 = vmatpush1.msra.mxu0 0.0
    %4312 = vmatprep.subr.mxu0 0.0
    %4313 = vmatpush1.msra.mxu0 0.0
    %4314 = vmatprep.subr.mxu0 0.0
    %4315 = vmatpush1.msra.mxu0 0.0
    %4316 = vmatprep.subr.mxu0 0.0
    %4317 = vmatpush1.msra.mxu0 0.0
    %4318 = vmatprep.subr.mxu0 0.0
    %4319 = vmatpush1.msra.mxu0 0.0
    %4320 = vmatprep.mubr.f32.mxu0 0.0
    %4321 = vmatmul.mubr.f32.gmra.mrb[0].mxu0 %v4251
    %v4322 = vpop.f32.mrb[0].mxu0
    %v4323 = vadd.f32 %v4243, %v4322
    %v4324 = vpop.f32.mrb[0].mxu0
    %v4325 = vadd.f32 %v4247, %v4324
    %4326 = vmatprep.mubr.f32.mxu0 0.0
    %4327 = vmatmul.mubr.f32.gmra.mrb[0].mxu0 %v4254
    %v4328 = vpop.f32.mrb[0].mxu0
    %v4329 = vadd.f32 %v4243, %v4328
    %v4330 = vpop.f32.mrb[0].mxu0
    %v4331 = vadd.f32 %v4247, %v4330
    %4332 = vdwg.mxu0
    %v4333 = vmul.f32 %v4323, 0.35355338
    %v4334 = vmul.f32 %v4329, 0.35355338
    %v4335 = vlaneseq
    %v4336 = vshrl.u32 %v4335, 7
    %v4337 = vadd.s32 %v4336, 8
    %vm4338 = vcmp.lt.s32.totalorder %v4336, 0
    %v4339 = vsub.s32 0, %v4336
    %v4340 = vsel %vm4338, %v4339, %v4336
    %v4341 = vshrl.u32 %v4340, 1
    %v4342 = vand.u32 %v4340, 1
    %v4343 = vsub.s32 0, %v4342
    %v4344 = vsel %vm4338, %v4343, %v4342
    %vm4345 = vcmp.lt.s32.totalorder %v4337, 0
    %v4346 = vsub.s32 0, %v4337
    %v4347 = vsel %vm4345, %v4346, %v4337
    %v4348 = vshrl.u32 %v4347, 1
    %v4349 = vand.u32 %v4347, 1
    %v4350 = vsub.s32 0, %v4349
    %v4351 = vsel %vm4345, %v4350, %v4349
    %vm4352 = vcmp.ne.s32.totalorder %v4344, 0
    %vm4353 = vcmp.ne.s32.totalorder %v4351, 0
    %vm4354 = vcmp.lt.s32.totalorder %v4344, 0
    %vm4355 = vcmp.lt.s32.totalorder %v4351, 0
    %vm4356 = vmand %vm4354, %vm4352
    %vm4357 = vmand %vm4355, %vm4353
    %v4358 = vadd.s32 %v4344, 2
    %v4359 = vadd.s32 %v4351, 2
    %v4360 = vsel %vm4356, %v4358, %v4344
    %v4361 = vsel %vm4357, %v4359, %v4351
    %v4362 = vlaneseq
    %v4363 = vand.u32 %v4362, 127
    %vm4364 = vcmp.lt.s32.totalorder %v4363, 0
    %v4365 = vsub.s32 0, %v4363
    %v4366 = vsel %vm4364, %v4365, %v4363
    %v4367 = vshrl.u32 %v4366, 1
    %v4368 = vand.u32 %v4366, 1
    %v4369 = vsub.s32 0, %v4368
    %v4370 = vsel %vm4364, %v4369, %v4368
    %vm4371 = vcmp.ne.s32.totalorder %v4370, 0
    %vm4372 = vcmp.lt.s32.totalorder %v4370, 0
    %vm4373 = vmand %vm4372, %vm4371
    %v4374 = vadd.s32 %v4370, 2
    %v4375 = vsel %vm4373, %v4374, %v4370
    %vm4376 = vcmp.eq.s32.totalorder %v4360, %v4375
    %vm4377 = vcmp.eq.s32.totalorder %v4361, %v4375
    %v4378 = vsel %vm4376, 0.0, -1e+30
    %v4379 = vsel %vm4377, 0.0, -1e+30
    %v4380 = vld [vmem:[#allocation15] sm:$0xff]
    %v4381 = vld [vmem:[#allocation15 + $0x8] sm:$0xff]
    %v4382 = vld [vmem:[#allocation15 + $0x10] sm:$0xff]
    %v4383 = vld [vmem:[#allocation15 + $0x18] sm:$0xff]
    %v4384 = vld [vmem:[#allocation15 + $0x20] sm:$0xff]
    %v4385 = vld [vmem:[#allocation15 + $0x28] sm:$0xff]
    %v4386 = vld [vmem:[#allocation15 + $0x30] sm:$0xff]
    %v4387 = vld [vmem:[#allocation15 + $0x38] sm:$0xff]
    %4390 = vrot.lane.b32.xlu0 %v4323, 64
    %v4391 = vpop.permute.xlu0 %4390
    %4392 = vrot.lane.b32.xlu0 %v4329, 64
    %v4393 = vpop.permute.xlu0 %4392
    %vm4394 = vcmask 64512
    %v4396 = vsel %vm4394, %v4333, 0
    %v4399 = vsel %vm4394, %v4334, 0
    %v4401 = vsel %vm4394, %v4391, 0
    %v4403 = vsel %vm4394, %v4393, 0
    %4405 = vmatprep.subr.mxu0 0.0
    %4406 = vmatpush1.xpose.msra.mxu0 %v4401
    %4407 = vmatprep.subr.mxu0 0.0
    %4408 = vmatpush1.xpose.msra.mxu0 %v4403
    %4409 = vmatprep.subr.mxu0 0.0
    %4410 = vmatpush1.xpose.msra.mxu0 0.0
    %4411 = vmatprep.subr.mxu0 0.0
    %4412 = vmatpush1.xpose.msra.mxu0 0.0
    %4413 = vmatprep.subr.mxu0 0.0
    %4414 = vmatpush1.xpose.msra.mxu0 0.0
    %4415 = vmatprep.subr.mxu0 0.0
    %4416 = vmatpush1.xpose.msra.mxu0 0.0
    %4417 = vmatprep.subr.mxu0 0.0
    %4418 = vmatpush1.xpose.msra.mxu0 0.0
    %4419 = vmatprep.subr.mxu0 0.0
    %4420 = vmatpush1.xpose.msra.mxu0 0.0
    %4421 = vmatprep.subr.mxu0 0.0
    %4422 = vmatpush1.xpose.msra.mxu0 0.0
    %4423 = vmatprep.subr.mxu0 0.0
    %4424 = vmatpush1.xpose.msra.mxu0 0.0
    %4425 = vmatprep.subr.mxu0 0.0
    %4426 = vmatpush1.xpose.msra.mxu0 0.0
    %4427 = vmatprep.subr.mxu0 0.0
    %4428 = vmatpush1.xpose.msra.mxu0 0.0
    %4429 = vmatprep.subr.mxu0 0.0
    %4430 = vmatpush1.xpose.msra.mxu0 0.0
    %4431 = vmatprep.subr.mxu0 0.0
    %4432 = vmatpush1.xpose.msra.mxu0 0.0
    %4433 = vmatprep.subr.mxu0 0.0
    %4434 = vmatpush1.xpose.msra.mxu0 0.0
    %4435 = vmatprep.subr.mxu0 0.0
    %4436 = vmatpush1.xpose.msra.mxu0 0.0
    %4437 = vmatprep.subr.mxu0 0.0
    %4438 = vmatpush1.xpose.msra.mxu0 0.0
    %4439 = vmatprep.subr.mxu0 0.0
    %4440 = vmatpush1.xpose.msra.mxu0 0.0
    %4441 = vmatprep.subr.mxu0 0.0
    %4442 = vmatpush1.xpose.msra.mxu0 0.0
    %4443 = vmatprep.subr.mxu0 0.0
    %4444 = vmatpush1.xpose.msra.mxu0 0.0
    %4445 = vmatprep.subr.mxu0 0.0
    %4446 = vmatpush1.xpose.msra.mxu0 0.0
    %4447 = vmatprep.subr.mxu0 0.0
    %4448 = vmatpush1.xpose.msra.mxu0 0.0
    %4449 = vmatprep.subr.mxu0 0.0
    %4450 = vmatpush1.xpose.msra.mxu0 0.0
    %4451 = vmatprep.subr.mxu0 0.0
    %4452 = vmatpush1.xpose.msra.mxu0 0.0
    %4453 = vmatprep.subr.mxu0 0.0
    %4454 = vmatpush1.xpose.msra.mxu0 0.0
    %4455 = vmatprep.subr.mxu0 0.0
    %4456 = vmatpush1.xpose.msra.mxu0 0.0
    %4457 = vmatprep.subr.mxu0 0.0
    %4458 = vmatpush1.xpose.msra.mxu0 0.0
    %4459 = vmatprep.subr.mxu0 0.0
    %4460 = vmatpush1.xpose.msra.mxu0 0.0
    %4461 = vmatprep.subr.mxu0 0.0
    %4462 = vmatpush1.xpose.msra.mxu0 0.0
    %4463 = vmatprep.subr.mxu0 0.0
    %4464 = vmatpush1.xpose.msra.mxu0 0.0
    %4465 = vmatprep.subr.mxu0 0.0
    %4466 = vmatpush1.xpose.msra.mxu0 0.0
    %4467 = vmatprep.subr.mxu0 0.0
    %4468 = vmatpush1.xpose.msra.mxu0 0.0
    %4469 = vmatprep.mubr.f32.mxu0 0.0
    %4470 = vmatmul.mubr.f32.gmra.mrb[0].mxu0 %v4396
    %v4471 = vpop.f32.mrb[0].mxu0
    %v4472 = vadd.f32 %v4378, %v4471
    %v4473 = vpop.f32.mrb[0].mxu0
    %4474 = vmatprep.mubr.f32.mxu0 0.0
    %4475 = vmatmul.mubr.f32.gmra.mrb[0].mxu0 %v4399
    %v4476 = vpop.f32.mrb[0].mxu0
    %v4477 = vadd.f32 %v4379, %v4476
    %v4478 = vpop.f32.mrb[0].mxu0
    %4479 = vdwg.mxu0
    %vm4480 = vcmask 130048
    %v4481 = vsel %vm4480, %v4472, -inf
    %4482 = vmax.xlane.f32.xlu0 %v4481
    %v4483 = vpop.xlane.xlu0 %4482
    %v4484 = vsel %vm4480, %v4477, -inf
    %4485 = vmax.xlane.f32.xlu0 %v4484
    %v4486 = vpop.xlane.xlu0 %4485
    %v4487 = vsub.f32 %v4472, %v4483
    %v4488 = vsub.f32 %v4477, %v4486
    %v4489 = vmul.f32 %v4487, 1.442695
    %v4490 = vpow.pop %v4489
    %v4491 = vmul.f32 %v4488, 1.442695
    %v4492 = vpow.pop %v4491
    %v4493 = vsel %vm4480, %v4490, 0.0
    %4494 = vadd.xlane.f32.xlu0 %v4493
    %v4495 = vpop.xlane.xlu0 %4494
    %v4496 = vsel %vm4480, %v4492, 0.0
    %4497 = vadd.xlane.f32.xlu0 %v4496
    %v4498 = vpop.xlane.xlu0 %4497
    %v4499 = vrcp.pop %v4495
    %v4500 = vmul.f32 %v4490, %v4499
    %v4501 = vrcp.pop %v4498
    %v4502 = vmul.f32 %v4492, %v4501
    %v4504 = vsel %vm4480, %v4500, 0
    %v4507 = vsel %vm4480, %v4502, 0
    %4509 = vmatprep.subr.mxu0 0.0
    %4510 = vmatpush1.msra.mxu0 %v4325
    %4511 = vmatprep.subr.mxu0 0.0
    %4512 = vmatpush1.msra.mxu0 %v4331
    %4513 = vmatprep.subr.mxu0 0.0
    %4514 = vmatpush1.msra.mxu0 0.0
    %4515 = vmatprep.subr.mxu0 0.0
    %4516 = vmatpush1.msra.mxu0 0.0
    %4517 = vmatprep.subr.mxu0 0.0
    %4518 = vmatpush1.msra.mxu0 0.0
    %4519 = vmatprep.subr.mxu0 0.0
    %4520 = vmatpush1.msra.mxu0 0.0
    %4521 = vmatprep.subr.mxu0 0.0
    %4522 = vmatpush1.msra.mxu0 0.0
    %4523 = vmatprep.subr.mxu0 0.0
    %4524 = vmatpush1.msra.mxu0 0.0
    %4525 = vmatprep.subr.mxu0 0.0
    %4526 = vmatpush1.msra.mxu0 0.0
    %4527 = vmatprep.subr.mxu0 0.0
    %4528 = vmatpush1.msra.mxu0 0.0
    %4529 = vmatprep.subr.mxu0 0.0
    %4530 = vmatpush1.msra.mxu0 0.0
    %4531 = vmatprep.subr.mxu0 0.0
    %4532 = vmatpush1.msra.mxu0 0.0
    %4533 = vmatprep.subr.mxu0 0.0
    %4534 = vmatpush1.msra.mxu0 0.0
    %4535 = vmatprep.subr.mxu0 0.0
    %4536 = vmatpush1.msra.mxu0 0.0
    %4537 = vmatprep.subr.mxu0 0.0
    %4538 = vmatpush1.msra.mxu0 0.0
    %4539 = vmatprep.subr.mxu0 0.0
    %4540 = vmatpush1.msra.mxu0 0.0
    %4541 = vmatprep.subr.mxu0 0.0
    %4542 = vmatpush1.msra.mxu0 0.0
    %4543 = vmatprep.subr.mxu0 0.0
    %4544 = vmatpush1.msra.mxu0 0.0
    %4545 = vmatprep.subr.mxu0 0.0
    %4546 = vmatpush1.msra.mxu0 0.0
    %4547 = vmatprep.subr.mxu0 0.0
    %4548 = vmatpush1.msra.mxu0 0.0
    %4549 = vmatprep.subr.mxu0 0.0
    %4550 = vmatpush1.msra.mxu0 0.0
    %4551 = vmatprep.subr.mxu0 0.0
    %4552 = vmatpush1.msra.mxu0 0.0
    %4553 = vmatprep.subr.mxu0 0.0
    %4554 = vmatpush1.msra.mxu0 0.0
    %4555 = vmatprep.subr.mxu0 0.0
    %4556 = vmatpush1.msra.mxu0 0.0
    %4557 = vmatprep.subr.mxu0 0.0
    %4558 = vmatpush1.msra.mxu0 0.0
    %4559 = vmatprep.subr.mxu0 0.0
    %4560 = vmatpush1.msra.mxu0 0.0
    %4561 = vmatprep.subr.mxu0 0.0
    %4562 = vmatpush1.msra.mxu0 0.0
    %4563 = vmatprep.subr.mxu0 0.0
    %4564 = vmatpush1.msra.mxu0 0.0
    %4565 = vmatprep.subr.mxu0 0.0
    %4566 = vmatpush1.msra.mxu0 0.0
    %4567 = vmatprep.subr.mxu0 0.0
    %4568 = vmatpush1.msra.mxu0 0.0
    %4569 = vmatprep.subr.mxu0 0.0
    %4570 = vmatpush1.msra.mxu0 0.0
    %4571 = vmatprep.subr.mxu0 0.0
    %4572 = vmatpush1.msra.mxu0 0.0
    %4573 = vmatprep.mubr.f32.mxu0 0.0
    %4574 = vmatmul.mubr.f32.gmra.mrb[0].mxu0 %v4504
    %v4575 = vpop.f32.mrb[0].mxu0
    %v4576 = vadd.f32 0.0, %v4575
    %v4577 = vpop.f32.mrb[0].mxu0
    %4578 = vmatprep.mubr.f32.mxu0 0.0
    %4579 = vmatmul.mubr.f32.gmra.mrb[0].mxu0 %v4507
    %v4580 = vpop.f32.mrb[0].mxu0
    %v4581 = vadd.f32 0.0, %v4580
    %v4582 = vpop.f32.mrb[0].mxu0
    %4583 = vdwg.mxu0
    %4584 = vrot.lane.b32.xlu0 %v4333, 120
    %v4585 = vpop.permute.xlu0 %4584
    %4586 = vrot.lane.b32.xlu0 %v4334, 120
    %v4587 = vpop.permute.xlu0 %4586
    %4588 = vrot.lane.b32.xlu0 %v4323, 56
    %v4589 = vpop.permute.xlu0 %4588
    %4590 = vrot.lane.b32.xlu0 %v4329, 56
    %v4591 = vpop.permute.xlu0 %4590
    %v4592 = vsel %vm4394, %v4585, 0
    %v4594 = vsel %vm4394, %v4587, 0
    %v4596 = vsel %vm4394, %v4589, 0
    %v4598 = vsel %vm4394, %v4591, 0
    %4600 = vmatprep.subr.mxu0 0.0
    %4601 = vmatpush1.xpose.msra.mxu0 %v4596
    %4602 = vmatprep.subr.mxu0 0.0
    %4603 = vmatpush1.xpose.msra.mxu0 %v4598
    %4604 = vmatprep.subr.mxu0 0.0
    %4605 = vmatpush1.xpose.msra.mxu0 0.0
    %4606 = vmatprep.subr.mxu0 0.0
    %4607 = vmatpush1.xpose.msra.mxu0 0.0
    %4608 = vmatprep.subr.mxu0 0.0
    %4609 = vmatpush1.xpose.msra.mxu0 0.0
    %4610 = vmatprep.subr.mxu0 0.0
    %4611 = vmatpush1.xpose.msra.mxu0 0.0
    %4612 = vmatprep.subr.mxu0 0.0
    %4613 = vmatpush1.xpose.msra.mxu0 0.0
    %4614 = vmatprep.subr.mxu0 0.0
    %4615 = vmatpush1.xpose.msra.mxu0 0.0
    %4616 = vmatprep.subr.mxu0 0.0
    %4617 = vmatpush1.xpose.msra.mxu0 0.0
    %4618 = vmatprep.subr.mxu0 0.0
    %4619 = vmatpush1.xpose.msra.mxu0 0.0
    %4620 = vmatprep.subr.mxu0 0.0
    %4621 = vmatpush1.xpose.msra.mxu0 0.0
    %4622 = vmatprep.subr.mxu0 0.0
    %4623 = vmatpush1.xpose.msra.mxu0 0.0
    %4624 = vmatprep.subr.mxu0 0.0
    %4625 = vmatpush1.xpose.msra.mxu0 0.0
    %4626 = vmatprep.subr.mxu0 0.0
    %4627 = vmatpush1.xpose.msra.mxu0 0.0
    %4628 = vmatprep.subr.mxu0 0.0
    %4629 = vmatpush1.xpose.msra.mxu0 0.0
    %4630 = vmatprep.subr.mxu0 0.0
    %4631 = vmatpush1.xpose.msra.mxu0 0.0
    %4632 = vmatprep.subr.mxu0 0.0
    %4633 = vmatpush1.xpose.msra.mxu0 0.0
    %4634 = vmatprep.subr.mxu0 0.0
    %4635 = vmatpush1.xpose.msra.mxu0 0.0
    %4636 = vmatprep.subr.mxu0 0.0
    %4637 = vmatpush1.xpose.msra.mxu0 0.0
    %4638 = vmatprep.subr.mxu0 0.0
    %4639 = vmatpush1.xpose.msra.mxu0 0.0
    %4640 = vmatprep.subr.mxu0 0.0
    %4641 = vmatpush1.xpose.msra.mxu0 0.0
    %4642 = vmatprep.subr.mxu0 0.0
    %4643 = vmatpush1.xpose.msra.mxu0 0.0
    %4644 = vmatprep.subr.mxu0 0.0
    %4645 = vmatpush1.xpose.msra.mxu0 0.0
    %4646 = vmatprep.subr.mxu0 0.0
    %4647 = vmatpush1.xpose.msra.mxu0 0.0
    %4648 = vmatprep.subr.mxu0 0.0
    %4649 = vmatpush1.xpose.msra.mxu0 0.0
    %4650 = vmatprep.subr.mxu0 0.0
    %4651 = vmatpush1.xpose.msra.mxu0 0.0
    %4652 = vmatprep.subr.mxu0 0.0
    %4653 = vmatpush1.xpose.msra.mxu0 0.0
    %4654 = vmatprep.subr.mxu0 0.0
    %4655 = vmatpush1.xpose.msra.mxu0 0.0
    %4656 = vmatprep.subr.mxu0 0.0
    %4657 = vmatpush1.xpose.msra.mxu0 0.0
    %4658 = vmatprep.subr.mxu0 0.0
    %4659 = vmatpush1.xpose.msra.mxu0 0.0
    %4660 = vmatprep.subr.mxu0 0.0
    %4661 = vmatpush1.xpose.msra.mxu0 0.0
    %4662 = vmatprep.subr.mxu0 0.0
    %4663 = vmatpush1.xpose.msra.mxu0 0.0
    %4664 = vmatprep.mubr.f32.mxu0 0.0
    %4665 = vmatmul.mubr.f32.gmra.mrb[0].mxu0 %v4592
    %v4666 = vpop.f32.mrb[0].mxu0
    %v4667 = vadd.f32 %v4378, %v4666
    %v4668 = vpop.f32.mrb[0].mxu0
    %4669 = vmatprep.mubr.f32.mxu0 0.0
    %4670 = vmatmul.mubr.f32.gmra.mrb[0].mxu0 %v4594
    %v4671 = vpop.f32.mrb[0].mxu0
    %v4672 = vadd.f32 %v4379, %v4671
    %v4673 = vpop.f32.mrb[0].mxu0
    %4674 = vdwg.mxu0
    %v4675 = vsel %vm4480, %v4667, -inf
    %4676 = vmax.xlane.f32.xlu0 %v4675
    %v4677 = vpop.xlane.xlu0 %4676
    %v4678 = vsel %vm4480, %v4672, -inf
    %4679 = vmax.xlane.f32.xlu0 %v4678
    %v4680 = vpop.xlane.xlu0 %4679
    %v4681 = vsub.f32 %v4667, %v4677
    %v4682 = vsub.f32 %v4672, %v4680
    %v4683 = vmul.f32 %v4681, 1.442695
    %v4684 = vpow.pop %v4683
    %v4685 = vmul.f32 %v4682, 1.442695
    %v4686 = vpow.pop %v4685
    %v4687 = vsel %vm4480, %v4684, 0.0
    %4688 = vadd.xlane.f32.xlu0 %v4687
    %v4689 = vpop.xlane.xlu0 %4688
    %v4690 = vsel %vm4480, %v4686, 0.0
    %4691 = vadd.xlane.f32.xlu0 %v4690
    %v4692 = vpop.xlane.xlu0 %4691
    %v4693 = vrcp.pop %v4689
    %v4694 = vmul.f32 %v4684, %v4693
    %v4695 = vrcp.pop %v4692
    %v4696 = vmul.f32 %v4686, %v4695
    %4699 = vrot.lane.b32.xlu0 %v4325, 120
    %v4700 = vpop.permute.xlu0 %4699
    %4701 = vrot.lane.b32.xlu0 %v4331, 120
    %v4702 = vpop.permute.xlu0 %4701
    %v4706 = vsel %vm4480, %v4694, 0
    %v4709 = vsel %vm4480, %v4696, 0
    %4711 = vmatprep.subr.mxu0 0.0
    %4712 = vmatpush1.msra.mxu0 %v4700
    %4713 = vmatprep.subr.mxu0 0.0
    %4714 = vmatpush1.msra.mxu0 %v4702
    %4715 = vmatprep.subr.mxu0 0.0
    %4716 = vmatpush1.msra.mxu0 0.0
    %4717 = vmatprep.subr.mxu0 0.0
    %4718 = vmatpush1.msra.mxu0 0.0
    %4719 = vmatprep.subr.mxu0 0.0
    %4720 = vmatpush1.msra.mxu0 0.0
    %4721 = vmatprep.subr.mxu0 0.0
    %4722 = vmatpush1.msra.mxu0 0.0
    %4723 = vmatprep.subr.mxu0 0.0
    %4724 = vmatpush1.msra.mxu0 0.0
    %4725 = vmatprep.subr.mxu0 0.0
    %4726 = vmatpush1.msra.mxu0 0.0
    %4727 = vmatprep.subr.mxu0 0.0
    %4728 = vmatpush1.msra.mxu0 0.0
    %4729 = vmatprep.subr.mxu0 0.0
    %4730 = vmatpush1.msra.mxu0 0.0
    %4731 = vmatprep.subr.mxu0 0.0
    %4732 = vmatpush1.msra.mxu0 0.0
    %4733 = vmatprep.subr.mxu0 0.0
    %4734 = vmatpush1.msra.mxu0 0.0
    %4735 = vmatprep.subr.mxu0 0.0
    %4736 = vmatpush1.msra.mxu0 0.0
    %4737 = vmatprep.subr.mxu0 0.0
    %4738 = vmatpush1.msra.mxu0 0.0
    %4739 = vmatprep.subr.mxu0 0.0
    %4740 = vmatpush1.msra.mxu0 0.0
    %4741 = vmatprep.subr.mxu0 0.0
    %4742 = vmatpush1.msra.mxu0 0.0
    %4743 = vmatprep.subr.mxu0 0.0
    %4744 = vmatpush1.msra.mxu0 0.0
    %4745 = vmatprep.subr.mxu0 0.0
    %4746 = vmatpush1.msra.mxu0 0.0
    %4747 = vmatprep.subr.mxu0 0.0
    %4748 = vmatpush1.msra.mxu0 0.0
    %4749 = vmatprep.subr.mxu0 0.0
    %4750 = vmatpush1.msra.mxu0 0.0
    %4751 = vmatprep.subr.mxu0 0.0
    %4752 = vmatpush1.msra.mxu0 0.0
    %4753 = vmatprep.subr.mxu0 0.0
    %4754 = vmatpush1.msra.mxu0 0.0
    %4755 = vmatprep.subr.mxu0 0.0
    %4756 = vmatpush1.msra.mxu0 0.0
    %4757 = vmatprep.subr.mxu0 0.0
    %4758 = vmatpush1.msra.mxu0 0.0
    %4759 = vmatprep.subr.mxu0 0.0
    %4760 = vmatpush1.msra.mxu0 0.0
    %4761 = vmatprep.subr.mxu0 0.0
    %4762 = vmatpush1.msra.mxu0 0.0
    %4763 = vmatprep.subr.mxu0 0.0
    %4764 = vmatpush1.msra.mxu0 0.0
    %4765 = vmatprep.subr.mxu0 0.0
    %4766 = vmatpush1.msra.mxu0 0.0
    %4767 = vmatprep.subr.mxu0 0.0
    %4768 = vmatpush1.msra.mxu0 0.0
    %4769 = vmatprep.subr.mxu0 0.0
    %4770 = vmatpush1.msra.mxu0 0.0
    %4771 = vmatprep.subr.mxu0 0.0
    %4772 = vmatpush1.msra.mxu0 0.0
    %4773 = vmatprep.subr.mxu0 0.0
    %4774 = vmatpush1.msra.mxu0 0.0
    %4775 = vmatprep.mubr.f32.mxu0 0.0
    %4776 = vmatmul.mubr.f32.gmra.mrb[0].mxu0 %v4706
    %v4777 = vpop.f32.mrb[0].mxu0
    %v4778 = vadd.f32 0.0, %v4777
    %v4779 = vpop.f32.mrb[0].mxu0
    %4780 = vmatprep.mubr.f32.mxu0 0.0
    %4781 = vmatmul.mubr.f32.gmra.mrb[0].mxu0 %v4709
    %v4782 = vpop.f32.mrb[0].mxu0
    %v4783 = vadd.f32 0.0, %v4782
    %v4784 = vpop.f32.mrb[0].mxu0
    %4785 = vdwg.mxu0
    %v4787 = vsel %vm4394, %v4778, 0
    %v4790 = vsel %vm4394, %v4783, 0
    %4792 = vmatprep.subr.mxu0 0.0
    %4793 = vmatpush1.msra.mxu0 %v4381
    %4794 = vmatprep.subr.mxu0 0.0
    %4795 = vmatpush1.msra.mxu0 0.0
    %4796 = vmatprep.subr.mxu0 0.0
    %4797 = vmatpush1.msra.mxu0 0.0
    %4798 = vmatprep.subr.mxu0 0.0
    %4799 = vmatpush1.msra.mxu0 0.0
    %4800 = vmatprep.subr.mxu0 0.0
    %4801 = vmatpush1.msra.mxu0 0.0
    %4802 = vmatprep.subr.mxu0 0.0
    %4803 = vmatpush1.msra.mxu0 0.0
    %4804 = vmatprep.subr.mxu0 0.0
    %4805 = vmatpush1.msra.mxu0 0.0
    %4806 = vmatprep.subr.mxu0 0.0
    %4807 = vmatpush1.msra.mxu0 0.0
    %4808 = vmatprep.subr.mxu0 0.0
    %4809 = vmatpush1.msra.mxu0 0.0
    %4810 = vmatprep.subr.mxu0 0.0
    %4811 = vmatpush1.msra.mxu0 0.0
    %4812 = vmatprep.subr.mxu0 0.0
    %4813 = vmatpush1.msra.mxu0 0.0
    %4814 = vmatprep.subr.mxu0 0.0
    %4815 = vmatpush1.msra.mxu0 0.0
    %4816 = vmatprep.subr.mxu0 0.0
    %4817 = vmatpush1.msra.mxu0 0.0
    %4818 = vmatprep.subr.mxu0 0.0
    %4819 = vmatpush1.msra.mxu0 0.0
    %4820 = vmatprep.subr.mxu0 0.0
    %4821 = vmatpush1.msra.mxu0 0.0
    %4822 = vmatprep.subr.mxu0 0.0
    %4823 = vmatpush1.msra.mxu0 0.0
    %4824 = vmatprep.subr.mxu0 0.0
    %4825 = vmatpush1.msra.mxu0 0.0
    %4826 = vmatprep.subr.mxu0 0.0
    %4827 = vmatpush1.msra.mxu0 0.0
    %4828 = vmatprep.subr.mxu0 0.0
    %4829 = vmatpush1.msra.mxu0 0.0
    %4830 = vmatprep.subr.mxu0 0.0
    %4831 = vmatpush1.msra.mxu0 0.0
    %4832 = vmatprep.subr.mxu0 0.0
    %4833 = vmatpush1.msra.mxu0 0.0
    %4834 = vmatprep.subr.mxu0 0.0
    %4835 = vmatpush1.msra.mxu0 0.0
    %4836 = vmatprep.subr.mxu0 0.0
    %4837 = vmatpush1.msra.mxu0 0.0
    %4838 = vmatprep.subr.mxu0 0.0
    %4839 = vmatpush1.msra.mxu0 0.0
    %4840 = vmatprep.subr.mxu0 0.0
    %4841 = vmatpush1.msra.mxu0 0.0
    %4842 = vmatprep.subr.mxu0 0.0
    %4843 = vmatpush1.msra.mxu0 0.0
    %4844 = vmatprep.subr.mxu0 0.0
    %4845 = vmatpush1.msra.mxu0 0.0
    %4846 = vmatprep.subr.mxu0 0.0
    %4847 = vmatpush1.msra.mxu0 0.0
    %4848 = vmatprep.subr.mxu0 0.0
    %4849 = vmatpush1.msra.mxu0 0.0
    %4850 = vmatprep.subr.mxu0 0.0
    %4851 = vmatpush1.msra.mxu0 0.0
    %4852 = vmatprep.subr.mxu0 0.0
    %4853 = vmatpush1.msra.mxu0 0.0
    %4854 = vmatprep.subr.mxu0 0.0
    %4855 = vmatpush1.msra.mxu0 0.0
    %4856 = vmatprep.mubr.f32.mxu0 0.0
    %4857 = vmatmul.mubr.f32.gmra.mrb[0].mxu0 %v4787
    %v4858 = vpop.f32.mrb[0].mxu0
    %v4859 = vadd.f32 0.0, %v4858
    %v4860 = vpop.f32.mrb[0].mxu0
    %4861 = vmatprep.mubr.f32.mxu0 0.0
    %4862 = vmatmul.mubr.f32.gmra.mrb[0].mxu0 %v4790
    %v4863 = vpop.f32.mrb[0].mxu0
    %v4864 = vadd.f32 0.0, %v4863
    %v4865 = vpop.f32.mrb[0].mxu0
    %4866 = vdwg.mxu0
    %v4868 = vsel %vm4394, %v4576, 0
    %v4871 = vsel %vm4394, %v4581, 0
    %4873 = vmatprep.subr.mxu0 0.0
    %4874 = vmatpush1.msra.mxu0 %v4380
    %4875 = vmatprep.subr.mxu0 0.0
    %4876 = vmatpush1.msra.mxu0 0.0
    %4877 = vmatprep.subr.mxu0 0.0
    %4878 = vmatpush1.msra.mxu0 0.0
    %4879 = vmatprep.subr.mxu0 0.0
    %4880 = vmatpush1.msra.mxu0 0.0
    %4881 = vmatprep.subr.mxu0 0.0
    %4882 = vmatpush1.msra.mxu0 0.0
    %4883 = vmatprep.subr.mxu0 0.0
    %4884 = vmatpush1.msra.mxu0 0.0
    %4885 = vmatprep.subr.mxu0 0.0
    %4886 = vmatpush1.msra.mxu0 0.0
    %4887 = vmatprep.subr.mxu0 0.0
    %4888 = vmatpush1.msra.mxu0 0.0
    %4889 = vmatprep.subr.mxu0 0.0
    %4890 = vmatpush1.msra.mxu0 0.0
    %4891 = vmatprep.subr.mxu0 0.0
    %4892 = vmatpush1.msra.mxu0 0.0
    %4893 = vmatprep.subr.mxu0 0.0
    %4894 = vmatpush1.msra.mxu0 0.0
    %4895 = vmatprep.subr.mxu0 0.0
    %4896 = vmatpush1.msra.mxu0 0.0
    %4897 = vmatprep.subr.mxu0 0.0
    %4898 = vmatpush1.msra.mxu0 0.0
    %4899 = vmatprep.subr.mxu0 0.0
    %4900 = vmatpush1.msra.mxu0 0.0
    %4901 = vmatprep.subr.mxu0 0.0
    %4902 = vmatpush1.msra.mxu0 0.0
    %4903 = vmatprep.subr.mxu0 0.0
    %4904 = vmatpush1.msra.mxu0 0.0
    %4905 = vmatprep.subr.mxu0 0.0
    %4906 = vmatpush1.msra.mxu0 0.0
    %4907 = vmatprep.subr.mxu0 0.0
    %4908 = vmatpush1.msra.mxu0 0.0
    %4909 = vmatprep.subr.mxu0 0.0
    %4910 = vmatpush1.msra.mxu0 0.0
    %4911 = vmatprep.subr.mxu0 0.0
    %4912 = vmatpush1.msra.mxu0 0.0
    %4913 = vmatprep.subr.mxu0 0.0
    %4914 = vmatpush1.msra.mxu0 0.0
    %4915 = vmatprep.subr.mxu0 0.0
    %4916 = vmatpush1.msra.mxu0 0.0
    %4917 = vmatprep.subr.mxu0 0.0
    %4918 = vmatpush1.msra.mxu0 0.0
    %4919 = vmatprep.subr.mxu0 0.0
    %4920 = vmatpush1.msra.mxu0 0.0
    %4921 = vmatprep.subr.mxu0 0.0
    %4922 = vmatpush1.msra.mxu0 0.0
    %4923 = vmatprep.subr.mxu0 0.0
    %4924 = vmatpush1.msra.mxu0 0.0
    %4925 = vmatprep.subr.mxu0 0.0
    %4926 = vmatpush1.msra.mxu0 0.0
    %4927 = vmatprep.subr.mxu0 0.0
    %4928 = vmatpush1.msra.mxu0 0.0
    %4929 = vmatprep.subr.mxu0 0.0
    %4930 = vmatpush1.msra.mxu0 0.0
    %4931 = vmatprep.subr.mxu0 0.0
    %4932 = vmatpush1.msra.mxu0 0.0
    %4933 = vmatprep.subr.mxu0 0.0
    %4934 = vmatpush1.msra.mxu0 0.0
    %4935 = vmatprep.subr.mxu0 0.0
    %4936 = vmatpush1.msra.mxu0 0.0
    %4937 = vmatprep.mubr.f32.mxu0 0.0
    %4938 = vmatmul.mubr.f32.gmra.mrb[0].mxu0 %v4868
    %v4939 = vpop.f32.mrb[0].mxu0
    %v4940 = vadd.f32 %v4859, %v4939
    %v4941 = vpop.f32.mrb[0].mxu0
    %4942 = vmatprep.mubr.f32.mxu0 0.0
    %4943 = vmatmul.mubr.f32.gmra.mrb[0].mxu0 %v4871
    %v4944 = vpop.f32.mrb[0].mxu0
    %v4945 = vadd.f32 %v4864, %v4944
    %v4946 = vpop.f32.mrb[0].mxu0
    %4947 = vdwg.mxu0
    %4948 = vrot.lane.b32.xlu0 %v4333, 112
    %v4949 = vpop.permute.xlu0 %4948
    %4950 = vrot.lane.b32.xlu0 %v4334, 112
    %v4951 = vpop.permute.xlu0 %4950
    %4952 = vrot.lane.b32.xlu0 %v4323, 48
    %v4953 = vpop.permute.xlu0 %4952
    %4954 = vrot.lane.b32.xlu0 %v4329, 48
    %v4955 = vpop.permute.xlu0 %4954
    %v4956 = vsel %vm4394, %v4949, 0
    %v4958 = vsel %vm4394, %v4951, 0
    %v4960 = vsel %vm4394, %v4953, 0
    %v4962 = vsel %vm4394, %v4955, 0
    %4964 = vmatprep.subr.mxu0 0.0
    %4965 = vmatpush1.xpose.msra.mxu0 %v4960
    %4966 = vmatprep.subr.mxu0 0.0
    %4967 = vmatpush1.xpose.msra.mxu0 %v4962
    %4968 = vmatprep.subr.mxu0 0.0
    %4969 = vmatpush1.xpose.msra.mxu0 0.0
    %4970 = vmatprep.subr.mxu0 0.0
    %4971 = vmatpush1.xpose.msra.mxu0 0.0
    %4972 = vmatprep.subr.mxu0 0.0
    %4973 = vmatpush1.xpose.msra.mxu0 0.0
    %4974 = vmatprep.subr.mxu0 0.0
    %4975 = vmatpush1.xpose.msra.mxu0 0.0
    %4976 = vmatprep.subr.mxu0 0.0
    %4977 = vmatpush1.xpose.msra.mxu0 0.0
    %4978 = vmatprep.subr.mxu0 0.0
    %4979 = vmatpush1.xpose.msra.mxu0 0.0
    %4980 = vmatprep.subr.mxu0 0.0
    %4981 = vmatpush1.xpose.msra.mxu0 0.0
    %4982 = vmatprep.subr.mxu0 0.0
    %4983 = vmatpush1.xpose.msra.mxu0 0.0
    %4984 = vmatprep.subr.mxu0 0.0
    %4985 = vmatpush1.xpose.msra.mxu0 0.0
    %4986 = vmatprep.subr.mxu0 0.0
    %4987 = vmatpush1.xpose.msra.mxu0 0.0
    %4988 = vmatprep.subr.mxu0 0.0
    %4989 = vmatpush1.xpose.msra.mxu0 0.0
    %4990 = vmatprep.subr.mxu0 0.0
    %4991 = vmatpush1.xpose.msra.mxu0 0.0
    %4992 = vmatprep.subr.mxu0 0.0
    %4993 = vmatpush1.xpose.msra.mxu0 0.0
    %4994 = vmatprep.subr.mxu0 0.0
    %4995 = vmatpush1.xpose.msra.mxu0 0.0
    %4996 = vmatprep.subr.mxu0 0.0
    %4997 = vmatpush1.xpose.msra.mxu0 0.0
    %4998 = vmatprep.subr.mxu0 0.0
    %4999 = vmatpush1.xpose.msra.mxu0 0.0
    %5000 = vmatprep.subr.mxu0 0.0
    %5001 = vmatpush1.xpose.msra.mxu0 0.0
    %5002 = vmatprep.subr.mxu0 0.0
    %5003 = vmatpush1.xpose.msra.mxu0 0.0
    %5004 = vmatprep.subr.mxu0 0.0
    %5005 = vmatpush1.xpose.msra.mxu0 0.0
    %5006 = vmatprep.subr.mxu0 0.0
    %5007 = vmatpush1.xpose.msra.mxu0 0.0
    %5008 = vmatprep.subr.mxu0 0.0
    %5009 = vmatpush1.xpose.msra.mxu0 0.0
    %5010 = vmatprep.subr.mxu0 0.0
    %5011 = vmatpush1.xpose.msra.mxu0 0.0
    %5012 = vmatprep.subr.mxu0 0.0
    %5013 = vmatpush1.xpose.msra.mxu0 0.0
    %5014 = vmatprep.subr.mxu0 0.0
    %5015 = vmatpush1.xpose.msra.mxu0 0.0
    %5016 = vmatprep.subr.mxu0 0.0
    %5017 = vmatpush1.xpose.msra.mxu0 0.0
    %5018 = vmatprep.subr.mxu0 0.0
    %5019 = vmatpush1.xpose.msra.mxu0 0.0
    %5020 = vmatprep.subr.mxu0 0.0
    %5021 = vmatpush1.xpose.msra.mxu0 0.0
    %5022 = vmatprep.subr.mxu0 0.0
    %5023 = vmatpush1.xpose.msra.mxu0 0.0
    %5024 = vmatprep.subr.mxu0 0.0
    %5025 = vmatpush1.xpose.msra.mxu0 0.0
    %5026 = vmatprep.subr.mxu0 0.0
    %5027 = vmatpush1.xpose.msra.mxu0 0.0
    %5028 = vmatprep.mubr.f32.mxu0 0.0
    %5029 = vmatmul.mubr.f32.gmra.mrb[0].mxu0 %v4956
    %v5030 = vpop.f32.mrb[0].mxu0
    %v5031 = vadd.f32 %v4378, %v5030
    %v5032 = vpop.f32.mrb[0].mxu0
    %5033 = vmatprep.mubr.f32.mxu0 0.0
    %5034 = vmatmul.mubr.f32.gmra.mrb[0].mxu0 %v4958
    %v5035 = vpop.f32.mrb[0].mxu0
    %v5036 = vadd.f32 %v4379, %v5035
    %v5037 = vpop.f32.mrb[0].mxu0
    %5038 = vdwg.mxu0
    %v5039 = vsel %vm4480, %v5031, -inf
    %5040 = vmax.xlane.f32.xlu0 %v5039
    %v5041 = vpop.xlane.xlu0 %5040
    %v5042 = vsel %vm4480, %v5036, -inf
    %5043 = vmax.xlane.f32.xlu0 %v5042
    %v5044 = vpop.xlane.xlu0 %5043
    %v5045 = vsub.f32 %v5031, %v5041
    %v5046 = vsub.f32 %v5036, %v5044
    %v5047 = vmul.f32 %v5045, 1.442695
    %v5048 = vpow.pop %v5047
    %v5049 = vmul.f32 %v5046, 1.442695
    %v5050 = vpow.pop %v5049
    %v5051 = vsel %vm4480, %v5048, 0.0
    %5052 = vadd.xlane.f32.xlu0 %v5051
    %v5053 = vpop.xlane.xlu0 %5052
    %v5054 = vsel %vm4480, %v5050, 0.0
    %5055 = vadd.xlane.f32.xlu0 %v5054
    %v5056 = vpop.xlane.xlu0 %5055
    %v5057 = vrcp.pop %v5053
    %v5058 = vmul.f32 %v5048, %v5057
    %v5059 = vrcp.pop %v5056
    %v5060 = vmul.f32 %v5050, %v5059
    %5061 = vrot.lane.b32.xlu0 %v4325, 112
    %v5062 = vpop.permute.xlu0 %5061
    %5063 = vrot.lane.b32.xlu0 %v4331, 112
    %v5064 = vpop.permute.xlu0 %5063
    %v5068 = vsel %vm4480, %v5058, 0
    %v5071 = vsel %vm4480, %v5060, 0
    %5073 = vmatprep.subr.mxu0 0.0
    %5074 = vmatpush1.msra.mxu0 %v5062
    %5075 = vmatprep.subr.mxu0 0.0
    %5076 = vmatpush1.msra.mxu0 %v5064
    %5077 = vmatprep.subr.mxu0 0.0
    %5078 = vmatpush1.msra.mxu0 0.0
    %5079 = vmatprep.subr.mxu0 0.0
    %5080 = vmatpush1.msra.mxu0 0.0
    %5081 = vmatprep.subr.mxu0 0.0
    %5082 = vmatpush1.msra.mxu0 0.0
    %5083 = vmatprep.subr.mxu0 0.0
    %5084 = vmatpush1.msra.mxu0 0.0
    %5085 = vmatprep.subr.mxu0 0.0
    %5086 = vmatpush1.msra.mxu0 0.0
    %5087 = vmatprep.subr.mxu0 0.0
    %5088 = vmatpush1.msra.mxu0 0.0
    %5089 = vmatprep.subr.mxu0 0.0
    %5090 = vmatpush1.msra.mxu0 0.0
    %5091 = vmatprep.subr.mxu0 0.0
    %5092 = vmatpush1.msra.mxu0 0.0
    %5093 = vmatprep.subr.mxu0 0.0
    %5094 = vmatpush1.msra.mxu0 0.0
    %5095 = vmatprep.subr.mxu0 0.0
    %5096 = vmatpush1.msra.mxu0 0.0
    %5097 = vmatprep.subr.mxu0 0.0
    %5098 = vmatpush1.msra.mxu0 0.0
    %5099 = vmatprep.subr.mxu0 0.0
    %5100 = vmatpush1.msra.mxu0 0.0
    %5101 = vmatprep.subr.mxu0 0.0
    %5102 = vmatpush1.msra.mxu0 0.0
    %5103 = vmatprep.subr.mxu0 0.0
    %5104 = vmatpush1.msra.mxu0 0.0
    %5105 = vmatprep.subr.mxu0 0.0
    %5106 = vmatpush1.msra.mxu0 0.0
    %5107 = vmatprep.subr.mxu0 0.0
    %5108 = vmatpush1.msra.mxu0 0.0
    %5109 = vmatprep.subr.mxu0 0.0
    %5110 = vmatpush1.msra.mxu0 0.0
    %5111 = vmatprep.subr.mxu0 0.0
    %5112 = vmatpush1.msra.mxu0 0.0
    %5113 = vmatprep.subr.mxu0 0.0
    %5114 = vmatpush1.msra.mxu0 0.0
    %5115 = vmatprep.subr.mxu0 0.0
    %5116 = vmatpush1.msra.mxu0 0.0
    %5117 = vmatprep.subr.mxu0 0.0
    %5118 = vmatpush1.msra.mxu0 0.0
    %5119 = vmatprep.subr.mxu0 0.0
    %5120 = vmatpush1.msra.mxu0 0.0
    %5121 = vmatprep.subr.mxu0 0.0
    %5122 = vmatpush1.msra.mxu0 0.0
    %5123 = vmatprep.subr.mxu0 0.0
    %5124 = vmatpush1.msra.mxu0 0.0
    %5125 = vmatprep.subr.mxu0 0.0
    %5126 = vmatpush1.msra.mxu0 0.0
    %5127 = vmatprep.subr.mxu0 0.0
    %5128 = vmatpush1.msra.mxu0 0.0
    %5129 = vmatprep.subr.mxu0 0.0
    %5130 = vmatpush1.msra.mxu0 0.0
    %5131 = vmatprep.subr.mxu0 0.0
    %5132 = vmatpush1.msra.mxu0 0.0
    %5133 = vmatprep.subr.mxu0 0.0
    %5134 = vmatpush1.msra.mxu0 0.0
    %5135 = vmatprep.subr.mxu0 0.0
    %5136 = vmatpush1.msra.mxu0 0.0
    %5137 = vmatprep.mubr.f32.mxu0 0.0
    %5138 = vmatmul.mubr.f32.gmra.mrb[0].mxu0 %v5068
    %v5139 = vpop.f32.mrb[0].mxu0
    %v5140 = vadd.f32 0.0, %v5139
    %v5141 = vpop.f32.mrb[0].mxu0
    %5142 = vmatprep.mubr.f32.mxu0 0.0
    %5143 = vmatmul.mubr.f32.gmra.mrb[0].mxu0 %v5071
    %v5144 = vpop.f32.mrb[0].mxu0
    %v5145 = vadd.f32 0.0, %v5144
    %v5146 = vpop.f32.mrb[0].mxu0
    %5147 = vdwg.mxu0
    %v5149 = vsel %vm4394, %v5140, 0
    %v5152 = vsel %vm4394, %v5145, 0
    %5154 = vmatprep.subr.mxu0 0.0
    %5155 = vmatpush1.msra.mxu0 %v4382
    %5156 = vmatprep.subr.mxu0 0.0
    %5157 = vmatpush1.msra.mxu0 0.0
    %5158 = vmatprep.subr.mxu0 0.0
    %5159 = vmatpush1.msra.mxu0 0.0
    %5160 = vmatprep.subr.mxu0 0.0
    %5161 = vmatpush1.msra.mxu0 0.0
    %5162 = vmatprep.subr.mxu0 0.0
    %5163 = vmatpush1.msra.mxu0 0.0
    %5164 = vmatprep.subr.mxu0 0.0
    %5165 = vmatpush1.msra.mxu0 0.0
    %5166 = vmatprep.subr.mxu0 0.0
    %5167 = vmatpush1.msra.mxu0 0.0
    %5168 = vmatprep.subr.mxu0 0.0
    %5169 = vmatpush1.msra.mxu0 0.0
    %5170 = vmatprep.subr.mxu0 0.0
    %5171 = vmatpush1.msra.mxu0 0.0
    %5172 = vmatprep.subr.mxu0 0.0
    %5173 = vmatpush1.msra.mxu0 0.0
    %5174 = vmatprep.subr.mxu0 0.0
    %5175 = vmatpush1.msra.mxu0 0.0
    %5176 = vmatprep.subr.mxu0 0.0
    %5177 = vmatpush1.msra.mxu0 0.0
    %5178 = vmatprep.subr.mxu0 0.0
    %5179 = vmatpush1.msra.mxu0 0.0
    %5180 = vmatprep.subr.mxu0 0.0
    %5181 = vmatpush1.msra.mxu0 0.0
    %5182 = vmatprep.subr.mxu0 0.0
    %5183 = vmatpush1.msra.mxu0 0.0
    %5184 = vmatprep.subr.mxu0 0.0
    %5185 = vmatpush1.msra.mxu0 0.0
    %5186 = vmatprep.subr.mxu0 0.0
    %5187 = vmatpush1.msra.mxu0 0.0
    %5188 = vmatprep.subr.mxu0 0.0
    %5189 = vmatpush1.msra.mxu0 0.0
    %5190 = vmatprep.subr.mxu0 0.0
    %5191 = vmatpush1.msra.mxu0 0.0
    %5192 = vmatprep.subr.mxu0 0.0
    %5193 = vmatpush1.msra.mxu0 0.0
    %5194 = vmatprep.subr.mxu0 0.0
    %5195 = vmatpush1.msra.mxu0 0.0
    %5196 = vmatprep.subr.mxu0 0.0
    %5197 = vmatpush1.msra.mxu0 0.0
    %5198 = vmatprep.subr.mxu0 0.0
    %5199 = vmatpush1.msra.mxu0 0.0
    %5200 = vmatprep.subr.mxu0 0.0
    %5201 = vmatpush1.msra.mxu0 0.0
    %5202 = vmatprep.subr.mxu0 0.0
    %5203 = vmatpush1.msra.mxu0 0.0
    %5204 = vmatprep.subr.mxu0 0.0
    %5205 = vmatpush1.msra.mxu0 0.0
    %5206 = vmatprep.subr.mxu0 0.0
    %5207 = vmatpush1.msra.mxu0 0.0
    %5208 = vmatprep.subr.mxu0 0.0
    %5209 = vmatpush1.msra.mxu0 0.0
    %5210 = vmatprep.subr.mxu0 0.0
    %5211 = vmatpush1.msra.mxu0 0.0
    %5212 = vmatprep.subr.mxu0 0.0
    %5213 = vmatpush1.msra.mxu0 0.0
    %5214 = vmatprep.subr.mxu0 0.0
    %5215 = vmatpush1.msra.mxu0 0.0
    %5216 = vmatprep.subr.mxu0 0.0
    %5217 = vmatpush1.msra.mxu0 0.0
    %5218 = vmatprep.mubr.f32.mxu0 0.0
    %5219 = vmatmul.mubr.f32.gmra.mrb[0].mxu0 %v5149
    %v5220 = vpop.f32.mrb[0].mxu0
    %v5221 = vadd.f32 0.0, %v5220
    %v5222 = vpop.f32.mrb[0].mxu0
    %5223 = vmatprep.mubr.f32.mxu0 0.0
    %5224 = vmatmul.mubr.f32.gmra.mrb[0].mxu0 %v5152
    %v5225 = vpop.f32.mrb[0].mxu0
    %v5226 = vadd.f32 0.0, %v5225
    %v5227 = vpop.f32.mrb[0].mxu0
    %5228 = vdwg.mxu0
    %v5229 = vadd.f32 %v4940, %v5221
    %v5230 = vadd.f32 %v4945, %v5226
    %5231 = vrot.lane.b32.xlu0 %v4333, 104
    %v5232 = vpop.permute.xlu0 %5231
    %5233 = vrot.lane.b32.xlu0 %v4334, 104
    %v5234 = vpop.permute.xlu0 %5233
    %5235 = vrot.lane.b32.xlu0 %v4323, 40
    %v5236 = vpop.permute.xlu0 %5235
    %5237 = vrot.lane.b32.xlu0 %v4329, 40
    %v5238 = vpop.permute.xlu0 %5237
    %v5239 = vsel %vm4394, %v5232, 0
    %v5241 = vsel %vm4394, %v5234, 0
    %v5243 = vsel %vm4394, %v5236, 0
    %v5245 = vsel %vm4394, %v5238, 0
    %5247 = vmatprep.subr.mxu0 0.0
    %5248 = vmatpush1.xpose.msra.mxu0 %v5243
    %5249 = vmatprep.subr.mxu0 0.0
    %5250 = vmatpush1.xpose.msra.mxu0 %v5245
    %5251 = vmatprep.subr.mxu0 0.0
    %5252 = vmatpush1.xpose.msra.mxu0 0.0
    %5253 = vmatprep.subr.mxu0 0.0
    %5254 = vmatpush1.xpose.msra.mxu0 0.0
    %5255 = vmatprep.subr.mxu0 0.0
    %5256 = vmatpush1.xpose.msra.mxu0 0.0
    %5257 = vmatprep.subr.mxu0 0.0
    %5258 = vmatpush1.xpose.msra.mxu0 0.0
    %5259 = vmatprep.subr.mxu0 0.0
    %5260 = vmatpush1.xpose.msra.mxu0 0.0
    %5261 = vmatprep.subr.mxu0 0.0
    %5262 = vmatpush1.xpose.msra.mxu0 0.0
    %5263 = vmatprep.subr.mxu0 0.0
    %5264 = vmatpush1.xpose.msra.mxu0 0.0
    %5265 = vmatprep.subr.mxu0 0.0
    %5266 = vmatpush1.xpose.msra.mxu0 0.0
    %5267 = vmatprep.subr.mxu0 0.0
    %5268 = vmatpush1.xpose.msra.mxu0 0.0
    %5269 = vmatprep.subr.mxu0 0.0
    %5270 = vmatpush1.xpose.msra.mxu0 0.0
    %5271 = vmatprep.subr.mxu0 0.0
    %5272 = vmatpush1.xpose.msra.mxu0 0.0
    %5273 = vmatprep.subr.mxu0 0.0
    %5274 = vmatpush1.xpose.msra.mxu0 0.0
    %5275 = vmatprep.subr.mxu0 0.0
    %5276 = vmatpush1.xpose.msra.mxu0 0.0
    %5277 = vmatprep.subr.mxu0 0.0
    %5278 = vmatpush1.xpose.msra.mxu0 0.0
    %5279 = vmatprep.subr.mxu0 0.0
    %5280 = vmatpush1.xpose.msra.mxu0 0.0
    %5281 = vmatprep.subr.mxu0 0.0
    %5282 = vmatpush1.xpose.msra.mxu0 0.0
    %5283 = vmatprep.subr.mxu0 0.0
    %5284 = vmatpush1.xpose.msra.mxu0 0.0
    %5285 = vmatprep.subr.mxu0 0.0
    %5286 = vmatpush1.xpose.msra.mxu0 0.0
    %5287 = vmatprep.subr.mxu0 0.0
    %5288 = vmatpush1.xpose.msra.mxu0 0.0
    %5289 = vmatprep.subr.mxu0 0.0
    %5290 = vmatpush1.xpose.msra.mxu0 0.0
    %5291 = vmatprep.subr.mxu0 0.0
    %5292 = vmatpush1.xpose.msra.mxu0 0.0
    %5293 = vmatprep.subr.mxu0 0.0
    %5294 = vmatpush1.xpose.msra.mxu0 0.0
    %5295 = vmatprep.subr.mxu0 0.0
    %5296 = vmatpush1.xpose.msra.mxu0 0.0
    %5297 = vmatprep.subr.mxu0 0.0
    %5298 = vmatpush1.xpose.msra.mxu0 0.0
    %5299 = vmatprep.subr.mxu0 0.0
    %5300 = vmatpush1.xpose.msra.mxu0 0.0
    %5301 = vmatprep.subr.mxu0 0.0
    %5302 = vmatpush1.xpose.msra.mxu0 0.0
    %5303 = vmatprep.subr.mxu0 0.0
    %5304 = vmatpush1.xpose.msra.mxu0 0.0
    %5305 = vmatprep.subr.mxu0 0.0
    %5306 = vmatpush1.xpose.msra.mxu0 0.0
    %5307 = vmatprep.subr.mxu0 0.0
    %5308 = vmatpush1.xpose.msra.mxu0 0.0
    %5309 = vmatprep.subr.mxu0 0.0
    %5310 = vmatpush1.xpose.msra.mxu0 0.0
    %5311 = vmatprep.mubr.f32.mxu0 0.0
    %5312 = vmatmul.mubr.f32.gmra.mrb[0].mxu0 %v5239
    %v5313 = vpop.f32.mrb[0].mxu0
    %v5314 = vadd.f32 %v4378, %v5313
    %v5315 = vpop.f32.mrb[0].mxu0
    %5316 = vmatprep.mubr.f32.mxu0 0.0
    %5317 = vmatmul.mubr.f32.gmra.mrb[0].mxu0 %v5241
    %v5318 = vpop.f32.mrb[0].mxu0
    %v5319 = vadd.f32 %v4379, %v5318
    %v5320 = vpop.f32.mrb[0].mxu0
    %5321 = vdwg.mxu0
    %v5322 = vsel %vm4480, %v5314, -inf
    %5323 = vmax.xlane.f32.xlu0 %v5322
    %v5324 = vpop.xlane.xlu0 %5323
    %v5325 = vsel %vm4480, %v5319, -inf
    %5326 = vmax.xlane.f32.xlu0 %v5325
    %v5327 = vpop.xlane.xlu0 %5326
    %v5328 = vsub.f32 %v5314, %v5324
    %v5329 = vsub.f32 %v5319, %v5327
    %v5330 = vmul.f32 %v5328, 1.442695
    %v5331 = vpow.pop %v5330
    %v5332 = vmul.f32 %v5329, 1.442695
    %v5333 = vpow.pop %v5332
    %v5334 = vsel %vm4480, %v5331, 0.0
    %5335 = vadd.xlane.f32.xlu0 %v5334
    %v5336 = vpop.xlane.xlu0 %5335
    %v5337 = vsel %vm4480, %v5333, 0.0
    %5338 = vadd.xlane.f32.xlu0 %v5337
    %v5339 = vpop.xlane.xlu0 %5338
    %v5340 = vrcp.pop %v5336
    %v5341 = vmul.f32 %v5331, %v5340
    %v5342 = vrcp.pop %v5339
    %v5343 = vmul.f32 %v5333, %v5342
    %5344 = vrot.lane.b32.xlu0 %v4325, 104
    %v5345 = vpop.permute.xlu0 %5344
    %5346 = vrot.lane.b32.xlu0 %v4331, 104
    %v5347 = vpop.permute.xlu0 %5346
    %v5351 = vsel %vm4480, %v5341, 0
    %v5354 = vsel %vm4480, %v5343, 0
    %5356 = vmatprep.subr.mxu0 0.0
    %5357 = vmatpush1.msra.mxu0 %v5345
    %5358 = vmatprep.subr.mxu0 0.0
    %5359 = vmatpush1.msra.mxu0 %v5347
    %5360 = vmatprep.subr.mxu0 0.0
    %5361 = vmatpush1.msra.mxu0 0.0
    %5362 = vmatprep.subr.mxu0 0.0
    %5363 = vmatpush1.msra.mxu0 0.0
    %5364 = vmatprep.subr.mxu0 0.0
    %5365 = vmatpush1.msra.mxu0 0.0
    %5366 = vmatprep.subr.mxu0 0.0
    %5367 = vmatpush1.msra.mxu0 0.0
    %5368 = vmatprep.subr.mxu0 0.0
    %5369 = vmatpush1.msra.mxu0 0.0
    %5370 = vmatprep.subr.mxu0 0.0
    %5371 = vmatpush1.msra.mxu0 0.0
    %5372 = vmatprep.subr.mxu0 0.0
    %5373 = vmatpush1.msra.mxu0 0.0
    %5374 = vmatprep.subr.mxu0 0.0
    %5375 = vmatpush1.msra.mxu0 0.0
    %5376 = vmatprep.subr.mxu0 0.0
    %5377 = vmatpush1.msra.mxu0 0.0
    %5378 = vmatprep.subr.mxu0 0.0
    %5379 = vmatpush1.msra.mxu0 0.0
    %5380 = vmatprep.subr.mxu0 0.0
    %5381 = vmatpush1.msra.mxu0 0.0
    %5382 = vmatprep.subr.mxu0 0.0
    %5383 = vmatpush1.msra.mxu0 0.0
    %5384 = vmatprep.subr.mxu0 0.0
    %5385 = vmatpush1.msra.mxu0 0.0
    %5386 = vmatprep.subr.mxu0 0.0
    %5387 = vmatpush1.msra.mxu0 0.0
    %5388 = vmatprep.subr.mxu0 0.0
    %5389 = vmatpush1.msra.mxu0 0.0
    %5390 = vmatprep.subr.mxu0 0.0
    %5391 = vmatpush1.msra.mxu0 0.0
    %5392 = vmatprep.subr.mxu0 0.0
    %5393 = vmatpush1.msra.mxu0 0.0
    %5394 = vmatprep.subr.mxu0 0.0
    %5395 = vmatpush1.msra.mxu0 0.0
    %5396 = vmatprep.subr.mxu0 0.0
    %5397 = vmatpush1.msra.mxu0 0.0
    %5398 = vmatprep.subr.mxu0 0.0
    %5399 = vmatpush1.msra.mxu0 0.0
    %5400 = vmatprep.subr.mxu0 0.0
    %5401 = vmatpush1.msra.mxu0 0.0
    %5402 = vmatprep.subr.mxu0 0.0
    %5403 = vmatpush1.msra.mxu0 0.0
    %5404 = vmatprep.subr.mxu0 0.0
    %5405 = vmatpush1.msra.mxu0 0.0
    %5406 = vmatprep.subr.mxu0 0.0
    %5407 = vmatpush1.msra.mxu0 0.0
    %5408 = vmatprep.subr.mxu0 0.0
    %5409 = vmatpush1.msra.mxu0 0.0
    %5410 = vmatprep.subr.mxu0 0.0
    %5411 = vmatpush1.msra.mxu0 0.0
    %5412 = vmatprep.subr.mxu0 0.0
    %5413 = vmatpush1.msra.mxu0 0.0
    %5414 = vmatprep.subr.mxu0 0.0
    %5415 = vmatpush1.msra.mxu0 0.0
    %5416 = vmatprep.subr.mxu0 0.0
    %5417 = vmatpush1.msra.mxu0 0.0
    %5418 = vmatprep.subr.mxu0 0.0
    %5419 = vmatpush1.msra.mxu0 0.0
    %5420 = vmatprep.mubr.f32.mxu0 0.0
    %5421 = vmatmul.mubr.f32.gmra.mrb[0].mxu0 %v5351
    %v5422 = vpop.f32.mrb[0].mxu0
    %v5423 = vadd.f32 0.0, %v5422
    %v5424 = vpop.f32.mrb[0].mxu0
    %5425 = vmatprep.mubr.f32.mxu0 0.0
    %5426 = vmatmul.mubr.f32.gmra.mrb[0].mxu0 %v5354
    %v5427 = vpop.f32.mrb[0].mxu0
    %v5428 = vadd.f32 0.0, %v5427
    %v5429 = vpop.f32.mrb[0].mxu0
    %5430 = vdwg.mxu0
    %v5432 = vsel %vm4394, %v5423, 0
    %v5435 = vsel %vm4394, %v5428, 0
    %5437 = vmatprep.subr.mxu0 0.0
    %5438 = vmatpush1.msra.mxu0 %v4383
    %5439 = vmatprep.subr.mxu0 0.0
    %5440 = vmatpush1.msra.mxu0 0.0
    %5441 = vmatprep.subr.mxu0 0.0
    %5442 = vmatpush1.msra.mxu0 0.0
    %5443 = vmatprep.subr.mxu0 0.0
    %5444 = vmatpush1.msra.mxu0 0.0
    %5445 = vmatprep.subr.mxu0 0.0
    %5446 = vmatpush1.msra.mxu0 0.0
    %5447 = vmatprep.subr.mxu0 0.0
    %5448 = vmatpush1.msra.mxu0 0.0
    %5449 = vmatprep.subr.mxu0 0.0
    %5450 = vmatpush1.msra.mxu0 0.0
    %5451 = vmatprep.subr.mxu0 0.0
    %5452 = vmatpush1.msra.mxu0 0.0
    %5453 = vmatprep.subr.mxu0 0.0
    %5454 = vmatpush1.msra.mxu0 0.0
    %5455 = vmatprep.subr.mxu0 0.0
    %5456 = vmatpush1.msra.mxu0 0.0
    %5457 = vmatprep.subr.mxu0 0.0
    %5458 = vmatpush1.msra.mxu0 0.0
    %5459 = vmatprep.subr.mxu0 0.0
    %5460 = vmatpush1.msra.mxu0 0.0
    %5461 = vmatprep.subr.mxu0 0.0
    %5462 = vmatpush1.msra.mxu0 0.0
    %5463 = vmatprep.subr.mxu0 0.0
    %5464 = vmatpush1.msra.mxu0 0.0
    %5465 = vmatprep.subr.mxu0 0.0
    %5466 = vmatpush1.msra.mxu0 0.0
    %5467 = vmatprep.subr.mxu0 0.0
    %5468 = vmatpush1.msra.mxu0 0.0
    %5469 = vmatprep.subr.mxu0 0.0
    %5470 = vmatpush1.msra.mxu0 0.0
    %5471 = vmatprep.subr.mxu0 0.0
    %5472 = vmatpush1.msra.mxu0 0.0
    %5473 = vmatprep.subr.mxu0 0.0
    %5474 = vmatpush1.msra.mxu0 0.0
    %5475 = vmatprep.subr.mxu0 0.0
    %5476 = vmatpush1.msra.mxu0 0.0
    %5477 = vmatprep.subr.mxu0 0.0
    %5478 = vmatpush1.msra.mxu0 0.0
    %5479 = vmatprep.subr.mxu0 0.0
    %5480 = vmatpush1.msra.mxu0 0.0
    %5481 = vmatprep.subr.mxu0 0.0
    %5482 = vmatpush1.msra.mxu0 0.0
    %5483 = vmatprep.subr.mxu0 0.0
    %5484 = vmatpush1.msra.mxu0 0.0
    %5485 = vmatprep.subr.mxu0 0.0
    %5486 = vmatpush1.msra.mxu0 0.0
    %5487 = vmatprep.subr.mxu0 0.0
    %5488 = vmatpush1.msra.mxu0 0.0
    %5489 = vmatprep.subr.mxu0 0.0
    %5490 = vmatpush1.msra.mxu0 0.0
    %5491 = vmatprep.subr.mxu0 0.0
    %5492 = vmatpush1.msra.mxu0 0.0
    %5493 = vmatprep.subr.mxu0 0.0
    %5494 = vmatpush1.msra.mxu0 0.0
    %5495 = vmatprep.subr.mxu0 0.0
    %5496 = vmatpush1.msra.mxu0 0.0
    %5497 = vmatprep.subr.mxu0 0.0
    %5498 = vmatpush1.msra.mxu0 0.0
    %5499 = vmatprep.subr.mxu0 0.0
    %5500 = vmatpush1.msra.mxu0 0.0
    %5501 = vmatprep.mubr.f32.mxu0 0.0
    %5502 = vmatmul.mubr.f32.gmra.mrb[0].mxu0 %v5432
    %v5503 = vpop.f32.mrb[0].mxu0
    %v5504 = vadd.f32 0.0, %v5503
    %v5505 = vpop.f32.mrb[0].mxu0
    %5506 = vmatprep.mubr.f32.mxu0 0.0
    %5507 = vmatmul.mubr.f32.gmra.mrb[0].mxu0 %v5435
    %v5508 = vpop.f32.mrb[0].mxu0
    %v5509 = vadd.f32 0.0, %v5508
    %v5510 = vpop.f32.mrb[0].mxu0
    %5511 = vdwg.mxu0
    %v5512 = vadd.f32 %v5229, %v5504
    %v5513 = vadd.f32 %v5230, %v5509
    %5514 = vrot.lane.b32.xlu0 %v4333, 96
    %v5515 = vpop.permute.xlu0 %5514
    %5516 = vrot.lane.b32.xlu0 %v4334, 96
    %v5517 = vpop.permute.xlu0 %5516
    %5518 = vrot.lane.b32.xlu0 %v4323, 32
    %v5519 = vpop.permute.xlu0 %5518
    %5520 = vrot.lane.b32.xlu0 %v4329, 32
    %v5521 = vpop.permute.xlu0 %5520
    %v5522 = vsel %vm4394, %v5515, 0
    %v5524 = vsel %vm4394, %v5517, 0
    %v5526 = vsel %vm4394, %v5519, 0
    %v5528 = vsel %vm4394, %v5521, 0
    %5530 = vmatprep.subr.mxu0 0.0
    %5531 = vmatpush1.xpose.msra.mxu0 %v5526
    %5532 = vmatprep.subr.mxu0 0.0
    %5533 = vmatpush1.xpose.msra.mxu0 %v5528
    %5534 = vmatprep.subr.mxu0 0.0
    %5535 = vmatpush1.xpose.msra.mxu0 0.0
    %5536 = vmatprep.subr.mxu0 0.0
    %5537 = vmatpush1.xpose.msra.mxu0 0.0
    %5538 = vmatprep.subr.mxu0 0.0
    %5539 = vmatpush1.xpose.msra.mxu0 0.0
    %5540 = vmatprep.subr.mxu0 0.0
    %5541 = vmatpush1.xpose.msra.mxu0 0.0
    %5542 = vmatprep.subr.mxu0 0.0
    %5543 = vmatpush1.xpose.msra.mxu0 0.0
    %5544 = vmatprep.subr.mxu0 0.0
    %5545 = vmatpush1.xpose.msra.mxu0 0.0
    %5546 = vmatprep.subr.mxu0 0.0
    %5547 = vmatpush1.xpose.msra.mxu0 0.0
    %5548 = vmatprep.subr.mxu0 0.0
    %5549 = vmatpush1.xpose.msra.mxu0 0.0
    %5550 = vmatprep.subr.mxu0 0.0
    %5551 = vmatpush1.xpose.msra.mxu0 0.0
    %5552 = vmatprep.subr.mxu0 0.0
    %5553 = vmatpush1.xpose.msra.mxu0 0.0
    %5554 = vmatprep.subr.mxu0 0.0
    %5555 = vmatpush1.xpose.msra.mxu0 0.0
    %5556 = vmatprep.subr.mxu0 0.0
    %5557 = vmatpush1.xpose.msra.mxu0 0.0
    %5558 = vmatprep.subr.mxu0 0.0
    %5559 = vmatpush1.xpose.msra.mxu0 0.0
    %5560 = vmatprep.subr.mxu0 0.0
    %5561 = vmatpush1.xpose.msra.mxu0 0.0
    %5562 = vmatprep.subr.mxu0 0.0
    %5563 = vmatpush1.xpose.msra.mxu0 0.0
    %5564 = vmatprep.subr.mxu0 0.0
    %5565 = vmatpush1.xpose.msra.mxu0 0.0
    %5566 = vmatprep.subr.mxu0 0.0
    %5567 = vmatpush1.xpose.msra.mxu0 0.0
    %5568 = vmatprep.subr.mxu0 0.0
    %5569 = vmatpush1.xpose.msra.mxu0 0.0
    %5570 = vmatprep.subr.mxu0 0.0
    %5571 = vmatpush1.xpose.msra.mxu0 0.0
    %5572 = vmatprep.subr.mxu0 0.0
    %5573 = vmatpush1.xpose.msra.mxu0 0.0
    %5574 = vmatprep.subr.mxu0 0.0
    %5575 = vmatpush1.xpose.msra.mxu0 0.0
    %5576 = vmatprep.subr.mxu0 0.0
    %5577 = vmatpush1.xpose.msra.mxu0 0.0
    %5578 = vmatprep.subr.mxu0 0.0
    %5579 = vmatpush1.xpose.msra.mxu0 0.0
    %5580 = vmatprep.subr.mxu0 0.0
    %5581 = vmatpush1.xpose.msra.mxu0 0.0
    %5582 = vmatprep.subr.mxu0 0.0
    %5583 = vmatpush1.xpose.msra.mxu0 0.0
    %5584 = vmatprep.subr.mxu0 0.0
    %5585 = vmatpush1.xpose.msra.mxu0 0.0
    %5586 = vmatprep.subr.mxu0 0.0
    %5587 = vmatpush1.xpose.msra.mxu0 0.0
    %5588 = vmatprep.subr.mxu0 0.0
    %5589 = vmatpush1.xpose.msra.mxu0 0.0
    %5590 = vmatprep.subr.mxu0 0.0
    %5591 = vmatpush1.xpose.msra.mxu0 0.0
    %5592 = vmatprep.subr.mxu0 0.0
    %5593 = vmatpush1.xpose.msra.mxu0 0.0
    %5594 = vmatprep.mubr.f32.mxu0 0.0
    %5595 = vmatmul.mubr.f32.gmra.mrb[0].mxu0 %v5522
    %v5596 = vpop.f32.mrb[0].mxu0
    %v5597 = vadd.f32 %v4378, %v5596
    %v5598 = vpop.f32.mrb[0].mxu0
    %5599 = vmatprep.mubr.f32.mxu0 0.0
    %5600 = vmatmul.mubr.f32.gmra.mrb[0].mxu0 %v5524
    %v5601 = vpop.f32.mrb[0].mxu0
    %v5602 = vadd.f32 %v4379, %v5601
    %v5603 = vpop.f32.mrb[0].mxu0
    %5604 = vdwg.mxu0
    %v5605 = vsel %vm4480, %v5597, -inf
    %5606 = vmax.xlane.f32.xlu0 %v5605
    %v5607 = vpop.xlane.xlu0 %5606
    %v5608 = vsel %vm4480, %v5602, -inf
    %5609 = vmax.xlane.f32.xlu0 %v5608
    %v5610 = vpop.xlane.xlu0 %5609
    %v5611 = vsub.f32 %v5597, %v5607
    %v5612 = vsub.f32 %v5602, %v5610
    %v5613 = vmul.f32 %v5611, 1.442695
    %v5614 = vpow.pop %v5613
    %v5615 = vmul.f32 %v5612, 1.442695
    %v5616 = vpow.pop %v5615
    %v5617 = vsel %vm4480, %v5614, 0.0
    %5618 = vadd.xlane.f32.xlu0 %v5617
    %v5619 = vpop.xlane.xlu0 %5618
    %v5620 = vsel %vm4480, %v5616, 0.0
    %5621 = vadd.xlane.f32.xlu0 %v5620
    %v5622 = vpop.xlane.xlu0 %5621
    %v5623 = vrcp.pop %v5619
    %v5624 = vmul.f32 %v5614, %v5623
    %v5625 = vrcp.pop %v5622
    %v5626 = vmul.f32 %v5616, %v5625
    %5627 = vrot.lane.b32.xlu0 %v4325, 96
    %v5628 = vpop.permute.xlu0 %5627
    %5629 = vrot.lane.b32.xlu0 %v4331, 96
    %v5630 = vpop.permute.xlu0 %5629
    %v5634 = vsel %vm4480, %v5624, 0
    %v5637 = vsel %vm4480, %v5626, 0
    %5639 = vmatprep.subr.mxu0 0.0
    %5640 = vmatpush1.msra.mxu0 %v5628
    %5641 = vmatprep.subr.mxu0 0.0
    %5642 = vmatpush1.msra.mxu0 %v5630
    %5643 = vmatprep.subr.mxu0 0.0
    %5644 = vmatpush1.msra.mxu0 0.0
    %5645 = vmatprep.subr.mxu0 0.0
    %5646 = vmatpush1.msra.mxu0 0.0
    %5647 = vmatprep.subr.mxu0 0.0
    %5648 = vmatpush1.msra.mxu0 0.0
    %5649 = vmatprep.subr.mxu0 0.0
    %5650 = vmatpush1.msra.mxu0 0.0
    %5651 = vmatprep.subr.mxu0 0.0
    %5652 = vmatpush1.msra.mxu0 0.0
    %5653 = vmatprep.subr.mxu0 0.0
    %5654 = vmatpush1.msra.mxu0 0.0
    %5655 = vmatprep.subr.mxu0 0.0
    %5656 = vmatpush1.msra.mxu0 0.0
    %5657 = vmatprep.subr.mxu0 0.0
    %5658 = vmatpush1.msra.mxu0 0.0
    %5659 = vmatprep.subr.mxu0 0.0
    %5660 = vmatpush1.msra.mxu0 0.0
    %5661 = vmatprep.subr.mxu0 0.0
    %5662 = vmatpush1.msra.mxu0 0.0
    %5663 = vmatprep.subr.mxu0 0.0
    %5664 = vmatpush1.msra.mxu0 0.0
    %5665 = vmatprep.subr.mxu0 0.0
    %5666 = vmatpush1.msra.mxu0 0.0
    %5667 = vmatprep.subr.mxu0 0.0
    %5668 = vmatpush1.msra.mxu0 0.0
    %5669 = vmatprep.subr.mxu0 0.0
    %5670 = vmatpush1.msra.mxu0 0.0
    %5671 = vmatprep.subr.mxu0 0.0
    %5672 = vmatpush1.msra.mxu0 0.0
    %5673 = vmatprep.subr.mxu0 0.0
    %5674 = vmatpush1.msra.mxu0 0.0
    %5675 = vmatprep.subr.mxu0 0.0
    %5676 = vmatpush1.msra.mxu0 0.0
    %5677 = vmatprep.subr.mxu0 0.0
    %5678 = vmatpush1.msra.mxu0 0.0
    %5679 = vmatprep.subr.mxu0 0.0
    %5680 = vmatpush1.msra.mxu0 0.0
    %5681 = vmatprep.subr.mxu0 0.0
    %5682 = vmatpush1.msra.mxu0 0.0
    %5683 = vmatprep.subr.mxu0 0.0
    %5684 = vmatpush1.msra.mxu0 0.0
    %5685 = vmatprep.subr.mxu0 0.0
    %5686 = vmatpush1.msra.mxu0 0.0
    %5687 = vmatprep.subr.mxu0 0.0
    %5688 = vmatpush1.msra.mxu0 0.0
    %5689 = vmatprep.subr.mxu0 0.0
    %5690 = vmatpush1.msra.mxu0 0.0
    %5691 = vmatprep.subr.mxu0 0.0
    %5692 = vmatpush1.msra.mxu0 0.0
    %5693 = vmatprep.subr.mxu0 0.0
    %5694 = vmatpush1.msra.mxu0 0.0
    %5695 = vmatprep.subr.mxu0 0.0
    %5696 = vmatpush1.msra.mxu0 0.0
    %5697 = vmatprep.subr.mxu0 0.0
    %5698 = vmatpush1.msra.mxu0 0.0
    %5699 = vmatprep.subr.mxu0 0.0
    %5700 = vmatpush1.msra.mxu0 0.0
    %5701 = vmatprep.subr.mxu0 0.0
    %5702 = vmatpush1.msra.mxu0 0.0
    %5703 = vmatprep.mubr.f32.mxu0 0.0
    %5704 = vmatmul.mubr.f32.gmra.mrb[0].mxu0 %v5634
    %v5705 = vpop.f32.mrb[0].mxu0
    %v5706 = vadd.f32 0.0, %v5705
    %v5707 = vpop.f32.mrb[0].mxu0
    %5708 = vmatprep.mubr.f32.mxu0 0.0
    %5709 = vmatmul.mubr.f32.gmra.mrb[0].mxu0 %v5637
    %v5710 = vpop.f32.mrb[0].mxu0
    %v5711 = vadd.f32 0.0, %v5710
    %v5712 = vpop.f32.mrb[0].mxu0
    %5713 = vdwg.mxu0
    %v5715 = vsel %vm4394, %v5706, 0
    %v5718 = vsel %vm4394, %v5711, 0
    %5720 = vmatprep.subr.mxu0 0.0
    %5721 = vmatpush1.msra.mxu0 %v4384
    %5722 = vmatprep.subr.mxu0 0.0
    %5723 = vmatpush1.msra.mxu0 0.0
    %5724 = vmatprep.subr.mxu0 0.0
    %5725 = vmatpush1.msra.mxu0 0.0
    %5726 = vmatprep.subr.mxu0 0.0
    %5727 = vmatpush1.msra.mxu0 0.0
    %5728 = vmatprep.subr.mxu0 0.0
    %5729 = vmatpush1.msra.mxu0 0.0
    %5730 = vmatprep.subr.mxu0 0.0
    %5731 = vmatpush1.msra.mxu0 0.0
    %5732 = vmatprep.subr.mxu0 0.0
    %5733 = vmatpush1.msra.mxu0 0.0
    %5734 = vmatprep.subr.mxu0 0.0
    %5735 = vmatpush1.msra.mxu0 0.0
    %5736 = vmatprep.subr.mxu0 0.0
    %5737 = vmatpush1.msra.mxu0 0.0
    %5738 = vmatprep.subr.mxu0 0.0
    %5739 = vmatpush1.msra.mxu0 0.0
    %5740 = vmatprep.subr.mxu0 0.0
    %5741 = vmatpush1.msra.mxu0 0.0
    %5742 = vmatprep.subr.mxu0 0.0
    %5743 = vmatpush1.msra.mxu0 0.0
    %5744 = vmatprep.subr.mxu0 0.0
    %5745 = vmatpush1.msra.mxu0 0.0
    %5746 = vmatprep.subr.mxu0 0.0
    %5747 = vmatpush1.msra.mxu0 0.0
    %5748 = vmatprep.subr.mxu0 0.0
    %5749 = vmatpush1.msra.mxu0 0.0
    %5750 = vmatprep.subr.mxu0 0.0
    %5751 = vmatpush1.msra.mxu0 0.0
    %5752 = vmatprep.subr.mxu0 0.0
    %5753 = vmatpush1.msra.mxu0 0.0
    %5754 = vmatprep.subr.mxu0 0.0
    %5755 = vmatpush1.msra.mxu0 0.0
    %5756 = vmatprep.subr.mxu0 0.0
    %5757 = vmatpush1.msra.mxu0 0.0
    %5758 = vmatprep.subr.mxu0 0.0
    %5759 = vmatpush1.msra.mxu0 0.0
    %5760 = vmatprep.subr.mxu0 0.0
    %5761 = vmatpush1.msra.mxu0 0.0
    %5762 = vmatprep.subr.mxu0 0.0
    %5763 = vmatpush1.msra.mxu0 0.0
    %5764 = vmatprep.subr.mxu0 0.0
    %5765 = vmatpush1.msra.mxu0 0.0
    %5766 = vmatprep.subr.mxu0 0.0
    %5767 = vmatpush1.msra.mxu0 0.0
    %5768 = vmatprep.subr.mxu0 0.0
    %5769 = vmatpush1.msra.mxu0 0.0
    %5770 = vmatprep.subr.mxu0 0.0
    %5771 = vmatpush1.msra.mxu0 0.0
    %5772 = vmatprep.subr.mxu0 0.0
    %5773 = vmatpush1.msra.mxu0 0.0
    %5774 = vmatprep.subr.mxu0 0.0
    %5775 = vmatpush1.msra.mxu0 0.0
    %5776 = vmatprep.subr.mxu0 0.0
    %5777 = vmatpush1.msra.mxu0 0.0
    %5778 = vmatprep.subr.mxu0 0.0
    %5779 = vmatpush1.msra.mxu0 0.0
    %5780 = vmatprep.subr.mxu0 0.0
    %5781 = vmatpush1.msra.mxu0 0.0
    %5782 = vmatprep.subr.mxu0 0.0
    %5783 = vmatpush1.msra.mxu0 0.0
    %5784 = vmatprep.mubr.f32.mxu0 0.0
    %5785 = vmatmul.mubr.f32.gmra.mrb[0].mxu0 %v5715
    %v5786 = vpop.f32.mrb[0].mxu0
    %v5787 = vadd.f32 0.0, %v5786
    %v5788 = vpop.f32.mrb[0].mxu0
    %5789 = vmatprep.mubr.f32.mxu0 0.0
    %5790 = vmatmul.mubr.f32.gmra.mrb[0].mxu0 %v5718
    %v5791 = vpop.f32.mrb[0].mxu0
    %v5792 = vadd.f32 0.0, %v5791
    %v5793 = vpop.f32.mrb[0].mxu0
    %5794 = vdwg.mxu0
    %v5795 = vadd.f32 %v5512, %v5787
    %v5796 = vadd.f32 %v5513, %v5792
    %5797 = vrot.lane.b32.xlu0 %v4333, 88
    %v5798 = vpop.permute.xlu0 %5797
    %5799 = vrot.lane.b32.xlu0 %v4334, 88
    %v5800 = vpop.permute.xlu0 %5799
    %5801 = vrot.lane.b32.xlu0 %v4323, 24
    %v5802 = vpop.permute.xlu0 %5801
    %5803 = vrot.lane.b32.xlu0 %v4329, 24
    %v5804 = vpop.permute.xlu0 %5803
    %v5805 = vsel %vm4394, %v5798, 0
    %v5807 = vsel %vm4394, %v5800, 0
    %v5809 = vsel %vm4394, %v5802, 0
    %v5811 = vsel %vm4394, %v5804, 0
    %5813 = vmatprep.subr.mxu0 0.0
    %5814 = vmatpush1.xpose.msra.mxu0 %v5809
    %5815 = vmatprep.subr.mxu0 0.0
    %5816 = vmatpush1.xpose.msra.mxu0 %v5811
    %5817 = vmatprep.subr.mxu0 0.0
    %5818 = vmatpush1.xpose.msra.mxu0 0.0
    %5819 = vmatprep.subr.mxu0 0.0
    %5820 = vmatpush1.xpose.msra.mxu0 0.0
    %5821 = vmatprep.subr.mxu0 0.0
    %5822 = vmatpush1.xpose.msra.mxu0 0.0
    %5823 = vmatprep.subr.mxu0 0.0
    %5824 = vmatpush1.xpose.msra.mxu0 0.0
    %5825 = vmatprep.subr.mxu0 0.0
    %5826 = vmatpush1.xpose.msra.mxu0 0.0
    %5827 = vmatprep.subr.mxu0 0.0
    %5828 = vmatpush1.xpose.msra.mxu0 0.0
    %5829 = vmatprep.subr.mxu0 0.0
    %5830 = vmatpush1.xpose.msra.mxu0 0.0
    %5831 = vmatprep.subr.mxu0 0.0
    %5832 = vmatpush1.xpose.msra.mxu0 0.0
    %5833 = vmatprep.subr.mxu0 0.0
    %5834 = vmatpush1.xpose.msra.mxu0 0.0
    %5835 = vmatprep.subr.mxu0 0.0
    %5836 = vmatpush1.xpose.msra.mxu0 0.0
    %5837 = vmatprep.subr.mxu0 0.0
    %5838 = vmatpush1.xpose.msra.mxu0 0.0
    %5839 = vmatprep.subr.mxu0 0.0
    %5840 = vmatpush1.xpose.msra.mxu0 0.0
    %5841 = vmatprep.subr.mxu0 0.0
    %5842 = vmatpush1.xpose.msra.mxu0 0.0
    %5843 = vmatprep.subr.mxu0 0.0
    %5844 = vmatpush1.xpose.msra.mxu0 0.0
    %5845 = vmatprep.subr.mxu0 0.0
    %5846 = vmatpush1.xpose.msra.mxu0 0.0
    %5847 = vmatprep.subr.mxu0 0.0
    %5848 = vmatpush1.xpose.msra.mxu0 0.0
    %5849 = vmatprep.subr.mxu0 0.0
    %5850 = vmatpush1.xpose.msra.mxu0 0.0
    %5851 = vmatprep.subr.mxu0 0.0
    %5852 = vmatpush1.xpose.msra.mxu0 0.0
    %5853 = vmatprep.subr.mxu0 0.0
    %5854 = vmatpush1.xpose.msra.mxu0 0.0
    %5855 = vmatprep.subr.mxu0 0.0
    %5856 = vmatpush1.xpose.msra.mxu0 0.0
    %5857 = vmatprep.subr.mxu0 0.0
    %5858 = vmatpush1.xpose.msra.mxu0 0.0
    %5859 = vmatprep.subr.mxu0 0.0
    %5860 = vmatpush1.xpose.msra.mxu0 0.0
    %5861 = vmatprep.subr.mxu0 0.0
    %5862 = vmatpush1.xpose.msra.mxu0 0.0
    %5863 = vmatprep.subr.mxu0 0.0
    %5864 = vmatpush1.xpose.msra.mxu0 0.0
    %5865 = vmatprep.subr.mxu0 0.0
    %5866 = vmatpush1.xpose.msra.mxu0 0.0
    %5867 = vmatprep.subr.mxu0 0.0
    %5868 = vmatpush1.xpose.msra.mxu0 0.0
    %5869 = vmatprep.subr.mxu0 0.0
    %5870 = vmatpush1.xpose.msra.mxu0 0.0
    %5871 = vmatprep.subr.mxu0 0.0
    %5872 = vmatpush1.xpose.msra.mxu0 0.0
    %5873 = vmatprep.subr.mxu0 0.0
    %5874 = vmatpush1.xpose.msra.mxu0 0.0
    %5875 = vmatprep.subr.mxu0 0.0
    %5876 = vmatpush1.xpose.msra.mxu0 0.0
    %5877 = vmatprep.mubr.f32.mxu0 0.0
    %5878 = vmatmul.mubr.f32.gmra.mrb[0].mxu0 %v5805
    %v5879 = vpop.f32.mrb[0].mxu0
    %v5880 = vadd.f32 %v4378, %v5879
    %v5881 = vpop.f32.mrb[0].mxu0
    %5882 = vmatprep.mubr.f32.mxu0 0.0
    %5883 = vmatmul.mubr.f32.gmra.mrb[0].mxu0 %v5807
    %v5884 = vpop.f32.mrb[0].mxu0
    %v5885 = vadd.f32 %v4379, %v5884
    %v5886 = vpop.f32.mrb[0].mxu0
    %5887 = vdwg.mxu0
    %v5888 = vsel %vm4480, %v5880, -inf
    %5889 = vmax.xlane.f32.xlu0 %v5888
    %v5890 = vpop.xlane.xlu0 %5889
    %v5891 = vsel %vm4480, %v5885, -inf
    %5892 = vmax.xlane.f32.xlu0 %v5891
    %v5893 = vpop.xlane.xlu0 %5892
    %v5894 = vsub.f32 %v5880, %v5890
    %v5895 = vsub.f32 %v5885, %v5893
    %v5896 = vmul.f32 %v5894, 1.442695
    %v5897 = vpow.pop %v5896
    %v5898 = vmul.f32 %v5895, 1.442695
    %v5899 = vpow.pop %v5898
    %v5900 = vsel %vm4480, %v5897, 0.0
    %5901 = vadd.xlane.f32.xlu0 %v5900
    %v5902 = vpop.xlane.xlu0 %5901
    %v5903 = vsel %vm4480, %v5899, 0.0
    %5904 = vadd.xlane.f32.xlu0 %v5903
    %v5905 = vpop.xlane.xlu0 %5904
    %v5906 = vrcp.pop %v5902
    %v5907 = vmul.f32 %v5897, %v5906
    %v5908 = vrcp.pop %v5905
    %v5909 = vmul.f32 %v5899, %v5908
    %5910 = vrot.lane.b32.xlu0 %v4325, 88
    %v5911 = vpop.permute.xlu0 %5910
    %5912 = vrot.lane.b32.xlu0 %v4331, 88
    %v5913 = vpop.permute.xlu0 %5912
    %v5917 = vsel %vm4480, %v5907, 0
    %v5920 = vsel %vm4480, %v5909, 0
    %5922 = vmatprep.subr.mxu0 0.0
    %5923 = vmatpush1.msra.mxu0 %v5911
    %5924 = vmatprep.subr.mxu0 0.0
    %5925 = vmatpush1.msra.mxu0 %v5913
    %5926 = vmatprep.subr.mxu0 0.0
    %5927 = vmatpush1.msra.mxu0 0.0
    %5928 = vmatprep.subr.mxu0 0.0
    %5929 = vmatpush1.msra.mxu0 0.0
    %5930 = vmatprep.subr.mxu0 0.0
    %5931 = vmatpush1.msra.mxu0 0.0
    %5932 = vmatprep.subr.mxu0 0.0
    %5933 = vmatpush1.msra.mxu0 0.0
    %5934 = vmatprep.subr.mxu0 0.0
    %5935 = vmatpush1.msra.mxu0 0.0
    %5936 = vmatprep.subr.mxu0 0.0
    %5937 = vmatpush1.msra.mxu0 0.0
    %5938 = vmatprep.subr.mxu0 0.0
    %5939 = vmatpush1.msra.mxu0 0.0
    %5940 = vmatprep.subr.mxu0 0.0
    %5941 = vmatpush1.msra.mxu0 0.0
    %5942 = vmatprep.subr.mxu0 0.0
    %5943 = vmatpush1.msra.mxu0 0.0
    %5944 = vmatprep.subr.mxu0 0.0
    %5945 = vmatpush1.msra.mxu0 0.0
    %5946 = vmatprep.subr.mxu0 0.0
    %5947 = vmatpush1.msra.mxu0 0.0
    %5948 = vmatprep.subr.mxu0 0.0
    %5949 = vmatpush1.msra.mxu0 0.0
    %5950 = vmatprep.subr.mxu0 0.0
    %5951 = vmatpush1.msra.mxu0 0.0
    %5952 = vmatprep.subr.mxu0 0.0
    %5953 = vmatpush1.msra.mxu0 0.0
    %5954 = vmatprep.subr.mxu0 0.0
    %5955 = vmatpush1.msra.mxu0 0.0
    %5956 = vmatprep.subr.mxu0 0.0
    %5957 = vmatpush1.msra.mxu0 0.0
    %5958 = vmatprep.subr.mxu0 0.0
    %5959 = vmatpush1.msra.mxu0 0.0
    %5960 = vmatprep.subr.mxu0 0.0
    %5961 = vmatpush1.msra.mxu0 0.0
    %5962 = vmatprep.subr.mxu0 0.0
    %5963 = vmatpush1.msra.mxu0 0.0
    %5964 = vmatprep.subr.mxu0 0.0
    %5965 = vmatpush1.msra.mxu0 0.0
    %5966 = vmatprep.subr.mxu0 0.0
    %5967 = vmatpush1.msra.mxu0 0.0
    %5968 = vmatprep.subr.mxu0 0.0
    %5969 = vmatpush1.msra.mxu0 0.0
    %5970 = vmatprep.subr.mxu0 0.0
    %5971 = vmatpush1.msra.mxu0 0.0
    %5972 = vmatprep.subr.mxu0 0.0
    %5973 = vmatpush1.msra.mxu0 0.0
    %5974 = vmatprep.subr.mxu0 0.0
    %5975 = vmatpush1.msra.mxu0 0.0
    %5976 = vmatprep.subr.mxu0 0.0
    %5977 = vmatpush1.msra.mxu0 0.0
    %5978 = vmatprep.subr.mxu0 0.0
    %5979 = vmatpush1.msra.mxu0 0.0
    %5980 = vmatprep.subr.mxu0 0.0
    %5981 = vmatpush1.msra.mxu0 0.0
    %5982 = vmatprep.subr.mxu0 0.0
    %5983 = vmatpush1.msra.mxu0 0.0
    %5984 = vmatprep.subr.mxu0 0.0
    %5985 = vmatpush1.msra.mxu0 0.0
    %5986 = vmatprep.mubr.f32.mxu0 0.0
    %5987 = vmatmul.mubr.f32.gmra.mrb[0].mxu0 %v5917
    %v5988 = vpop.f32.mrb[0].mxu0
    %v5989 = vadd.f32 0.0, %v5988
    %v5990 = vpop.f32.mrb[0].mxu0
    %5991 = vmatprep.mubr.f32.mxu0 0.0
    %5992 = vmatmul.mubr.f32.gmra.mrb[0].mxu0 %v5920
    %v5993 = vpop.f32.mrb[0].mxu0
    %v5994 = vadd.f32 0.0, %v5993
    %v5995 = vpop.f32.mrb[0].mxu0
    %5996 = vdwg.mxu0
    %v5998 = vsel %vm4394, %v5989, 0
    %v6001 = vsel %vm4394, %v5994, 0
    %6003 = vmatprep.subr.mxu0 0.0
    %6004 = vmatpush1.msra.mxu0 %v4385
    %6005 = vmatprep.subr.mxu0 0.0
    %6006 = vmatpush1.msra.mxu0 0.0
    %6007 = vmatprep.subr.mxu0 0.0
    %6008 = vmatpush1.msra.mxu0 0.0
    %6009 = vmatprep.subr.mxu0 0.0
    %6010 = vmatpush1.msra.mxu0 0.0
    %6011 = vmatprep.subr.mxu0 0.0
    %6012 = vmatpush1.msra.mxu0 0.0
    %6013 = vmatprep.subr.mxu0 0.0
    %6014 = vmatpush1.msra.mxu0 0.0
    %6015 = vmatprep.subr.mxu0 0.0
    %6016 = vmatpush1.msra.mxu0 0.0
    %6017 = vmatprep.subr.mxu0 0.0
    %6018 = vmatpush1.msra.mxu0 0.0
    %6019 = vmatprep.subr.mxu0 0.0
    %6020 = vmatpush1.msra.mxu0 0.0
    %6021 = vmatprep.subr.mxu0 0.0
    %6022 = vmatpush1.msra.mxu0 0.0
    %6023 = vmatprep.subr.mxu0 0.0
    %6024 = vmatpush1.msra.mxu0 0.0
    %6025 = vmatprep.subr.mxu0 0.0
    %6026 = vmatpush1.msra.mxu0 0.0
    %6027 = vmatprep.subr.mxu0 0.0
    %6028 = vmatpush1.msra.mxu0 0.0
    %6029 = vmatprep.subr.mxu0 0.0
    %6030 = vmatpush1.msra.mxu0 0.0
    %6031 = vmatprep.subr.mxu0 0.0
    %6032 = vmatpush1.msra.mxu0 0.0
    %6033 = vmatprep.subr.mxu0 0.0
    %6034 = vmatpush1.msra.mxu0 0.0
    %6035 = vmatprep.subr.mxu0 0.0
    %6036 = vmatpush1.msra.mxu0 0.0
    %6037 = vmatprep.subr.mxu0 0.0
    %6038 = vmatpush1.msra.mxu0 0.0
    %6039 = vmatprep.subr.mxu0 0.0
    %6040 = vmatpush1.msra.mxu0 0.0
    %6041 = vmatprep.subr.mxu0 0.0
    %6042 = vmatpush1.msra.mxu0 0.0
    %6043 = vmatprep.subr.mxu0 0.0
    %6044 = vmatpush1.msra.mxu0 0.0
    %6045 = vmatprep.subr.mxu0 0.0
    %6046 = vmatpush1.msra.mxu0 0.0
    %6047 = vmatprep.subr.mxu0 0.0
    %6048 = vmatpush1.msra.mxu0 0.0
    %6049 = vmatprep.subr.mxu0 0.0
    %6050 = vmatpush1.msra.mxu0 0.0
    %6051 = vmatprep.subr.mxu0 0.0
    %6052 = vmatpush1.msra.mxu0 0.0
    %6053 = vmatprep.subr.mxu0 0.0
    %6054 = vmatpush1.msra.mxu0 0.0
    %6055 = vmatprep.subr.mxu0 0.0
    %6056 = vmatpush1.msra.mxu0 0.0
    %6057 = vmatprep.subr.mxu0 0.0
    %6058 = vmatpush1.msra.mxu0 0.0
    %6059 = vmatprep.subr.mxu0 0.0
    %6060 = vmatpush1.msra.mxu0 0.0
    %6061 = vmatprep.subr.mxu0 0.0
    %6062 = vmatpush1.msra.mxu0 0.0
    %6063 = vmatprep.subr.mxu0 0.0
    %6064 = vmatpush1.msra.mxu0 0.0
    %6065 = vmatprep.subr.mxu0 0.0
    %6066 = vmatpush1.msra.mxu0 0.0
    %6067 = vmatprep.mubr.f32.mxu0 0.0
    %6068 = vmatmul.mubr.f32.gmra.mrb[0].mxu0 %v5998
    %v6069 = vpop.f32.mrb[0].mxu0
    %v6070 = vadd.f32 0.0, %v6069
    %v6071 = vpop.f32.mrb[0].mxu0
    %6072 = vmatprep.mubr.f32.mxu0 0.0
    %6073 = vmatmul.mubr.f32.gmra.mrb[0].mxu0 %v6001
    %v6074 = vpop.f32.mrb[0].mxu0
    %v6075 = vadd.f32 0.0, %v6074
    %v6076 = vpop.f32.mrb[0].mxu0
    %6077 = vdwg.mxu0
    %v6078 = vadd.f32 %v5795, %v6070
    %v6079 = vadd.f32 %v5796, %v6075
    %6080 = vrot.lane.b32.xlu0 %v4333, 80
    %v6081 = vpop.permute.xlu0 %6080
    %6082 = vrot.lane.b32.xlu0 %v4334, 80
    %v6083 = vpop.permute.xlu0 %6082
    %6084 = vrot.lane.b32.xlu0 %v4323, 16
    %v6085 = vpop.permute.xlu0 %6084
    %6086 = vrot.lane.b32.xlu0 %v4329, 16
    %v6087 = vpop.permute.xlu0 %6086
    %v6088 = vsel %vm4394, %v6081, 0
    %v6090 = vsel %vm4394, %v6083, 0
    %v6092 = vsel %vm4394, %v6085, 0
    %v6094 = vsel %vm4394, %v6087, 0
    %6096 = vmatprep.subr.mxu0 0.0
    %6097 = vmatpush1.xpose.msra.mxu0 %v6092
    %6098 = vmatprep.subr.mxu0 0.0
    %6099 = vmatpush1.xpose.msra.mxu0 %v6094
    %6100 = vmatprep.subr.mxu0 0.0
    %6101 = vmatpush1.xpose.msra.mxu0 0.0
    %6102 = vmatprep.subr.mxu0 0.0
    %6103 = vmatpush1.xpose.msra.mxu0 0.0
    %6104 = vmatprep.subr.mxu0 0.0
    %6105 = vmatpush1.xpose.msra.mxu0 0.0
    %6106 = vmatprep.subr.mxu0 0.0
    %6107 = vmatpush1.xpose.msra.mxu0 0.0
    %6108 = vmatprep.subr.mxu0 0.0
    %6109 = vmatpush1.xpose.msra.mxu0 0.0
    %6110 = vmatprep.subr.mxu0 0.0
    %6111 = vmatpush1.xpose.msra.mxu0 0.0
    %6112 = vmatprep.subr.mxu0 0.0
    %6113 = vmatpush1.xpose.msra.mxu0 0.0
    %6114 = vmatprep.subr.mxu0 0.0
    %6115 = vmatpush1.xpose.msra.mxu0 0.0
    %6116 = vmatprep.subr.mxu0 0.0
    %6117 = vmatpush1.xpose.msra.mxu0 0.0
    %6118 = vmatprep.subr.mxu0 0.0
    %6119 = vmatpush1.xpose.msra.mxu0 0.0
    %6120 = vmatprep.subr.mxu0 0.0
    %6121 = vmatpush1.xpose.msra.mxu0 0.0
    %6122 = vmatprep.subr.mxu0 0.0
    %6123 = vmatpush1.xpose.msra.mxu0 0.0
    %6124 = vmatprep.subr.mxu0 0.0
    %6125 = vmatpush1.xpose.msra.mxu0 0.0
    %6126 = vmatprep.subr.mxu0 0.0
    %6127 = vmatpush1.xpose.msra.mxu0 0.0
    %6128 = vmatprep.subr.mxu0 0.0
    %6129 = vmatpush1.xpose.msra.mxu0 0.0
    %6130 = vmatprep.subr.mxu0 0.0
    %6131 = vmatpush1.xpose.msra.mxu0 0.0
    %6132 = vmatprep.subr.mxu0 0.0
    %6133 = vmatpush1.xpose.msra.mxu0 0.0
    %6134 = vmatprep.subr.mxu0 0.0
    %6135 = vmatpush1.xpose.msra.mxu0 0.0
    %6136 = vmatprep.subr.mxu0 0.0
    %6137 = vmatpush1.xpose.msra.mxu0 0.0
    %6138 = vmatprep.subr.mxu0 0.0
    %6139 = vmatpush1.xpose.msra.mxu0 0.0
    %6140 = vmatprep.subr.mxu0 0.0
    %6141 = vmatpush1.xpose.msra.mxu0 0.0
    %6142 = vmatprep.subr.mxu0 0.0
    %6143 = vmatpush1.xpose.msra.mxu0 0.0
    %6144 = vmatprep.subr.mxu0 0.0
    %6145 = vmatpush1.xpose.msra.mxu0 0.0
    %6146 = vmatprep.subr.mxu0 0.0
    %6147 = vmatpush1.xpose.msra.mxu0 0.0
    %6148 = vmatprep.subr.mxu0 0.0
    %6149 = vmatpush1.xpose.msra.mxu0 0.0
    %6150 = vmatprep.subr.mxu0 0.0
    %6151 = vmatpush1.xpose.msra.mxu0 0.0
    %6152 = vmatprep.subr.mxu0 0.0
    %6153 = vmatpush1.xpose.msra.mxu0 0.0
    %6154 = vmatprep.subr.mxu0 0.0
    %6155 = vmatpush1.xpose.msra.mxu0 0.0
    %6156 = vmatprep.subr.mxu0 0.0
    %6157 = vmatpush1.xpose.msra.mxu0 0.0
    %6158 = vmatprep.subr.mxu0 0.0
    %6159 = vmatpush1.xpose.msra.mxu0 0.0
    %6160 = vmatprep.mubr.f32.mxu0 0.0
    %6161 = vmatmul.mubr.f32.gmra.mrb[0].mxu0 %v6088
    %v6162 = vpop.f32.mrb[0].mxu0
    %v6163 = vadd.f32 %v4378, %v6162
    %v6164 = vpop.f32.mrb[0].mxu0
    %6165 = vmatprep.mubr.f32.mxu0 0.0
    %6166 = vmatmul.mubr.f32.gmra.mrb[0].mxu0 %v6090
    %v6167 = vpop.f32.mrb[0].mxu0
    %v6168 = vadd.f32 %v4379, %v6167
    %v6169 = vpop.f32.mrb[0].mxu0
    %6170 = vdwg.mxu0
    %v6171 = vsel %vm4480, %v6163, -inf
    %6172 = vmax.xlane.f32.xlu0 %v6171
    %v6173 = vpop.xlane.xlu0 %6172
    %v6174 = vsel %vm4480, %v6168, -inf
    %6175 = vmax.xlane.f32.xlu0 %v6174
    %v6176 = vpop.xlane.xlu0 %6175
    %v6177 = vsub.f32 %v6163, %v6173
    %v6178 = vsub.f32 %v6168, %v6176
    %v6179 = vmul.f32 %v6177, 1.442695
    %v6180 = vpow.pop %v6179
    %v6181 = vmul.f32 %v6178, 1.442695
    %v6182 = vpow.pop %v6181
    %v6183 = vsel %vm4480, %v6180, 0.0
    %6184 = vadd.xlane.f32.xlu0 %v6183
    %v6185 = vpop.xlane.xlu0 %6184
    %v6186 = vsel %vm4480, %v6182, 0.0
    %6187 = vadd.xlane.f32.xlu0 %v6186
    %v6188 = vpop.xlane.xlu0 %6187
    %v6189 = vrcp.pop %v6185
    %v6190 = vmul.f32 %v6180, %v6189
    %v6191 = vrcp.pop %v6188
    %v6192 = vmul.f32 %v6182, %v6191
    %6193 = vrot.lane.b32.xlu0 %v4325, 80
    %v6194 = vpop.permute.xlu0 %6193
    %6195 = vrot.lane.b32.xlu0 %v4331, 80
    %v6196 = vpop.permute.xlu0 %6195
    %v6200 = vsel %vm4480, %v6190, 0
    %v6203 = vsel %vm4480, %v6192, 0
    %6205 = vmatprep.subr.mxu0 0.0
    %6206 = vmatpush1.msra.mxu0 %v6194
    %6207 = vmatprep.subr.mxu0 0.0
    %6208 = vmatpush1.msra.mxu0 %v6196
    %6209 = vmatprep.subr.mxu0 0.0
    %6210 = vmatpush1.msra.mxu0 0.0
    %6211 = vmatprep.subr.mxu0 0.0
    %6212 = vmatpush1.msra.mxu0 0.0
    %6213 = vmatprep.subr.mxu0 0.0
    %6214 = vmatpush1.msra.mxu0 0.0
    %6215 = vmatprep.subr.mxu0 0.0
    %6216 = vmatpush1.msra.mxu0 0.0
    %6217 = vmatprep.subr.mxu0 0.0
    %6218 = vmatpush1.msra.mxu0 0.0
    %6219 = vmatprep.subr.mxu0 0.0
    %6220 = vmatpush1.msra.mxu0 0.0
    %6221 = vmatprep.subr.mxu0 0.0
    %6222 = vmatpush1.msra.mxu0 0.0
    %6223 = vmatprep.subr.mxu0 0.0
    %6224 = vmatpush1.msra.mxu0 0.0
    %6225 = vmatprep.subr.mxu0 0.0
    %6226 = vmatpush1.msra.mxu0 0.0
    %6227 = vmatprep.subr.mxu0 0.0
    %6228 = vmatpush1.msra.mxu0 0.0
    %6229 = vmatprep.subr.mxu0 0.0
    %6230 = vmatpush1.msra.mxu0 0.0
    %6231 = vmatprep.subr.mxu0 0.0
    %6232 = vmatpush1.msra.mxu0 0.0
    %6233 = vmatprep.subr.mxu0 0.0
    %6234 = vmatpush1.msra.mxu0 0.0
    %6235 = vmatprep.subr.mxu0 0.0
    %6236 = vmatpush1.msra.mxu0 0.0
    %6237 = vmatprep.subr.mxu0 0.0
    %6238 = vmatpush1.msra.mxu0 0.0
    %6239 = vmatprep.subr.mxu0 0.0
    %6240 = vmatpush1.msra.mxu0 0.0
    %6241 = vmatprep.subr.mxu0 0.0
    %6242 = vmatpush1.msra.mxu0 0.0
    %6243 = vmatprep.subr.mxu0 0.0
    %6244 = vmatpush1.msra.mxu0 0.0
    %6245 = vmatprep.subr.mxu0 0.0
    %6246 = vmatpush1.msra.mxu0 0.0
    %6247 = vmatprep.subr.mxu0 0.0
    %6248 = vmatpush1.msra.mxu0 0.0
    %6249 = vmatprep.subr.mxu0 0.0
    %6250 = vmatpush1.msra.mxu0 0.0
    %6251 = vmatprep.subr.mxu0 0.0
    %6252 = vmatpush1.msra.mxu0 0.0
    %6253 = vmatprep.subr.mxu0 0.0
    %6254 = vmatpush1.msra.mxu0 0.0
    %6255 = vmatprep.subr.mxu0 0.0
    %6256 = vmatpush1.msra.mxu0 0.0
    %6257 = vmatprep.subr.mxu0 0.0
    %6258 = vmatpush1.msra.mxu0 0.0
    %6259 = vmatprep.subr.mxu0 0.0
    %6260 = vmatpush1.msra.mxu0 0.0
    %6261 = vmatprep.subr.mxu0 0.0
    %6262 = vmatpush1.msra.mxu0 0.0
    %6263 = vmatprep.subr.mxu0 0.0
    %6264 = vmatpush1.msra.mxu0 0.0
    %6265 = vmatprep.subr.mxu0 0.0
    %6266 = vmatpush1.msra.mxu0 0.0
    %6267 = vmatprep.subr.mxu0 0.0
    %6268 = vmatpush1.msra.mxu0 0.0
    %6269 = vmatprep.mubr.f32.mxu0 0.0
    %6270 = vmatmul.mubr.f32.gmra.mrb[0].mxu0 %v6200
    %v6271 = vpop.f32.mrb[0].mxu0
    %v6272 = vadd.f32 0.0, %v6271
    %v6273 = vpop.f32.mrb[0].mxu0
    %6274 = vmatprep.mubr.f32.mxu0 0.0
    %6275 = vmatmul.mubr.f32.gmra.mrb[0].mxu0 %v6203
    %v6276 = vpop.f32.mrb[0].mxu0
    %v6277 = vadd.f32 0.0, %v6276
    %v6278 = vpop.f32.mrb[0].mxu0
    %6279 = vdwg.mxu0
    %v6281 = vsel %vm4394, %v6272, 0
    %v6284 = vsel %vm4394, %v6277, 0
    %6286 = vmatprep.subr.mxu0 0.0
    %6287 = vmatpush1.msra.mxu0 %v4386
    %6288 = vmatprep.subr.mxu0 0.0
    %6289 = vmatpush1.msra.mxu0 0.0
    %6290 = vmatprep.subr.mxu0 0.0
    %6291 = vmatpush1.msra.mxu0 0.0
    %6292 = vmatprep.subr.mxu0 0.0
    %6293 = vmatpush1.msra.mxu0 0.0
    %6294 = vmatprep.subr.mxu0 0.0
    %6295 = vmatpush1.msra.mxu0 0.0
    %6296 = vmatprep.subr.mxu0 0.0
    %6297 = vmatpush1.msra.mxu0 0.0
    %6298 = vmatprep.subr.mxu0 0.0
    %6299 = vmatpush1.msra.mxu0 0.0
    %6300 = vmatprep.subr.mxu0 0.0
    %6301 = vmatpush1.msra.mxu0 0.0
    %6302 = vmatprep.subr.mxu0 0.0
    %6303 = vmatpush1.msra.mxu0 0.0
    %6304 = vmatprep.subr.mxu0 0.0
    %6305 = vmatpush1.msra.mxu0 0.0
    %6306 = vmatprep.subr.mxu0 0.0
    %6307 = vmatpush1.msra.mxu0 0.0
    %6308 = vmatprep.subr.mxu0 0.0
    %6309 = vmatpush1.msra.mxu0 0.0
    %6310 = vmatprep.subr.mxu0 0.0
    %6311 = vmatpush1.msra.mxu0 0.0
    %6312 = vmatprep.subr.mxu0 0.0
    %6313 = vmatpush1.msra.mxu0 0.0
    %6314 = vmatprep.subr.mxu0 0.0
    %6315 = vmatpush1.msra.mxu0 0.0
    %6316 = vmatprep.subr.mxu0 0.0
    %6317 = vmatpush1.msra.mxu0 0.0
    %6318 = vmatprep.subr.mxu0 0.0
    %6319 = vmatpush1.msra.mxu0 0.0
    %6320 = vmatprep.subr.mxu0 0.0
    %6321 = vmatpush1.msra.mxu0 0.0
    %6322 = vmatprep.subr.mxu0 0.0
    %6323 = vmatpush1.msra.mxu0 0.0
    %6324 = vmatprep.subr.mxu0 0.0
    %6325 = vmatpush1.msra.mxu0 0.0
    %6326 = vmatprep.subr.mxu0 0.0
    %6327 = vmatpush1.msra.mxu0 0.0
    %6328 = vmatprep.subr.mxu0 0.0
    %6329 = vmatpush1.msra.mxu0 0.0
    %6330 = vmatprep.subr.mxu0 0.0
    %6331 = vmatpush1.msra.mxu0 0.0
    %6332 = vmatprep.subr.mxu0 0.0
    %6333 = vmatpush1.msra.mxu0 0.0
    %6334 = vmatprep.subr.mxu0 0.0
    %6335 = vmatpush1.msra.mxu0 0.0
    %6336 = vmatprep.subr.mxu0 0.0
    %6337 = vmatpush1.msra.mxu0 0.0
    %6338 = vmatprep.subr.mxu0 0.0
    %6339 = vmatpush1.msra.mxu0 0.0
    %6340 = vmatprep.subr.mxu0 0.0
    %6341 = vmatpush1.msra.mxu0 0.0
    %6342 = vmatprep.subr.mxu0 0.0
    %6343 = vmatpush1.msra.mxu0 0.0
    %6344 = vmatprep.subr.mxu0 0.0
    %6345 = vmatpush1.msra.mxu0 0.0
    %6346 = vmatprep.subr.mxu0 0.0
    %6347 = vmatpush1.msra.mxu0 0.0
    %6348 = vmatprep.subr.mxu0 0.0
    %6349 = vmatpush1.msra.mxu0 0.0
    %6350 = vmatprep.mubr.f32.mxu0 0.0
    %6351 = vmatmul.mubr.f32.gmra.mrb[0].mxu0 %v6281
    %v6352 = vpop.f32.mrb[0].mxu0
    %v6353 = vadd.f32 0.0, %v6352
    %v6354 = vpop.f32.mrb[0].mxu0
    %6355 = vmatprep.mubr.f32.mxu0 0.0
    %6356 = vmatmul.mubr.f32.gmra.mrb[0].mxu0 %v6284
    %v6357 = vpop.f32.mrb[0].mxu0
    %v6358 = vadd.f32 0.0, %v6357
    %v6359 = vpop.f32.mrb[0].mxu0
    %6360 = vdwg.mxu0
    %v6361 = vadd.f32 %v6078, %v6353
    %v6362 = vadd.f32 %v6079, %v6358
    %6363 = vrot.lane.b32.xlu0 %v4333, 72
    %v6364 = vpop.permute.xlu0 %6363
    %6365 = vrot.lane.b32.xlu0 %v4334, 72
    %v6366 = vpop.permute.xlu0 %6365
    %6367 = vrot.lane.b32.xlu0 %v4323, 8
    %v6368 = vpop.permute.xlu0 %6367
    %6369 = vrot.lane.b32.xlu0 %v4329, 8
    %v6370 = vpop.permute.xlu0 %6369
    %v6371 = vsel %vm4394, %v6364, 0
    %v6373 = vsel %vm4394, %v6366, 0
    %v6375 = vsel %vm4394, %v6368, 0
    %v6377 = vsel %vm4394, %v6370, 0
    %6379 = vmatprep.subr.mxu0 0.0
    %6380 = vmatpush1.xpose.msra.mxu0 %v6375
    %6381 = vmatprep.subr.mxu0 0.0
    %6382 = vmatpush1.xpose.msra.mxu0 %v6377
    %6383 = vmatprep.subr.mxu0 0.0
    %6384 = vmatpush1.xpose.msra.mxu0 0.0
    %6385 = vmatprep.subr.mxu0 0.0
    %6386 = vmatpush1.xpose.msra.mxu0 0.0
    %6387 = vmatprep.subr.mxu0 0.0
    %6388 = vmatpush1.xpose.msra.mxu0 0.0
    %6389 = vmatprep.subr.mxu0 0.0
    %6390 = vmatpush1.xpose.msra.mxu0 0.0
    %6391 = vmatprep.subr.mxu0 0.0
    %6392 = vmatpush1.xpose.msra.mxu0 0.0
    %6393 = vmatprep.subr.mxu0 0.0
    %6394 = vmatpush1.xpose.msra.mxu0 0.0
    %6395 = vmatprep.subr.mxu0 0.0
    %6396 = vmatpush1.xpose.msra.mxu0 0.0
    %6397 = vmatprep.subr.mxu0 0.0
    %6398 = vmatpush1.xpose.msra.mxu0 0.0
    %6399 = vmatprep.subr.mxu0 0.0
    %6400 = vmatpush1.xpose.msra.mxu0 0.0
    %6401 = vmatprep.subr.mxu0 0.0
    %6402 = vmatpush1.xpose.msra.mxu0 0.0
    %6403 = vmatprep.subr.mxu0 0.0
    %6404 = vmatpush1.xpose.msra.mxu0 0.0
    %6405 = vmatprep.subr.mxu0 0.0
    %6406 = vmatpush1.xpose.msra.mxu0 0.0
    %6407 = vmatprep.subr.mxu0 0.0
    %6408 = vmatpush1.xpose.msra.mxu0 0.0
    %6409 = vmatprep.subr.mxu0 0.0
    %6410 = vmatpush1.xpose.msra.mxu0 0.0
    %6411 = vmatprep.subr.mxu0 0.0
    %6412 = vmatpush1.xpose.msra.mxu0 0.0
    %6413 = vmatprep.subr.mxu0 0.0
    %6414 = vmatpush1.xpose.msra.mxu0 0.0
    %6415 = vmatprep.subr.mxu0 0.0
    %6416 = vmatpush1.xpose.msra.mxu0 0.0
    %6417 = vmatprep.subr.mxu0 0.0
    %6418 = vmatpush1.xpose.msra.mxu0 0.0
    %6419 = vmatprep.subr.mxu0 0.0
    %6420 = vmatpush1.xpose.msra.mxu0 0.0
    %6421 = vmatprep.subr.mxu0 0.0
    %6422 = vmatpush1.xpose.msra.mxu0 0.0
    %6423 = vmatprep.subr.mxu0 0.0
    %6424 = vmatpush1.xpose.msra.mxu0 0.0
    %6425 = vmatprep.subr.mxu0 0.0
    %6426 = vmatpush1.xpose.msra.mxu0 0.0
    %6427 = vmatprep.subr.mxu0 0.0
    %6428 = vmatpush1.xpose.msra.mxu0 0.0
    %6429 = vmatprep.subr.mxu0 0.0
    %6430 = vmatpush1.xpose.msra.mxu0 0.0
    %6431 = vmatprep.subr.mxu0 0.0
    %6432 = vmatpush1.xpose.msra.mxu0 0.0
    %6433 = vmatprep.subr.mxu0 0.0
    %6434 = vmatpush1.xpose.msra.mxu0 0.0
    %6435 = vmatprep.subr.mxu0 0.0
    %6436 = vmatpush1.xpose.msra.mxu0 0.0
    %6437 = vmatprep.subr.mxu0 0.0
    %6438 = vmatpush1.xpose.msra.mxu0 0.0
    %6439 = vmatprep.subr.mxu0 0.0
    %6440 = vmatpush1.xpose.msra.mxu0 0.0
    %6441 = vmatprep.subr.mxu0 0.0
    %6442 = vmatpush1.xpose.msra.mxu0 0.0
    %6443 = vmatprep.mubr.f32.mxu0 0.0
    %6444 = vmatmul.mubr.f32.gmra.mrb[0].mxu0 %v6371
    %v6445 = vpop.f32.mrb[0].mxu0
    %v6446 = vadd.f32 %v4378, %v6445
    %v6447 = vpop.f32.mrb[0].mxu0
    %6448 = vmatprep.mubr.f32.mxu0 0.0
    %6449 = vmatmul.mubr.f32.gmra.mrb[0].mxu0 %v6373
    %v6450 = vpop.f32.mrb[0].mxu0
    %v6451 = vadd.f32 %v4379, %v6450
    %v6452 = vpop.f32.mrb[0].mxu0
    %6453 = vdwg.mxu0
    %v6454 = vsel %vm4480, %v6446, -inf
    %6455 = vmax.xlane.f32.xlu0 %v6454
    %v6456 = vpop.xlane.xlu0 %6455
    %v6457 = vsel %vm4480, %v6451, -inf
    %6458 = vmax.xlane.f32.xlu0 %v6457
    %v6459 = vpop.xlane.xlu0 %6458
    %v6460 = vsub.f32 %v6446, %v6456
    %v6461 = vsub.f32 %v6451, %v6459
    %v6462 = vmul.f32 %v6460, 1.442695
    %v6463 = vpow.pop %v6462
    %v6464 = vmul.f32 %v6461, 1.442695
    %v6465 = vpow.pop %v6464
    %v6466 = vsel %vm4480, %v6463, 0.0
    %6467 = vadd.xlane.f32.xlu0 %v6466
    %v6468 = vpop.xlane.xlu0 %6467
    %v6469 = vsel %vm4480, %v6465, 0.0
    %6470 = vadd.xlane.f32.xlu0 %v6469
    %v6471 = vpop.xlane.xlu0 %6470
    %v6472 = vrcp.pop %v6468
    %v6473 = vmul.f32 %v6463, %v6472
    %v6474 = vrcp.pop %v6471
    %v6475 = vmul.f32 %v6465, %v6474
    %6476 = vrot.lane.b32.xlu0 %v4325, 72
    %v6477 = vpop.permute.xlu0 %6476
    %6478 = vrot.lane.b32.xlu0 %v4331, 72
    %v6479 = vpop.permute.xlu0 %6478
    %v6483 = vsel %vm4480, %v6473, 0
    %v6486 = vsel %vm4480, %v6475, 0
    %6488 = vmatprep.subr.mxu0 0.0
    %6489 = vmatpush1.msra.mxu0 %v6477
    %6490 = vmatprep.subr.mxu0 0.0
    %6491 = vmatpush1.msra.mxu0 %v6479
    %6492 = vmatprep.subr.mxu0 0.0
    %6493 = vmatpush1.msra.mxu0 0.0
    %6494 = vmatprep.subr.mxu0 0.0
    %6495 = vmatpush1.msra.mxu0 0.0
    %6496 = vmatprep.subr.mxu0 0.0
    %6497 = vmatpush1.msra.mxu0 0.0
    %6498 = vmatprep.subr.mxu0 0.0
    %6499 = vmatpush1.msra.mxu0 0.0
    %6500 = vmatprep.subr.mxu0 0.0
    %6501 = vmatpush1.msra.mxu0 0.0
    %6502 = vmatprep.subr.mxu0 0.0
    %6503 = vmatpush1.msra.mxu0 0.0
    %6504 = vmatprep.subr.mxu0 0.0
    %6505 = vmatpush1.msra.mxu0 0.0
    %6506 = vmatprep.subr.mxu0 0.0
    %6507 = vmatpush1.msra.mxu0 0.0
    %6508 = vmatprep.subr.mxu0 0.0
    %6509 = vmatpush1.msra.mxu0 0.0
    %6510 = vmatprep.subr.mxu0 0.0
    %6511 = vmatpush1.msra.mxu0 0.0
    %6512 = vmatprep.subr.mxu0 0.0
    %6513 = vmatpush1.msra.mxu0 0.0
    %6514 = vmatprep.subr.mxu0 0.0
    %6515 = vmatpush1.msra.mxu0 0.0
    %6516 = vmatprep.subr.mxu0 0.0
    %6517 = vmatpush1.msra.mxu0 0.0
    %6518 = vmatprep.subr.mxu0 0.0
    %6519 = vmatpush1.msra.mxu0 0.0
    %6520 = vmatprep.subr.mxu0 0.0
    %6521 = vmatpush1.msra.mxu0 0.0
    %6522 = vmatprep.subr.mxu0 0.0
    %6523 = vmatpush1.msra.mxu0 0.0
    %6524 = vmatprep.subr.mxu0 0.0
    %6525 = vmatpush1.msra.mxu0 0.0
    %6526 = vmatprep.subr.mxu0 0.0
    %6527 = vmatpush1.msra.mxu0 0.0
    %6528 = vmatprep.subr.mxu0 0.0
    %6529 = vmatpush1.msra.mxu0 0.0
    %6530 = vmatprep.subr.mxu0 0.0
    %6531 = vmatpush1.msra.mxu0 0.0
    %6532 = vmatprep.subr.mxu0 0.0
    %6533 = vmatpush1.msra.mxu0 0.0
    %6534 = vmatprep.subr.mxu0 0.0
    %6535 = vmatpush1.msra.mxu0 0.0
    %6536 = vmatprep.subr.mxu0 0.0
    %6537 = vmatpush1.msra.mxu0 0.0
    %6538 = vmatprep.subr.mxu0 0.0
    %6539 = vmatpush1.msra.mxu0 0.0
    %6540 = vmatprep.subr.mxu0 0.0
    %6541 = vmatpush1.msra.mxu0 0.0
    %6542 = vmatprep.subr.mxu0 0.0
    %6543 = vmatpush1.msra.mxu0 0.0
    %6544 = vmatprep.subr.mxu0 0.0
    %6545 = vmatpush1.msra.mxu0 0.0
    %6546 = vmatprep.subr.mxu0 0.0
    %6547 = vmatpush1.msra.mxu0 0.0
    %6548 = vmatprep.subr.mxu0 0.0
    %6549 = vmatpush1.msra.mxu0 0.0
    %6550 = vmatprep.subr.mxu0 0.0
    %6551 = vmatpush1.msra.mxu0 0.0
    %6552 = vmatprep.mubr.f32.mxu0 0.0
    %6553 = vmatmul.mubr.f32.gmra.mrb[0].mxu0 %v6483
    %v6554 = vpop.f32.mrb[0].mxu0
    %v6555 = vadd.f32 0.0, %v6554
    %v6556 = vpop.f32.mrb[0].mxu0
    %6557 = vmatprep.mubr.f32.mxu0 0.0
    %6558 = vmatmul.mubr.f32.gmra.mrb[0].mxu0 %v6486
    %v6559 = vpop.f32.mrb[0].mxu0
    %v6560 = vadd.f32 0.0, %v6559
    %v6561 = vpop.f32.mrb[0].mxu0
    %6562 = vdwg.mxu0
    %v6564 = vsel %vm4394, %v6555, 0
    %v6567 = vsel %vm4394, %v6560, 0
    %6569 = vmatprep.subr.mxu0 0.0
    %6570 = vmatpush1.msra.mxu0 %v4387
    %6571 = vmatprep.subr.mxu0 0.0
    %6572 = vmatpush1.msra.mxu0 0.0
    %6573 = vmatprep.subr.mxu0 0.0
    %6574 = vmatpush1.msra.mxu0 0.0
    %6575 = vmatprep.subr.mxu0 0.0
    %6576 = vmatpush1.msra.mxu0 0.0
    %6577 = vmatprep.subr.mxu0 0.0
    %6578 = vmatpush1.msra.mxu0 0.0
    %6579 = vmatprep.subr.mxu0 0.0
    %6580 = vmatpush1.msra.mxu0 0.0
    %6581 = vmatprep.subr.mxu0 0.0
    %6582 = vmatpush1.msra.mxu0 0.0
    %6583 = vmatprep.subr.mxu0 0.0
    %6584 = vmatpush1.msra.mxu0 0.0
    %6585 = vmatprep.subr.mxu0 0.0
    %6586 = vmatpush1.msra.mxu0 0.0
    %6587 = vmatprep.subr.mxu0 0.0
    %6588 = vmatpush1.msra.mxu0 0.0
    %6589 = vmatprep.subr.mxu0 0.0
    %6590 = vmatpush1.msra.mxu0 0.0
    %6591 = vmatprep.subr.mxu0 0.0
    %6592 = vmatpush1.msra.mxu0 0.0
    %6593 = vmatprep.subr.mxu0 0.0
    %6594 = vmatpush1.msra.mxu0 0.0
    %6595 = vmatprep.subr.mxu0 0.0
    %6596 = vmatpush1.msra.mxu0 0.0
    %6597 = vmatprep.subr.mxu0 0.0
    %6598 = vmatpush1.msra.mxu0 0.0
    %6599 = vmatprep.subr.mxu0 0.0
    %6600 = vmatpush1.msra.mxu0 0.0
    %6601 = vmatprep.subr.mxu0 0.0
    %6602 = vmatpush1.msra.mxu0 0.0
    %6603 = vmatprep.subr.mxu0 0.0
    %6604 = vmatpush1.msra.mxu0 0.0
    %6605 = vmatprep.subr.mxu0 0.0
    %6606 = vmatpush1.msra.mxu0 0.0
    %6607 = vmatprep.subr.mxu0 0.0
    %6608 = vmatpush1.msra.mxu0 0.0
    %6609 = vmatprep.subr.mxu0 0.0
    %6610 = vmatpush1.msra.mxu0 0.0
    %6611 = vmatprep.subr.mxu0 0.0
    %6612 = vmatpush1.msra.mxu0 0.0
    %6613 = vmatprep.subr.mxu0 0.0
    %6614 = vmatpush1.msra.mxu0 0.0
    %6615 = vmatprep.subr.mxu0 0.0
    %6616 = vmatpush1.msra.mxu0 0.0
    %6617 = vmatprep.subr.mxu0 0.0
    %6618 = vmatpush1.msra.mxu0 0.0
    %6619 = vmatprep.subr.mxu0 0.0
    %6620 = vmatpush1.msra.mxu0 0.0
    %6621 = vmatprep.subr.mxu0 0.0
    %6622 = vmatpush1.msra.mxu0 0.0
    %6623 = vmatprep.subr.mxu0 0.0
    %6624 = vmatpush1.msra.mxu0 0.0
    %6625 = vmatprep.subr.mxu0 0.0
    %6626 = vmatpush1.msra.mxu0 0.0
    %6627 = vmatprep.subr.mxu0 0.0
    %6628 = vmatpush1.msra.mxu0 0.0
    %6629 = vmatprep.subr.mxu0 0.0
    %6630 = vmatpush1.msra.mxu0 0.0
    %6631 = vmatprep.subr.mxu0 0.0
    %6632 = vmatpush1.msra.mxu0 0.0
    %6633 = vmatprep.mubr.f32.mxu0 0.0
    %6634 = vmatmul.mubr.f32.gmra.mrb[0].mxu0 %v6564
    %v6635 = vpop.f32.mrb[0].mxu0
    %v6636 = vadd.f32 0.0, %v6635
    %v6637 = vpop.f32.mrb[0].mxu0
    %6638 = vmatprep.mubr.f32.mxu0 0.0
    %6639 = vmatmul.mubr.f32.gmra.mrb[0].mxu0 %v6567
    %v6640 = vpop.f32.mrb[0].mxu0
    %v6641 = vadd.f32 0.0, %v6640
    %v6642 = vpop.f32.mrb[0].mxu0
    %6643 = vdwg.mxu0
    %v6644 = vadd.f32 %v6361, %v6636
    %v6645 = vadd.f32 %v6362, %v6641
    %v6646 = vld [vmem:[#allocation17] sm:$0x1]
    %v6648 = vlaneseq
    %v6649 = vshrl.u32 %v6648, 7
    %v6650 = vsub.s32 0, %v6649
    %v6651 = vrot.slane %v6646, %v6650
    %v6653 = vadd.f32 %v6644, %v6651
    %v6654 = vadd.f32 %v6645, %v6651
    %v6655 = vld [vmem:[%s20] sm:$0x1]
    %v6657 = vlaneseq
    %v6658 = vshrl.u32 %v6657, 7
    %v6659 = vsub.s32 0, %v6658
    %v6660 = vrot.slane %v6655, %v6659
    %v6662 = vadd.f32 %v6660, 0.0
    %v6663 = vld [vmem:[#allocation18] sm:$0xff]
    %v6664 = vld [vmem:[#allocation18 + $0x8] sm:$0xff]
    %v6665 = vld [vmem:[#allocation18 + $0x10] sm:$0xff]
    %v6666 = vld [vmem:[#allocation18 + $0x18] sm:$0xff]
    %v6667 = vld [vmem:[#allocation18 + $0x20] sm:$0xff]
    %v6668 = vld [vmem:[#allocation18 + $0x28] sm:$0xff]
    %v6669 = vld [vmem:[#allocation18 + $0x30] sm:$0xff]
    %v6670 = vld [vmem:[#allocation18 + $0x38] sm:$0xff]
    %v6671 = vld [vmem:[#allocation18 + $0x40] sm:$0xff]
    %v6672 = vld [vmem:[#allocation18 + $0x48] sm:$0xff]
    %v6673 = vld [vmem:[#allocation18 + $0x50] sm:$0xff]
    %v6674 = vld [vmem:[#allocation18 + $0x58] sm:$0xff]
    %v6675 = vld [vmem:[#allocation18 + $0x60] sm:$0xff]
    %v6676 = vld [vmem:[#allocation18 + $0x68] sm:$0xff]
    %v6677 = vld [vmem:[#allocation18 + $0x70] sm:$0xff]
    %v6678 = vld [vmem:[#allocation18 + $0x78] sm:$0xff]
    %s6679 = scalar_lea.vmem [#allocation18], 128
    %v6680 = vld [vmem:[%s6679] sm:$0xff]
    %v6681 = vld [vmem:[%s6679 + $0x8] sm:$0xff]
    %v6682 = vld [vmem:[%s6679 + $0x10] sm:$0xff]
    %v6683 = vld [vmem:[%s6679 + $0x18] sm:$0xff]
    %v6684 = vld [vmem:[%s6679 + $0x20] sm:$0xff]
    %v6685 = vld [vmem:[%s6679 + $0x28] sm:$0xff]
    %v6686 = vld [vmem:[%s6679 + $0x30] sm:$0xff]
    %v6687 = vld [vmem:[%s6679 + $0x38] sm:$0xff]
    %v6688 = vld [vmem:[%s6679 + $0x40] sm:$0xff]
    %v6689 = vld [vmem:[%s6679 + $0x48] sm:$0xff]
    %v6690 = vld [vmem:[%s6679 + $0x50] sm:$0xff]
    %v6691 = vld [vmem:[%s6679 + $0x58] sm:$0xff]
    %v6692 = vld [vmem:[%s6679 + $0x60] sm:$0xff]
    %v6693 = vld [vmem:[%s6679 + $0x68] sm:$0xff]
    %v6694 = vld [vmem:[%s6679 + $0x70] sm:$0xff]
    %v6695 = vld [vmem:[%s6679 + $0x78] sm:$0xff]
    %vm6698 = vcmask 1045504
    %v6699 = vrot.slane %v6653, 2
    %v6700 = vrot.slane %v6654, 2
    %v6701 = vsel %vm6698, %v6699, %v6700
    %v6702 = vsel %vm2275, %v6701, 0
    %v6704 = vsel %vm2275, %v6700, 0
    %6706 = vmatprep.subr.mxu0 %v6681
    %6707 = vmatpush1.msra.mxu0 %v6680
    %6708 = vmatprep.subr.mxu0 %v6683
    %6709 = vmatpush1.msra.mxu0 %v6682
    %6710 = vmatprep.subr.mxu0 %v6685
    %6711 = vmatpush1.msra.mxu0 %v6684
    %6712 = vmatprep.subr.mxu0 %v6687
    %6713 = vmatpush1.msra.mxu0 %v6686
    %6714 = vmatprep.subr.mxu0 %v6689
    %6715 = vmatpush1.msra.mxu0 %v6688
    %6716 = vmatprep.subr.mxu0 %v6691
    %6717 = vmatpush1.msra.mxu0 %v6690
    %6718 = vmatprep.subr.mxu0 %v6693
    %6719 = vmatpush1.msra.mxu0 %v6692
    %6720 = vmatprep.subr.mxu0 %v6695
    %6721 = vmatpush1.msra.mxu0 %v6694
    %6722 = vmatprep.subr.mxu0 0.0
    %6723 = vmatpush1.msra.mxu0 0.0
    %6724 = vmatprep.subr.mxu0 0.0
    %6725 = vmatpush1.msra.mxu0 0.0
    %6726 = vmatprep.subr.mxu0 0.0
    %6727 = vmatpush1.msra.mxu0 0.0
    %6728 = vmatprep.subr.mxu0 0.0
    %6729 = vmatpush1.msra.mxu0 0.0
    %6730 = vmatprep.subr.mxu0 0.0
    %6731 = vmatpush1.msra.mxu0 0.0
    %6732 = vmatprep.subr.mxu0 0.0
    %6733 = vmatpush1.msra.mxu0 0.0
    %6734 = vmatprep.subr.mxu0 0.0
    %6735 = vmatpush1.msra.mxu0 0.0
    %6736 = vmatprep.subr.mxu0 0.0
    %6737 = vmatpush1.msra.mxu0 0.0
    %6738 = vmatprep.subr.mxu0 0.0
    %6739 = vmatpush1.msra.mxu0 0.0
    %6740 = vmatprep.subr.mxu0 0.0
    %6741 = vmatpush1.msra.mxu0 0.0
    %6742 = vmatprep.subr.mxu0 0.0
    %6743 = vmatpush1.msra.mxu0 0.0
    %6744 = vmatprep.subr.mxu0 0.0
    %6745 = vmatpush1.msra.mxu0 0.0
    %6746 = vmatprep.subr.mxu0 0.0
    %6747 = vmatpush1.msra.mxu0 0.0
    %6748 = vmatprep.subr.mxu0 0.0
    %6749 = vmatpush1.msra.mxu0 0.0
    %6750 = vmatprep.subr.mxu0 0.0
    %6751 = vmatpush1.msra.mxu0 0.0
    %6752 = vmatprep.subr.mxu0 0.0
    %6753 = vmatpush1.msra.mxu0 0.0
    %6754 = vmatprep.subr.mxu0 0.0
    %6755 = vmatpush1.msra.mxu0 0.0
    %6756 = vmatprep.subr.mxu0 0.0
    %6757 = vmatpush1.msra.mxu0 0.0
    %6758 = vmatprep.subr.mxu0 0.0
    %6759 = vmatpush1.msra.mxu0 0.0
    %6760 = vmatprep.subr.mxu0 0.0
    %6761 = vmatpush1.msra.mxu0 0.0
    %6762 = vmatprep.subr.mxu0 0.0
    %6763 = vmatpush1.msra.mxu0 0.0
    %6764 = vmatprep.subr.mxu0 0.0
    %6765 = vmatpush1.msra.mxu0 0.0
    %6766 = vmatprep.subr.mxu0 0.0
    %6767 = vmatpush1.msra.mxu0 0.0
    %6768 = vmatprep.subr.mxu0 0.0
    %6769 = vmatpush1.msra.mxu0 0.0
    %6770 = vmatprep.mubr.f32.mxu0 0.0
    %6771 = vmatmul.mubr.f32.gmra.mrb[0].mxu0 %v6702
    %v6772 = vpop.f32.mrb[0].mxu0
    %v6773 = vadd.f32 0.0, %v6772
    %v6774 = vpop.f32.mrb[0].mxu0
    %v6775 = vadd.f32 0.0, %v6774
    %6776 = vmatprep.mubr.f32.mxu0 0.0
    %6777 = vmatmul.mubr.f32.gmra.mrb[0].mxu0 %v6704
    %v6778 = vpop.f32.mrb[0].mxu0
    %v6779 = vadd.f32 0.0, %v6778
    %v6780 = vpop.f32.mrb[0].mxu0
    %v6781 = vadd.f32 0.0, %v6780
    %6782 = vdwg.mxu0
    %v6783 = vsel %vm2275, %v6653, 0
    %v6785 = vsel %vm2275, %v6654, 0
    %6787 = vmatprep.subr.mxu0 %v6664
    %6788 = vmatpush1.msra.mxu0 %v6663
    %6789 = vmatprep.subr.mxu0 %v6666
    %6790 = vmatpush1.msra.mxu0 %v6665
    %6791 = vmatprep.subr.mxu0 %v6668
    %6792 = vmatpush1.msra.mxu0 %v6667
    %6793 = vmatprep.subr.mxu0 %v6670
    %6794 = vmatpush1.msra.mxu0 %v6669
    %6795 = vmatprep.subr.mxu0 %v6672
    %6796 = vmatpush1.msra.mxu0 %v6671
    %6797 = vmatprep.subr.mxu0 %v6674
    %6798 = vmatpush1.msra.mxu0 %v6673
    %6799 = vmatprep.subr.mxu0 %v6676
    %6800 = vmatpush1.msra.mxu0 %v6675
    %6801 = vmatprep.subr.mxu0 %v6678
    %6802 = vmatpush1.msra.mxu0 %v6677
    %6803 = vmatprep.subr.mxu0 0.0
    %6804 = vmatpush1.msra.mxu0 0.0
    %6805 = vmatprep.subr.mxu0 0.0
    %6806 = vmatpush1.msra.mxu0 0.0
    %6807 = vmatprep.subr.mxu0 0.0
    %6808 = vmatpush1.msra.mxu0 0.0
    %6809 = vmatprep.subr.mxu0 0.0
    %6810 = vmatpush1.msra.mxu0 0.0
    %6811 = vmatprep.subr.mxu0 0.0
    %6812 = vmatpush1.msra.mxu0 0.0
    %6813 = vmatprep.subr.mxu0 0.0
    %6814 = vmatpush1.msra.mxu0 0.0
    %6815 = vmatprep.subr.mxu0 0.0
    %6816 = vmatpush1.msra.mxu0 0.0
    %6817 = vmatprep.subr.mxu0 0.0
    %6818 = vmatpush1.msra.mxu0 0.0
    %6819 = vmatprep.subr.mxu0 0.0
    %6820 = vmatpush1.msra.mxu0 0.0
    %6821 = vmatprep.subr.mxu0 0.0
    %6822 = vmatpush1.msra.mxu0 0.0
    %6823 = vmatprep.subr.mxu0 0.0
    %6824 = vmatpush1.msra.mxu0 0.0
    %6825 = vmatprep.subr.mxu0 0.0
    %6826 = vmatpush1.msra.mxu0 0.0
    %6827 = vmatprep.subr.mxu0 0.0
    %6828 = vmatpush1.msra.mxu0 0.0
    %6829 = vmatprep.subr.mxu0 0.0
    %6830 = vmatpush1.msra.mxu0 0.0
    %6831 = vmatprep.subr.mxu0 0.0
    %6832 = vmatpush1.msra.mxu0 0.0
    %6833 = vmatprep.subr.mxu0 0.0
    %6834 = vmatpush1.msra.mxu0 0.0
    %6835 = vmatprep.subr.mxu0 0.0
    %6836 = vmatpush1.msra.mxu0 0.0
    %6837 = vmatprep.subr.mxu0 0.0
    %6838 = vmatpush1.msra.mxu0 0.0
    %6839 = vmatprep.subr.mxu0 0.0
    %6840 = vmatpush1.msra.mxu0 0.0
    %6841 = vmatprep.subr.mxu0 0.0
    %6842 = vmatpush1.msra.mxu0 0.0
    %6843 = vmatprep.subr.mxu0 0.0
    %6844 = vmatpush1.msra.mxu0 0.0
    %6845 = vmatprep.subr.mxu0 0.0
    %6846 = vmatpush1.msra.mxu0 0.0
    %6847 = vmatprep.subr.mxu0 0.0
    %6848 = vmatpush1.msra.mxu0 0.0
    %6849 = vmatprep.subr.mxu0 0.0
    %6850 = vmatpush1.msra.mxu0 0.0
    %6851 = vmatprep.mubr.f32.mxu0 0.0
    %6852 = vmatmul.mubr.f32.gmra.mrb[0].mxu0 %v6783
    %v6853 = vpop.f32.mrb[0].mxu0
    %v6854 = vadd.f32 %v6773, %v6853
    %v6855 = vpop.f32.mrb[0].mxu0
    %v6856 = vadd.f32 %v6775, %v6855
    %6857 = vmatprep.mubr.f32.mxu0 0.0
    %6858 = vmatmul.mubr.f32.gmra.mrb[0].mxu0 %v6785
    %v6859 = vpop.f32.mrb[0].mxu0
    %v6860 = vadd.f32 %v6779, %v6859
    %v6861 = vpop.f32.mrb[0].mxu0
    %v6862 = vadd.f32 %v6781, %v6861
    %6863 = vdwg.mxu0
    %s6864 = scalar_lea.vmem [#allocation18], 256
    %v6865 = vld [vmem:[%s6864] sm:$0xff]
    %v6866 = vld [vmem:[%s6864 + $0x8] sm:$0xff]
    %v6867 = vld [vmem:[%s6864 + $0x10] sm:$0xff]
    %v6868 = vld [vmem:[%s6864 + $0x18] sm:$0xff]
    %v6869 = vld [vmem:[%s6864 + $0x20] sm:$0xff]
    %v6870 = vld [vmem:[%s6864 + $0x28] sm:$0xff]
    %v6871 = vld [vmem:[%s6864 + $0x30] sm:$0xff]
    %v6872 = vld [vmem:[%s6864 + $0x38] sm:$0xff]
    %v6873 = vld [vmem:[%s6864 + $0x40] sm:$0xff]
    %v6874 = vld [vmem:[%s6864 + $0x48] sm:$0xff]
    %v6875 = vld [vmem:[%s6864 + $0x50] sm:$0xff]
    %v6876 = vld [vmem:[%s6864 + $0x58] sm:$0xff]
    %v6877 = vld [vmem:[%s6864 + $0x60] sm:$0xff]
    %v6878 = vld [vmem:[%s6864 + $0x68] sm:$0xff]
    %v6879 = vld [vmem:[%s6864 + $0x70] sm:$0xff]
    %v6880 = vld [vmem:[%s6864 + $0x78] sm:$0xff]
    %vm6881 = vcmask 1043456
    %v6882 = vrot.slane %v6653, 4
    %v6883 = vrot.slane %v6654, 4
    %v6884 = vsel %vm6881, %v6882, %v6883
    %v6885 = vsel %vm2275, %v6884, 0
    %v6887 = vsel %vm2275, %v6883, 0
    %6889 = vmatprep.subr.mxu0 %v6866
    %6890 = vmatpush1.msra.mxu0 %v6865
    %6891 = vmatprep.subr.mxu0 %v6868
    %6892 = vmatpush1.msra.mxu0 %v6867
    %6893 = vmatprep.subr.mxu0 %v6870
    %6894 = vmatpush1.msra.mxu0 %v6869
    %6895 = vmatprep.subr.mxu0 %v6872
    %6896 = vmatpush1.msra.mxu0 %v6871
    %6897 = vmatprep.subr.mxu0 %v6874
    %6898 = vmatpush1.msra.mxu0 %v6873
    %6899 = vmatprep.subr.mxu0 %v6876
    %6900 = vmatpush1.msra.mxu0 %v6875
    %6901 = vmatprep.subr.mxu0 %v6878
    %6902 = vmatpush1.msra.mxu0 %v6877
    %6903 = vmatprep.subr.mxu0 %v6880
    %6904 = vmatpush1.msra.mxu0 %v6879
    %6905 = vmatprep.subr.mxu0 0.0
    %6906 = vmatpush1.msra.mxu0 0.0
    %6907 = vmatprep.subr.mxu0 0.0
    %6908 = vmatpush1.msra.mxu0 0.0
    %6909 = vmatprep.subr.mxu0 0.0
    %6910 = vmatpush1.msra.mxu0 0.0
    %6911 = vmatprep.subr.mxu0 0.0
    %6912 = vmatpush1.msra.mxu0 0.0
    %6913 = vmatprep.subr.mxu0 0.0
    %6914 = vmatpush1.msra.mxu0 0.0
    %6915 = vmatprep.subr.mxu0 0.0
    %6916 = vmatpush1.msra.mxu0 0.0
    %6917 = vmatprep.subr.mxu0 0.0
    %6918 = vmatpush1.msra.mxu0 0.0
    %6919 = vmatprep.subr.mxu0 0.0
    %6920 = vmatpush1.msra.mxu0 0.0
    %6921 = vmatprep.subr.mxu0 0.0
    %6922 = vmatpush1.msra.mxu0 0.0
    %6923 = vmatprep.subr.mxu0 0.0
    %6924 = vmatpush1.msra.mxu0 0.0
    %6925 = vmatprep.subr.mxu0 0.0
    %6926 = vmatpush1.msra.mxu0 0.0
    %6927 = vmatprep.subr.mxu0 0.0
    %6928 = vmatpush1.msra.mxu0 0.0
    %6929 = vmatprep.subr.mxu0 0.0
    %6930 = vmatpush1.msra.mxu0 0.0
    %6931 = vmatprep.subr.mxu0 0.0
    %6932 = vmatpush1.msra.mxu0 0.0
    %6933 = vmatprep.subr.mxu0 0.0
    %6934 = vmatpush1.msra.mxu0 0.0
    %6935 = vmatprep.subr.mxu0 0.0
    %6936 = vmatpush1.msra.mxu0 0.0
    %6937 = vmatprep.subr.mxu0 0.0
    %6938 = vmatpush1.msra.mxu0 0.0
    %6939 = vmatprep.subr.mxu0 0.0
    %6940 = vmatpush1.msra.mxu0 0.0
    %6941 = vmatprep.subr.mxu0 0.0
    %6942 = vmatpush1.msra.mxu0 0.0
    %6943 = vmatprep.subr.mxu0 0.0
    %6944 = vmatpush1.msra.mxu0 0.0
    %6945 = vmatprep.subr.mxu0 0.0
    %6946 = vmatpush1.msra.mxu0 0.0
    %6947 = vmatprep.subr.mxu0 0.0
    %6948 = vmatpush1.msra.mxu0 0.0
    %6949 = vmatprep.subr.mxu0 0.0
    %6950 = vmatpush1.msra.mxu0 0.0
    %6951 = vmatprep.subr.mxu0 0.0
    %6952 = vmatpush1.msra.mxu0 0.0
    %6953 = vmatprep.mubr.f32.mxu0 0.0
    %6954 = vmatmul.mubr.f32.gmra.mrb[0].mxu0 %v6885
    %v6955 = vpop.f32.mrb[0].mxu0
    %v6956 = vadd.f32 0.0, %v6955
    %v6957 = vpop.f32.mrb[0].mxu0
    %v6958 = vadd.f32 0.0, %v6957
    %6959 = vmatprep.mubr.f32.mxu0 0.0
    %6960 = vmatmul.mubr.f32.gmra.mrb[0].mxu0 %v6887
    %v6961 = vpop.f32.mrb[0].mxu0
    %v6962 = vadd.f32 0.0, %v6961
    %v6963 = vpop.f32.mrb[0].mxu0
    %v6964 = vadd.f32 0.0, %v6963
    %6965 = vdwg.mxu0
    %v6966 = vadd.f32 %v6854, %v6956
    %v6967 = vadd.f32 %v6856, %v6958
    %v6968 = vadd.f32 %v6860, %v6962
    %v6969 = vadd.f32 %v6862, %v6964
    %v6970 = vld [vmem:[#allocation20] sm:$0x3]
    %v6972 = vlaneseq
    %v6973 = vshrl.u32 %v6972, 7
    %v6974 = vsub.s32 0, %v6973
    %v6975 = vrot.slane %v6970, %v6974
    %v6976 = vlaneseq
    %v6977 = vshrl.u32 %v6976, 7
    %v6978 = vsub.s32 1, %v6977
    %v6979 = vrot.slane %v6970, %v6978
    %v6982 = vadd.f32 %v6966, %v6975
    %v6983 = vadd.f32 %v6967, %v6979
    %v6984 = vadd.f32 %v6968, %v6975
    %v6985 = vadd.f32 %v6969, %v6979
    %v6986 = vmax.f32 %v6982, 0.0
    %v6987 = vmax.f32 %v6983, 0.0
    %v6988 = vmax.f32 %v6984, 0.0
    %v6989 = vmax.f32 %v6985, 0.0
    %v6992 = vrot.slane %v6986, 2
    %v6993 = vrot.slane %v6987, 2
    %v6996 = vmax.f32 %v6986, %v6992
    %v6997 = vmax.f32 %v6987, %v6993
    %v6998 = vrot.slane %v6986, 4
    %v6999 = vrot.slane %v6987, 4
    %v7002 = vmax.f32 %v6996, %v6998
    %v7003 = vmax.f32 %v6997, %v6999
    %v7004 = vrot.slane %v6986, 6
    %v7005 = vrot.slane %v6987, 6
    %v7008 = vmax.f32 %v7002, %v7004
    %v7009 = vmax.f32 %v7003, %v7005
    %v7010 = vmax.f32 %v7008, %v6988
    %v7011 = vmax.f32 %v7009, %v6989
    %v7014 = vrot.slane %v6988, 2
    %v7015 = vrot.slane %v6989, 2
    %v7018 = vmax.f32 %v7010, %v7014
    %v7019 = vmax.f32 %v7011, %v7015
    %v7020 = vld [vmem:[#allocation27] sm:$0xff]
    %v7021 = vld [vmem:[#allocation27 + $0x8] sm:$0xff]
    %v7022 = vld [vmem:[#allocation27 + $0x10] sm:$0xff]
    %v7023 = vld [vmem:[#allocation27 + $0x18] sm:$0xff]
    %v7024 = vld [vmem:[#allocation27 + $0x20] sm:$0xff]
    %v7025 = vld [vmem:[#allocation27 + $0x28] sm:$0xff]
    %v7026 = vld [vmem:[#allocation27 + $0x30] sm:$0xff]
    %v7027 = vld [vmem:[#allocation27 + $0x38] sm:$0xff]
    %v7028 = vld [vmem:[#allocation27 + $0x40] sm:$0xff]
    %v7029 = vld [vmem:[#allocation27 + $0x48] sm:$0xff]
    %v7030 = vld [vmem:[#allocation27 + $0x50] sm:$0xff]
    %v7031 = vld [vmem:[#allocation27 + $0x58] sm:$0xff]
    %v7032 = vld [vmem:[#allocation27 + $0x60] sm:$0xff]
    %v7033 = vld [vmem:[#allocation27 + $0x68] sm:$0xff]
    %v7034 = vld [vmem:[#allocation27 + $0x70] sm:$0xff]
    %v7035 = vld [vmem:[#allocation27 + $0x78] sm:$0xff]
    %v7036 = vld [vmem:[#allocation27 + $0x80] sm:$0xff]
    %v7037 = vld [vmem:[#allocation27 + $0x88] sm:$0xff]
    %v7038 = vld [vmem:[#allocation27 + $0x90] sm:$0xff]
    %v7039 = vld [vmem:[#allocation27 + $0x98] sm:$0xff]
    %v7040 = vld [vmem:[#allocation27 + $0xa0] sm:$0xff]
    %v7041 = vld [vmem:[#allocation27 + $0xa8] sm:$0xff]
    %v7042 = vld [vmem:[#allocation27 + $0xb0] sm:$0xff]
    %v7043 = vld [vmem:[#allocation27 + $0xb8] sm:$0xff]
    %v7044 = vld [vmem:[#allocation27 + $0xc0] sm:$0xff]
    %v7045 = vld [vmem:[#allocation27 + $0xc8] sm:$0xff]
    %v7046 = vld [vmem:[#allocation27 + $0xd0] sm:$0xff]
    %v7047 = vld [vmem:[#allocation27 + $0xd8] sm:$0xff]
    %v7048 = vld [vmem:[#allocation27 + $0xe0] sm:$0xff]
    %v7049 = vld [vmem:[#allocation27 + $0xe8] sm:$0xff]
    %v7050 = vld [vmem:[#allocation27 + $0xf0] sm:$0xff]
    %v7051 = vld [vmem:[#allocation27 + $0xf8] sm:$0xff]
    %7052 = vmatprep.subr.mxu0 0.0
    %7053 = vmatpush1.msra.mxu0 %v7020
    %7054 = vmatprep.subr.mxu0 0.0
    %7055 = vmatpush1.msra.mxu0 %v7021
    %7056 = vmatprep.subr.mxu0 0.0
    %7057 = vmatpush1.msra.mxu0 %v7022
    %7058 = vmatprep.subr.mxu0 0.0
    %7059 = vmatpush1.msra.mxu0 %v7023
    %7060 = vmatprep.subr.mxu0 0.0
    %7061 = vmatpush1.msra.mxu0 %v7024
    %7062 = vmatprep.subr.mxu0 0.0
    %7063 = vmatpush1.msra.mxu0 %v7025
    %7064 = vmatprep.subr.mxu0 0.0
    %7065 = vmatpush1.msra.mxu0 %v7026
    %7066 = vmatprep.subr.mxu0 0.0
    %7067 = vmatpush1.msra.mxu0 %v7027
    %7068 = vmatprep.subr.mxu0 0.0
    %7069 = vmatpush1.msra.mxu0 %v7028
    %7070 = vmatprep.subr.mxu0 0.0
    %7071 = vmatpush1.msra.mxu0 %v7029
    %7072 = vmatprep.subr.mxu0 0.0
    %7073 = vmatpush1.msra.mxu0 %v7030
    %7074 = vmatprep.subr.mxu0 0.0
    %7075 = vmatpush1.msra.mxu0 %v7031
    %7076 = vmatprep.subr.mxu0 0.0
    %7077 = vmatpush1.msra.mxu0 %v7032
    %7078 = vmatprep.subr.mxu0 0.0
    %7079 = vmatpush1.msra.mxu0 %v7033
    %7080 = vmatprep.subr.mxu0 0.0
    %7081 = vmatpush1.msra.mxu0 %v7034
    %7082 = vmatprep.subr.mxu0 0.0
    %7083 = vmatpush1.msra.mxu0 %v7035
    %7084 = vmatprep.subr.mxu0 0.0
    %7085 = vmatpush1.msra.mxu0 %v7036
    %7086 = vmatprep.subr.mxu0 0.0
    %7087 = vmatpush1.msra.mxu0 %v7037
    %7088 = vmatprep.subr.mxu0 0.0
    %7089 = vmatpush1.msra.mxu0 %v7038
    %7090 = vmatprep.subr.mxu0 0.0
    %7091 = vmatpush1.msra.mxu0 %v7039
    %7092 = vmatprep.subr.mxu0 0.0
    %7093 = vmatpush1.msra.mxu0 %v7040
    %7094 = vmatprep.subr.mxu0 0.0
    %7095 = vmatpush1.msra.mxu0 %v7041
    %7096 = vmatprep.subr.mxu0 0.0
    %7097 = vmatpush1.msra.mxu0 %v7042
    %7098 = vmatprep.subr.mxu0 0.0
    %7099 = vmatpush1.msra.mxu0 %v7043
    %7100 = vmatprep.subr.mxu0 0.0
    %7101 = vmatpush1.msra.mxu0 %v7044
    %7102 = vmatprep.subr.mxu0 0.0
    %7103 = vmatpush1.msra.mxu0 %v7045
    %7104 = vmatprep.subr.mxu0 0.0
    %7105 = vmatpush1.msra.mxu0 %v7046
    %7106 = vmatprep.subr.mxu0 0.0
    %7107 = vmatpush1.msra.mxu0 %v7047
    %7108 = vmatprep.subr.mxu0 0.0
    %7109 = vmatpush1.msra.mxu0 %v7048
    %7110 = vmatprep.subr.mxu0 0.0
    %7111 = vmatpush1.msra.mxu0 %v7049
    %7112 = vmatprep.subr.mxu0 0.0
    %7113 = vmatpush1.msra.mxu0 %v7050
    %7114 = vmatprep.subr.mxu0 0.0
    %7115 = vmatpush1.msra.mxu0 %v7051
    %7116 = vmatprep.mubr.f32.mxu0 %v7019
    %7117 = vmatmul.mubr.f32.gmra.mrb[0].mxu0 %v7018
    %v7118 = vpop.f32.mrb[0].mxu0
    %v7119 = vadd.f32 0.0, %v7118
    %v7120 = vpop.f32.mrb[0].mxu0
    %7121 = vdwg.mxu0
    %v7122 = vadd.f32 %v6662, %v7119
    %v7123 = vld [vmem:[#allocation21] sm:$0xff]
    %v7124 = vld [vmem:[#allocation21 + $0x8] sm:$0xff]
    %v7125 = vld [vmem:[#allocation21 + $0x10] sm:$0xff]
    %v7126 = vld [vmem:[#allocation21 + $0x18] sm:$0xff]
    %v7127 = vld [vmem:[#allocation21 + $0x20] sm:$0xff]
    %v7128 = vld [vmem:[#allocation21 + $0x28] sm:$0xff]
    %v7129 = vld [vmem:[#allocation21 + $0x30] sm:$0xff]
    %v7130 = vld [vmem:[#allocation21 + $0x38] sm:$0xff]
    %v7131 = vld [vmem:[#allocation21 + $0x40] sm:$0xff]
    %v7132 = vld [vmem:[#allocation21 + $0x48] sm:$0xff]
    %v7133 = vld [vmem:[#allocation21 + $0x50] sm:$0xff]
    %v7134 = vld [vmem:[#allocation21 + $0x58] sm:$0xff]
    %v7135 = vld [vmem:[#allocation21 + $0x60] sm:$0xff]
    %v7136 = vld [vmem:[#allocation21 + $0x68] sm:$0xff]
    %v7137 = vld [vmem:[#allocation21 + $0x70] sm:$0xff]
    %v7138 = vld [vmem:[#allocation21 + $0x78] sm:$0xff]
    %s7139 = scalar_lea.vmem [#allocation21], 128
    %v7140 = vld [vmem:[%s7139] sm:$0xff]
    %v7141 = vld [vmem:[%s7139 + $0x8] sm:$0xff]
    %v7142 = vld [vmem:[%s7139 + $0x10] sm:$0xff]
    %v7143 = vld [vmem:[%s7139 + $0x18] sm:$0xff]
    %v7144 = vld [vmem:[%s7139 + $0x20] sm:$0xff]
    %v7145 = vld [vmem:[%s7139 + $0x28] sm:$0xff]
    %v7146 = vld [vmem:[%s7139 + $0x30] sm:$0xff]
    %v7147 = vld [vmem:[%s7139 + $0x38] sm:$0xff]
    %v7148 = vld [vmem:[%s7139 + $0x40] sm:$0xff]
    %v7149 = vld [vmem:[%s7139 + $0x48] sm:$0xff]
    %v7150 = vld [vmem:[%s7139 + $0x50] sm:$0xff]
    %v7151 = vld [vmem:[%s7139 + $0x58] sm:$0xff]
    %v7152 = vld [vmem:[%s7139 + $0x60] sm:$0xff]
    %v7153 = vld [vmem:[%s7139 + $0x68] sm:$0xff]
    %v7154 = vld [vmem:[%s7139 + $0x70] sm:$0xff]
    %v7155 = vld [vmem:[%s7139 + $0x78] sm:$0xff]
    %7156 = vmatprep.subr.mxu0 %v7141
    %7157 = vmatpush1.msra.mxu0 %v7140
    %7158 = vmatprep.subr.mxu0 %v7143
    %7159 = vmatpush1.msra.mxu0 %v7142
    %7160 = vmatprep.subr.mxu0 %v7145
    %7161 = vmatpush1.msra.mxu0 %v7144
    %7162 = vmatprep.subr.mxu0 %v7147
    %7163 = vmatpush1.msra.mxu0 %v7146
    %7164 = vmatprep.subr.mxu0 %v7149
    %7165 = vmatpush1.msra.mxu0 %v7148
    %7166 = vmatprep.subr.mxu0 %v7151
    %7167 = vmatpush1.msra.mxu0 %v7150
    %7168 = vmatprep.subr.mxu0 %v7153
    %7169 = vmatpush1.msra.mxu0 %v7152
    %7170 = vmatprep.subr.mxu0 %v7155
    %7171 = vmatpush1.msra.mxu0 %v7154
    %7172 = vmatprep.subr.mxu0 0.0
    %7173 = vmatpush1.msra.mxu0 0.0
    %7174 = vmatprep.subr.mxu0 0.0
    %7175 = vmatpush1.msra.mxu0 0.0
    %7176 = vmatprep.subr.mxu0 0.0
    %7177 = vmatpush1.msra.mxu0 0.0
    %7178 = vmatprep.subr.mxu0 0.0
    %7179 = vmatpush1.msra.mxu0 0.0
    %7180 = vmatprep.subr.mxu0 0.0
    %7181 = vmatpush1.msra.mxu0 0.0
    %7182 = vmatprep.subr.mxu0 0.0
    %7183 = vmatpush1.msra.mxu0 0.0
    %7184 = vmatprep.subr.mxu0 0.0
    %7185 = vmatpush1.msra.mxu0 0.0
    %7186 = vmatprep.subr.mxu0 0.0
    %7187 = vmatpush1.msra.mxu0 0.0
    %7188 = vmatprep.subr.mxu0 0.0
    %7189 = vmatpush1.msra.mxu0 0.0
    %7190 = vmatprep.subr.mxu0 0.0
    %7191 = vmatpush1.msra.mxu0 0.0
    %7192 = vmatprep.subr.mxu0 0.0
    %7193 = vmatpush1.msra.mxu0 0.0
    %7194 = vmatprep.subr.mxu0 0.0
    %7195 = vmatpush1.msra.mxu0 0.0
    %7196 = vmatprep.subr.mxu0 0.0
    %7197 = vmatpush1.msra.mxu0 0.0
    %7198 = vmatprep.subr.mxu0 0.0
    %7199 = vmatpush1.msra.mxu0 0.0
    %7200 = vmatprep.subr.mxu0 0.0
    %7201 = vmatpush1.msra.mxu0 0.0
    %7202 = vmatprep.subr.mxu0 0.0
    %7203 = vmatpush1.msra.mxu0 0.0
    %7204 = vmatprep.subr.mxu0 0.0
    %7205 = vmatpush1.msra.mxu0 0.0
    %7206 = vmatprep.subr.mxu0 0.0
    %7207 = vmatpush1.msra.mxu0 0.0
    %7208 = vmatprep.subr.mxu0 0.0
    %7209 = vmatpush1.msra.mxu0 0.0
    %7210 = vmatprep.subr.mxu0 0.0
    %7211 = vmatpush1.msra.mxu0 0.0
    %7212 = vmatprep.subr.mxu0 0.0
    %7213 = vmatpush1.msra.mxu0 0.0
    %7214 = vmatprep.subr.mxu0 0.0
    %7215 = vmatpush1.msra.mxu0 0.0
    %7216 = vmatprep.subr.mxu0 0.0
    %7217 = vmatpush1.msra.mxu0 0.0
    %7218 = vmatprep.subr.mxu0 0.0
    %7219 = vmatpush1.msra.mxu0 0.0
    %7220 = vmatprep.mubr.f32.mxu0 0.0
    %7221 = vmatmul.mubr.f32.gmra.mrb[0].mxu0 %v6702
    %v7222 = vpop.f32.mrb[0].mxu0
    %v7223 = vadd.f32 0.0, %v7222
    %v7224 = vpop.f32.mrb[0].mxu0
    %v7225 = vadd.f32 0.0, %v7224
    %7226 = vdwg.mxu0
    %7227 = vmatprep.subr.mxu0 %v7124
    %7228 = vmatpush1.msra.mxu0 %v7123
    %7229 = vmatprep.subr.mxu0 %v7126
    %7230 = vmatpush1.msra.mxu0 %v7125
    %7231 = vmatprep.subr.mxu0 %v7128
    %7232 = vmatpush1.msra.mxu0 %v7127
    %7233 = vmatprep.subr.mxu0 %v7130
    %7234 = vmatpush1.msra.mxu0 %v7129
    %7235 = vmatprep.subr.mxu0 %v7132
    %7236 = vmatpush1.msra.mxu0 %v7131
    %7237 = vmatprep.subr.mxu0 %v7134
    %7238 = vmatpush1.msra.mxu0 %v7133
    %7239 = vmatprep.subr.mxu0 %v7136
    %7240 = vmatpush1.msra.mxu0 %v7135
    %7241 = vmatprep.subr.mxu0 %v7138
    %7242 = vmatpush1.msra.mxu0 %v7137
    %7243 = vmatprep.subr.mxu0 0.0
    %7244 = vmatpush1.msra.mxu0 0.0
    %7245 = vmatprep.subr.mxu0 0.0
    %7246 = vmatpush1.msra.mxu0 0.0
    %7247 = vmatprep.subr.mxu0 0.0
    %7248 = vmatpush1.msra.mxu0 0.0
    %7249 = vmatprep.subr.mxu0 0.0
    %7250 = vmatpush1.msra.mxu0 0.0
    %7251 = vmatprep.subr.mxu0 0.0
    %7252 = vmatpush1.msra.mxu0 0.0
    %7253 = vmatprep.subr.mxu0 0.0
    %7254 = vmatpush1.msra.mxu0 0.0
    %7255 = vmatprep.subr.mxu0 0.0
    %7256 = vmatpush1.msra.mxu0 0.0
    %7257 = vmatprep.subr.mxu0 0.0
    %7258 = vmatpush1.msra.mxu0 0.0
    %7259 = vmatprep.subr.mxu0 0.0
    %7260 = vmatpush1.msra.mxu0 0.0
    %7261 = vmatprep.subr.mxu0 0.0
    %7262 = vmatpush1.msra.mxu0 0.0
    %7263 = vmatprep.subr.mxu0 0.0
    %7264 = vmatpush1.msra.mxu0 0.0
    %7265 = vmatprep.subr.mxu0 0.0
    %7266 = vmatpush1.msra.mxu0 0.0
    %7267 = vmatprep.subr.mxu0 0.0
    %7268 = vmatpush1.msra.mxu0 0.0
    %7269 = vmatprep.subr.mxu0 0.0
    %7270 = vmatpush1.msra.mxu0 0.0
    %7271 = vmatprep.subr.mxu0 0.0
    %7272 = vmatpush1.msra.mxu0 0.0
    %7273 = vmatprep.subr.mxu0 0.0
    %7274 = vmatpush1.msra.mxu0 0.0
    %7275 = vmatprep.subr.mxu0 0.0
    %7276 = vmatpush1.msra.mxu0 0.0
    %7277 = vmatprep.subr.mxu0 0.0
    %7278 = vmatpush1.msra.mxu0 0.0
    %7279 = vmatprep.subr.mxu0 0.0
    %7280 = vmatpush1.msra.mxu0 0.0
    %7281 = vmatprep.subr.mxu0 0.0
    %7282 = vmatpush1.msra.mxu0 0.0
    %7283 = vmatprep.subr.mxu0 0.0
    %7284 = vmatpush1.msra.mxu0 0.0
    %7285 = vmatprep.subr.mxu0 0.0
    %7286 = vmatpush1.msra.mxu0 0.0
    %7287 = vmatprep.subr.mxu0 0.0
    %7288 = vmatpush1.msra.mxu0 0.0
    %7289 = vmatprep.subr.mxu0 0.0
    %7290 = vmatpush1.msra.mxu0 0.0
    %7291 = vmatprep.mubr.f32.mxu0 0.0
    %7292 = vmatmul.mubr.f32.gmra.mrb[0].mxu0 %v6783
    %v7293 = vpop.f32.mrb[0].mxu0
    %v7294 = vadd.f32 %v7223, %v7293
    %v7295 = vpop.f32.mrb[0].mxu0
    %v7296 = vadd.f32 %v7225, %v7295
    %7297 = vdwg.mxu0
    %s7298 = scalar_lea.vmem [#allocation21], 256
    %v7299 = vld [vmem:[%s7298] sm:$0xff]
    %v7300 = vld [vmem:[%s7298 + $0x8] sm:$0xff]
    %v7301 = vld [vmem:[%s7298 + $0x10] sm:$0xff]
    %v7302 = vld [vmem:[%s7298 + $0x18] sm:$0xff]
    %v7303 = vld [vmem:[%s7298 + $0x20] sm:$0xff]
    %v7304 = vld [vmem:[%s7298 + $0x28] sm:$0xff]
    %v7305 = vld [vmem:[%s7298 + $0x30] sm:$0xff]
    %v7306 = vld [vmem:[%s7298 + $0x38] sm:$0xff]
    %v7307 = vld [vmem:[%s7298 + $0x40] sm:$0xff]
    %v7308 = vld [vmem:[%s7298 + $0x48] sm:$0xff]
    %v7309 = vld [vmem:[%s7298 + $0x50] sm:$0xff]
    %v7310 = vld [vmem:[%s7298 + $0x58] sm:$0xff]
    %v7311 = vld [vmem:[%s7298 + $0x60] sm:$0xff]
    %v7312 = vld [vmem:[%s7298 + $0x68] sm:$0xff]
    %v7313 = vld [vmem:[%s7298 + $0x70] sm:$0xff]
    %v7314 = vld [vmem:[%s7298 + $0x78] sm:$0xff]
    %7315 = vmatprep.subr.mxu0 %v7300
    %7316 = vmatpush1.msra.mxu0 %v7299
    %7317 = vmatprep.subr.mxu0 %v7302
    %7318 = vmatpush1.msra.mxu0 %v7301
    %7319 = vmatprep.subr.mxu0 %v7304
    %7320 = vmatpush1.msra.mxu0 %v7303
    %7321 = vmatprep.subr.mxu0 %v7306
    %7322 = vmatpush1.msra.mxu0 %v7305
    %7323 = vmatprep.subr.mxu0 %v7308
    %7324 = vmatpush1.msra.mxu0 %v7307
    %7325 = vmatprep.subr.mxu0 %v7310
    %7326 = vmatpush1.msra.mxu0 %v7309
    %7327 = vmatprep.subr.mxu0 %v7312
    %7328 = vmatpush1.msra.mxu0 %v7311
    %7329 = vmatprep.subr.mxu0 %v7314
    %7330 = vmatpush1.msra.mxu0 %v7313
    %7331 = vmatprep.subr.mxu0 0.0
    %7332 = vmatpush1.msra.mxu0 0.0
    %7333 = vmatprep.subr.mxu0 0.0
    %7334 = vmatpush1.msra.mxu0 0.0
    %7335 = vmatprep.subr.mxu0 0.0
    %7336 = vmatpush1.msra.mxu0 0.0
    %7337 = vmatprep.subr.mxu0 0.0
    %7338 = vmatpush1.msra.mxu0 0.0
    %7339 = vmatprep.subr.mxu0 0.0
    %7340 = vmatpush1.msra.mxu0 0.0
    %7341 = vmatprep.subr.mxu0 0.0
    %7342 = vmatpush1.msra.mxu0 0.0
    %7343 = vmatprep.subr.mxu0 0.0
    %7344 = vmatpush1.msra.mxu0 0.0
    %7345 = vmatprep.subr.mxu0 0.0
    %7346 = vmatpush1.msra.mxu0 0.0
    %7347 = vmatprep.subr.mxu0 0.0
    %7348 = vmatpush1.msra.mxu0 0.0
    %7349 = vmatprep.subr.mxu0 0.0
    %7350 = vmatpush1.msra.mxu0 0.0
    %7351 = vmatprep.subr.mxu0 0.0
    %7352 = vmatpush1.msra.mxu0 0.0
    %7353 = vmatprep.subr.mxu0 0.0
    %7354 = vmatpush1.msra.mxu0 0.0
    %7355 = vmatprep.subr.mxu0 0.0
    %7356 = vmatpush1.msra.mxu0 0.0
    %7357 = vmatprep.subr.mxu0 0.0
    %7358 = vmatpush1.msra.mxu0 0.0
    %7359 = vmatprep.subr.mxu0 0.0
    %7360 = vmatpush1.msra.mxu0 0.0
    %7361 = vmatprep.subr.mxu0 0.0
    %7362 = vmatpush1.msra.mxu0 0.0
    %7363 = vmatprep.subr.mxu0 0.0
    %7364 = vmatpush1.msra.mxu0 0.0
    %7365 = vmatprep.subr.mxu0 0.0
    %7366 = vmatpush1.msra.mxu0 0.0
    %7367 = vmatprep.subr.mxu0 0.0
    %7368 = vmatpush1.msra.mxu0 0.0
    %7369 = vmatprep.subr.mxu0 0.0
    %7370 = vmatpush1.msra.mxu0 0.0
    %7371 = vmatprep.subr.mxu0 0.0
    %7372 = vmatpush1.msra.mxu0 0.0
    %7373 = vmatprep.subr.mxu0 0.0
    %7374 = vmatpush1.msra.mxu0 0.0
    %7375 = vmatprep.subr.mxu0 0.0
    %7376 = vmatpush1.msra.mxu0 0.0
    %7377 = vmatprep.subr.mxu0 0.0
    %7378 = vmatpush1.msra.mxu0 0.0
    %7379 = vmatprep.mubr.f32.mxu0 0.0
    %7380 = vmatmul.mubr.f32.gmra.mrb[0].mxu0 %v6885
    %v7381 = vpop.f32.mrb[0].mxu0
    %v7382 = vadd.f32 0.0, %v7381
    %v7383 = vpop.f32.mrb[0].mxu0
    %v7384 = vadd.f32 0.0, %v7383
    %7385 = vdwg.mxu0
    %v7386 = vadd.f32 %v7294, %v7382
    %v7387 = vadd.f32 %v7296, %v7384
    %s7388 = scalar_lea.vmem [#allocation21], 384
    %v7389 = vld [vmem:[%s7388] sm:$0xff]
    %v7390 = vld [vmem:[%s7388 + $0x8] sm:$0xff]
    %v7391 = vld [vmem:[%s7388 + $0x10] sm:$0xff]
    %v7392 = vld [vmem:[%s7388 + $0x18] sm:$0xff]
    %v7393 = vld [vmem:[%s7388 + $0x20] sm:$0xff]
    %v7394 = vld [vmem:[%s7388 + $0x28] sm:$0xff]
    %v7395 = vld [vmem:[%s7388 + $0x30] sm:$0xff]
    %v7396 = vld [vmem:[%s7388 + $0x38] sm:$0xff]
    %v7397 = vld [vmem:[%s7388 + $0x40] sm:$0xff]
    %v7398 = vld [vmem:[%s7388 + $0x48] sm:$0xff]
    %v7399 = vld [vmem:[%s7388 + $0x50] sm:$0xff]
    %v7400 = vld [vmem:[%s7388 + $0x58] sm:$0xff]
    %v7401 = vld [vmem:[%s7388 + $0x60] sm:$0xff]
    %v7402 = vld [vmem:[%s7388 + $0x68] sm:$0xff]
    %v7403 = vld [vmem:[%s7388 + $0x70] sm:$0xff]
    %v7404 = vld [vmem:[%s7388 + $0x78] sm:$0xff]
    %vm7405 = vcmask 1041408
    %v7406 = vrot.slane %v6653, 6
    %v7407 = vrot.slane %v6654, 6
    %v7408 = vsel %vm7405, %v7406, %v7407
    %v7409 = vsel %vm2275, %v7408, 0
    %7411 = vmatprep.subr.mxu0 %v7390
    %7412 = vmatpush1.msra.mxu0 %v7389
    %7413 = vmatprep.subr.mxu0 %v7392
    %7414 = vmatpush1.msra.mxu0 %v7391
    %7415 = vmatprep.subr.mxu0 %v7394
    %7416 = vmatpush1.msra.mxu0 %v7393
    %7417 = vmatprep.subr.mxu0 %v7396
    %7418 = vmatpush1.msra.mxu0 %v7395
    %7419 = vmatprep.subr.mxu0 %v7398
    %7420 = vmatpush1.msra.mxu0 %v7397
    %7421 = vmatprep.subr.mxu0 %v7400
    %7422 = vmatpush1.msra.mxu0 %v7399
    %7423 = vmatprep.subr.mxu0 %v7402
    %7424 = vmatpush1.msra.mxu0 %v7401
    %7425 = vmatprep.subr.mxu0 %v7404
    %7426 = vmatpush1.msra.mxu0 %v7403
    %7427 = vmatprep.subr.mxu0 0.0
    %7428 = vmatpush1.msra.mxu0 0.0
    %7429 = vmatprep.subr.mxu0 0.0
    %7430 = vmatpush1.msra.mxu0 0.0
    %7431 = vmatprep.subr.mxu0 0.0
    %7432 = vmatpush1.msra.mxu0 0.0
    %7433 = vmatprep.subr.mxu0 0.0
    %7434 = vmatpush1.msra.mxu0 0.0
    %7435 = vmatprep.subr.mxu0 0.0
    %7436 = vmatpush1.msra.mxu0 0.0
    %7437 = vmatprep.subr.mxu0 0.0
    %7438 = vmatpush1.msra.mxu0 0.0
    %7439 = vmatprep.subr.mxu0 0.0
    %7440 = vmatpush1.msra.mxu0 0.0
    %7441 = vmatprep.subr.mxu0 0.0
    %7442 = vmatpush1.msra.mxu0 0.0
    %7443 = vmatprep.subr.mxu0 0.0
    %7444 = vmatpush1.msra.mxu0 0.0
    %7445 = vmatprep.subr.mxu0 0.0
    %7446 = vmatpush1.msra.mxu0 0.0
    %7447 = vmatprep.subr.mxu0 0.0
    %7448 = vmatpush1.msra.mxu0 0.0
    %7449 = vmatprep.subr.mxu0 0.0
    %7450 = vmatpush1.msra.mxu0 0.0
    %7451 = vmatprep.subr.mxu0 0.0
    %7452 = vmatpush1.msra.mxu0 0.0
    %7453 = vmatprep.subr.mxu0 0.0
    %7454 = vmatpush1.msra.mxu0 0.0
    %7455 = vmatprep.subr.mxu0 0.0
    %7456 = vmatpush1.msra.mxu0 0.0
    %7457 = vmatprep.subr.mxu0 0.0
    %7458 = vmatpush1.msra.mxu0 0.0
    %7459 = vmatprep.subr.mxu0 0.0
    %7460 = vmatpush1.msra.mxu0 0.0
    %7461 = vmatprep.subr.mxu0 0.0
    %7462 = vmatpush1.msra.mxu0 0.0
    %7463 = vmatprep.subr.mxu0 0.0
    %7464 = vmatpush1.msra.mxu0 0.0
    %7465 = vmatprep.subr.mxu0 0.0
    %7466 = vmatpush1.msra.mxu0 0.0
    %7467 = vmatprep.subr.mxu0 0.0
    %7468 = vmatpush1.msra.mxu0 0.0
    %7469 = vmatprep.subr.mxu0 0.0
    %7470 = vmatpush1.msra.mxu0 0.0
    %7471 = vmatprep.subr.mxu0 0.0
    %7472 = vmatpush1.msra.mxu0 0.0
    %7473 = vmatprep.subr.mxu0 0.0
    %7474 = vmatpush1.msra.mxu0 0.0
    %7475 = vmatprep.mubr.f32.mxu0 0.0
    %7476 = vmatmul.mubr.f32.gmra.mrb[0].mxu0 %v7409
    %v7477 = vpop.f32.mrb[0].mxu0
    %v7478 = vadd.f32 0.0, %v7477
    %v7479 = vpop.f32.mrb[0].mxu0
    %v7480 = vadd.f32 0.0, %v7479
    %7481 = vdwg.mxu0
    %v7482 = vadd.f32 %v7386, %v7478
    %v7483 = vadd.f32 %v7387, %v7480
    %s7484 = scalar_lea.vmem [#allocation21], 512
    %v7485 = vld [vmem:[%s7484] sm:$0xff]
    %v7486 = vld [vmem:[%s7484 + $0x8] sm:$0xff]
    %v7487 = vld [vmem:[%s7484 + $0x10] sm:$0xff]
    %v7488 = vld [vmem:[%s7484 + $0x18] sm:$0xff]
    %v7489 = vld [vmem:[%s7484 + $0x20] sm:$0xff]
    %v7490 = vld [vmem:[%s7484 + $0x28] sm:$0xff]
    %v7491 = vld [vmem:[%s7484 + $0x30] sm:$0xff]
    %v7492 = vld [vmem:[%s7484 + $0x38] sm:$0xff]
    %v7493 = vld [vmem:[%s7484 + $0x40] sm:$0xff]
    %v7494 = vld [vmem:[%s7484 + $0x48] sm:$0xff]
    %v7495 = vld [vmem:[%s7484 + $0x50] sm:$0xff]
    %v7496 = vld [vmem:[%s7484 + $0x58] sm:$0xff]
    %v7497 = vld [vmem:[%s7484 + $0x60] sm:$0xff]
    %v7498 = vld [vmem:[%s7484 + $0x68] sm:$0xff]
    %v7499 = vld [vmem:[%s7484 + $0x70] sm:$0xff]
    %v7500 = vld [vmem:[%s7484 + $0x78] sm:$0xff]
    %7501 = vmatprep.subr.mxu0 %v7486
    %7502 = vmatpush1.msra.mxu0 %v7485
    %7503 = vmatprep.subr.mxu0 %v7488
    %7504 = vmatpush1.msra.mxu0 %v7487
    %7505 = vmatprep.subr.mxu0 %v7490
    %7506 = vmatpush1.msra.mxu0 %v7489
    %7507 = vmatprep.subr.mxu0 %v7492
    %7508 = vmatpush1.msra.mxu0 %v7491
    %7509 = vmatprep.subr.mxu0 %v7494
    %7510 = vmatpush1.msra.mxu0 %v7493
    %7511 = vmatprep.subr.mxu0 %v7496
    %7512 = vmatpush1.msra.mxu0 %v7495
    %7513 = vmatprep.subr.mxu0 %v7498
    %7514 = vmatpush1.msra.mxu0 %v7497
    %7515 = vmatprep.subr.mxu0 %v7500
    %7516 = vmatpush1.msra.mxu0 %v7499
    %7517 = vmatprep.subr.mxu0 0.0
    %7518 = vmatpush1.msra.mxu0 0.0
    %7519 = vmatprep.subr.mxu0 0.0
    %7520 = vmatpush1.msra.mxu0 0.0
    %7521 = vmatprep.subr.mxu0 0.0
    %7522 = vmatpush1.msra.mxu0 0.0
    %7523 = vmatprep.subr.mxu0 0.0
    %7524 = vmatpush1.msra.mxu0 0.0
    %7525 = vmatprep.subr.mxu0 0.0
    %7526 = vmatpush1.msra.mxu0 0.0
    %7527 = vmatprep.subr.mxu0 0.0
    %7528 = vmatpush1.msra.mxu0 0.0
    %7529 = vmatprep.subr.mxu0 0.0
    %7530 = vmatpush1.msra.mxu0 0.0
    %7531 = vmatprep.subr.mxu0 0.0
    %7532 = vmatpush1.msra.mxu0 0.0
    %7533 = vmatprep.subr.mxu0 0.0
    %7534 = vmatpush1.msra.mxu0 0.0
    %7535 = vmatprep.subr.mxu0 0.0
    %7536 = vmatpush1.msra.mxu0 0.0
    %7537 = vmatprep.subr.mxu0 0.0
    %7538 = vmatpush1.msra.mxu0 0.0
    %7539 = vmatprep.subr.mxu0 0.0
    %7540 = vmatpush1.msra.mxu0 0.0
    %7541 = vmatprep.subr.mxu0 0.0
    %7542 = vmatpush1.msra.mxu0 0.0
    %7543 = vmatprep.subr.mxu0 0.0
    %7544 = vmatpush1.msra.mxu0 0.0
    %7545 = vmatprep.subr.mxu0 0.0
    %7546 = vmatpush1.msra.mxu0 0.0
    %7547 = vmatprep.subr.mxu0 0.0
    %7548 = vmatpush1.msra.mxu0 0.0
    %7549 = vmatprep.subr.mxu0 0.0
    %7550 = vmatpush1.msra.mxu0 0.0
    %7551 = vmatprep.subr.mxu0 0.0
    %7552 = vmatpush1.msra.mxu0 0.0
    %7553 = vmatprep.subr.mxu0 0.0
    %7554 = vmatpush1.msra.mxu0 0.0
    %7555 = vmatprep.subr.mxu0 0.0
    %7556 = vmatpush1.msra.mxu0 0.0
    %7557 = vmatprep.subr.mxu0 0.0
    %7558 = vmatpush1.msra.mxu0 0.0
    %7559 = vmatprep.subr.mxu0 0.0
    %7560 = vmatpush1.msra.mxu0 0.0
    %7561 = vmatprep.subr.mxu0 0.0
    %7562 = vmatpush1.msra.mxu0 0.0
    %7563 = vmatprep.subr.mxu0 0.0
    %7564 = vmatpush1.msra.mxu0 0.0
    %7565 = vmatprep.mubr.f32.mxu0 0.0
    %7566 = vmatmul.mubr.f32.gmra.mrb[0].mxu0 %v6785
    %v7567 = vpop.f32.mrb[0].mxu0
    %v7568 = vadd.f32 0.0, %v7567
    %v7569 = vpop.f32.mrb[0].mxu0
    %v7570 = vadd.f32 0.0, %v7569
    %7571 = vdwg.mxu0
    %v7572 = vadd.f32 %v7482, %v7568
    %v7573 = vadd.f32 %v7483, %v7570
    %v7574 = vld [vmem:[#allocation23] sm:$0x3]
    %v7576 = vlaneseq
    %v7577 = vshrl.u32 %v7576, 7
    %v7578 = vsub.s32 0, %v7577
    %v7579 = vrot.slane %v7574, %v7578
    %v7580 = vlaneseq
    %v7581 = vshrl.u32 %v7580, 7
    %v7582 = vsub.s32 1, %v7581
    %v7583 = vrot.slane %v7574, %v7582
    %v7586 = vadd.f32 %v7572, %v7579
    %v7587 = vadd.f32 %v7573, %v7583
    %v7588 = vmax.f32 %v7586, 0.0
    %v7589 = vmax.f32 %v7587, 0.0
    %v7592 = vrot.slane %v7588, 2
    %v7593 = vrot.slane %v7589, 2
    %v7596 = vmax.f32 %v7588, %v7592
    %v7597 = vmax.f32 %v7589, %v7593
    %v7598 = vrot.slane %v7588, 4
    %v7599 = vrot.slane %v7589, 4
    %v7602 = vmax.f32 %v7596, %v7598
    %v7603 = vmax.f32 %v7597, %v7599
    %v7604 = vrot.slane %v7588, 6
    %v7605 = vrot.slane %v7589, 6
    %v7608 = vmax.f32 %v7602, %v7604
    %v7609 = vmax.f32 %v7603, %v7605
    %s7610 = scalar_lea.vmem [#allocation27], 256
    %v7611 = vld [vmem:[%s7610] sm:$0xff]
    %v7612 = vld [vmem:[%s7610 + $0x8] sm:$0xff]
    %v7613 = vld [vmem:[%s7610 + $0x10] sm:$0xff]
    %v7614 = vld [vmem:[%s7610 + $0x18] sm:$0xff]
    %v7615 = vld [vmem:[%s7610 + $0x20] sm:$0xff]
    %v7616 = vld [vmem:[%s7610 + $0x28] sm:$0xff]
    %v7617 = vld [vmem:[%s7610 + $0x30] sm:$0xff]
    %v7618 = vld [vmem:[%s7610 + $0x38] sm:$0xff]
    %v7619 = vld [vmem:[%s7610 + $0x40] sm:$0xff]
    %v7620 = vld [vmem:[%s7610 + $0x48] sm:$0xff]
    %v7621 = vld [vmem:[%s7610 + $0x50] sm:$0xff]
    %v7622 = vld [vmem:[%s7610 + $0x58] sm:$0xff]
    %v7623 = vld [vmem:[%s7610 + $0x60] sm:$0xff]
    %v7624 = vld [vmem:[%s7610 + $0x68] sm:$0xff]
    %v7625 = vld [vmem:[%s7610 + $0x70] sm:$0xff]
    %v7626 = vld [vmem:[%s7610 + $0x78] sm:$0xff]
    %v7627 = vld [vmem:[%s7610 + $0x80] sm:$0xff]
    %v7628 = vld [vmem:[%s7610 + $0x88] sm:$0xff]
    %v7629 = vld [vmem:[%s7610 + $0x90] sm:$0xff]
    %v7630 = vld [vmem:[%s7610 + $0x98] sm:$0xff]
    %v7631 = vld [vmem:[%s7610 + $0xa0] sm:$0xff]
    %v7632 = vld [vmem:[%s7610 + $0xa8] sm:$0xff]
    %v7633 = vld [vmem:[%s7610 + $0xb0] sm:$0xff]
    %v7634 = vld [vmem:[%s7610 + $0xb8] sm:$0xff]
    %v7635 = vld [vmem:[%s7610 + $0xc0] sm:$0xff]
    %v7636 = vld [vmem:[%s7610 + $0xc8] sm:$0xff]
    %v7637 = vld [vmem:[%s7610 + $0xd0] sm:$0xff]
    %v7638 = vld [vmem:[%s7610 + $0xd8] sm:$0xff]
    %v7639 = vld [vmem:[%s7610 + $0xe0] sm:$0xff]
    %v7640 = vld [vmem:[%s7610 + $0xe8] sm:$0xff]
    %v7641 = vld [vmem:[%s7610 + $0xf0] sm:$0xff]
    %v7642 = vld [vmem:[%s7610 + $0xf8] sm:$0xff]
    %7643 = vmatprep.subr.mxu0 0.0
    %7644 = vmatpush1.msra.mxu0 %v7611
    %7645 = vmatprep.subr.mxu0 0.0
    %7646 = vmatpush1.msra.mxu0 %v7612
    %7647 = vmatprep.subr.mxu0 0.0
    %7648 = vmatpush1.msra.mxu0 %v7613
    %7649 = vmatprep.subr.mxu0 0.0
    %7650 = vmatpush1.msra.mxu0 %v7614
    %7651 = vmatprep.subr.mxu0 0.0
    %7652 = vmatpush1.msra.mxu0 %v7615
    %7653 = vmatprep.subr.mxu0 0.0
    %7654 = vmatpush1.msra.mxu0 %v7616
    %7655 = vmatprep.subr.mxu0 0.0
    %7656 = vmatpush1.msra.mxu0 %v7617
    %7657 = vmatprep.subr.mxu0 0.0
    %7658 = vmatpush1.msra.mxu0 %v7618
    %7659 = vmatprep.subr.mxu0 0.0
    %7660 = vmatpush1.msra.mxu0 %v7619
    %7661 = vmatprep.subr.mxu0 0.0
    %7662 = vmatpush1.msra.mxu0 %v7620
    %7663 = vmatprep.subr.mxu0 0.0
    %7664 = vmatpush1.msra.mxu0 %v7621
    %7665 = vmatprep.subr.mxu0 0.0
    %7666 = vmatpush1.msra.mxu0 %v7622
    %7667 = vmatprep.subr.mxu0 0.0
    %7668 = vmatpush1.msra.mxu0 %v7623
    %7669 = vmatprep.subr.mxu0 0.0
    %7670 = vmatpush1.msra.mxu0 %v7624
    %7671 = vmatprep.subr.mxu0 0.0
    %7672 = vmatpush1.msra.mxu0 %v7625
    %7673 = vmatprep.subr.mxu0 0.0
    %7674 = vmatpush1.msra.mxu0 %v7626
    %7675 = vmatprep.subr.mxu0 0.0
    %7676 = vmatpush1.msra.mxu0 %v7627
    %7677 = vmatprep.subr.mxu0 0.0
    %7678 = vmatpush1.msra.mxu0 %v7628
    %7679 = vmatprep.subr.mxu0 0.0
    %7680 = vmatpush1.msra.mxu0 %v7629
    %7681 = vmatprep.subr.mxu0 0.0
    %7682 = vmatpush1.msra.mxu0 %v7630
    %7683 = vmatprep.subr.mxu0 0.0
    %7684 = vmatpush1.msra.mxu0 %v7631
    %7685 = vmatprep.subr.mxu0 0.0
    %7686 = vmatpush1.msra.mxu0 %v7632
    %7687 = vmatprep.subr.mxu0 0.0
    %7688 = vmatpush1.msra.mxu0 %v7633
    %7689 = vmatprep.subr.mxu0 0.0
    %7690 = vmatpush1.msra.mxu0 %v7634
    %7691 = vmatprep.subr.mxu0 0.0
    %7692 = vmatpush1.msra.mxu0 %v7635
    %7693 = vmatprep.subr.mxu0 0.0
    %7694 = vmatpush1.msra.mxu0 %v7636
    %7695 = vmatprep.subr.mxu0 0.0
    %7696 = vmatpush1.msra.mxu0 %v7637
    %7697 = vmatprep.subr.mxu0 0.0
    %7698 = vmatpush1.msra.mxu0 %v7638
    %7699 = vmatprep.subr.mxu0 0.0
    %7700 = vmatpush1.msra.mxu0 %v7639
    %7701 = vmatprep.subr.mxu0 0.0
    %7702 = vmatpush1.msra.mxu0 %v7640
    %7703 = vmatprep.subr.mxu0 0.0
    %7704 = vmatpush1.msra.mxu0 %v7641
    %7705 = vmatprep.subr.mxu0 0.0
    %7706 = vmatpush1.msra.mxu0 %v7642
    %7707 = vmatprep.mubr.f32.mxu0 %v7609
    %7708 = vmatmul.mubr.f32.gmra.mrb[0].mxu0 %v7608
    %v7709 = vpop.f32.mrb[0].mxu0
    %v7710 = vadd.f32 0.0, %v7709
    %v7711 = vpop.f32.mrb[0].mxu0
    %7712 = vdwg.mxu0
    %v7713 = vadd.f32 %v7122, %v7710
    %v7714 = vld [vmem:[#allocation24] sm:$0xff]
    %v7715 = vld [vmem:[#allocation24 + $0x8] sm:$0xff]
    %v7716 = vld [vmem:[#allocation24 + $0x10] sm:$0xff]
    %v7717 = vld [vmem:[#allocation24 + $0x18] sm:$0xff]
    %v7718 = vld [vmem:[#allocation24 + $0x20] sm:$0xff]
    %v7719 = vld [vmem:[#allocation24 + $0x28] sm:$0xff]
    %v7720 = vld [vmem:[#allocation24 + $0x30] sm:$0xff]
    %v7721 = vld [vmem:[#allocation24 + $0x38] sm:$0xff]
    %v7722 = vld [vmem:[#allocation24 + $0x40] sm:$0xff]
    %v7723 = vld [vmem:[#allocation24 + $0x48] sm:$0xff]
    %v7724 = vld [vmem:[#allocation24 + $0x50] sm:$0xff]
    %v7725 = vld [vmem:[#allocation24 + $0x58] sm:$0xff]
    %v7726 = vld [vmem:[#allocation24 + $0x60] sm:$0xff]
    %v7727 = vld [vmem:[#allocation24 + $0x68] sm:$0xff]
    %v7728 = vld [vmem:[#allocation24 + $0x70] sm:$0xff]
    %v7729 = vld [vmem:[#allocation24 + $0x78] sm:$0xff]
    %s7730 = scalar_lea.vmem [#allocation24], 128
    %v7731 = vld [vmem:[%s7730] sm:$0xff]
    %v7732 = vld [vmem:[%s7730 + $0x8] sm:$0xff]
    %v7733 = vld [vmem:[%s7730 + $0x10] sm:$0xff]
    %v7734 = vld [vmem:[%s7730 + $0x18] sm:$0xff]
    %v7735 = vld [vmem:[%s7730 + $0x20] sm:$0xff]
    %v7736 = vld [vmem:[%s7730 + $0x28] sm:$0xff]
    %v7737 = vld [vmem:[%s7730 + $0x30] sm:$0xff]
    %v7738 = vld [vmem:[%s7730 + $0x38] sm:$0xff]
    %v7739 = vld [vmem:[%s7730 + $0x40] sm:$0xff]
    %v7740 = vld [vmem:[%s7730 + $0x48] sm:$0xff]
    %v7741 = vld [vmem:[%s7730 + $0x50] sm:$0xff]
    %v7742 = vld [vmem:[%s7730 + $0x58] sm:$0xff]
    %v7743 = vld [vmem:[%s7730 + $0x60] sm:$0xff]
    %v7744 = vld [vmem:[%s7730 + $0x68] sm:$0xff]
    %v7745 = vld [vmem:[%s7730 + $0x70] sm:$0xff]
    %v7746 = vld [vmem:[%s7730 + $0x78] sm:$0xff]
    %v7747 = vsel %vm2275, %v6699, 0
    %7749 = vmatprep.subr.mxu0 %v7732
    %7750 = vmatpush1.msra.mxu0 %v7731
    %7751 = vmatprep.subr.mxu0 %v7734
    %7752 = vmatpush1.msra.mxu0 %v7733
    %7753 = vmatprep.subr.mxu0 %v7736
    %7754 = vmatpush1.msra.mxu0 %v7735
    %7755 = vmatprep.subr.mxu0 %v7738
    %7756 = vmatpush1.msra.mxu0 %v7737
    %7757 = vmatprep.subr.mxu0 %v7740
    %7758 = vmatpush1.msra.mxu0 %v7739
    %7759 = vmatprep.subr.mxu0 %v7742
    %7760 = vmatpush1.msra.mxu0 %v7741
    %7761 = vmatprep.subr.mxu0 %v7744
    %7762 = vmatpush1.msra.mxu0 %v7743
    %7763 = vmatprep.subr.mxu0 %v7746
    %7764 = vmatpush1.msra.mxu0 %v7745
    %7765 = vmatprep.subr.mxu0 0.0
    %7766 = vmatpush1.msra.mxu0 0.0
    %7767 = vmatprep.subr.mxu0 0.0
    %7768 = vmatpush1.msra.mxu0 0.0
    %7769 = vmatprep.subr.mxu0 0.0
    %7770 = vmatpush1.msra.mxu0 0.0
    %7771 = vmatprep.subr.mxu0 0.0
    %7772 = vmatpush1.msra.mxu0 0.0
    %7773 = vmatprep.subr.mxu0 0.0
    %7774 = vmatpush1.msra.mxu0 0.0
    %7775 = vmatprep.subr.mxu0 0.0
    %7776 = vmatpush1.msra.mxu0 0.0
    %7777 = vmatprep.subr.mxu0 0.0
    %7778 = vmatpush1.msra.mxu0 0.0
    %7779 = vmatprep.subr.mxu0 0.0
    %7780 = vmatpush1.msra.mxu0 0.0
    %7781 = vmatprep.subr.mxu0 0.0
    %7782 = vmatpush1.msra.mxu0 0.0
    %7783 = vmatprep.subr.mxu0 0.0
    %7784 = vmatpush1.msra.mxu0 0.0
    %7785 = vmatprep.subr.mxu0 0.0
    %7786 = vmatpush1.msra.mxu0 0.0
    %7787 = vmatprep.subr.mxu0 0.0
    %7788 = vmatpush1.msra.mxu0 0.0
    %7789 = vmatprep.subr.mxu0 0.0
    %7790 = vmatpush1.msra.mxu0 0.0
    %7791 = vmatprep.subr.mxu0 0.0
    %7792 = vmatpush1.msra.mxu0 0.0
    %7793 = vmatprep.subr.mxu0 0.0
    %7794 = vmatpush1.msra.mxu0 0.0
    %7795 = vmatprep.subr.mxu0 0.0
    %7796 = vmatpush1.msra.mxu0 0.0
    %7797 = vmatprep.subr.mxu0 0.0
    %7798 = vmatpush1.msra.mxu0 0.0
    %7799 = vmatprep.subr.mxu0 0.0
    %7800 = vmatpush1.msra.mxu0 0.0
    %7801 = vmatprep.subr.mxu0 0.0
    %7802 = vmatpush1.msra.mxu0 0.0
    %7803 = vmatprep.subr.mxu0 0.0
    %7804 = vmatpush1.msra.mxu0 0.0
    %7805 = vmatprep.subr.mxu0 0.0
    %7806 = vmatpush1.msra.mxu0 0.0
    %7807 = vmatprep.subr.mxu0 0.0
    %7808 = vmatpush1.msra.mxu0 0.0
    %7809 = vmatprep.subr.mxu0 0.0
    %7810 = vmatpush1.msra.mxu0 0.0
    %7811 = vmatprep.subr.mxu0 0.0
    %7812 = vmatpush1.msra.mxu0 0.0
    %7813 = vmatprep.mubr.f32.mxu0 0.0
    %7814 = vmatmul.mubr.f32.gmra.mrb[0].mxu0 %v7747
    %v7815 = vpop.f32.mrb[0].mxu0
    %v7816 = vadd.f32 0.0, %v7815
    %v7817 = vpop.f32.mrb[0].mxu0
    %v7818 = vadd.f32 0.0, %v7817
    %7819 = vdwg.mxu0
    %7820 = vmatprep.subr.mxu0 %v7715
    %7821 = vmatpush1.msra.mxu0 %v7714
    %7822 = vmatprep.subr.mxu0 %v7717
    %7823 = vmatpush1.msra.mxu0 %v7716
    %7824 = vmatprep.subr.mxu0 %v7719
    %7825 = vmatpush1.msra.mxu0 %v7718
    %7826 = vmatprep.subr.mxu0 %v7721
    %7827 = vmatpush1.msra.mxu0 %v7720
    %7828 = vmatprep.subr.mxu0 %v7723
    %7829 = vmatpush1.msra.mxu0 %v7722
    %7830 = vmatprep.subr.mxu0 %v7725
    %7831 = vmatpush1.msra.mxu0 %v7724
    %7832 = vmatprep.subr.mxu0 %v7727
    %7833 = vmatpush1.msra.mxu0 %v7726
    %7834 = vmatprep.subr.mxu0 %v7729
    %7835 = vmatpush1.msra.mxu0 %v7728
    %7836 = vmatprep.subr.mxu0 0.0
    %7837 = vmatpush1.msra.mxu0 0.0
    %7838 = vmatprep.subr.mxu0 0.0
    %7839 = vmatpush1.msra.mxu0 0.0
    %7840 = vmatprep.subr.mxu0 0.0
    %7841 = vmatpush1.msra.mxu0 0.0
    %7842 = vmatprep.subr.mxu0 0.0
    %7843 = vmatpush1.msra.mxu0 0.0
    %7844 = vmatprep.subr.mxu0 0.0
    %7845 = vmatpush1.msra.mxu0 0.0
    %7846 = vmatprep.subr.mxu0 0.0
    %7847 = vmatpush1.msra.mxu0 0.0
    %7848 = vmatprep.subr.mxu0 0.0
    %7849 = vmatpush1.msra.mxu0 0.0
    %7850 = vmatprep.subr.mxu0 0.0
    %7851 = vmatpush1.msra.mxu0 0.0
    %7852 = vmatprep.subr.mxu0 0.0
    %7853 = vmatpush1.msra.mxu0 0.0
    %7854 = vmatprep.subr.mxu0 0.0
    %7855 = vmatpush1.msra.mxu0 0.0
    %7856 = vmatprep.subr.mxu0 0.0
    %7857 = vmatpush1.msra.mxu0 0.0
    %7858 = vmatprep.subr.mxu0 0.0
    %7859 = vmatpush1.msra.mxu0 0.0
    %7860 = vmatprep.subr.mxu0 0.0
    %7861 = vmatpush1.msra.mxu0 0.0
    %7862 = vmatprep.subr.mxu0 0.0
    %7863 = vmatpush1.msra.mxu0 0.0
    %7864 = vmatprep.subr.mxu0 0.0
    %7865 = vmatpush1.msra.mxu0 0.0
    %7866 = vmatprep.subr.mxu0 0.0
    %7867 = vmatpush1.msra.mxu0 0.0
    %7868 = vmatprep.subr.mxu0 0.0
    %7869 = vmatpush1.msra.mxu0 0.0
    %7870 = vmatprep.subr.mxu0 0.0
    %7871 = vmatpush1.msra.mxu0 0.0
    %7872 = vmatprep.subr.mxu0 0.0
    %7873 = vmatpush1.msra.mxu0 0.0
    %7874 = vmatprep.subr.mxu0 0.0
    %7875 = vmatpush1.msra.mxu0 0.0
    %7876 = vmatprep.subr.mxu0 0.0
    %7877 = vmatpush1.msra.mxu0 0.0
    %7878 = vmatprep.subr.mxu0 0.0
    %7879 = vmatpush1.msra.mxu0 0.0
    %7880 = vmatprep.subr.mxu0 0.0
    %7881 = vmatpush1.msra.mxu0 0.0
    %7882 = vmatprep.subr.mxu0 0.0
    %7883 = vmatpush1.msra.mxu0 0.0
    %7884 = vmatprep.mubr.f32.mxu0 0.0
    %7885 = vmatmul.mubr.f32.gmra.mrb[0].mxu0 %v6783
    %v7886 = vpop.f32.mrb[0].mxu0
    %v7887 = vadd.f32 %v7816, %v7886
    %v7888 = vpop.f32.mrb[0].mxu0
    %v7889 = vadd.f32 %v7818, %v7888
    %7890 = vdwg.mxu0
    %s7891 = scalar_lea.vmem [#allocation24], 256
    %v7892 = vld [vmem:[%s7891] sm:$0xff]
    %v7893 = vld [vmem:[%s7891 + $0x8] sm:$0xff]
    %v7894 = vld [vmem:[%s7891 + $0x10] sm:$0xff]
    %v7895 = vld [vmem:[%s7891 + $0x18] sm:$0xff]
    %v7896 = vld [vmem:[%s7891 + $0x20] sm:$0xff]
    %v7897 = vld [vmem:[%s7891 + $0x28] sm:$0xff]
    %v7898 = vld [vmem:[%s7891 + $0x30] sm:$0xff]
    %v7899 = vld [vmem:[%s7891 + $0x38] sm:$0xff]
    %v7900 = vld [vmem:[%s7891 + $0x40] sm:$0xff]
    %v7901 = vld [vmem:[%s7891 + $0x48] sm:$0xff]
    %v7902 = vld [vmem:[%s7891 + $0x50] sm:$0xff]
    %v7903 = vld [vmem:[%s7891 + $0x58] sm:$0xff]
    %v7904 = vld [vmem:[%s7891 + $0x60] sm:$0xff]
    %v7905 = vld [vmem:[%s7891 + $0x68] sm:$0xff]
    %v7906 = vld [vmem:[%s7891 + $0x70] sm:$0xff]
    %v7907 = vld [vmem:[%s7891 + $0x78] sm:$0xff]
    %v7908 = vsel %vm2275, %v6882, 0
    %7910 = vmatprep.subr.mxu0 %v7893
    %7911 = vmatpush1.msra.mxu0 %v7892
    %7912 = vmatprep.subr.mxu0 %v7895
    %7913 = vmatpush1.msra.mxu0 %v7894
    %7914 = vmatprep.subr.mxu0 %v7897
    %7915 = vmatpush1.msra.mxu0 %v7896
    %7916 = vmatprep.subr.mxu0 %v7899
    %7917 = vmatpush1.msra.mxu0 %v7898
    %7918 = vmatprep.subr.mxu0 %v7901
    %7919 = vmatpush1.msra.mxu0 %v7900
    %7920 = vmatprep.subr.mxu0 %v7903
    %7921 = vmatpush1.msra.mxu0 %v7902
    %7922 = vmatprep.subr.mxu0 %v7905
    %7923 = vmatpush1.msra.mxu0 %v7904
    %7924 = vmatprep.subr.mxu0 %v7907
    %7925 = vmatpush1.msra.mxu0 %v7906
    %7926 = vmatprep.subr.mxu0 0.0
    %7927 = vmatpush1.msra.mxu0 0.0
    %7928 = vmatprep.subr.mxu0 0.0
    %7929 = vmatpush1.msra.mxu0 0.0
    %7930 = vmatprep.subr.mxu0 0.0
    %7931 = vmatpush1.msra.mxu0 0.0
    %7932 = vmatprep.subr.mxu0 0.0
    %7933 = vmatpush1.msra.mxu0 0.0
    %7934 = vmatprep.subr.mxu0 0.0
    %7935 = vmatpush1.msra.mxu0 0.0
    %7936 = vmatprep.subr.mxu0 0.0
    %7937 = vmatpush1.msra.mxu0 0.0
    %7938 = vmatprep.subr.mxu0 0.0
    %7939 = vmatpush1.msra.mxu0 0.0
    %7940 = vmatprep.subr.mxu0 0.0
    %7941 = vmatpush1.msra.mxu0 0.0
    %7942 = vmatprep.subr.mxu0 0.0
    %7943 = vmatpush1.msra.mxu0 0.0
    %7944 = vmatprep.subr.mxu0 0.0
    %7945 = vmatpush1.msra.mxu0 0.0
    %7946 = vmatprep.subr.mxu0 0.0
    %7947 = vmatpush1.msra.mxu0 0.0
    %7948 = vmatprep.subr.mxu0 0.0
    %7949 = vmatpush1.msra.mxu0 0.0
    %7950 = vmatprep.subr.mxu0 0.0
    %7951 = vmatpush1.msra.mxu0 0.0
    %7952 = vmatprep.subr.mxu0 0.0
    %7953 = vmatpush1.msra.mxu0 0.0
    %7954 = vmatprep.subr.mxu0 0.0
    %7955 = vmatpush1.msra.mxu0 0.0
    %7956 = vmatprep.subr.mxu0 0.0
    %7957 = vmatpush1.msra.mxu0 0.0
    %7958 = vmatprep.subr.mxu0 0.0
    %7959 = vmatpush1.msra.mxu0 0.0
    %7960 = vmatprep.subr.mxu0 0.0
    %7961 = vmatpush1.msra.mxu0 0.0
    %7962 = vmatprep.subr.mxu0 0.0
    %7963 = vmatpush1.msra.mxu0 0.0
    %7964 = vmatprep.subr.mxu0 0.0
    %7965 = vmatpush1.msra.mxu0 0.0
    %7966 = vmatprep.subr.mxu0 0.0
    %7967 = vmatpush1.msra.mxu0 0.0
    %7968 = vmatprep.subr.mxu0 0.0
    %7969 = vmatpush1.msra.mxu0 0.0
    %7970 = vmatprep.subr.mxu0 0.0
    %7971 = vmatpush1.msra.mxu0 0.0
    %7972 = vmatprep.subr.mxu0 0.0
    %7973 = vmatpush1.msra.mxu0 0.0
    %7974 = vmatprep.mubr.f32.mxu0 0.0
    %7975 = vmatmul.mubr.f32.gmra.mrb[0].mxu0 %v7908
    %v7976 = vpop.f32.mrb[0].mxu0
    %v7977 = vadd.f32 0.0, %v7976
    %v7978 = vpop.f32.mrb[0].mxu0
    %v7979 = vadd.f32 0.0, %v7978
    %7980 = vdwg.mxu0
    %v7981 = vadd.f32 %v7887, %v7977
    %v7982 = vadd.f32 %v7889, %v7979
    %s7983 = scalar_lea.vmem [#allocation24], 384
    %v7984 = vld [vmem:[%s7983] sm:$0xff]
    %v7985 = vld [vmem:[%s7983 + $0x8] sm:$0xff]
    %v7986 = vld [vmem:[%s7983 + $0x10] sm:$0xff]
    %v7987 = vld [vmem:[%s7983 + $0x18] sm:$0xff]
    %v7988 = vld [vmem:[%s7983 + $0x20] sm:$0xff]
    %v7989 = vld [vmem:[%s7983 + $0x28] sm:$0xff]
    %v7990 = vld [vmem:[%s7983 + $0x30] sm:$0xff]
    %v7991 = vld [vmem:[%s7983 + $0x38] sm:$0xff]
    %v7992 = vld [vmem:[%s7983 + $0x40] sm:$0xff]
    %v7993 = vld [vmem:[%s7983 + $0x48] sm:$0xff]
    %v7994 = vld [vmem:[%s7983 + $0x50] sm:$0xff]
    %v7995 = vld [vmem:[%s7983 + $0x58] sm:$0xff]
    %v7996 = vld [vmem:[%s7983 + $0x60] sm:$0xff]
    %v7997 = vld [vmem:[%s7983 + $0x68] sm:$0xff]
    %v7998 = vld [vmem:[%s7983 + $0x70] sm:$0xff]
    %v7999 = vld [vmem:[%s7983 + $0x78] sm:$0xff]
    %8000 = vmatprep.subr.mxu0 %v7985
    %8001 = vmatpush1.msra.mxu0 %v7984
    %8002 = vmatprep.subr.mxu0 %v7987
    %8003 = vmatpush1.msra.mxu0 %v7986
    %8004 = vmatprep.subr.mxu0 %v7989
    %8005 = vmatpush1.msra.mxu0 %v7988
    %8006 = vmatprep.subr.mxu0 %v7991
    %8007 = vmatpush1.msra.mxu0 %v7990
    %8008 = vmatprep.subr.mxu0 %v7993
    %8009 = vmatpush1.msra.mxu0 %v7992
    %8010 = vmatprep.subr.mxu0 %v7995
    %8011 = vmatpush1.msra.mxu0 %v7994
    %8012 = vmatprep.subr.mxu0 %v7997
    %8013 = vmatpush1.msra.mxu0 %v7996
    %8014 = vmatprep.subr.mxu0 %v7999
    %8015 = vmatpush1.msra.mxu0 %v7998
    %8016 = vmatprep.subr.mxu0 0.0
    %8017 = vmatpush1.msra.mxu0 0.0
    %8018 = vmatprep.subr.mxu0 0.0
    %8019 = vmatpush1.msra.mxu0 0.0
    %8020 = vmatprep.subr.mxu0 0.0
    %8021 = vmatpush1.msra.mxu0 0.0
    %8022 = vmatprep.subr.mxu0 0.0
    %8023 = vmatpush1.msra.mxu0 0.0
    %8024 = vmatprep.subr.mxu0 0.0
    %8025 = vmatpush1.msra.mxu0 0.0
    %8026 = vmatprep.subr.mxu0 0.0
    %8027 = vmatpush1.msra.mxu0 0.0
    %8028 = vmatprep.subr.mxu0 0.0
    %8029 = vmatpush1.msra.mxu0 0.0
    %8030 = vmatprep.subr.mxu0 0.0
    %8031 = vmatpush1.msra.mxu0 0.0
    %8032 = vmatprep.subr.mxu0 0.0
    %8033 = vmatpush1.msra.mxu0 0.0
    %8034 = vmatprep.subr.mxu0 0.0
    %8035 = vmatpush1.msra.mxu0 0.0
    %8036 = vmatprep.subr.mxu0 0.0
    %8037 = vmatpush1.msra.mxu0 0.0
    %8038 = vmatprep.subr.mxu0 0.0
    %8039 = vmatpush1.msra.mxu0 0.0
    %8040 = vmatprep.subr.mxu0 0.0
    %8041 = vmatpush1.msra.mxu0 0.0
    %8042 = vmatprep.subr.mxu0 0.0
    %8043 = vmatpush1.msra.mxu0 0.0
    %8044 = vmatprep.subr.mxu0 0.0
    %8045 = vmatpush1.msra.mxu0 0.0
    %8046 = vmatprep.subr.mxu0 0.0
    %8047 = vmatpush1.msra.mxu0 0.0
    %8048 = vmatprep.subr.mxu0 0.0
    %8049 = vmatpush1.msra.mxu0 0.0
    %8050 = vmatprep.subr.mxu0 0.0
    %8051 = vmatpush1.msra.mxu0 0.0
    %8052 = vmatprep.subr.mxu0 0.0
    %8053 = vmatpush1.msra.mxu0 0.0
    %8054 = vmatprep.subr.mxu0 0.0
    %8055 = vmatpush1.msra.mxu0 0.0
    %8056 = vmatprep.subr.mxu0 0.0
    %8057 = vmatpush1.msra.mxu0 0.0
    %8058 = vmatprep.subr.mxu0 0.0
    %8059 = vmatpush1.msra.mxu0 0.0
    %8060 = vmatprep.subr.mxu0 0.0
    %8061 = vmatpush1.msra.mxu0 0.0
    %8062 = vmatprep.subr.mxu0 0.0
    %8063 = vmatpush1.msra.mxu0 0.0
    %8064 = vmatprep.mubr.f32.mxu0 0.0
    %8065 = vmatmul.mubr.f32.gmra.mrb[0].mxu0 %v7409
    %v8066 = vpop.f32.mrb[0].mxu0
    %v8067 = vadd.f32 0.0, %v8066
    %v8068 = vpop.f32.mrb[0].mxu0
    %v8069 = vadd.f32 0.0, %v8068
    %8070 = vdwg.mxu0
    %v8071 = vadd.f32 %v7981, %v8067
    %v8072 = vadd.f32 %v7982, %v8069
    %s8073 = scalar_lea.vmem [#allocation24], 512
    %v8074 = vld [vmem:[%s8073] sm:$0xff]
    %v8075 = vld [vmem:[%s8073 + $0x8] sm:$0xff]
    %v8076 = vld [vmem:[%s8073 + $0x10] sm:$0xff]
    %v8077 = vld [vmem:[%s8073 + $0x18] sm:$0xff]
    %v8078 = vld [vmem:[%s8073 + $0x20] sm:$0xff]
    %v8079 = vld [vmem:[%s8073 + $0x28] sm:$0xff]
    %v8080 = vld [vmem:[%s8073 + $0x30] sm:$0xff]
    %v8081 = vld [vmem:[%s8073 + $0x38] sm:$0xff]
    %v8082 = vld [vmem:[%s8073 + $0x40] sm:$0xff]
    %v8083 = vld [vmem:[%s8073 + $0x48] sm:$0xff]
    %v8084 = vld [vmem:[%s8073 + $0x50] sm:$0xff]
    %v8085 = vld [vmem:[%s8073 + $0x58] sm:$0xff]
    %v8086 = vld [vmem:[%s8073 + $0x60] sm:$0xff]
    %v8087 = vld [vmem:[%s8073 + $0x68] sm:$0xff]
    %v8088 = vld [vmem:[%s8073 + $0x70] sm:$0xff]
    %v8089 = vld [vmem:[%s8073 + $0x78] sm:$0xff]
    %8090 = vmatprep.subr.mxu0 %v8075
    %8091 = vmatpush1.msra.mxu0 %v8074
    %8092 = vmatprep.subr.mxu0 %v8077
    %8093 = vmatpush1.msra.mxu0 %v8076
    %8094 = vmatprep.subr.mxu0 %v8079
    %8095 = vmatpush1.msra.mxu0 %v8078
    %8096 = vmatprep.subr.mxu0 %v8081
    %8097 = vmatpush1.msra.mxu0 %v8080
    %8098 = vmatprep.subr.mxu0 %v8083
    %8099 = vmatpush1.msra.mxu0 %v8082
    %8100 = vmatprep.subr.mxu0 %v8085
    %8101 = vmatpush1.msra.mxu0 %v8084
    %8102 = vmatprep.subr.mxu0 %v8087
    %8103 = vmatpush1.msra.mxu0 %v8086
    %8104 = vmatprep.subr.mxu0 %v8089
    %8105 = vmatpush1.msra.mxu0 %v8088
    %8106 = vmatprep.subr.mxu0 0.0
    %8107 = vmatpush1.msra.mxu0 0.0
    %8108 = vmatprep.subr.mxu0 0.0
    %8109 = vmatpush1.msra.mxu0 0.0
    %8110 = vmatprep.subr.mxu0 0.0
    %8111 = vmatpush1.msra.mxu0 0.0
    %8112 = vmatprep.subr.mxu0 0.0
    %8113 = vmatpush1.msra.mxu0 0.0
    %8114 = vmatprep.subr.mxu0 0.0
    %8115 = vmatpush1.msra.mxu0 0.0
    %8116 = vmatprep.subr.mxu0 0.0
    %8117 = vmatpush1.msra.mxu0 0.0
    %8118 = vmatprep.subr.mxu0 0.0
    %8119 = vmatpush1.msra.mxu0 0.0
    %8120 = vmatprep.subr.mxu0 0.0
    %8121 = vmatpush1.msra.mxu0 0.0
    %8122 = vmatprep.subr.mxu0 0.0
    %8123 = vmatpush1.msra.mxu0 0.0
    %8124 = vmatprep.subr.mxu0 0.0
    %8125 = vmatpush1.msra.mxu0 0.0
    %8126 = vmatprep.subr.mxu0 0.0
    %8127 = vmatpush1.msra.mxu0 0.0
    %8128 = vmatprep.subr.mxu0 0.0
    %8129 = vmatpush1.msra.mxu0 0.0
    %8130 = vmatprep.subr.mxu0 0.0
    %8131 = vmatpush1.msra.mxu0 0.0
    %8132 = vmatprep.subr.mxu0 0.0
    %8133 = vmatpush1.msra.mxu0 0.0
    %8134 = vmatprep.subr.mxu0 0.0
    %8135 = vmatpush1.msra.mxu0 0.0
    %8136 = vmatprep.subr.mxu0 0.0
    %8137 = vmatpush1.msra.mxu0 0.0
    %8138 = vmatprep.subr.mxu0 0.0
    %8139 = vmatpush1.msra.mxu0 0.0
    %8140 = vmatprep.subr.mxu0 0.0
    %8141 = vmatpush1.msra.mxu0 0.0
    %8142 = vmatprep.subr.mxu0 0.0
    %8143 = vmatpush1.msra.mxu0 0.0
    %8144 = vmatprep.subr.mxu0 0.0
    %8145 = vmatpush1.msra.mxu0 0.0
    %8146 = vmatprep.subr.mxu0 0.0
    %8147 = vmatpush1.msra.mxu0 0.0
    %8148 = vmatprep.subr.mxu0 0.0
    %8149 = vmatpush1.msra.mxu0 0.0
    %8150 = vmatprep.subr.mxu0 0.0
    %8151 = vmatpush1.msra.mxu0 0.0
    %8152 = vmatprep.subr.mxu0 0.0
    %8153 = vmatpush1.msra.mxu0 0.0
    %8154 = vmatprep.mubr.f32.mxu0 0.0
    %8155 = vmatmul.mubr.f32.gmra.mrb[0].mxu0 %v6785
    %v8156 = vpop.f32.mrb[0].mxu0
    %v8157 = vadd.f32 0.0, %v8156
    %v8158 = vpop.f32.mrb[0].mxu0
    %v8159 = vadd.f32 0.0, %v8158
    %8160 = vdwg.mxu0
    %v8161 = vadd.f32 %v8071, %v8157
    %v8162 = vadd.f32 %v8072, %v8159
    %s8163 = scalar_lea.vmem [#allocation24], 640
    %v8164 = vld [vmem:[%s8163] sm:$0xff]
    %v8165 = vld [vmem:[%s8163 + $0x8] sm:$0xff]
    %v8166 = vld [vmem:[%s8163 + $0x10] sm:$0xff]
    %v8167 = vld [vmem:[%s8163 + $0x18] sm:$0xff]
    %v8168 = vld [vmem:[%s8163 + $0x20] sm:$0xff]
    %v8169 = vld [vmem:[%s8163 + $0x28] sm:$0xff]
    %v8170 = vld [vmem:[%s8163 + $0x30] sm:$0xff]
    %v8171 = vld [vmem:[%s8163 + $0x38] sm:$0xff]
    %v8172 = vld [vmem:[%s8163 + $0x40] sm:$0xff]
    %v8173 = vld [vmem:[%s8163 + $0x48] sm:$0xff]
    %v8174 = vld [vmem:[%s8163 + $0x50] sm:$0xff]
    %v8175 = vld [vmem:[%s8163 + $0x58] sm:$0xff]
    %v8176 = vld [vmem:[%s8163 + $0x60] sm:$0xff]
    %v8177 = vld [vmem:[%s8163 + $0x68] sm:$0xff]
    %v8178 = vld [vmem:[%s8163 + $0x70] sm:$0xff]
    %v8179 = vld [vmem:[%s8163 + $0x78] sm:$0xff]
    %8180 = vmatprep.subr.mxu0 %v8165
    %8181 = vmatpush1.msra.mxu0 %v8164
    %8182 = vmatprep.subr.mxu0 %v8167
    %8183 = vmatpush1.msra.mxu0 %v8166
    %8184 = vmatprep.subr.mxu0 %v8169
    %8185 = vmatpush1.msra.mxu0 %v8168
    %8186 = vmatprep.subr.mxu0 %v8171
    %8187 = vmatpush1.msra.mxu0 %v8170
    %8188 = vmatprep.subr.mxu0 %v8173
    %8189 = vmatpush1.msra.mxu0 %v8172
    %8190 = vmatprep.subr.mxu0 %v8175
    %8191 = vmatpush1.msra.mxu0 %v8174
    %8192 = vmatprep.subr.mxu0 %v8177
    %8193 = vmatpush1.msra.mxu0 %v8176
    %8194 = vmatprep.subr.mxu0 %v8179
    %8195 = vmatpush1.msra.mxu0 %v8178
    %8196 = vmatprep.subr.mxu0 0.0
    %8197 = vmatpush1.msra.mxu0 0.0
    %8198 = vmatprep.subr.mxu0 0.0
    %8199 = vmatpush1.msra.mxu0 0.0
    %8200 = vmatprep.subr.mxu0 0.0
    %8201 = vmatpush1.msra.mxu0 0.0
    %8202 = vmatprep.subr.mxu0 0.0
    %8203 = vmatpush1.msra.mxu0 0.0
    %8204 = vmatprep.subr.mxu0 0.0
    %8205 = vmatpush1.msra.mxu0 0.0
    %8206 = vmatprep.subr.mxu0 0.0
    %8207 = vmatpush1.msra.mxu0 0.0
    %8208 = vmatprep.subr.mxu0 0.0
    %8209 = vmatpush1.msra.mxu0 0.0
    %8210 = vmatprep.subr.mxu0 0.0
    %8211 = vmatpush1.msra.mxu0 0.0
    %8212 = vmatprep.subr.mxu0 0.0
    %8213 = vmatpush1.msra.mxu0 0.0
    %8214 = vmatprep.subr.mxu0 0.0
    %8215 = vmatpush1.msra.mxu0 0.0
    %8216 = vmatprep.subr.mxu0 0.0
    %8217 = vmatpush1.msra.mxu0 0.0
    %8218 = vmatprep.subr.mxu0 0.0
    %8219 = vmatpush1.msra.mxu0 0.0
    %8220 = vmatprep.subr.mxu0 0.0
    %8221 = vmatpush1.msra.mxu0 0.0
    %8222 = vmatprep.subr.mxu0 0.0
    %8223 = vmatpush1.msra.mxu0 0.0
    %8224 = vmatprep.subr.mxu0 0.0
    %8225 = vmatpush1.msra.mxu0 0.0
    %8226 = vmatprep.subr.mxu0 0.0
    %8227 = vmatpush1.msra.mxu0 0.0
    %8228 = vmatprep.subr.mxu0 0.0
    %8229 = vmatpush1.msra.mxu0 0.0
    %8230 = vmatprep.subr.mxu0 0.0
    %8231 = vmatpush1.msra.mxu0 0.0
    %8232 = vmatprep.subr.mxu0 0.0
    %8233 = vmatpush1.msra.mxu0 0.0
    %8234 = vmatprep.subr.mxu0 0.0
    %8235 = vmatpush1.msra.mxu0 0.0
    %8236 = vmatprep.subr.mxu0 0.0
    %8237 = vmatpush1.msra.mxu0 0.0
    %8238 = vmatprep.subr.mxu0 0.0
    %8239 = vmatpush1.msra.mxu0 0.0
    %8240 = vmatprep.subr.mxu0 0.0
    %8241 = vmatpush1.msra.mxu0 0.0
    %8242 = vmatprep.subr.mxu0 0.0
    %8243 = vmatpush1.msra.mxu0 0.0
    %8244 = vmatprep.mubr.f32.mxu0 0.0
    %8245 = vmatmul.mubr.f32.gmra.mrb[0].mxu0 %v6704
    %v8246 = vpop.f32.mrb[0].mxu0
    %v8247 = vadd.f32 0.0, %v8246
    %v8248 = vpop.f32.mrb[0].mxu0
    %v8249 = vadd.f32 0.0, %v8248
    %8250 = vdwg.mxu0
    %v8251 = vadd.f32 %v8161, %v8247
    %v8252 = vadd.f32 %v8162, %v8249
    %s8253 = scalar_lea.vmem [#allocation24], 768
    %v8254 = vld [vmem:[%s8253] sm:$0xff]
    %v8255 = vld [vmem:[%s8253 + $0x8] sm:$0xff]
    %v8256 = vld [vmem:[%s8253 + $0x10] sm:$0xff]
    %v8257 = vld [vmem:[%s8253 + $0x18] sm:$0xff]
    %v8258 = vld [vmem:[%s8253 + $0x20] sm:$0xff]
    %v8259 = vld [vmem:[%s8253 + $0x28] sm:$0xff]
    %v8260 = vld [vmem:[%s8253 + $0x30] sm:$0xff]
    %v8261 = vld [vmem:[%s8253 + $0x38] sm:$0xff]
    %v8262 = vld [vmem:[%s8253 + $0x40] sm:$0xff]
    %v8263 = vld [vmem:[%s8253 + $0x48] sm:$0xff]
    %v8264 = vld [vmem:[%s8253 + $0x50] sm:$0xff]
    %v8265 = vld [vmem:[%s8253 + $0x58] sm:$0xff]
    %v8266 = vld [vmem:[%s8253 + $0x60] sm:$0xff]
    %v8267 = vld [vmem:[%s8253 + $0x68] sm:$0xff]
    %v8268 = vld [vmem:[%s8253 + $0x70] sm:$0xff]
    %v8269 = vld [vmem:[%s8253 + $0x78] sm:$0xff]
    %8270 = vmatprep.subr.mxu0 %v8255
    %8271 = vmatpush1.msra.mxu0 %v8254
    %8272 = vmatprep.subr.mxu0 %v8257
    %8273 = vmatpush1.msra.mxu0 %v8256
    %8274 = vmatprep.subr.mxu0 %v8259
    %8275 = vmatpush1.msra.mxu0 %v8258
    %8276 = vmatprep.subr.mxu0 %v8261
    %8277 = vmatpush1.msra.mxu0 %v8260
    %8278 = vmatprep.subr.mxu0 %v8263
    %8279 = vmatpush1.msra.mxu0 %v8262
    %8280 = vmatprep.subr.mxu0 %v8265
    %8281 = vmatpush1.msra.mxu0 %v8264
    %8282 = vmatprep.subr.mxu0 %v8267
    %8283 = vmatpush1.msra.mxu0 %v8266
    %8284 = vmatprep.subr.mxu0 %v8269
    %8285 = vmatpush1.msra.mxu0 %v8268
    %8286 = vmatprep.subr.mxu0 0.0
    %8287 = vmatpush1.msra.mxu0 0.0
    %8288 = vmatprep.subr.mxu0 0.0
    %8289 = vmatpush1.msra.mxu0 0.0
    %8290 = vmatprep.subr.mxu0 0.0
    %8291 = vmatpush1.msra.mxu0 0.0
    %8292 = vmatprep.subr.mxu0 0.0
    %8293 = vmatpush1.msra.mxu0 0.0
    %8294 = vmatprep.subr.mxu0 0.0
    %8295 = vmatpush1.msra.mxu0 0.0
    %8296 = vmatprep.subr.mxu0 0.0
    %8297 = vmatpush1.msra.mxu0 0.0
    %8298 = vmatprep.subr.mxu0 0.0
    %8299 = vmatpush1.msra.mxu0 0.0
    %8300 = vmatprep.subr.mxu0 0.0
    %8301 = vmatpush1.msra.mxu0 0.0
    %8302 = vmatprep.subr.mxu0 0.0
    %8303 = vmatpush1.msra.mxu0 0.0
    %8304 = vmatprep.subr.mxu0 0.0
    %8305 = vmatpush1.msra.mxu0 0.0
    %8306 = vmatprep.subr.mxu0 0.0
    %8307 = vmatpush1.msra.mxu0 0.0
    %8308 = vmatprep.subr.mxu0 0.0
    %8309 = vmatpush1.msra.mxu0 0.0
    %8310 = vmatprep.subr.mxu0 0.0
    %8311 = vmatpush1.msra.mxu0 0.0
    %8312 = vmatprep.subr.mxu0 0.0
    %8313 = vmatpush1.msra.mxu0 0.0
    %8314 = vmatprep.subr.mxu0 0.0
    %8315 = vmatpush1.msra.mxu0 0.0
    %8316 = vmatprep.subr.mxu0 0.0
    %8317 = vmatpush1.msra.mxu0 0.0
    %8318 = vmatprep.subr.mxu0 0.0
    %8319 = vmatpush1.msra.mxu0 0.0
    %8320 = vmatprep.subr.mxu0 0.0
    %8321 = vmatpush1.msra.mxu0 0.0
    %8322 = vmatprep.subr.mxu0 0.0
    %8323 = vmatpush1.msra.mxu0 0.0
    %8324 = vmatprep.subr.mxu0 0.0
    %8325 = vmatpush1.msra.mxu0 0.0
    %8326 = vmatprep.subr.mxu0 0.0
    %8327 = vmatpush1.msra.mxu0 0.0
    %8328 = vmatprep.subr.mxu0 0.0
    %8329 = vmatpush1.msra.mxu0 0.0
    %8330 = vmatprep.subr.mxu0 0.0
    %8331 = vmatpush1.msra.mxu0 0.0
    %8332 = vmatprep.subr.mxu0 0.0
    %8333 = vmatpush1.msra.mxu0 0.0
    %8334 = vmatprep.mubr.f32.mxu0 0.0
    %8335 = vmatmul.mubr.f32.gmra.mrb[0].mxu0 %v6887
    %v8336 = vpop.f32.mrb[0].mxu0
    %v8337 = vadd.f32 0.0, %v8336
    %v8338 = vpop.f32.mrb[0].mxu0
    %v8339 = vadd.f32 0.0, %v8338
    %8340 = vdwg.mxu0
    %v8341 = vadd.f32 %v8251, %v8337
    %v8342 = vadd.f32 %v8252, %v8339
    %v8343 = vld [vmem:[#allocation26] sm:$0x3]
    %v8345 = vlaneseq
    %v8346 = vshrl.u32 %v8345, 7
    %v8347 = vsub.s32 0, %v8346
    %v8348 = vrot.slane %v8343, %v8347
    %v8349 = vlaneseq
    %v8350 = vshrl.u32 %v8349, 7
    %v8351 = vsub.s32 1, %v8350
    %v8352 = vrot.slane %v8343, %v8351
    %v8355 = vadd.f32 %v8341, %v8348
    %v8356 = vadd.f32 %v8342, %v8352
    %v8357 = vmax.f32 %v8355, 0.0
    %v8358 = vmax.f32 %v8356, 0.0
    %v8361 = vrot.slane %v8357, 2
    %v8362 = vrot.slane %v8358, 2
    %v8365 = vmax.f32 %v8357, %v8361
    %v8366 = vmax.f32 %v8358, %v8362
    %s8367 = scalar_lea.vmem [#allocation27], 512
    %v8368 = vld [vmem:[%s8367] sm:$0xff]
    %v8369 = vld [vmem:[%s8367 + $0x8] sm:$0xff]
    %v8370 = vld [vmem:[%s8367 + $0x10] sm:$0xff]
    %v8371 = vld [vmem:[%s8367 + $0x18] sm:$0xff]
    %v8372 = vld [vmem:[%s8367 + $0x20] sm:$0xff]
    %v8373 = vld [vmem:[%s8367 + $0x28] sm:$0xff]
    %v8374 = vld [vmem:[%s8367 + $0x30] sm:$0xff]
    %v8375 = vld [vmem:[%s8367 + $0x38] sm:$0xff]
    %v8376 = vld [vmem:[%s8367 + $0x40] sm:$0xff]
    %v8377 = vld [vmem:[%s8367 + $0x48] sm:$0xff]
    %v8378 = vld [vmem:[%s8367 + $0x50] sm:$0xff]
    %v8379 = vld [vmem:[%s8367 + $0x58] sm:$0xff]
    %v8380 = vld [vmem:[%s8367 + $0x60] sm:$0xff]
    %v8381 = vld [vmem:[%s8367 + $0x68] sm:$0xff]
    %v8382 = vld [vmem:[%s8367 + $0x70] sm:$0xff]
    %v8383 = vld [vmem:[%s8367 + $0x78] sm:$0xff]
    %v8384 = vld [vmem:[%s8367 + $0x80] sm:$0xff]
    %v8385 = vld [vmem:[%s8367 + $0x88] sm:$0xff]
    %v8386 = vld [vmem:[%s8367 + $0x90] sm:$0xff]
    %v8387 = vld [vmem:[%s8367 + $0x98] sm:$0xff]
    %v8388 = vld [vmem:[%s8367 + $0xa0] sm:$0xff]
    %v8389 = vld [vmem:[%s8367 + $0xa8] sm:$0xff]
    %v8390 = vld [vmem:[%s8367 + $0xb0] sm:$0xff]
    %v8391 = vld [vmem:[%s8367 + $0xb8] sm:$0xff]
    %v8392 = vld [vmem:[%s8367 + $0xc0] sm:$0xff]
    %v8393 = vld [vmem:[%s8367 + $0xc8] sm:$0xff]
    %v8394 = vld [vmem:[%s8367 + $0xd0] sm:$0xff]
    %v8395 = vld [vmem:[%s8367 + $0xd8] sm:$0xff]
    %v8396 = vld [vmem:[%s8367 + $0xe0] sm:$0xff]
    %v8397 = vld [vmem:[%s8367 + $0xe8] sm:$0xff]
    %v8398 = vld [vmem:[%s8367 + $0xf0] sm:$0xff]
    %v8399 = vld [vmem:[%s8367 + $0xf8] sm:$0xff]
    %8400 = vmatprep.subr.mxu0 0.0
    %8401 = vmatpush1.msra.mxu0 %v8368
    %8402 = vmatprep.subr.mxu0 0.0
    %8403 = vmatpush1.msra.mxu0 %v8369
    %8404 = vmatprep.subr.mxu0 0.0
    %8405 = vmatpush1.msra.mxu0 %v8370
    %8406 = vmatprep.subr.mxu0 0.0
    %8407 = vmatpush1.msra.mxu0 %v8371
    %8408 = vmatprep.subr.mxu0 0.0
    %8409 = vmatpush1.msra.mxu0 %v8372
    %8410 = vmatprep.subr.mxu0 0.0
    %8411 = vmatpush1.msra.mxu0 %v8373
    %8412 = vmatprep.subr.mxu0 0.0
    %8413 = vmatpush1.msra.mxu0 %v8374
    %8414 = vmatprep.subr.mxu0 0.0
    %8415 = vmatpush1.msra.mxu0 %v8375
    %8416 = vmatprep.subr.mxu0 0.0
    %8417 = vmatpush1.msra.mxu0 %v8376
    %8418 = vmatprep.subr.mxu0 0.0
    %8419 = vmatpush1.msra.mxu0 %v8377
    %8420 = vmatprep.subr.mxu0 0.0
    %8421 = vmatpush1.msra.mxu0 %v8378
    %8422 = vmatprep.subr.mxu0 0.0
    %8423 = vmatpush1.msra.mxu0 %v8379
    %8424 = vmatprep.subr.mxu0 0.0
    %8425 = vmatpush1.msra.mxu0 %v8380
    %8426 = vmatprep.subr.mxu0 0.0
    %8427 = vmatpush1.msra.mxu0 %v8381
    %8428 = vmatprep.subr.mxu0 0.0
    %8429 = vmatpush1.msra.mxu0 %v8382
    %8430 = vmatprep.subr.mxu0 0.0
    %8431 = vmatpush1.msra.mxu0 %v8383
    %8432 = vmatprep.subr.mxu0 0.0
    %8433 = vmatpush1.msra.mxu0 %v8384
    %8434 = vmatprep.subr.mxu0 0.0
    %8435 = vmatpush1.msra.mxu0 %v8385
    %8436 = vmatprep.subr.mxu0 0.0
    %8437 = vmatpush1.msra.mxu0 %v8386
    %8438 = vmatprep.subr.mxu0 0.0
    %8439 = vmatpush1.msra.mxu0 %v8387
    %8440 = vmatprep.subr.mxu0 0.0
    %8441 = vmatpush1.msra.mxu0 %v8388
    %8442 = vmatprep.subr.mxu0 0.0
    %8443 = vmatpush1.msra.mxu0 %v8389
    %8444 = vmatprep.subr.mxu0 0.0
    %8445 = vmatpush1.msra.mxu0 %v8390
    %8446 = vmatprep.subr.mxu0 0.0
    %8447 = vmatpush1.msra.mxu0 %v8391
    %8448 = vmatprep.subr.mxu0 0.0
    %8449 = vmatpush1.msra.mxu0 %v8392
    %8450 = vmatprep.subr.mxu0 0.0
    %8451 = vmatpush1.msra.mxu0 %v8393
    %8452 = vmatprep.subr.mxu0 0.0
    %8453 = vmatpush1.msra.mxu0 %v8394
    %8454 = vmatprep.subr.mxu0 0.0
    %8455 = vmatpush1.msra.mxu0 %v8395
    %8456 = vmatprep.subr.mxu0 0.0
    %8457 = vmatpush1.msra.mxu0 %v8396
    %8458 = vmatprep.subr.mxu0 0.0
    %8459 = vmatpush1.msra.mxu0 %v8397
    %8460 = vmatprep.subr.mxu0 0.0
    %8461 = vmatpush1.msra.mxu0 %v8398
    %8462 = vmatprep.subr.mxu0 0.0
    %8463 = vmatpush1.msra.mxu0 %v8399
    %8464 = vmatprep.mubr.f32.mxu0 %v8366
    %8465 = vmatmul.mubr.f32.gmra.mrb[0].mxu0 %v8365
    %v8466 = vpop.f32.mrb[0].mxu0
    %v8467 = vadd.f32 0.0, %v8466
    %v8468 = vpop.f32.mrb[0].mxu0
    %8469 = vdwg.mxu0
    %v8470 = vadd.f32 %v7713, %v8467
    %v8471 = vmax.f32 %v8470, 0.0
    %v8472 = vld [vmem:[%s21] sm:$0xff]
    %v8473 = vld [vmem:[%s21 + $0x8] sm:$0xff]
    %v8474 = vld [vmem:[%s21 + $0x10] sm:$0xff]
    %v8475 = vld [vmem:[%s21 + $0x18] sm:$0xff]
    %v8476 = vld [vmem:[%s21 + $0x20] sm:$0xff]
    %v8477 = vld [vmem:[%s21 + $0x28] sm:$0xff]
    %v8478 = vld [vmem:[%s21 + $0x30] sm:$0xff]
    %v8479 = vld [vmem:[%s21 + $0x38] sm:$0xff]
    %v8480 = vld [vmem:[%s21 + $0x40] sm:$0xff]
    %v8481 = vld [vmem:[%s21 + $0x48] sm:$0xff]
    %v8482 = vld [vmem:[%s21 + $0x50] sm:$0xff]
    %v8483 = vld [vmem:[%s21 + $0x58] sm:$0xff]
    %v8484 = vld [vmem:[%s21 + $0x60] sm:$0xff]
    %v8485 = vld [vmem:[%s21 + $0x68] sm:$0xff]
    %v8486 = vld [vmem:[%s21 + $0x70] sm:$0xff]
    %v8487 = vld [vmem:[%s21 + $0x78] sm:$0xff]
    %v8488 = vld [vmem:[#allocation29] sm:$0x1]
    %v8490 = vlaneseq
    %v8491 = vshrl.u32 %v8490, 7
    %v8492 = vsub.s32 0, %v8491
    %v8493 = vrot.slane %v8488, %v8492
    %8495 = vmatprep.subr.mxu0 0.0
    %8496 = vmatpush1.msra.mxu0 %v8472
    %8497 = vmatprep.subr.mxu0 0.0
    %8498 = vmatpush1.msra.mxu0 %v8473
    %8499 = vmatprep.subr.mxu0 0.0
    %8500 = vmatpush1.msra.mxu0 %v8474
    %8501 = vmatprep.subr.mxu0 0.0
    %8502 = vmatpush1.msra.mxu0 %v8475
    %8503 = vmatprep.subr.mxu0 0.0
    %8504 = vmatpush1.msra.mxu0 %v8476
    %8505 = vmatprep.subr.mxu0 0.0
    %8506 = vmatpush1.msra.mxu0 %v8477
    %8507 = vmatprep.subr.mxu0 0.0
    %8508 = vmatpush1.msra.mxu0 %v8478
    %8509 = vmatprep.subr.mxu0 0.0
    %8510 = vmatpush1.msra.mxu0 %v8479
    %8511 = vmatprep.subr.mxu0 0.0
    %8512 = vmatpush1.msra.mxu0 %v8480
    %8513 = vmatprep.subr.mxu0 0.0
    %8514 = vmatpush1.msra.mxu0 %v8481
    %8515 = vmatprep.subr.mxu0 0.0
    %8516 = vmatpush1.msra.mxu0 %v8482
    %8517 = vmatprep.subr.mxu0 0.0
    %8518 = vmatpush1.msra.mxu0 %v8483
    %8519 = vmatprep.subr.mxu0 0.0
    %8520 = vmatpush1.msra.mxu0 %v8484
    %8521 = vmatprep.subr.mxu0 0.0
    %8522 = vmatpush1.msra.mxu0 %v8485
    %8523 = vmatprep.subr.mxu0 0.0
    %8524 = vmatpush1.msra.mxu0 %v8486
    %8525 = vmatprep.subr.mxu0 0.0
    %8526 = vmatpush1.msra.mxu0 %v8487
    %8527 = vmatprep.subr.mxu0 0.0
    %8528 = vmatpush1.msra.mxu0 0.0
    %8529 = vmatprep.subr.mxu0 0.0
    %8530 = vmatpush1.msra.mxu0 0.0
    %8531 = vmatprep.subr.mxu0 0.0
    %8532 = vmatpush1.msra.mxu0 0.0
    %8533 = vmatprep.subr.mxu0 0.0
    %8534 = vmatpush1.msra.mxu0 0.0
    %8535 = vmatprep.subr.mxu0 0.0
    %8536 = vmatpush1.msra.mxu0 0.0
    %8537 = vmatprep.subr.mxu0 0.0
    %8538 = vmatpush1.msra.mxu0 0.0
    %8539 = vmatprep.subr.mxu0 0.0
    %8540 = vmatpush1.msra.mxu0 0.0
    %8541 = vmatprep.subr.mxu0 0.0
    %8542 = vmatpush1.msra.mxu0 0.0
    %8543 = vmatprep.subr.mxu0 0.0
    %8544 = vmatpush1.msra.mxu0 0.0
    %8545 = vmatprep.subr.mxu0 0.0
    %8546 = vmatpush1.msra.mxu0 0.0
    %8547 = vmatprep.subr.mxu0 0.0
    %8548 = vmatpush1.msra.mxu0 0.0
    %8549 = vmatprep.subr.mxu0 0.0
    %8550 = vmatpush1.msra.mxu0 0.0
    %8551 = vmatprep.subr.mxu0 0.0
    %8552 = vmatpush1.msra.mxu0 0.0
    %8553 = vmatprep.subr.mxu0 0.0
    %8554 = vmatpush1.msra.mxu0 0.0
    %8555 = vmatprep.subr.mxu0 0.0
    %8556 = vmatpush1.msra.mxu0 0.0
    %8557 = vmatprep.subr.mxu0 0.0
    %8558 = vmatpush1.msra.mxu0 0.0
    %8559 = vmatprep.mubr.f32.mxu0 0.0
    %8560 = vmatmul.mubr.f32.gmra.mrb[0].mxu0 %v8471
    %v8561 = vpop.f32.mrb[0].mxu0
    %v8562 = vadd.f32 %v8493, %v8561
    %v8563 = vpop.f32.mrb[0].mxu0
    %8564 = vdwg.mxu0
    %vm8565 = vcmask 58368
    %8566 = vst.msk [vmem:[#allocation30] sm:$0x3] %vm8565, %v8562
    // Predicated region
    $region162: #{mjnet_forward.1} parent=1 // pred_check
      _
    $region163: #{mjnet_forward.1} parent=1 // pred_check_branch
      %8568 = sbr.rel (0) target = $region165
    $region164: #{mjnet_forward.1} parent=1 // pred_region
      %s8570 = ssub.s32 32, 32
      %8571 = vsyncadd [#allocation5], %s8570
      %s8573 = sshll.u32 [#allocation30], 4
      %s8574 = int_to_ptr.vmem [resolvable:$true] %s8573
      %8576 = dma.vmem_to_hbm [thread:$0]  %s8574, 32, %s23, [#allocation5]
    $region165: #{mjnet_forward.1} parent=1 // pred_fallthru
      _
    // Predicated region
    $region166: #{mjnet_forward.1} parent=1 // pred_check
      _
    $region167: #{mjnet_forward.1} parent=1 // pred_check_branch
      %8578 = sbr.rel (0) target = $region169
    $region168: #{mjnet_forward.1} parent=1 // pred_region
      %8579 = dma.done [#allocation5], 32
    $region169: #{mjnet_forward.1} parent=1 // pred_fallthru
      _
    %8580 = vsyncpa [#allocation4], 1
    %8581 = vsyncpa [#allocation7], 1
    %8582 = vsyncpa [#allocation10], 1
    %8583 = vsyncpa [#allocation13], 1
    %8584 = vsyncpa [#allocation16], 1
    %8585 = vsyncpa [#allocation19], 1
    %8586 = vsyncpa [#allocation22], 1
    %8587 = vsyncpa [#allocation25], 1
    %8588 = vsyncpa [#allocation28], 1
    %8589 = vsyncpa [#allocation5], 1

</llo_original>
